<compile_context>
chip_gen: v5e
topology: v5e:2x2
jax: 0.10.0
libtpu: 0.0.40
codegen_flags: <defaults>
</compile_context>

<pallas_src>
import jax
import jax.numpy as jnp
from jax.experimental import pallas as pl
from jax.experimental.pallas import tpu as pltpu

CPAD = 128   # lane width: every channel dimension is zero-padded to 128 lanes.
LPAD = 8     # column offset of real data inside the f32 pad scratch (aligned interior stores).

_COMPILER_PARAMS = pltpu.CompilerParams(
    dimension_semantics=("parallel",),
    vmem_limit_bytes=32 * 1024 * 1024,
)


def _const_spec(shape):
    """Whole-array block whose index never changes -> stays VMEM-resident across grid steps."""
    zeros = (0,) * len(shape)
    return pl.BlockSpec(shape, lambda i: zeros)


# ----------------------------- in-kernel helpers ------------------------------

def _store_padded(pad_ref, y, ho, wo):
    """Write y (ho*wo, CPAD) f32 into the pad scratch interior; border stays zero."""
    pad_ref[...] = jnp.zeros_like(pad_ref)
    pad_ref[1:1 + ho, LPAD:LPAD + wo, :] = y.reshape(ho, wo, CPAD)


def _conv3x3_from_pad(pad_ref, ho, wo, w_ref, acc=None):
    """3x3 stride-1 conv; taps read static windows of the f32 pad scratch, f32 accumulation."""
    m = ho * wo
    for dy in range(3):
        for dx in range(3):
            c0 = LPAD - 1 + dx
            xt = pad_ref[dy:dy + ho, c0:c0 + wo, :].reshape(m, CPAD).astype(jnp.bfloat16)
            part = jnp.dot(xt, w_ref[dy * 3 + dx], preferred_element_type=jnp.float32)
            acc = part if acc is None else acc + part
    return acc


def _conv_s2_from_planes(q_ref, ho, wo, w_ref):
    """3x3 stride-2 conv from the 4 parity planes of the padded input (unit-stride slices only).

    q_ref: (4, Hq, Wq, CPAD) with plane(p, q)[r, s] == x_padded[2r + p, 2s + q].
    Output (i, j) of tap (dy, dx) reads plane(dy%2, dx%2)[i + dy//2, j + dx//2].
    """
    m = ho * wo
    acc = None
    for dy in range(3):
        for dx in range(3):
            k = (dy % 2) * 2 + (dx % 2)
            i0, j0 = dy // 2, dx // 2
            xt = q_ref[k:k + 1, i0:i0 + ho, j0:j0 + wo, :].reshape(m, CPAD)
            part = jnp.dot(xt, w_ref[dy * 3 + dx], preferred_element_type=jnp.float32)
            acc = part if acc is None else acc + part
    return acc


def _affine_relu(acc, s_ref, b_ref):
    return jnp.maximum(acc * s_ref[...] + b_ref[...], 0.0)


# ----------------------------- Pallas kernels ------------------------------

def _block1_kernel(x_ref, stem_w_ref, c1_w_ref, c2_w_ref, sc_w_ref,
                   s1_ref, b1_ref, s2_ref, b2_ref, s3_ref, b3_ref,
                   o_ref, padA_ref, padB_ref):
    """stem conv + WRN block1 (stride 1) + block2 pre-activation BN/ReLU, all per sample."""
    _, ho, wo, _ = o_ref.shape
    m = ho * wo

    # stem conv (input ref is spatially pre-padded bf16) + block1 BN1/ReLU
    acc = None
    for dy in range(3):
        for dx in range(3):
            xt = x_ref[0:1, dy:dy + ho, dx:dx + wo, :].reshape(m, CPAD)
            part = jnp.dot(xt, stem_w_ref[dy * 3 + dx], preferred_element_type=jnp.float32)
            acc = part if acc is None else acc + part
    o1 = _affine_relu(acc, s1_ref, b1_ref)            # (m, CPAD) f32
    o1_bf = o1.astype(jnp.bfloat16)                   # kept for the 1x1 shortcut
    _store_padded(padA_ref, o1, ho, wo)

    # block1 conv1 + BN2/ReLU
    a1 = _affine_relu(_conv3x3_from_pad(padA_ref, ho, wo, c1_w_ref), s2_ref, b2_ref)
    _store_padded(padB_ref, a1, ho, wo)

    # block1 conv2 + 1x1 shortcut + block2 BN1/ReLU
    acc = jnp.dot(o1_bf, sc_w_ref[...], preferred_element_type=jnp.float32)
    acc = _conv3x3_from_pad(padB_ref, ho, wo, c2_w_ref, acc)
    o2 = _affine_relu(acc, s3_ref, b3_ref)
    o_ref[...] = o2.reshape(1, ho, wo, CPAD).astype(o_ref.dtype)


def _block2_kernel(q_ref, c1_w_ref, c2_w_ref, sc_w_ref,
                   s_a_ref, b_a_ref, s_o_ref, b_o_ref,
                   o_ref, pad_ref):
    """WRN block with stride-2 first conv (input = 4 parity planes) + next-stage BN/ReLU."""
    _, ho, wo, _ = o_ref.shape
    m = ho * wo

    # conv1 (stride 2) + BN2/ReLU
    a = _affine_relu(_conv_s2_from_planes(q_ref, ho, wo, c1_w_ref), s_a_ref, b_a_ref)
    _store_padded(pad_ref, a, ho, wo)

    # conv2 (stride 1) + 1x1 stride-2 shortcut (== parity plane (1,1)) + next BN/ReLU
    sc_in = q_ref[3:4, 0:ho, 0:wo, :].reshape(m, CPAD)
    acc = jnp.dot(sc_in, sc_w_ref[...], preferred_element_type=jnp.float32)
    acc = _conv3x3_from_pad(pad_ref, ho, wo, c2_w_ref, acc)
    o = _affine_relu(acc, s_o_ref, b_o_ref)
    o_ref[...] = o.reshape(1, ho, wo, CPAD).astype(o_ref.dtype)


def _block3_kernel(q_ref, c1_w_ref, c2_w_ref, sc_w_ref,
                   s_a_ref, b_a_ref, s_f_ref, b_f_ref, hw_ref, hb_ref,
                   feats_ref, logits_ref, pad_ref):
    """Last WRN block + final BN/ReLU + global-avg-pool + combined (classifier ++ rotation) head."""
    _, hq, wq, _ = q_ref.shape
    ho, wo = hq - 1, wq - 1
    m = ho * wo

    a = _affine_relu(_conv_s2_from_planes(q_ref, ho, wo, c1_w_ref), s_a_ref, b_a_ref)
    _store_padded(pad_ref, a, ho, wo)

    sc_in = q_ref[3:4, 0:ho, 0:wo, :].reshape(m, CPAD)
    acc = jnp.dot(sc_in, sc_w_ref[...], preferred_element_type=jnp.float32)
    acc = _conv3x3_from_pad(pad_ref, ho, wo, c2_w_ref, acc)
    f = _affine_relu(acc, s_f_ref, b_f_ref)                     # (m, CPAD) f32

    feats = jnp.sum(f, axis=0, keepdims=True) * (1.0 / m)       # (1, CPAD) global avg pool
    feats_ref[...] = feats.reshape(1, 1, CPAD)
    logits = jnp.dot(feats.astype(jnp.bfloat16), hw_ref[...],
                     preferred_element_type=jnp.float32) + hb_ref[...]
    logits_ref[...] = logits.reshape(1, 1, CPAD)


# ------------------------------ pallas_call wrappers ------------------------------

def run_block1(xpad, stem_w, c1_w, c2_w, sc_w, s1, b1, s2, b2, s3, b3):
    N, Hp, Wp, C = xpad.shape
    H, W = Hp - 2, Wp - 2
    consts = (stem_w, c1_w, c2_w, sc_w, s1, b1, s2, b2, s3, b3)
    return pl.pallas_call(
        _block1_kernel,
        out_shape=jax.ShapeDtypeStruct((N, H, W, C), jnp.bfloat16),
        grid=(N,),
        in_specs=[pl.BlockSpec((1, Hp, Wp, C), lambda i: (i, 0, 0, 0))]
                 + [_const_spec(a.shape) for a in consts],
        out_specs=pl.BlockSpec((1, H, W, C), lambda i: (i, 0, 0, 0)),
        scratch_shapes=[pltpu.VMEM((H + 2, W + LPAD + 1, C), jnp.float32),
                        pltpu.VMEM((H + 2, W + LPAD + 1, C), jnp.float32)],
        compiler_params=_COMPILER_PARAMS,
    )(xpad, *consts)


def run_block2(q, c1_w, c2_w, sc_w, s_a, b_a, s_o, b_o):
    N4, Hq, Wq, C = q.shape
    N = N4 // 4
    Ho, Wo = Hq - 1, Wq - 1
    consts = (c1_w, c2_w, sc_w, s_a, b_a, s_o, b_o)
    return pl.pallas_call(
        _block2_kernel,
        out_shape=jax.ShapeDtypeStruct((N, Ho, Wo, C), jnp.bfloat16),
        grid=(N,),
        in_specs=[pl.BlockSpec((4, Hq, Wq, C), lambda i: (i, 0, 0, 0))]
                 + [_const_spec(a.shape) for a in consts],
        out_specs=pl.BlockSpec((1, Ho, Wo, C), lambda i: (i, 0, 0, 0)),
        scratch_shapes=[pltpu.VMEM((Ho + 2, Wo + LPAD + 1, C), jnp.float32)],
        compiler_params=_COMPILER_PARAMS,
    )(q, *consts)


def run_block3(q, c1_w, c2_w, sc_w, s_a, b_a, s_f, b_f, head_w, head_b):
    N4, Hq, Wq, C = q.shape
    N = N4 // 4
    Ho, Wo = Hq - 1, Wq - 1
    consts = (c1_w, c2_w, sc_w, s_a, b_a, s_f, b_f, head_w, head_b)
    return pl.pallas_call(
        _block3_kernel,
        out_shape=(jax.ShapeDtypeStruct((N, 1, C), jnp.float32),
                   jax.ShapeDtypeStruct((N, 1, C), jnp.float32)),
        grid=(N,),
        in_specs=[pl.BlockSpec((4, Hq, Wq, C), lambda i: (i, 0, 0, 0))]
                 + [_const_spec(a.shape) for a in consts],
        out_specs=(pl.BlockSpec((1, 1, C), lambda i: (i, 0, 0)),
                   pl.BlockSpec((1, 1, C), lambda i: (i, 0, 0))),
        scratch_shapes=[pltpu.VMEM((Ho + 2, Wo + LPAD + 1, C), jnp.float32)],
        compiler_params=_COMPILER_PARAMS,
    )(q, *consts)


# ------------------------------ JAX-side glue ------------------------------

def _parity_stack(o):
    """(N, H, W, C) -> (N*4, H/2+1, W/2+1, C) parity planes of the spatially padded activation."""
    # TODO(synk): spatial pad + stride-2 parity split between stages remains thin XLA glue.
    N, H, W, C = o.shape
    op = jnp.pad(o, ((0, 0), (1, 1), (1, 1), (0, 0)))
    planes = [op[:, p::2, q::2, :] for p in (0, 1) for q in (0, 1)]
    return jnp.stack(planes, axis=1).reshape(N * 4, (H + 2) // 2, (W + 2) // 2, C)


# ------------------------------ parameters ---------------------------------

def _pad_vec(v):
    out = jnp.zeros((1, CPAD), jnp.float32)
    return out.at[0, :v.shape[0]].set(v.astype(jnp.float32))


def _pad_mat(w, cin, cout):
    out = jnp.zeros((CPAD, CPAD), jnp.float32)
    return out.at[:cin, :cout].set(w).astype(jnp.bfloat16)


def _pad_taps(w, cin, cout):
    out = jnp.zeros((w.shape[0], CPAD, CPAD), jnp.float32)
    return out.at[:, :cin, :cout].set(w).astype(jnp.bfloat16)


def init_params(key, in_channels=3, num_classes=10, widen=2, with_rotation_head=True):
    widths = [16, 16 * widen, 32 * widen, 64 * widen]   # 16, 32, 64, 128
    assert widths[3] <= CPAD and in_channels <= CPAD
    keys = iter(jax.random.split(key, 32))

    def conv_taps(cin, cout, k):
        std = (2.0 / (k * k * cin)) ** 0.5
        w = std * jax.random.normal(next(keys), (k * k, cin, cout), jnp.float32)
        return _pad_taps(w, cin, cout)

    def conv_1x1(cin, cout):
        std = (2.0 / cin) ** 0.5
        w = std * jax.random.normal(next(keys), (cin, cout), jnp.float32)
        return _pad_mat(w, cin, cout)

    def fold_bn(c):
        k1, k2, k3, k4 = jax.random.split(next(keys), 4)
        gamma = 1.0 + 0.1 * jax.random.normal(k1, (c,), jnp.float32)
        beta = 0.1 * jax.random.normal(k2, (c,), jnp.float32)
        mean = 0.1 * jax.random.normal(k3, (c,), jnp.float32)
        var = 1.0 + 0.05 * jnp.abs(jax.random.normal(k4, (c,), jnp.float32))
        scale = gamma / jnp.sqrt(var + 1e-5)
        shift = beta - mean * scale
        return _pad_vec(scale), _pad_vec(shift)

    params = {
        "with_rotation_head": with_rotation_head,
        "in_channels": in_channels,
        "num_classes": num_classes,
        "out_features": widths[3],
    }
    params["stem_w"] = conv_taps(in_channels, widths[0], 3)

    def make_block(cin, cout):
        b = {}
        b["bn1_scale"], b["bn1_shift"] = fold_bn(cin)
        b["conv1_w"] = conv_taps(cin, cout, 3)
        b["bn2_scale"], b["bn2_shift"] = fold_bn(cout)
        b["conv2_w"] = conv_taps(cout, cout, 3)
        b["sc_w"] = conv_1x1(cin, cout)
        return b

    params["block1"] = make_block(widths[0], widths[1])
    params["block2"] = make_block(widths[1], widths[2])
    params["block3"] = make_block(widths[2], widths[3])
    params["bnf_scale"], params["bnf_shift"] = fold_bn(widths[3])

    # Combined (classifier ++ rotation) head: one lane-dense CPAD-wide matmul.
    out_features = widths[3]
    std = out_features ** -0.5
    cls_w = std * jax.random.normal(next(keys), (out_features, num_classes), jnp.float32)
    rot_w = std * jax.random.normal(next(keys), (out_features, 4), jnp.float32)
    head_w = jnp.zeros((CPAD, CPAD), jnp.float32)
    head_w = head_w.at[:out_features, :num_classes].set(cls_w)
    head_w = head_w.at[:out_features, num_classes:num_classes + 4].set(rot_w)
    params["head_w"] = head_w.astype(jnp.bfloat16)
    params["head_b"] = jnp.zeros((1, CPAD), jnp.float32)   # Linear biases init to zero
    return params


# -------------------------------- forward ----------------------------------

def semi_model_forward(params, x_nchw, is_train=True, rotation=False,
                       classification_mode=None, return_features=False):
    N, Cin, H, W = x_nchw.shape
    assert H % 4 == 0 and W % 4 == 0, "two stride-2 stages require spatial dims % 4 == 0"

    # NCHW -> NHWC, spatial pad by 1, zero-pad channels to CPAD lanes, cast bf16 for the MXU.
    x = jnp.transpose(x_nchw, (0, 2, 3, 1)).astype(jnp.float32)
    x = jnp.pad(x, ((0, 0), (1, 1), (1, 1), (0, CPAD - Cin))).astype(jnp.bfloat16)

    b1, b2, b3 = params["block1"], params["block2"], params["block3"]

    # K1: stem conv + block1 + block2 pre-act BN/ReLU          -> o2 (N, H, W, 128)
    o2 = run_block1(x, params["stem_w"], b1["conv1_w"], b1["conv2_w"], b1["sc_w"],
                    b1["bn1_scale"], b1["bn1_shift"], b1["bn2_scale"], b1["bn2_shift"],
                    b2["bn1_scale"], b2["bn1_shift"])

    # K2: block2 (stride 2) + block3 pre-act BN/ReLU           -> o3 (N, H/2, W/2, 128)
    o3 = run_block2(_parity_stack(o2), b2["conv1_w"], b2["conv2_w"], b2["sc_w"],
                    b2["bn2_scale"], b2["bn2_shift"], b3["bn1_scale"], b3["bn1_shift"])

    # K3: block3 (stride 2) + final BN/ReLU + pool + heads
    feats_pad, logits_pad = run_block3(_parity_stack(o3), b3["conv1_w"], b3["conv2_w"],
                                       b3["sc_w"], b3["bn2_scale"], b3["bn2_shift"],
                                       params["bnf_scale"], params["bnf_shift"],
                                       params["head_w"], params["head_b"])

    out_features = params["out_features"]
    nc = params["num_classes"]
    feats = feats_pad.reshape(N, CPAD)[:, :out_features]
    logits_pad = logits_pad.reshape(N, CPAD)

    if return_features:
        return feats
    if (not is_train) or (not params["with_rotation_head"]):
        return logits_pad[:, :nc]
    if classification_mode is not None:
        assert classification_mode in ["linear", "rotation"]
    else:
        classification_mode = "linear"
    if classification_mode == "linear":
        return logits_pad[:, :nc]
    if classification_mode == "rotation":
        return logits_pad[:, nc:nc + 4]


# ----------------------------------- main -----------------------------------

if __name__ == "__main__":
    key = jax.random.PRNGKey(0)
    k_param, k_data = jax.random.split(key)
    params = init_params(k_param, in_channels=3, num_classes=10, widen=2,
                         with_rotation_head=True)

    x = jax.random.normal(k_data, (2, 3, 16, 16), jnp.float32)  # NCHW input

    logits = semi_model_forward(params, x, is_train=True, classification_mode="linear")
    rot = semi_model_forward(params, x, is_train=True, classification_mode="rotation")
    feats = semi_model_forward(params, x, return_features=True)

    jax.block_until_ready(logits)
    jax.block_until_ready(rot)
    jax.block_until_ready(feats)

    assert logits.shape == (2, 10), logits.shape
    assert rot.shape == (2, 4), rot.shape
    assert feats.shape == (2, params["out_features"]), feats.shape
    assert bool(jnp.all(jnp.isfinite(logits))) and bool(jnp.all(jnp.isfinite(rot)))
    assert bool(jnp.all(jnp.isfinite(feats)))

    print("KERNEL_OK")
</pallas_src>

<mosaic_0001>
module attributes {stable_mosaic.version = 11 : i64} {
  func.func @_block1_kernel(%arg0: i32, %arg1: memref<1x18x18x128xbf16, #tpu.memory_space<vmem>>, %arg2: memref<9x128x128xbf16, #tpu.memory_space<vmem>>, %arg3: memref<9x128x128xbf16, #tpu.memory_space<vmem>>, %arg4: memref<9x128x128xbf16, #tpu.memory_space<vmem>>, %arg5: memref<128x128xbf16, #tpu.memory_space<vmem>>, %arg6: memref<1x128xf32, #tpu.memory_space<vmem>>, %arg7: memref<1x128xf32, #tpu.memory_space<vmem>>, %arg8: memref<1x128xf32, #tpu.memory_space<vmem>>, %arg9: memref<1x128xf32, #tpu.memory_space<vmem>>, %arg10: memref<1x128xf32, #tpu.memory_space<vmem>>, %arg11: memref<1x128xf32, #tpu.memory_space<vmem>>, %arg12: memref<1x16x16x128xbf16, #tpu.memory_space<vmem>>, %arg13: memref<18x25x128xf32, #tpu.memory_space<vmem>>, %arg14: memref<18x25x128xf32, #tpu.memory_space<vmem>>) attributes {dimension_semantics = [#tpu.dimension_semantics<parallel>], iteration_bounds = array<i64: 2>, scalar_prefetch = 0 : i64, scratch_operands = 2 : i64, tpu.core_type = #tpu.core_type<tc>, window_params = [{transform_indices = @transform_0, window_bounds = array<i64: 1, 18, 18, 128>}, {pipeline_mode = #tpu.pipeline_mode<synchronous>, transform_indices = @transform_1, window_bounds = array<i64: 9, 128, 128>}, {pipeline_mode = #tpu.pipeline_mode<synchronous>, transform_indices = @transform_2, window_bounds = array<i64: 9, 128, 128>}, {pipeline_mode = #tpu.pipeline_mode<synchronous>, transform_indices = @transform_3, window_bounds = array<i64: 9, 128, 128>}, {pipeline_mode = #tpu.pipeline_mode<synchronous>, transform_indices = @transform_4, window_bounds = array<i64: 128, 128>}, {pipeline_mode = #tpu.pipeline_mode<synchronous>, transform_indices = @transform_5, window_bounds = array<i64: 1, 128>}, {pipeline_mode = #tpu.pipeline_mode<synchronous>, transform_indices = @transform_6, window_bounds = array<i64: 1, 128>}, {pipeline_mode = #tpu.pipeline_mode<synchronous>, transform_indices = @transform_7, window_bounds = array<i64: 1, 128>}, {pipeline_mode = #tpu.pipeline_mode<synchronous>, transform_indices = @transform_8, window_bounds = array<i64: 1, 128>}, {pipeline_mode = #tpu.pipeline_mode<synchronous>, transform_indices = @transform_9, window_bounds = array<i64: 1, 128>}, {pipeline_mode = #tpu.pipeline_mode<synchronous>, transform_indices = @transform_10, window_bounds = array<i64: 1, 128>}, {transform_indices = @transform_11, window_bounds = array<i64: 1, 16, 16, 128>}]} {
    %c0 = arith.constant 0 : index
    %c0_0 = arith.constant 0 : index
    %c0_1 = arith.constant 0 : index
    %c0_2 = arith.constant 0 : index
    %0 = vector.load %arg1[%c0, %c0_0, %c0_1, %c0_2] : memref<1x18x18x128xbf16, #tpu.memory_space<vmem>>, vector<1x16x16x128xbf16>
    %1 = vector.shape_cast %0 : vector<1x16x16x128xbf16> to vector<256x128xbf16>
    %c0_3 = arith.constant 0 : index
    %c0_4 = arith.constant 0 : index
    %c0_5 = arith.constant 0 : index
    %2 = vector.load %arg2[%c0_3, %c0_4, %c0_5] : memref<9x128x128xbf16, #tpu.memory_space<vmem>>, vector<1x128x128xbf16>
    %3 = vector.shape_cast %2 : vector<1x128x128xbf16> to vector<128x128xbf16>
    %cst = arith.constant dense<0.000000e+00> : vector<256x128xf32>
    %4 = tpu.matmul %1, %3, %cst {dimension_numbers = #tpu.dot_dimension_numbers<[1], [0], [0], [1], [0, 0, 1, 1], [], []>} : vector<256x128xbf16>, vector<128x128xbf16>, vector<256x128xf32> -> vector<256x128xf32>
    %c0_6 = arith.constant 0 : index
    %c0_7 = arith.constant 0 : index
    %c1 = arith.constant 1 : index
    %c0_8 = arith.constant 0 : index
    %5 = vector.load %arg1[%c0_6, %c0_7, %c1, %c0_8] : memref<1x18x18x128xbf16, #tpu.memory_space<vmem>>, vector<1x16x16x128xbf16>
    %6 = vector.shape_cast %5 : vector<1x16x16x128xbf16> to vector<256x128xbf16>
    %c1_9 = arith.constant 1 : index
    %c0_10 = arith.constant 0 : index
    %c0_11 = arith.constant 0 : index
    %7 = vector.load %arg2[%c1_9, %c0_10, %c0_11] : memref<9x128x128xbf16, #tpu.memory_space<vmem>>, vector<1x128x128xbf16>
    %8 = vector.shape_cast %7 : vector<1x128x128xbf16> to vector<128x128xbf16>
    %cst_12 = arith.constant dense<0.000000e+00> : vector<256x128xf32>
    %9 = tpu.matmul %6, %8, %cst_12 {dimension_numbers = #tpu.dot_dimension_numbers<[1], [0], [0], [1], [0, 0, 1, 1], [], []>} : vector<256x128xbf16>, vector<128x128xbf16>, vector<256x128xf32> -> vector<256x128xf32>
    %10 = arith.addf %4, %9 : vector<256x128xf32>
    %c0_13 = arith.constant 0 : index
    %c0_14 = arith.constant 0 : index
    %c2 = arith.constant 2 : index
    %c0_15 = arith.constant 0 : index
    %11 = vector.load %arg1[%c0_13, %c0_14, %c2, %c0_15] : memref<1x18x18x128xbf16, #tpu.memory_space<vmem>>, vector<1x16x16x128xbf16>
    %12 = vector.shape_cast %11 : vector<1x16x16x128xbf16> to vector<256x128xbf16>
    %c2_16 = arith.constant 2 : index
    %c0_17 = arith.constant 0 : index
    %c0_18 = arith.constant 0 : index
    %13 = vector.load %arg2[%c2_16, %c0_17, %c0_18] : memref<9x128x128xbf16, #tpu.memory_space<vmem>>, vector<1x128x128xbf16>
    %14 = vector.shape_cast %13 : vector<1x128x128xbf16> to vector<128x128xbf16>
    %cst_19 = arith.constant dense<0.000000e+00> : vector<256x128xf32>
    %15 = tpu.matmul %12, %14, %cst_19 {dimension_numbers = #tpu.dot_dimension_numbers<[1], [0], [0], [1], [0, 0, 1, 1], [], []>} : vector<256x128xbf16>, vector<128x128xbf16>, vector<256x128xf32> -> vector<256x128xf32>
    %16 = arith.addf %10, %15 : vector<256x128xf32>
    %c0_20 = arith.constant 0 : index
    %c1_21 = arith.constant 1 : index
    %c0_22 = arith.constant 0 : index
    %c0_23 = arith.constant 0 : index
    %17 = vector.load %arg1[%c0_20, %c1_21, %c0_22, %c0_23] : memref<1x18x18x128xbf16, #tpu.memory_space<vmem>>, vector<1x16x16x128xbf16>
    %18 = vector.shape_cast %17 : vector<1x16x16x128xbf16> to vector<256x128xbf16>
    %c3 = arith.constant 3 : index
    %c0_24 = arith.constant 0 : index
    %c0_25 = arith.constant 0 : index
    %19 = vector.load %arg2[%c3, %c0_24, %c0_25] : memref<9x128x128xbf16, #tpu.memory_space<vmem>>, vector<1x128x128xbf16>
    %20 = vector.shape_cast %19 : vector<1x128x128xbf16> to vector<128x128xbf16>
    %cst_26 = arith.constant dense<0.000000e+00> : vector<256x128xf32>
    %21 = tpu.matmul %18, %20, %cst_26 {dimension_numbers = #tpu.dot_dimension_numbers<[1], [0], [0], [1], [0, 0, 1, 1], [], []>} : vector<256x128xbf16>, vector<128x128xbf16>, vector<256x128xf32> -> vector<256x128xf32>
    %22 = arith.addf %16, %21 : vector<256x128xf32>
    %c0_27 = arith.constant 0 : index
    %c1_28 = arith.constant 1 : index
    %c1_29 = arith.constant 1 : index
    %c0_30 = arith.constant 0 : index
    %23 = vector.load %arg1[%c0_27, %c1_28, %c1_29, %c0_30] : memref<1x18x18x128xbf16, #tpu.memory_space<vmem>>, vector<1x16x16x128xbf16>
    %24 = vector.shape_cast %23 : vector<1x16x16x128xbf16> to vector<256x128xbf16>
    %c4 = arith.constant 4 : index
    %c0_31 = arith.constant 0 : index
    %c0_32 = arith.constant 0 : index
    %25 = vector.load %arg2[%c4, %c0_31, %c0_32] : memref<9x128x128xbf16, #tpu.memory_space<vmem>>, vector<1x128x128xbf16>
    %26 = vector.shape_cast %25 : vector<1x128x128xbf16> to vector<128x128xbf16>
    %cst_33 = arith.constant dense<0.000000e+00> : vector<256x128xf32>
    %27 = tpu.matmul %24, %26, %cst_33 {dimension_numbers = #tpu.dot_dimension_numbers<[1], [0], [0], [1], [0, 0, 1, 1], [], []>} : vector<256x128xbf16>, vector<128x128xbf16>, vector<256x128xf32> -> vector<256x128xf32>
    %28 = arith.addf %22, %27 : vector<256x128xf32>
    %c0_34 = arith.constant 0 : index
    %c1_35 = arith.constant 1 : index
    %c2_36 = arith.constant 2 : index
    %c0_37 = arith.constant 0 : index
    %29 = vector.load %arg1[%c0_34, %c1_35, %c2_36, %c0_37] : memref<1x18x18x128xbf16, #tpu.memory_space<vmem>>, vector<1x16x16x128xbf16>
    %30 = vector.shape_cast %29 : vector<1x16x16x128xbf16> to vector<256x128xbf16>
    %c5 = arith.constant 5 : index
    %c0_38 = arith.constant 0 : index
    %c0_39 = arith.constant 0 : index
    %31 = vector.load %arg2[%c5, %c0_38, %c0_39] : memref<9x128x128xbf16, #tpu.memory_space<vmem>>, vector<1x128x128xbf16>
    %32 = vector.shape_cast %31 : vector<1x128x128xbf16> to vector<128x128xbf16>
    %cst_40 = arith.constant dense<0.000000e+00> : vector<256x128xf32>
    %33 = tpu.matmul %30, %32, %cst_40 {dimension_numbers = #tpu.dot_dimension_numbers<[1], [0], [0], [1], [0, 0, 1, 1], [], []>} : vector<256x128xbf16>, vector<128x128xbf16>, vector<256x128xf32> -> vector<256x128xf32>
    %34 = arith.addf %28, %33 : vector<256x128xf32>
    %c0_41 = arith.constant 0 : index
    %c2_42 = arith.constant 2 : index
    %c0_43 = arith.constant 0 : index
    %c0_44 = arith.constant 0 : index
    %35 = vector.load %arg1[%c0_41, %c2_42, %c0_43, %c0_44] : memref<1x18x18x128xbf16, #tpu.memory_space<vmem>>, vector<1x16x16x128xbf16>
    %36 = vector.shape_cast %35 : vector<1x16x16x128xbf16> to vector<256x128xbf16>
    %c6 = arith.constant 6 : index
    %c0_45 = arith.constant 0 : index
    %c0_46 = arith.constant 0 : index
    %37 = vector.load %arg2[%c6, %c0_45, %c0_46] : memref<9x128x128xbf16, #tpu.memory_space<vmem>>, vector<1x128x128xbf16>
    %38 = vector.shape_cast %37 : vector<1x128x128xbf16> to vector<128x128xbf16>
    %cst_47 = arith.constant dense<0.000000e+00> : vector<256x128xf32>
    %39 = tpu.matmul %36, %38, %cst_47 {dimension_numbers = #tpu.dot_dimension_numbers<[1], [0], [0], [1], [0, 0, 1, 1], [], []>} : vector<256x128xbf16>, vector<128x128xbf16>, vector<256x128xf32> -> vector<256x128xf32>
    %40 = arith.addf %34, %39 : vector<256x128xf32>
    %c0_48 = arith.constant 0 : index
    %c2_49 = arith.constant 2 : index
    %c1_50 = arith.constant 1 : index
    %c0_51 = arith.constant 0 : index
    %41 = vector.load %arg1[%c0_48, %c2_49, %c1_50, %c0_51] : memref<1x18x18x128xbf16, #tpu.memory_space<vmem>>, vector<1x16x16x128xbf16>
    %42 = vector.shape_cast %41 : vector<1x16x16x128xbf16> to vector<256x128xbf16>
    %c7 = arith.constant 7 : index
    %c0_52 = arith.constant 0 : index
    %c0_53 = arith.constant 0 : index
    %43 = vector.load %arg2[%c7, %c0_52, %c0_53] : memref<9x128x128xbf16, #tpu.memory_space<vmem>>, vector<1x128x128xbf16>
    %44 = vector.shape_cast %43 : vector<1x128x128xbf16> to vector<128x128xbf16>
    %cst_54 = arith.constant dense<0.000000e+00> : vector<256x128xf32>
    %45 = tpu.matmul %42, %44, %cst_54 {dimension_numbers = #tpu.dot_dimension_numbers<[1], [0], [0], [1], [0, 0, 1, 1], [], []>} : vector<256x128xbf16>, vector<128x128xbf16>, vector<256x128xf32> -> vector<256x128xf32>
    %46 = arith.addf %40, %45 : vector<256x128xf32>
    %c0_55 = arith.constant 0 : index
    %c2_56 = arith.constant 2 : index
    %c2_57 = arith.constant 2 : index
    %c0_58 = arith.constant 0 : index
    %47 = vector.load %arg1[%c0_55, %c2_56, %c2_57, %c0_58] : memref<1x18x18x128xbf16, #tpu.memory_space<vmem>>, vector<1x16x16x128xbf16>
    %48 = vector.shape_cast %47 : vector<1x16x16x128xbf16> to vector<256x128xbf16>
    %c8 = arith.constant 8 : index
    %c0_59 = arith.constant 0 : index
    %c0_60 = arith.constant 0 : index
    %49 = vector.load %arg2[%c8, %c0_59, %c0_60] : memref<9x128x128xbf16, #tpu.memory_space<vmem>>, vector<1x128x128xbf16>
    %50 = vector.shape_cast %49 : vector<1x128x128xbf16> to vector<128x128xbf16>
    %cst_61 = arith.constant dense<0.000000e+00> : vector<256x128xf32>
    %51 = tpu.matmul %48, %50, %cst_61 {dimension_numbers = #tpu.dot_dimension_numbers<[1], [0], [0], [1], [0, 0, 1, 1], [], []>} : vector<256x128xbf16>, vector<128x128xbf16>, vector<256x128xf32> -> vector<256x128xf32>
    %52 = arith.addf %46, %51 : vector<256x128xf32>
    %c0_62 = arith.constant 0 : index
    %c0_63 = arith.constant 0 : index
    %53 = vector.load %arg6[%c0_62, %c0_63] : memref<1x128xf32, #tpu.memory_space<vmem>>, vector<1x128xf32>
    %54 = vector.broadcast %53 : vector<1x128xf32> to vector<256x128xf32>
    %55 = arith.mulf %52, %54 : vector<256x128xf32>
    %c0_64 = arith.constant 0 : index
    %c0_65 = arith.constant 0 : index
    %56 = vector.load %arg7[%c0_64, %c0_65] : memref<1x128xf32, #tpu.memory_space<vmem>>, vector<1x128xf32>
    %57 = vector.broadcast %56 : vector<1x128xf32> to vector<256x128xf32>
    %58 = arith.addf %55, %57 : vector<256x128xf32>
    %cst_66 = arith.constant 0.000000e+00 : f32
    %59 = vector.broadcast %cst_66 : f32 to vector<256x128xf32>
    %60 = arith.maximumf %58, %59 : vector<256x128xf32>
    %61 = arith.truncf %60 : vector<256x128xf32> to vector<256x128xbf16>
    %cst_67 = arith.constant 0.000000e+00 : f32
    %62 = vector.broadcast %cst_67 : f32 to vector<18x25x128xf32>
    %c0_68 = arith.constant 0 : index
    %c0_69 = arith.constant 0 : index
    %c0_70 = arith.constant 0 : index
    %63 = vector.load %arg13[%c0_68, %c0_69, %c0_70] : memref<18x25x128xf32, #tpu.memory_space<vmem>>, vector<18x25x128xf32>
    tpu.vector_store %arg13[%c0_68, %c0_69, %c0_70], %62 {strides = array<i32>} : memref<18x25x128xf32, #tpu.memory_space<vmem>>, vector<18x25x128xf32>,
    %64 = vector.shape_cast %60 : vector<256x128xf32> to vector<16x16x128xf32>
    %c1_71 = arith.constant 1 : index
    %c8_72 = arith.constant 8 : index
    %c0_73 = arith.constant 0 : index
    %65 = vector.load %arg13[%c1_71, %c8_72, %c0_73] : memref<18x25x128xf32, #tpu.memory_space<vmem>>, vector<16x16x128xf32>
    tpu.vector_store %arg13[%c1_71, %c8_72, %c0_73], %64 {strides = array<i32>} : memref<18x25x128xf32, #tpu.memory_space<vmem>>, vector<16x16x128xf32>,
    %c0_74 = arith.constant 0 : index
    %c7_75 = arith.constant 7 : index
    %c0_76 = arith.constant 0 : index
    %66 = vector.load %arg13[%c0_74, %c7_75, %c0_76] : memref<18x25x128xf32, #tpu.memory_space<vmem>>, vector<16x16x128xf32>
    %67 = vector.shape_cast %66 : vector<16x16x128xf32> to vector<256x128xf32>
    %68 = arith.truncf %67 : vector<256x128xf32> to vector<256x128xbf16>
    %c0_77 = arith.constant 0 : index
    %c0_78 = arith.constant 0 : index
    %c0_79 = arith.constant 0 : index
    %69 = vector.load %arg3[%c0_77, %c0_78, %c0_79] : memref<9x128x128xbf16, #tpu.memory_space<vmem>>, vector<1x128x128xbf16>
    %70 = vector.shape_cast %69 : vector<1x128x128xbf16> to vector<128x128xbf16>
    %cst_80 = arith.constant dense<0.000000e+00> : vector<256x128xf32>
    %71 = tpu.matmul %68, %70, %cst_80 {dimension_numbers = #tpu.dot_dimension_numbers<[1], [0], [0], [1], [0, 0, 1, 1], [], []>} : vector<256x128xbf16>, vector<128x128xbf16>, vector<256x128xf32> -> vector<256x128xf32>
    %c0_81 = arith.constant 0 : index
    %c8_82 = arith.constant 8 : index
    %c0_83 = arith.constant 0 : index
    %72 = vector.load %arg13[%c0_81, %c8_82, %c0_83] : memref<18x25x128xf32, #tpu.memory_space<vmem>>, vector<16x16x128xf32>
    %73 = vector.shape_cast %72 : vector<16x16x128xf32> to vector<256x128xf32>
    %74 = arith.truncf %73 : vector<256x128xf32> to vector<256x128xbf16>
    %c1_84 = arith.constant 1 : index
    %c0_85 = arith.constant 0 : index
    %c0_86 = arith.constant 0 : index
    %75 = vector.load %arg3[%c1_84, %c0_85, %c0_86] : memref<9x128x128xbf16, #tpu.memory_space<vmem>>, vector<1x128x128xbf16>
    %76 = vector.shape_cast %75 : vector<1x128x128xbf16> to vector<128x128xbf16>
    %cst_87 = arith.constant dense<0.000000e+00> : vector<256x128xf32>
    %77 = tpu.matmul %74, %76, %cst_87 {dimension_numbers = #tpu.dot_dimension_numbers<[1], [0], [0], [1], [0, 0, 1, 1], [], []>} : vector<256x128xbf16>, vector<128x128xbf16>, vector<256x128xf32> -> vector<256x128xf32>
    %78 = arith.addf %71, %77 : vector<256x128xf32>
    %c0_88 = arith.constant 0 : index
    %c9 = arith.constant 9 : index
    %c0_89 = arith.constant 0 : index
    %79 = vector.load %arg13[%c0_88, %c9, %c0_89] : memref<18x25x128xf32, #tpu.memory_space<vmem>>, vector<16x16x128xf32>
    %80 = vector.shape_cast %79 : vector<16x16x128xf32> to vector<256x128xf32>
    %81 = arith.truncf %80 : vector<256x128xf32> to vector<256x128xbf16>
    %c2_90 = arith.constant 2 : index
    %c0_91 = arith.constant 0 : index
    %c0_92 = arith.constant 0 : index
    %82 = vector.load %arg3[%c2_90, %c0_91, %c0_92] : memref<9x128x128xbf16, #tpu.memory_space<vmem>>, vector<1x128x128xbf16>
    %83 = vector.shape_cast %82 : vector<1x128x128xbf16> to vector<128x128xbf16>
    %cst_93 = arith.constant dense<0.000000e+00> : vector<256x128xf32>
    %84 = tpu.matmul %81, %83, %cst_93 {dimension_numbers = #tpu.dot_dimension_numbers<[1], [0], [0], [1], [0, 0, 1, 1], [], []>} : vector<256x128xbf16>, vector<128x128xbf16>, vector<256x128xf32> -> vector<256x128xf32>
    %85 = arith.addf %78, %84 : vector<256x128xf32>
    %c1_94 = arith.constant 1 : index
    %c7_95 = arith.constant 7 : index
    %c0_96 = arith.constant 0 : index
    %86 = vector.load %arg13[%c1_94, %c7_95, %c0_96] : memref<18x25x128xf32, #tpu.memory_space<vmem>>, vector<16x16x128xf32>
    %87 = vector.shape_cast %86 : vector<16x16x128xf32> to vector<256x128xf32>
    %88 = arith.truncf %87 : vector<256x128xf32> to vector<256x128xbf16>
    %c3_97 = arith.constant 3 : index
    %c0_98 = arith.constant 0 : index
    %c0_99 = arith.constant 0 : index
    %89 = vector.load %arg3[%c3_97, %c0_98, %c0_99] : memref<9x128x128xbf16, #tpu.memory_space<vmem>>, vector<1x128x128xbf16>
    %90 = vector.shape_cast %89 : vector<1x128x128xbf16> to vector<128x128xbf16>
    %cst_100 = arith.constant dense<0.000000e+00> : vector<256x128xf32>
    %91 = tpu.matmul %88, %90, %cst_100 {dimension_numbers = #tpu.dot_dimension_numbers<[1], [0], [0], [1], [0, 0, 1, 1], [], []>} : vector<256x128xbf16>, vector<128x128xbf16>, vector<256x128xf32> -> vector<256x128xf32>
    %92 = arith.addf %85, %91 : vector<256x128xf32>
    %c1_101 = arith.constant 1 : index
    %c8_102 = arith.constant 8 : index
    %c0_103 = arith.constant 0 : index
    %93 = vector.load %arg13[%c1_101, %c8_102, %c0_103] : memref<18x25x128xf32, #tpu.memory_space<vmem>>, vector<16x16x128xf32>
    %94 = vector.shape_cast %93 : vector<16x16x128xf32> to vector<256x128xf32>
    %95 = arith.truncf %94 : vector<256x128xf32> to vector<256x128xbf16>
    %c4_104 = arith.constant 4 : index
    %c0_105 = arith.constant 0 : index
    %c0_106 = arith.constant 0 : index
    %96 = vector.load %arg3[%c4_104, %c0_105, %c0_106] : memref<9x128x128xbf16, #tpu.memory_space<vmem>>, vector<1x128x128xbf16>
    %97 = vector.shape_cast %96 : vector<1x128x128xbf16> to vector<128x128xbf16>
    %cst_107 = arith.constant dense<0.000000e+00> : vector<256x128xf32>
    %98 = tpu.matmul %95, %97, %cst_107 {dimension_numbers = #tpu.dot_dimension_numbers<[1], [0], [0], [1], [0, 0, 1, 1], [], []>} : vector<256x128xbf16>, vector<128x128xbf16>, vector<256x128xf32> -> vector<256x128xf32>
    %99 = arith.addf %92, %98 : vector<256x128xf32>
    %c1_108 = arith.constant 1 : index
    %c9_109 = arith.constant 9 : index
    %c0_110 = arith.constant 0 : index
    %100 = vector.load %arg13[%c1_108, %c9_109, %c0_110] : memref<18x25x128xf32, #tpu.memory_space<vmem>>, vector<16x16x128xf32>
    %101 = vector.shape_cast %100 : vector<16x16x128xf32> to vector<256x128xf32>
    %102 = arith.truncf %101 : vector<256x128xf32> to vector<256x128xbf16>
    %c5_111 = arith.constant 5 : index
    %c0_112 = arith.constant 0 : index
    %c0_113 = arith.constant 0 : index
    %103 = vector.load %arg3[%c5_111, %c0_112, %c0_113] : memref<9x128x128xbf16, #tpu.memory_space<vmem>>, vector<1x128x128xbf16>
    %104 = vector.shape_cast %103 : vector<1x128x128xbf16> to vector<128x128xbf16>
    %cst_114 = arith.constant dense<0.000000e+00> : vector<256x128xf32>
    %105 = tpu.matmul %102, %104, %cst_114 {dimension_numbers = #tpu.dot_dimension_numbers<[1], [0], [0], [1], [0, 0, 1, 1], [], []>} : vector<256x128xbf16>, vector<128x128xbf16>, vector<256x128xf32> -> vector<256x128xf32>
    %106 = arith.addf %99, %105 : vector<256x128xf32>
    %c2_115 = arith.constant 2 : index
    %c7_116 = arith.constant 7 : index
    %c0_117 = arith.constant 0 : index
    %107 = vector.load %arg13[%c2_115, %c7_116, %c0_117] : memref<18x25x128xf32, #tpu.memory_space<vmem>>, vector<16x16x128xf32>
    %108 = vector.shape_cast %107 : vector<16x16x128xf32> to vector<256x128xf32>
    %109 = arith.truncf %108 : vector<256x128xf32> to vector<256x128xbf16>
    %c6_118 = arith.constant 6 : index
    %c0_119 = arith.constant 0 : index
    %c0_120 = arith.constant 0 : index
    %110 = vector.load %arg3[%c6_118, %c0_119, %c0_120] : memref<9x128x128xbf16, #tpu.memory_space<vmem>>, vector<1x128x128xbf16>
    %111 = vector.shape_cast %110 : vector<1x128x128xbf16> to vector<128x128xbf16>
    %cst_121 = arith.constant dense<0.000000e+00> : vector<256x128xf32>
    %112 = tpu.matmul %109, %111, %cst_121 {dimension_numbers = #tpu.dot_dimension_numbers<[1], [0], [0], [1], [0, 0, 1, 1], [], []>} : vector<256x128xbf16>, vector<128x128xbf16>, vector<256x128xf32> -> vector<256x128xf32>
    %113 = arith.addf %106, %112 : vector<256x128xf32>
    %c2_122 = arith.constant 2 : index
    %c8_123 = arith.constant 8 : index
    %c0_124 = arith.constant 0 : index
    %114 = vector.load %arg13[%c2_122, %c8_123, %c0_124] : memref<18x25x128xf32, #tpu.memory_space<vmem>>, vector<16x16x128xf32>
    %115 = vector.shape_cast %114 : vector<16x16x128xf32> to vector<256x128xf32>
    %116 = arith.truncf %115 : vector<256x128xf32> to vector<256x128xbf16>
    %c7_125 = arith.constant 7 : index
    %c0_126 = arith.constant 0 : index
    %c0_127 = arith.constant 0 : index
    %117 = vector.load %arg3[%c7_125, %c0_126, %c0_127] : memref<9x128x128xbf16, #tpu.memory_space<vmem>>, vector<1x128x128xbf16>
    %118 = vector.shape_cast %117 : vector<1x128x128xbf16> to vector<128x128xbf16>
    %cst_128 = arith.constant dense<0.000000e+00> : vector<256x128xf32>
    %119 = tpu.matmul %116, %118, %cst_128 {dimension_numbers = #tpu.dot_dimension_numbers<[1], [0], [0], [1], [0, 0, 1, 1], [], []>} : vector<256x128xbf16>, vector<128x128xbf16>, vector<256x128xf32> -> vector<256x128xf32>
    %120 = arith.addf %113, %119 : vector<256x128xf32>
    %c2_129 = arith.constant 2 : index
    %c9_130 = arith.constant 9 : index
    %c0_131 = arith.constant 0 : index
    %121 = vector.load %arg13[%c2_129, %c9_130, %c0_131] : memref<18x25x128xf32, #tpu.memory_space<vmem>>, vector<16x16x128xf32>
    %122 = vector.shape_cast %121 : vector<16x16x128xf32> to vector<256x128xf32>
    %123 = arith.truncf %122 : vector<256x128xf32> to vector<256x128xbf16>
    %c8_132 = arith.constant 8 : index
    %c0_133 = arith.constant 0 : index
    %c0_134 = arith.constant 0 : index
    %124 = vector.load %arg3[%c8_132, %c0_133, %c0_134] : memref<9x128x128xbf16, #tpu.memory_space<vmem>>, vector<1x128x128xbf16>
    %125 = vector.shape_cast %124 : vector<1x128x128xbf16> to vector<128x128xbf16>
    %cst_135 = arith.constant dense<0.000000e+00> : vector<256x128xf32>
    %126 = tpu.matmul %123, %125, %cst_135 {dimension_numbers = #tpu.dot_dimension_numbers<[1], [0], [0], [1], [0, 0, 1, 1], [], []>} : vector<256x128xbf16>, vector<128x128xbf16>, vector<256x128xf32> -> vector<256x128xf32>
    %127 = arith.addf %120, %126 : vector<256x128xf32>
    %c0_136 = arith.constant 0 : index
    %c0_137 = arith.constant 0 : index
    %128 = vector.load %arg8[%c0_136, %c0_137] : memref<1x128xf32, #tpu.memory_space<vmem>>, vector<1x128xf32>
    %129 = vector.broadcast %128 : vector<1x128xf32> to vector<256x128xf32>
    %130 = arith.mulf %127, %129 : vector<256x128xf32>
    %c0_138 = arith.constant 0 : index
    %c0_139 = arith.constant 0 : index
    %131 = vector.load %arg9[%c0_138, %c0_139] : memref<1x128xf32, #tpu.memory_space<vmem>>, vector<1x128xf32>
    %132 = vector.broadcast %131 : vector<1x128xf32> to vector<256x128xf32>
    %133 = arith.addf %130, %132 : vector<256x128xf32>
    %cst_140 = arith.constant 0.000000e+00 : f32
    %134 = vector.broadcast %cst_140 : f32 to vector<256x128xf32>
    %135 = arith.maximumf %133, %134 : vector<256x128xf32>
    %cst_141 = arith.constant 0.000000e+00 : f32
    %136 = vector.broadcast %cst_141 : f32 to vector<18x25x128xf32>
    %c0_142 = arith.constant 0 : index
    %c0_143 = arith.constant 0 : index
    %c0_144 = arith.constant 0 : index
    %137 = vector.load %arg14[%c0_142, %c0_143, %c0_144] : memref<18x25x128xf32, #tpu.memory_space<vmem>>, vector<18x25x128xf32>
    tpu.vector_store %arg14[%c0_142, %c0_143, %c0_144], %136 {strides = array<i32>} : memref<18x25x128xf32, #tpu.memory_space<vmem>>, vector<18x25x128xf32>,
    %138 = vector.shape_cast %135 : vector<256x128xf32> to vector<16x16x128xf32>
    %c1_145 = arith.constant 1 : index
    %c8_146 = arith.constant 8 : index
    %c0_147 = arith.constant 0 : index
    %139 = vector.load %arg14[%c1_145, %c8_146, %c0_147] : memref<18x25x128xf32, #tpu.memory_space<vmem>>, vector<16x16x128xf32>
    tpu.vector_store %arg14[%c1_145, %c8_146, %c0_147], %138 {strides = array<i32>} : memref<18x25x128xf32, #tpu.memory_space<vmem>>, vector<16x16x128xf32>,
    %c0_148 = arith.constant 0 : index
    %c0_149 = arith.constant 0 : index
    %140 = vector.load %arg5[%c0_148, %c0_149] : memref<128x128xbf16, #tpu.memory_space<vmem>>, vector<128x128xbf16>
    %cst_150 = arith.constant dense<0.000000e+00> : vector<256x128xf32>
    %141 = tpu.matmul %61, %140, %cst_150 {dimension_numbers = #tpu.dot_dimension_numbers<[1], [0], [0], [1], [0, 0, 1, 1], [], []>} : vector<256x128xbf16>, vector<128x128xbf16>, vector<256x128xf32> -> vector<256x128xf32>
    %c0_151 = arith.constant 0 : index
    %c7_152 = arith.constant 7 : index
    %c0_153 = arith.constant 0 : index
    %142 = vector.load %arg14[%c0_151, %c7_152, %c0_153] : memref<18x25x128xf32, #tpu.memory_space<vmem>>, vector<16x16x128xf32>
    %143 = vector.shape_cast %142 : vector<16x16x128xf32> to vector<256x128xf32>
    %144 = arith.truncf %143 : vector<256x128xf32> to vector<256x128xbf16>
    %c0_154 = arith.constant 0 : index
    %c0_155 = arith.constant 0 : index
    %c0_156 = arith.constant 0 : index
    %145 = vector.load %arg4[%c0_154, %c0_155, %c0_156] : memref<9x128x128xbf16, #tpu.memory_space<vmem>>, vector<1x128x128xbf16>
    %146 = vector.shape_cast %145 : vector<1x128x128xbf16> to vector<128x128xbf16>
    %cst_157 = arith.constant dense<0.000000e+00> : vector<256x128xf32>
    %147 = tpu.matmul %144, %146, %cst_157 {dimension_numbers = #tpu.dot_dimension_numbers<[1], [0], [0], [1], [0, 0, 1, 1], [], []>} : vector<256x128xbf16>, vector<128x128xbf16>, vector<256x128xf32> -> vector<256x128xf32>
    %148 = arith.addf %141, %147 : vector<256x128xf32>
    %c0_158 = arith.constant 0 : index
    %c8_159 = arith.constant 8 : index
    %c0_160 = arith.constant 0 : index
    %149 = vector.load %arg14[%c0_158, %c8_159, %c0_160] : memref<18x25x128xf32, #tpu.memory_space<vmem>>, vector<16x16x128xf32>
    %150 = vector.shape_cast %149 : vector<16x16x128xf32> to vector<256x128xf32>
    %151 = arith.truncf %150 : vector<256x128xf32> to vector<256x128xbf16>
    %c1_161 = arith.constant 1 : index
    %c0_162 = arith.constant 0 : index
    %c0_163 = arith.constant 0 : index
    %152 = vector.load %arg4[%c1_161, %c0_162, %c0_163] : memref<9x128x128xbf16, #tpu.memory_space<vmem>>, vector<1x128x128xbf16>
    %153 = vector.shape_cast %152 : vector<1x128x128xbf16> to vector<128x128xbf16>
    %cst_164 = arith.constant dense<0.000000e+00> : vector<256x128xf32>
    %154 = tpu.matmul %151, %153, %cst_164 {dimension_numbers = #tpu.dot_dimension_numbers<[1], [0], [0], [1], [0, 0, 1, 1], [], []>} : vector<256x128xbf16>, vector<128x128xbf16>, vector<256x128xf32> -> vector<256x128xf32>
    %155 = arith.addf %148, %154 : vector<256x128xf32>
    %c0_165 = arith.constant 0 : index
    %c9_166 = arith.constant 9 : index
    %c0_167 = arith.constant 0 : index
    %156 = vector.load %arg14[%c0_165, %c9_166, %c0_167] : memref<18x25x128xf32, #tpu.memory_space<vmem>>, vector<16x16x128xf32>
    %157 = vector.shape_cast %156 : vector<16x16x128xf32> to vector<256x128xf32>
    %158 = arith.truncf %157 : vector<256x128xf32> to vector<256x128xbf16>
    %c2_168 = arith.constant 2 : index
    %c0_169 = arith.constant 0 : index
    %c0_170 = arith.constant 0 : index
    %159 = vector.load %arg4[%c2_168, %c0_169, %c0_170] : memref<9x128x128xbf16, #tpu.memory_space<vmem>>, vector<1x128x128xbf16>
    %160 = vector.shape_cast %159 : vector<1x128x128xbf16> to vector<128x128xbf16>
    %cst_171 = arith.constant dense<0.000000e+00> : vector<256x128xf32>
    %161 = tpu.matmul %158, %160, %cst_171 {dimension_numbers = #tpu.dot_dimension_numbers<[1], [0], [0], [1], [0, 0, 1, 1], [], []>} : vector<256x128xbf16>, vector<128x128xbf16>, vector<256x128xf32> -> vector<256x128xf32>
    %162 = arith.addf %155, %161 : vector<256x128xf32>
    %c1_172 = arith.constant 1 : index
    %c7_173 = arith.constant 7 : index
    %c0_174 = arith.constant 0 : index
    %163 = vector.load %arg14[%c1_172, %c7_173, %c0_174] : memref<18x25x128xf32, #tpu.memory_space<vmem>>, vector<16x16x128xf32>
    %164 = vector.shape_cast %163 : vector<16x16x128xf32> to vector<256x128xf32>
    %165 = arith.truncf %164 : vector<256x128xf32> to vector<256x128xbf16>
    %c3_175 = arith.constant 3 : index
    %c0_176 = arith.constant 0 : index
    %c0_177 = arith.constant 0 : index
    %166 = vector.load %arg4[%c3_175, %c0_176, %c0_177] : memref<9x128x128xbf16, #tpu.memory_space<vmem>>, vector<1x128x128xbf16>
    %167 = vector.shape_cast %166 : vector<1x128x128xbf16> to vector<128x128xbf16>
    %cst_178 = arith.constant dense<0.000000e+00> : vector<256x128xf32>
    %168 = tpu.matmul %165, %167, %cst_178 {dimension_numbers = #tpu.dot_dimension_numbers<[1], [0], [0], [1], [0, 0, 1, 1], [], []>} : vector<256x128xbf16>, vector<128x128xbf16>, vector<256x128xf32> -> vector<256x128xf32>
    %169 = arith.addf %162, %168 : vector<256x128xf32>
    %c1_179 = arith.constant 1 : index
    %c8_180 = arith.constant 8 : index
    %c0_181 = arith.constant 0 : index
    %170 = vector.load %arg14[%c1_179, %c8_180, %c0_181] : memref<18x25x128xf32, #tpu.memory_space<vmem>>, vector<16x16x128xf32>
    %171 = vector.shape_cast %170 : vector<16x16x128xf32> to vector<256x128xf32>
    %172 = arith.truncf %171 : vector<256x128xf32> to vector<256x128xbf16>
    %c4_182 = arith.constant 4 : index
    %c0_183 = arith.constant 0 : index
    %c0_184 = arith.constant 0 : index
    %173 = vector.load %arg4[%c4_182, %c0_183, %c0_184] : memref<9x128x128xbf16, #tpu.memory_space<vmem>>, vector<1x128x128xbf16>
    %174 = vector.shape_cast %173 : vector<1x128x128xbf16> to vector<128x128xbf16>
    %cst_185 = arith.constant dense<0.000000e+00> : vector<256x128xf32>
    %175 = tpu.matmul %172, %174, %cst_185 {dimension_numbers = #tpu.dot_dimension_numbers<[1], [0], [0], [1], [0, 0, 1, 1], [], []>} : vector<256x128xbf16>, vector<128x128xbf16>, vector<256x128xf32> -> vector<256x128xf32>
    %176 = arith.addf %169, %175 : vector<256x128xf32>
    %c1_186 = arith.constant 1 : index
    %c9_187 = arith.constant 9 : index
    %c0_188 = arith.constant 0 : index
    %177 = vector.load %arg14[%c1_186, %c9_187, %c0_188] : memref<18x25x128xf32, #tpu.memory_space<vmem>>, vector<16x16x128xf32>
    %178 = vector.shape_cast %177 : vector<16x16x128xf32> to vector<256x128xf32>
    %179 = arith.truncf %178 : vector<256x128xf32> to vector<256x128xbf16>
    %c5_189 = arith.constant 5 : index
    %c0_190 = arith.constant 0 : index
    %c0_191 = arith.constant 0 : index
    %180 = vector.load %arg4[%c5_189, %c0_190, %c0_191] : memref<9x128x128xbf16, #tpu.memory_space<vmem>>, vector<1x128x128xbf16>
    %181 = vector.shape_cast %180 : vector<1x128x128xbf16> to vector<128x128xbf16>
    %cst_192 = arith.constant dense<0.000000e+00> : vector<256x128xf32>
    %182 = tpu.matmul %179, %181, %cst_192 {dimension_numbers = #tpu.dot_dimension_numbers<[1], [0], [0], [1], [0, 0, 1, 1], [], []>} : vector<256x128xbf16>, vector<128x128xbf16>, vector<256x128xf32> -> vector<256x128xf32>
    %183 = arith.addf %176, %182 : vector<256x128xf32>
    %c2_193 = arith.constant 2 : index
    %c7_194 = arith.constant 7 : index
    %c0_195 = arith.constant 0 : index
    %184 = vector.load %arg14[%c2_193, %c7_194, %c0_195] : memref<18x25x128xf32, #tpu.memory_space<vmem>>, vector<16x16x128xf32>
    %185 = vector.shape_cast %184 : vector<16x16x128xf32> to vector<256x128xf32>
    %186 = arith.truncf %185 : vector<256x128xf32> to vector<256x128xbf16>
    %c6_196 = arith.constant 6 : index
    %c0_197 = arith.constant 0 : index
    %c0_198 = arith.constant 0 : index
    %187 = vector.load %arg4[%c6_196, %c0_197, %c0_198] : memref<9x128x128xbf16, #tpu.memory_space<vmem>>, vector<1x128x128xbf16>
    %188 = vector.shape_cast %187 : vector<1x128x128xbf16> to vector<128x128xbf16>
    %cst_199 = arith.constant dense<0.000000e+00> : vector<256x128xf32>
    %189 = tpu.matmul %186, %188, %cst_199 {dimension_numbers = #tpu.dot_dimension_numbers<[1], [0], [0], [1], [0, 0, 1, 1], [], []>} : vector<256x128xbf16>, vector<128x128xbf16>, vector<256x128xf32> -> vector<256x128xf32>
    %190 = arith.addf %183, %189 : vector<256x128xf32>
    %c2_200 = arith.constant 2 : index
    %c8_201 = arith.constant 8 : index
    %c0_202 = arith.constant 0 : index
    %191 = vector.load %arg14[%c2_200, %c8_201, %c0_202] : memref<18x25x128xf32, #tpu.memory_space<vmem>>, vector<16x16x128xf32>
    %192 = vector.shape_cast %191 : vector<16x16x128xf32> to vector<256x128xf32>
    %193 = arith.truncf %192 : vector<256x128xf32> to vector<256x128xbf16>
    %c7_203 = arith.constant 7 : index
    %c0_204 = arith.constant 0 : index
    %c0_205 = arith.constant 0 : index
    %194 = vector.load %arg4[%c7_203, %c0_204, %c0_205] : memref<9x128x128xbf16, #tpu.memory_space<vmem>>, vector<1x128x128xbf16>
    %195 = vector.shape_cast %194 : vector<1x128x128xbf16> to vector<128x128xbf16>
    %cst_206 = arith.constant dense<0.000000e+00> : vector<256x128xf32>
    %196 = tpu.matmul %193, %195, %cst_206 {dimension_numbers = #tpu.dot_dimension_numbers<[1], [0], [0], [1], [0, 0, 1, 1], [], []>} : vector<256x128xbf16>, vector<128x128xbf16>, vector<256x128xf32> -> vector<256x128xf32>
    %197 = arith.addf %190, %196 : vector<256x128xf32>
    %c2_207 = arith.constant 2 : index
    %c9_208 = arith.constant 9 : index
    %c0_209 = arith.constant 0 : index
    %198 = vector.load %arg14[%c2_207, %c9_208, %c0_209] : memref<18x25x128xf32, #tpu.memory_space<vmem>>, vector<16x16x128xf32>
    %199 = vector.shape_cast %198 : vector<16x16x128xf32> to vector<256x128xf32>
    %200 = arith.truncf %199 : vector<256x128xf32> to vector<256x128xbf16>
    %c8_210 = arith.constant 8 : index
    %c0_211 = arith.constant 0 : index
    %c0_212 = arith.constant 0 : index
    %201 = vector.load %arg4[%c8_210, %c0_211, %c0_212] : memref<9x128x128xbf16, #tpu.memory_space<vmem>>, vector<1x128x128xbf16>
    %202 = vector.shape_cast %201 : vector<1x128x128xbf16> to vector<128x128xbf16>
    %cst_213 = arith.constant dense<0.000000e+00> : vector<256x128xf32>
    %203 = tpu.matmul %200, %202, %cst_213 {dimension_numbers = #tpu.dot_dimension_numbers<[1], [0], [0], [1], [0, 0, 1, 1], [], []>} : vector<256x128xbf16>, vector<128x128xbf16>, vector<256x128xf32> -> vector<256x128xf32>
    %204 = arith.addf %197, %203 : vector<256x128xf32>
    %c0_214 = arith.constant 0 : index
    %c0_215 = arith.constant 0 : index
    %205 = vector.load %arg10[%c0_214, %c0_215] : memref<1x128xf32, #tpu.memory_space<vmem>>, vector<1x128xf32>
    %206 = vector.broadcast %205 : vector<1x128xf32> to vector<256x128xf32>
    %207 = arith.mulf %204, %206 : vector<256x128xf32>
    %c0_216 = arith.constant 0 : index
    %c0_217 = arith.constant 0 : index
    %208 = vector.load %arg11[%c0_216, %c0_217] : memref<1x128xf32, #tpu.memory_space<vmem>>, vector<1x128xf32>
    %209 = vector.broadcast %208 : vector<1x128xf32> to vector<256x128xf32>
    %210 = arith.addf %207, %209 : vector<256x128xf32>
    %cst_218 = arith.constant 0.000000e+00 : f32
    %211 = vector.broadcast %cst_218 : f32 to vector<256x128xf32>
    %212 = arith.maximumf %210, %211 : vector<256x128xf32>
    %213 = vector.shape_cast %212 : vector<256x128xf32> to vector<1x16x16x128xf32>
    %214 = arith.truncf %213 : vector<1x16x16x128xf32> to vector<1x16x16x128xbf16>
    %c0_219 = arith.constant 0 : index
    %c0_220 = arith.constant 0 : index
    %c0_221 = arith.constant 0 : index
    %c0_222 = arith.constant 0 : index
    %215 = vector.load %arg12[%c0_219, %c0_220, %c0_221, %c0_222] : memref<1x16x16x128xbf16, #tpu.memory_space<vmem>>, vector<1x16x16x128xbf16>
    tpu.vector_store %arg12[%c0_219, %c0_220, %c0_221, %c0_222], %214 {strides = array<i32>} : memref<1x16x16x128xbf16, #tpu.memory_space<vmem>>, vector<1x16x16x128xbf16>,
    return
  }
  func.func @transform_0(%arg0: i32) -> (i32, i32, i32, i32) {
    %c0_i32 = arith.constant 0 : i32
    %c0_i32_0 = arith.constant 0 : i32
    %c0_i32_1 = arith.constant 0 : i32
    %c0_i32_2 = arith.constant 0 : i32
    return %arg0, %c0_i32, %c0_i32_0, %c0_i32_1 : i32, i32, i32, i32
  }
  func.func @transform_1(%arg0: i32) -> (i32, i32, i32) {
    %c0_i32 = arith.constant 0 : i32
    %c0_i32_0 = arith.constant 0 : i32
    %c0_i32_1 = arith.constant 0 : i32
    %c0_i32_2 = arith.constant 0 : i32
    return %c0_i32, %c0_i32_0, %c0_i32_1 : i32, i32, i32
  }
  func.func @transform_2(%arg0: i32) -> (i32, i32, i32) {
    %c0_i32 = arith.constant 0 : i32
    %c0_i32_0 = arith.constant 0 : i32
    %c0_i32_1 = arith.constant 0 : i32
    %c0_i32_2 = arith.constant 0 : i32
    return %c0_i32, %c0_i32_0, %c0_i32_1 : i32, i32, i32
  }
  func.func @transform_3(%arg0: i32) -> (i32, i32, i32) {
    %c0_i32 = arith.constant 0 : i32
    %c0_i32_0 = arith.constant 0 : i32
    %c0_i32_1 = arith.constant 0 : i32
    %c0_i32_2 = arith.constant 0 : i32
    return %c0_i32, %c0_i32_0, %c0_i32_1 : i32, i32, i32
  }
  func.func @transform_4(%arg0: i32) -> (i32, i32) {
    %c0_i32 = arith.constant 0 : i32
    %c0_i32_0 = arith.constant 0 : i32
    %c0_i32_1 = arith.constant 0 : i32
    return %c0_i32, %c0_i32_0 : i32, i32
  }
  func.func @transform_5(%arg0: i32) -> (i32, i32) {
    %c0_i32 = arith.constant 0 : i32
    %c0_i32_0 = arith.constant 0 : i32
    %c0_i32_1 = arith.constant 0 : i32
    return %c0_i32, %c0_i32_0 : i32, i32
  }
  func.func @transform_6(%arg0: i32) -> (i32, i32) {
    %c0_i32 = arith.constant 0 : i32
    %c0_i32_0 = arith.constant 0 : i32
    %c0_i32_1 = arith.constant 0 : i32
    return %c0_i32, %c0_i32_0 : i32, i32
  }
  func.func @transform_7(%arg0: i32) -> (i32, i32) {
    %c0_i32 = arith.constant 0 : i32
    %c0_i32_0 = arith.constant 0 : i32
    %c0_i32_1 = arith.constant 0 : i32
    return %c0_i32, %c0_i32_0 : i32, i32
  }
  func.func @transform_8(%arg0: i32) -> (i32, i32) {
    %c0_i32 = arith.constant 0 : i32
    %c0_i32_0 = arith.constant 0 : i32
    %c0_i32_1 = arith.constant 0 : i32
    return %c0_i32, %c0_i32_0 : i32, i32
  }
  func.func @transform_9(%arg0: i32) -> (i32, i32) {
    %c0_i32 = arith.constant 0 : i32
    %c0_i32_0 = arith.constant 0 : i32
    %c0_i32_1 = arith.constant 0 : i32
    return %c0_i32, %c0_i32_0 : i32, i32
  }
  func.func @transform_10(%arg0: i32) -> (i32, i32) {
    %c0_i32 = arith.constant 0 : i32
    %c0_i32_0 = arith.constant 0 : i32
    %c0_i32_1 = arith.constant 0 : i32
    return %c0_i32, %c0_i32_0 : i32, i32
  }
  func.func @transform_11(%arg0: i32) -> (i32, i32, i32, i32) {
    %c0_i32 = arith.constant 0 : i32
    %c0_i32_0 = arith.constant 0 : i32
    %c0_i32_1 = arith.constant 0 : i32
    %c0_i32_2 = arith.constant 0 : i32
    return %arg0, %c0_i32, %c0_i32_0, %c0_i32_1 : i32, i32, i32, i32
  }
}

</mosaic_0001>

<llo_original>
// kernel: tpu_custom_call.1
$region0: #{tpu_custom_call.1}
  #allocation0 [shape = 'u32[]', space=smem, size = 0x4, offset = 0x4, fixed_abs, tag = 'smem constant byte address 0x4 - core index']
  #allocation1 [shape = 'u32[72,128]{1,0:T(1,128)}', space=vmem, size = 0x9000, scoped, tag = 'internal scratch']
  #allocation2 [shape = 'f32[18,25,128]{2,1,0:T(8,128)}', space=vmem, size = 0x48000, scoped, tag = 'scratch operand']
  #allocation3 [shape = 'f32[18,25,128]{2,1,0:T(8,128)}', space=vmem, size = 0x48000, scoped, tag = 'scratch operand']
  %s0 = inlined_call_operand.vmem [shape: bf16[2,18,18,128], index: 0, kind: input, shape index: {}]
  %s1 = inlined_call_operand.vmem [shape: bf16[9,128,128], index: 1, kind: input, shape index: {}]
  %s2 = inlined_call_operand.hbm [shape: bf16[9,128,128], index: 2, kind: input, shape index: {}]
  %s3 = inlined_call_operand.hbm [shape: bf16[9,128,128], index: 3, kind: input, shape index: {}]
  %s4 = inlined_call_operand.vmem [shape: bf16[128,128], index: 4, kind: input, shape index: {}]
  %s5 = inlined_call_operand.vmem [shape: f32[1,128], index: 5, kind: input, shape index: {}]
  %s6 = inlined_call_operand.vmem [shape: f32[1,128], index: 6, kind: input, shape index: {}]
  %s7 = inlined_call_operand.vmem [shape: f32[1,128], index: 7, kind: input, shape index: {}]
  %s8 = inlined_call_operand.vmem [shape: f32[1,128], index: 8, kind: input, shape index: {}]
  %s9 = inlined_call_operand.vmem [shape: f32[1,128], index: 9, kind: input, shape index: {}]
  %s10 = inlined_call_operand.vmem [shape: f32[1,128], index: 10, kind: input, shape index: {}]
  %s11 = inlined_call_operand.hbm [shape: bf16[2,16,16,128], index: 11, kind: output, shape index: {}]
  %s12 = sld [smem:[#allocation0]]
  $region85: #{tpu_custom_call.1} parent=0
    _
  %s14 = ssub.s32 1, %s12
  %s15 = scalar_select 0, %s14, %s12
  $region1: #{tpu_custom_call.1} parent=0
    #allocation4 [shape = 'u8[294912]{0}', space=vmem, size = 0x48000, scoped, tag = 'input window, operand 2, single buffered']
    #allocation5 [shape = 's32[2]{0}', space=sflag, size = 0x8, scoped, tag = 'scoped memory for tpu_custom_call.1']
    #allocation6 [shape = 's32[2]{0}', space=sflag, size = 0x8, scoped, tag = 'scoped memory for tpu_custom_call.1']
    #allocation7 [shape = 'u8[294912]{0}', space=vmem, size = 0x48000, scoped, tag = 'input window, operand 3, single buffered']
    #allocation8 [shape = 's32[1]{0}', space=sflag, size = 0x4, scoped, tag = 'scoped memory for tpu_custom_call.1']
    #allocation9 [shape = 'u8[131072]{0}', space=vmem, size = 0x20000, scoped, tag = 'output window, operand 0']
    %16 = vsyncpa [#allocation5], 0
    %17 = vsyncpa [#allocation8], 0
    %18 = vsyncpa [#allocation6], 0
    %s19 = scalar_lea.sflag [#allocation6], 1
    %20 = vsyncpa %s19, 0
    loop: start=0, step=1, limit=4
    $region2: #{tpu_custom_call.1} parent=1 // loop_pre_header
      _
    $region3: #{tpu_custom_call.1} parent=1 // loop_header
      %s22 = sphi 0, %s26
      %p23 = scmp.ge.s32.totalorder %s22, 4
      %s32 = sphi 0, %s34
      %s35 = sphi 0, %s32
      %s36 = sphi 0, %s35
      %s52 = sphi 0, %s36
      %s56 = sphi 0, %s56
      %s58 = sphi 0, %s56
      %s59 = sphi 0, %s58
      %s73 = sphi 0, %s59
      %s77 = sphi 0, %s77
      %s79 = sphi 0, %s77
      %s80 = sphi 0, %s79
      %s94 = sphi 0, %s80
      %s98 = sphi 0, %s98
      %s100 = sphi 0, %s98
      %s101 = sphi 0, %s100
      %s115 = sphi 0, %s101
      %s119 = sphi 0, %s119
      %s121 = sphi 0, %s119
      %s122 = sphi 0, %s121
      %s136 = sphi 0, %s122
      %s140 = sphi 0, %s140
      %s142 = sphi 0, %s140
      %s143 = sphi 0, %s142
      %s157 = sphi 0, %s143
      %s161 = sphi 0, %s161
      %s163 = sphi 0, %s161
      %s164 = sphi 0, %s163
      %s178 = sphi 0, %s164
      %s182 = sphi 0, %s182
      %s184 = sphi 0, %s182
      %s185 = sphi 0, %s184
      %s199 = sphi 0, %s185
      %s203 = sphi 0, %s203
      %s205 = sphi 0, %s203
      %s206 = sphi 0, %s205
      %s220 = sphi 0, %s206
      %s224 = sphi 0, %s224
      %s226 = sphi 0, %s224
      %s227 = sphi 0, %s226
      %s241 = sphi 0, %s227
      %s245 = sphi 0, %s245
      %s247 = sphi 0, %s245
      %s248 = sphi 0, %s247
      %s262 = sphi 0, %s248
      %s268 = sphi 0, %s270
      %s271 = sphi 0, %s268
      %s272 = sphi 0, %s271
      %s288 = sphi 0, %s272
    $region4: #{tpu_custom_call.1} parent=1 // loop_header_branch
      %25 = sbr.rel (%p23) target = $region8
    $region5: #{tpu_custom_call.1} parent=1 // loop_body
      %s27 = ssub.s32 %s22, 1
      %s28 = ssub.s32 %s22, 2
      %s29 = sadd.s32 %s22, 1
      %s30 = ssub.s32 %s22, %s29
      %p31 = scmp.eq.s32.totalorder %s30, 0
      %s33 = sadd.s32 %s32, 1
      %s34 = scalar_select %p31, %s32, %s33
      %p37 = pneg %p31
      %p38 = scmp.eq.s32.totalorder %s22, 1
      %p39 = por %p37, %p38
      %p40 = scmp.ne.s32.totalorder %s32, %s35
      %p41 = scmp.eq.s32.totalorder %s22, 0
      %p42 = por %p40, %p41
      %p43 = scmp.ne.s32.totalorder %s32, %s35
      %p44 = scmp.eq.s32.totalorder %s27, 1
      %p45 = por %p43, %p44
      %p46 = scmp.ne.s32.totalorder %s35, %s36
      %p47 = scmp.eq.s32.totalorder %s27, 0
      %p48 = por %p46, %p47
      %p49 = scmp.ne.s32.totalorder %s35, %s36
      %p50 = scmp.eq.s32.totalorder %s28, 1
      %p51 = por %p49, %p50
      %p53 = scmp.ne.s32.totalorder %s36, %s52
      %p54 = scmp.eq.s32.totalorder %s28, 0
      %p55 = por %p53, %p54
      %s57 = sadd.s32 %s56, 1
      %p60 = scmp.eq.s32.totalorder %s22, 1
      %p61 = scmp.ne.s32.totalorder %s56, %s58
      %p62 = scmp.eq.s32.totalorder %s22, 0
      %p63 = por %p61, %p62
      %p64 = scmp.ne.s32.totalorder %s56, %s58
      %p65 = scmp.eq.s32.totalorder %s27, 1
      %p66 = por %p64, %p65
      %p67 = scmp.ne.s32.totalorder %s58, %s59
      %p68 = scmp.eq.s32.totalorder %s27, 0
      %p69 = por %p67, %p68
      %p70 = scmp.ne.s32.totalorder %s58, %s59
      %p71 = scmp.eq.s32.totalorder %s28, 1
      %p72 = por %p70, %p71
      %p74 = scmp.ne.s32.totalorder %s59, %s73
      %p75 = scmp.eq.s32.totalorder %s28, 0
      %p76 = por %p74, %p75
      %s78 = sadd.s32 %s77, 1
      %p81 = scmp.eq.s32.totalorder %s22, 1
      %p82 = scmp.ne.s32.totalorder %s77, %s79
      %p83 = scmp.eq.s32.totalorder %s22, 0
      %p84 = por %p82, %p83
      %p85 = scmp.ne.s32.totalorder %s77, %s79
      %p86 = scmp.eq.s32.totalorder %s27, 1
      %p87 = por %p85, %p86
      %p88 = scmp.ne.s32.totalorder %s79, %s80
      %p89 = scmp.eq.s32.totalorder %s27, 0
      %p90 = por %p88, %p89
      %p91 = scmp.ne.s32.totalorder %s79, %s80
      %p92 = scmp.eq.s32.totalorder %s28, 1
      %p93 = por %p91, %p92
      %p95 = scmp.ne.s32.totalorder %s80, %s94
      %p96 = scmp.eq.s32.totalorder %s28, 0
      %p97 = por %p95, %p96
      %s99 = sadd.s32 %s98, 1
      %p102 = scmp.eq.s32.totalorder %s22, 1
      %p103 = scmp.ne.s32.totalorder %s98, %s100
      %p104 = scmp.eq.s32.totalorder %s22, 0
      %p105 = por %p103, %p104
      %p106 = scmp.ne.s32.totalorder %s98, %s100
      %p107 = scmp.eq.s32.totalorder %s27, 1
      %p108 = por %p106, %p107
      %p109 = scmp.ne.s32.totalorder %s100, %s101
      %p110 = scmp.eq.s32.totalorder %s27, 0
      %p111 = por %p109, %p110
      %p112 = scmp.ne.s32.totalorder %s100, %s101
      %p113 = scmp.eq.s32.totalorder %s28, 1
      %p114 = por %p112, %p113
      %p116 = scmp.ne.s32.totalorder %s101, %s115
      %p117 = scmp.eq.s32.totalorder %s28, 0
      %p118 = por %p116, %p117
      %s120 = sadd.s32 %s119, 1
      %p123 = scmp.eq.s32.totalorder %s22, 1
      %p124 = scmp.ne.s32.totalorder %s119, %s121
      %p125 = scmp.eq.s32.totalorder %s22, 0
      %p126 = por %p124, %p125
      %p127 = scmp.ne.s32.totalorder %s119, %s121
      %p128 = scmp.eq.s32.totalorder %s27, 1
      %p129 = por %p127, %p128
      %p130 = scmp.ne.s32.totalorder %s121, %s122
      %p131 = scmp.eq.s32.totalorder %s27, 0
      %p132 = por %p130, %p131
      %p133 = scmp.ne.s32.totalorder %s121, %s122
      %p134 = scmp.eq.s32.totalorder %s28, 1
      %p135 = por %p133, %p134
      %p137 = scmp.ne.s32.totalorder %s122, %s136
      %p138 = scmp.eq.s32.totalorder %s28, 0
      %p139 = por %p137, %p138
      %s141 = sadd.s32 %s140, 1
      %p144 = scmp.eq.s32.totalorder %s22, 1
      %p145 = scmp.ne.s32.totalorder %s140, %s142
      %p146 = scmp.eq.s32.totalorder %s22, 0
      %p147 = por %p145, %p146
      %p148 = scmp.ne.s32.totalorder %s140, %s142
      %p149 = scmp.eq.s32.totalorder %s27, 1
      %p150 = por %p148, %p149
      %p151 = scmp.ne.s32.totalorder %s142, %s143
      %p152 = scmp.eq.s32.totalorder %s27, 0
      %p153 = por %p151, %p152
      %p154 = scmp.ne.s32.totalorder %s142, %s143
      %p155 = scmp.eq.s32.totalorder %s28, 1
      %p156 = por %p154, %p155
      %p158 = scmp.ne.s32.totalorder %s143, %s157
      %p159 = scmp.eq.s32.totalorder %s28, 0
      %p160 = por %p158, %p159
      %s162 = sadd.s32 %s161, 1
      %p165 = scmp.eq.s32.totalorder %s22, 1
      %p166 = scmp.ne.s32.totalorder %s161, %s163
      %p167 = scmp.eq.s32.totalorder %s22, 0
      %p168 = por %p166, %p167
      %p169 = scmp.ne.s32.totalorder %s161, %s163
      %p170 = scmp.eq.s32.totalorder %s27, 1
      %p171 = por %p169, %p170
      %p172 = scmp.ne.s32.totalorder %s163, %s164
      %p173 = scmp.eq.s32.totalorder %s27, 0
      %p174 = por %p172, %p173
      %p175 = scmp.ne.s32.totalorder %s163, %s164
      %p176 = scmp.eq.s32.totalorder %s28, 1
      %p177 = por %p175, %p176
      %p179 = scmp.ne.s32.totalorder %s164, %s178
      %p180 = scmp.eq.s32.totalorder %s28, 0
      %p181 = por %p179, %p180
      %s183 = sadd.s32 %s182, 1
      %p186 = scmp.eq.s32.totalorder %s22, 1
      %p187 = scmp.ne.s32.totalorder %s182, %s184
      %p188 = scmp.eq.s32.totalorder %s22, 0
      %p189 = por %p187, %p188
      %p190 = scmp.ne.s32.totalorder %s182, %s184
      %p191 = scmp.eq.s32.totalorder %s27, 1
      %p192 = por %p190, %p191
      %p193 = scmp.ne.s32.totalorder %s184, %s185
      %p194 = scmp.eq.s32.totalorder %s27, 0
      %p195 = por %p193, %p194
      %p196 = scmp.ne.s32.totalorder %s184, %s185
      %p197 = scmp.eq.s32.totalorder %s28, 1
      %p198 = por %p196, %p197
      %p200 = scmp.ne.s32.totalorder %s185, %s199
      %p201 = scmp.eq.s32.totalorder %s28, 0
      %p202 = por %p200, %p201
      %s204 = sadd.s32 %s203, 1
      %p207 = scmp.eq.s32.totalorder %s22, 1
      %p208 = scmp.ne.s32.totalorder %s203, %s205
      %p209 = scmp.eq.s32.totalorder %s22, 0
      %p210 = por %p208, %p209
      %p211 = scmp.ne.s32.totalorder %s203, %s205
      %p212 = scmp.eq.s32.totalorder %s27, 1
      %p213 = por %p211, %p212
      %p214 = scmp.ne.s32.totalorder %s205, %s206
      %p215 = scmp.eq.s32.totalorder %s27, 0
      %p216 = por %p214, %p215
      %p217 = scmp.ne.s32.totalorder %s205, %s206
      %p218 = scmp.eq.s32.totalorder %s28, 1
      %p219 = por %p217, %p218
      %p221 = scmp.ne.s32.totalorder %s206, %s220
      %p222 = scmp.eq.s32.totalorder %s28, 0
      %p223 = por %p221, %p222
      %s225 = sadd.s32 %s224, 1
      %p228 = scmp.eq.s32.totalorder %s22, 1
      %p229 = scmp.ne.s32.totalorder %s224, %s226
      %p230 = scmp.eq.s32.totalorder %s22, 0
      %p231 = por %p229, %p230
      %p232 = scmp.ne.s32.totalorder %s224, %s226
      %p233 = scmp.eq.s32.totalorder %s27, 1
      %p234 = por %p232, %p233
      %p235 = scmp.ne.s32.totalorder %s226, %s227
      %p236 = scmp.eq.s32.totalorder %s27, 0
      %p237 = por %p235, %p236
      %p238 = scmp.ne.s32.totalorder %s226, %s227
      %p239 = scmp.eq.s32.totalorder %s28, 1
      %p240 = por %p238, %p239
      %p242 = scmp.ne.s32.totalorder %s227, %s241
      %p243 = scmp.eq.s32.totalorder %s28, 0
      %p244 = por %p242, %p243
      %s246 = sadd.s32 %s245, 1
      %p249 = scmp.eq.s32.totalorder %s22, 1
      %p250 = scmp.ne.s32.totalorder %s245, %s247
      %p251 = scmp.eq.s32.totalorder %s22, 0
      %p252 = por %p250, %p251
      %p253 = scmp.ne.s32.totalorder %s245, %s247
      %p254 = scmp.eq.s32.totalorder %s27, 1
      %p255 = por %p253, %p254
      %p256 = scmp.ne.s32.totalorder %s247, %s248
      %p257 = scmp.eq.s32.totalorder %s27, 0
      %p258 = por %p256, %p257
      %p259 = scmp.ne.s32.totalorder %s247, %s248
      %p260 = scmp.eq.s32.totalorder %s28, 1
      %p261 = por %p259, %p260
      %p263 = scmp.ne.s32.totalorder %s248, %s262
      %p264 = scmp.eq.s32.totalorder %s28, 0
      %p265 = por %p263, %p264
      %s266 = ssub.s32 %s22, %s29
      %p267 = scmp.eq.s32.totalorder %s266, 0
      %s269 = sadd.s32 %s268, 1
      %s270 = scalar_select %p267, %s268, %s269
      %p273 = pneg %p267
      %p274 = scmp.eq.s32.totalorder %s22, 1
      %p275 = por %p273, %p274
      %p276 = scmp.ne.s32.totalorder %s268, %s271
      %p277 = scmp.eq.s32.totalorder %s22, 0
      %p278 = por %p276, %p277
      %p279 = scmp.ne.s32.totalorder %s268, %s271
      %p280 = scmp.eq.s32.totalorder %s27, 1
      %p281 = por %p279, %p280
      %p282 = scmp.ne.s32.totalorder %s271, %s272
      %p283 = scmp.eq.s32.totalorder %s27, 0
      %p284 = por %p282, %p283
      %p285 = scmp.ne.s32.totalorder %s271, %s272
      %p286 = scmp.eq.s32.totalorder %s28, 1
      %p287 = por %p285, %p286
      %p289 = scmp.ne.s32.totalorder %s272, %s288
      %p290 = scmp.eq.s32.totalorder %s28, 0
      %p291 = por %p289, %p290
      %p292 = scmp.le.s32.totalorder 1, %s22
      %p293 = scmp.lt.s32.totalorder %s22, 3
      %p294 = pnand %p292, %p293
      %p295 = pneg %p294
      // Predicated region
      $region9: #{tpu_custom_call.1} parent=5 // pred_check
        _
      $region10: #{tpu_custom_call.1} parent=5 // pred_check_branch
        %297 = sbr.rel (%p294) target = $region12
      $region11: #{tpu_custom_call.1} parent=5 // pred_region
        %s298 = ssub.s32 %s22, 1
        // Predicated region
        $region13: #{tpu_custom_call.1} parent=11 // pred_check
          %p299 = pneg %p69
        $region14: #{tpu_custom_call.1} parent=11 // pred_check_branch
          %301 = sbr.rel (%p299) target = $region16
        $region15: #{tpu_custom_call.1} parent=11 // pred_region
          _
        $region16: #{tpu_custom_call.1} parent=11 // pred_fallthru
          _
        // Predicated region
        $region17: #{tpu_custom_call.1} parent=11 // pred_check
          %p302 = pneg %p90
        $region18: #{tpu_custom_call.1} parent=11 // pred_check_branch
          %304 = sbr.rel (%p302) target = $region20
        $region19: #{tpu_custom_call.1} parent=11 // pred_region
          %306 = vsyncadd [#allocation5], 0
          %s307 = sshll.u32 %s2, 4
          %s308 = int_to_ptr.hbm [resolvable:$true] %s307
          %s309 = sshll.u32 [#allocation4], 4
          %s310 = int_to_ptr.vmem [resolvable:$true] %s309
          %315 = dma.hbm_to_vmem [thread:$0]  %s308, 9216, %s310, [#allocation5], 64, 64, 4
        $region20: #{tpu_custom_call.1} parent=11 // pred_fallthru
          _
        // Predicated region
        $region21: #{tpu_custom_call.1} parent=11 // pred_check
          %p316 = pneg %p111
        $region22: #{tpu_custom_call.1} parent=11 // pred_check_branch
          %318 = sbr.rel (%p316) target = $region24
        $region23: #{tpu_custom_call.1} parent=11 // pred_region
          %320 = vsyncadd [#allocation8], 0
          %s321 = sshll.u32 %s3, 4
          %s322 = int_to_ptr.hbm [resolvable:$true] %s321
          %s323 = sshll.u32 [#allocation7], 4
          %s324 = int_to_ptr.vmem [resolvable:$true] %s323
          %329 = dma.hbm_to_vmem [thread:$0]  %s322, 9216, %s324, [#allocation8], 64, 64, 4
        $region24: #{tpu_custom_call.1} parent=11 // pred_fallthru
          _
        // Predicated region
        $region25: #{tpu_custom_call.1} parent=11 // pred_check
          %p330 = pneg %p132
        $region26: #{tpu_custom_call.1} parent=11 // pred_check_branch
          %332 = sbr.rel (%p330) target = $region28
        $region27: #{tpu_custom_call.1} parent=11 // pred_region
          _
        $region28: #{tpu_custom_call.1} parent=11 // pred_fallthru
          _
        // Predicated region
        $region29: #{tpu_custom_call.1} parent=11 // pred_check
          %p333 = pneg %p153
        $region30: #{tpu_custom_call.1} parent=11 // pred_check_branch
          %335 = sbr.rel (%p333) target = $region32
        $region31: #{tpu_custom_call.1} parent=11 // pred_region
          _
        $region32: #{tpu_custom_call.1} parent=11 // pred_fallthru
          _
        // Predicated region
        $region33: #{tpu_custom_call.1} parent=11 // pred_check
          %p336 = pneg %p174
        $region34: #{tpu_custom_call.1} parent=11 // pred_check_branch
          %338 = sbr.rel (%p336) target = $region36
        $region35: #{tpu_custom_call.1} parent=11 // pred_region
          _
        $region36: #{tpu_custom_call.1} parent=11 // pred_fallthru
          _
        // Predicated region
        $region37: #{tpu_custom_call.1} parent=11 // pred_check
          %p339 = pneg %p195
        $region38: #{tpu_custom_call.1} parent=11 // pred_check_branch
          %341 = sbr.rel (%p339) target = $region40
        $region39: #{tpu_custom_call.1} parent=11 // pred_region
          _
        $region40: #{tpu_custom_call.1} parent=11 // pred_fallthru
          _
        // Predicated region
        $region41: #{tpu_custom_call.1} parent=11 // pred_check
          %p342 = pneg %p216
        $region42: #{tpu_custom_call.1} parent=11 // pred_check_branch
          %344 = sbr.rel (%p342) target = $region44
        $region43: #{tpu_custom_call.1} parent=11 // pred_region
          _
        $region44: #{tpu_custom_call.1} parent=11 // pred_fallthru
          _
        // Predicated region
        $region45: #{tpu_custom_call.1} parent=11 // pred_check
          %p345 = pneg %p237
        $region46: #{tpu_custom_call.1} parent=11 // pred_check_branch
          %347 = sbr.rel (%p345) target = $region48
        $region47: #{tpu_custom_call.1} parent=11 // pred_region
          _
        $region48: #{tpu_custom_call.1} parent=11 // pred_fallthru
          _
        // Predicated region
        $region49: #{tpu_custom_call.1} parent=11 // pred_check
          %p348 = pneg %p258
        $region50: #{tpu_custom_call.1} parent=11 // pred_check_branch
          %350 = sbr.rel (%p348) target = $region52
        $region51: #{tpu_custom_call.1} parent=11 // pred_region
          _
        $region52: #{tpu_custom_call.1} parent=11 // pred_fallthru
          _
      $region12: #{tpu_custom_call.1} parent=5 // pred_fallthru
        _
      %p351 = scmp.lt.s32.totalorder %s22, 2
      // Predicated region
      $region53: #{tpu_custom_call.1} parent=5 // pred_check
        %p352 = pneg %p351
      $region54: #{tpu_custom_call.1} parent=5 // pred_check_branch
        %354 = sbr.rel (%p352) target = $region56
      $region55: #{tpu_custom_call.1} parent=5 // pred_region
        // Predicated region
        $region57: #{tpu_custom_call.1} parent=55 // pred_check
          %p355 = pneg %p42
        $region58: #{tpu_custom_call.1} parent=55 // pred_check_branch
          %357 = sbr.rel (%p355) target = $region60
        $region59: #{tpu_custom_call.1} parent=55 // pred_region
          %p358 = scmp.lt.s32.totalorder %s22, 1
          %s359 = scalar_select %p358, %s22, 1
          %s360 = smul.addr %s359, 54
          %s361 = smul.addr %s360, 4
          %s362 = scalar_lea.vmem %s0, %s361
        $region60: #{tpu_custom_call.1} parent=55 // pred_fallthru
          _
      $region56: #{tpu_custom_call.1} parent=5 // pred_fallthru
        _
      %p363 = scmp.le.s32.totalorder 1, %s22
      %p364 = scmp.lt.s32.totalorder %s22, 3
      %p365 = pnand %p363, %p364
      %p366 = pneg %p365
      // Predicated region
      $region61: #{tpu_custom_call.1} parent=5 // pred_check
        _
      $region62: #{tpu_custom_call.1} parent=5 // pred_check_branch
        %368 = sbr.rel (%p365) target = $region64
      $region63: #{tpu_custom_call.1} parent=5 // pred_region
        %s369 = ssub.s32 %s22, 1
        // Predicated region
        $region65: #{tpu_custom_call.1} parent=63 // pred_check
          %p370 = pneg %p90
        $region66: #{tpu_custom_call.1} parent=63 // pred_check_branch
          %372 = sbr.rel (%p370) target = $region68
        $region67: #{tpu_custom_call.1} parent=63 // pred_region
          %374 = dma.done [#allocation5], 9216
        $region68: #{tpu_custom_call.1} parent=63 // pred_fallthru
          _
        // Predicated region
        $region69: #{tpu_custom_call.1} parent=63 // pred_check
          %p375 = pneg %p111
        $region70: #{tpu_custom_call.1} parent=63 // pred_check_branch
          %377 = sbr.rel (%p375) target = $region72
        $region71: #{tpu_custom_call.1} parent=63 // pred_region
          %379 = dma.done [#allocation8], 9216
        $region72: #{tpu_custom_call.1} parent=63 // pred_fallthru
          _
        %p380 = scmp.lt.s32.totalorder %s27, 1
        %s381 = scalar_select %p380, %s27, 1
        %s382 = smul.addr %s381, 54
        %s383 = smul.addr %s382, 4
        %s384 = scalar_lea.vmem %s0, %s383
        %p385 = pneg %p48
        %p386 = pneg %p45
        %p387 = pneg %p69
        %p388 = pneg %p66
        %p389 = pneg %p90
        %p390 = pneg %p87
        %p391 = pneg %p111
        %p392 = pneg %p108
        %p393 = pneg %p132
        %p394 = pneg %p129
        %p395 = pneg %p153
        %p396 = pneg %p150
        %p397 = pneg %p174
        %p398 = pneg %p171
        %p399 = pneg %p195
        %p400 = pneg %p192
        %p401 = pneg %p216
        %p402 = pneg %p213
        %p403 = pneg %p237
        %p404 = pneg %p234
        %p405 = pneg %p258
        %p406 = pneg %p255
        %p407 = pneg %p284
        %p408 = pneg %p281
        %s409 = sand.u32 %s271, 1
        %s410 = scalar_lea.sflag [#allocation6], %s409
        %s411 = sand.u32 %s271, 1
        %s412 = smul.addr %s411, 128
        %s413 = scalar_lea.vmem [#allocation9], %s412
        %p414 = scmp.lt.s32.totalorder %s27, 1
        %s415 = scalar_select %p414, %s27, 1
        %s416 = smul.addr %s415, 54
        %s417 = smul.addr %s416, 4
        %s418 = scalar_lea.vmem %s0, %s417
        %v419 = vld [vmem:[%s418] sm:$0xf]
        %v420 = vld [vmem:[%s418 + $0x4] sm:$0xf]
        %v421 = vld [vmem:[%s418 + $0xc] sm:$0xf]
        %v422 = vld [vmem:[%s418 + $0x10] sm:$0xf]
        %v423 = vld [vmem:[%s418 + $0x18] sm:$0xf]
        %v424 = vld [vmem:[%s418 + $0x1c] sm:$0xf]
        %v425 = vld [vmem:[%s418 + $0x24] sm:$0xf]
        %v426 = vld [vmem:[%s418 + $0x28] sm:$0xf]
        %v427 = vld [vmem:[%s418 + $0x30] sm:$0xf]
        %v428 = vld [vmem:[%s418 + $0x34] sm:$0xf]
        %v429 = vld [vmem:[%s418 + $0x3c] sm:$0xf]
        %v430 = vld [vmem:[%s418 + $0x40] sm:$0xf]
        %v431 = vld [vmem:[%s418 + $0x48] sm:$0xf]
        %v432 = vld [vmem:[%s418 + $0x4c] sm:$0xf]
        %v433 = vld [vmem:[%s418 + $0x54] sm:$0xf]
        %v434 = vld [vmem:[%s418 + $0x58] sm:$0xf]
        %v435 = vld [vmem:[%s418 + $0x60] sm:$0xf]
        %v436 = vld [vmem:[%s418 + $0x64] sm:$0xf]
        %v437 = vld [vmem:[%s418 + $0x6c] sm:$0xf]
        %v438 = vld [vmem:[%s418 + $0x70] sm:$0xf]
        %v439 = vld [vmem:[%s418 + $0x78] sm:$0xf]
        %v440 = vld [vmem:[%s418 + $0x7c] sm:$0xf]
        %v441 = vld [vmem:[%s418 + $0x84] sm:$0xf]
        %v442 = vld [vmem:[%s418 + $0x88] sm:$0xf]
        %v443 = vld [vmem:[%s418 + $0x90] sm:$0xf]
        %v444 = vld [vmem:[%s418 + $0x94] sm:$0xf]
        %v445 = vld [vmem:[%s418 + $0x9c] sm:$0xf]
        %v446 = vld [vmem:[%s418 + $0xa0] sm:$0xf]
        %v447 = vld [vmem:[%s418 + $0xa8] sm:$0xf]
        %v448 = vld [vmem:[%s418 + $0xac] sm:$0xf]
        %v449 = vld [vmem:[%s418 + $0xb4] sm:$0xf]
        %v450 = vld [vmem:[%s418 + $0xb8] sm:$0xf]
        %v451 = vld [vmem:[%s1] sm:$0xf]
        %v452 = vld [vmem:[%s1 + $0x4] sm:$0xf]
        %v453 = vld [vmem:[%s1 + $0x8] sm:$0xf]
        %v454 = vld [vmem:[%s1 + $0xc] sm:$0xf]
        %v455 = vld [vmem:[%s1 + $0x10] sm:$0xf]
        %v456 = vld [vmem:[%s1 + $0x14] sm:$0xf]
        %v457 = vld [vmem:[%s1 + $0x18] sm:$0xf]
        %v458 = vld [vmem:[%s1 + $0x1c] sm:$0xf]
        %v459 = vld [vmem:[%s1 + $0x20] sm:$0xf]
        %v460 = vld [vmem:[%s1 + $0x24] sm:$0xf]
        %v461 = vld [vmem:[%s1 + $0x28] sm:$0xf]
        %v462 = vld [vmem:[%s1 + $0x2c] sm:$0xf]
        %v463 = vld [vmem:[%s1 + $0x30] sm:$0xf]
        %v464 = vld [vmem:[%s1 + $0x34] sm:$0xf]
        %v465 = vld [vmem:[%s1 + $0x38] sm:$0xf]
        %v466 = vld [vmem:[%s1 + $0x3c] sm:$0xf]
        %v467 = vld [vmem:[%s418 + $0x8] sm:$0x1]
        %v468 = vld [vmem:[%s418 + $0x14] sm:$0x1]
        %v469 = vld [vmem:[%s418 + $0x20] sm:$0x1]
        %v470 = vld [vmem:[%s418 + $0x2c] sm:$0x1]
        %v471 = vld [vmem:[%s418 + $0x38] sm:$0x1]
        %v472 = vld [vmem:[%s418 + $0x44] sm:$0x1]
        %v473 = vld [vmem:[%s418 + $0x50] sm:$0x1]
        %v474 = vld [vmem:[%s418 + $0x5c] sm:$0x1]
        %v475 = vld [vmem:[%s418 + $0x68] sm:$0x1]
        %v476 = vld [vmem:[%s418 + $0x74] sm:$0x1]
        %v477 = vld [vmem:[%s418 + $0x80] sm:$0x1]
        %v478 = vld [vmem:[%s418 + $0x8c] sm:$0x1]
        %v479 = vld [vmem:[%s418 + $0x98] sm:$0x1]
        %v480 = vld [vmem:[%s418 + $0xa4] sm:$0x1]
        %v481 = vld [vmem:[%s418 + $0xb0] sm:$0x1]
        %v482 = vld [vmem:[%s418 + $0xbc] sm:$0x1]
        %vm483 = vsmask.f32 3328
        %vm484 = vsmask.f32 7440
        %vm485 = vmor %vm483, %vm484
        %v487 = vshrl.u32 %v419, 16
        %v489 = vrot.slane %v487, 4
        %v490 = vshll.u32 %v419, 16
        %v492 = vrot.slane %v490, 5
        %v493 = vor.u32 %v489, %v492
        %v494 = vrot.slane %v493, 4
        %v496 = vshll.u32 %v420, 16
        %v498 = vrot.slane %v496, 5
        %v499 = vsel %vm485, %v494, %v498
        %v500 = vshrl.u32 %v420, 16
        %v502 = vrot.slane %v500, 4
        %v503 = vor.u32 %v502, %v498
        %v504 = vrot.slane %v503, 4
        %v506 = vshll.u32 %v467, 16
        %v508 = vrot.slane %v506, 5
        %v509 = vsel %vm485, %v504, %v508
        %v511 = vshrl.u32 %v421, 16
        %v513 = vrot.slane %v511, 4
        %v514 = vshll.u32 %v421, 16
        %v516 = vrot.slane %v514, 5
        %v517 = vor.u32 %v513, %v516
        %v518 = vrot.slane %v517, 4
        %v520 = vshll.u32 %v422, 16
        %v522 = vrot.slane %v520, 5
        %v523 = vsel %vm485, %v518, %v522
        %v524 = vshrl.u32 %v422, 16
        %v526 = vrot.slane %v524, 4
        %v527 = vor.u32 %v526, %v522
        %v528 = vrot.slane %v527, 4
        %v530 = vshll.u32 %v468, 16
        %v532 = vrot.slane %v530, 5
        %v533 = vsel %vm485, %v528, %v532
        %v535 = vshrl.u32 %v423, 16
        %v537 = vrot.slane %v535, 4
        %v538 = vshll.u32 %v423, 16
        %v540 = vrot.slane %v538, 5
        %v541 = vor.u32 %v537, %v540
        %v542 = vrot.slane %v541, 4
        %v544 = vshll.u32 %v424, 16
        %v546 = vrot.slane %v544, 5
        %v547 = vsel %vm485, %v542, %v546
        %v548 = vshrl.u32 %v424, 16
        %v550 = vrot.slane %v548, 4
        %v551 = vor.u32 %v550, %v546
        %v552 = vrot.slane %v551, 4
        %v554 = vshll.u32 %v469, 16
        %v556 = vrot.slane %v554, 5
        %v557 = vsel %vm485, %v552, %v556
        %v559 = vshrl.u32 %v425, 16
        %v561 = vrot.slane %v559, 4
        %v562 = vshll.u32 %v425, 16
        %v564 = vrot.slane %v562, 5
        %v565 = vor.u32 %v561, %v564
        %v566 = vrot.slane %v565, 4
        %v568 = vshll.u32 %v426, 16
        %v570 = vrot.slane %v568, 5
        %v571 = vsel %vm485, %v566, %v570
        %v572 = vshrl.u32 %v426, 16
        %v574 = vrot.slane %v572, 4
        %v575 = vor.u32 %v574, %v570
        %v576 = vrot.slane %v575, 4
        %v578 = vshll.u32 %v470, 16
        %v580 = vrot.slane %v578, 5
        %v581 = vsel %vm485, %v576, %v580
        %v583 = vshrl.u32 %v427, 16
        %v585 = vrot.slane %v583, 4
        %v586 = vshll.u32 %v427, 16
        %v588 = vrot.slane %v586, 5
        %v589 = vor.u32 %v585, %v588
        %v590 = vrot.slane %v589, 4
        %v592 = vshll.u32 %v428, 16
        %v594 = vrot.slane %v592, 5
        %v595 = vsel %vm485, %v590, %v594
        %v596 = vshrl.u32 %v428, 16
        %v598 = vrot.slane %v596, 4
        %v599 = vor.u32 %v598, %v594
        %v600 = vrot.slane %v599, 4
        %v602 = vshll.u32 %v471, 16
        %v604 = vrot.slane %v602, 5
        %v605 = vsel %vm485, %v600, %v604
        %v607 = vshrl.u32 %v429, 16
        %v609 = vrot.slane %v607, 4
        %v610 = vshll.u32 %v429, 16
        %v612 = vrot.slane %v610, 5
        %v613 = vor.u32 %v609, %v612
        %v614 = vrot.slane %v613, 4
        %v616 = vshll.u32 %v430, 16
        %v618 = vrot.slane %v616, 5
        %v619 = vsel %vm485, %v614, %v618
        %v620 = vshrl.u32 %v430, 16
        %v622 = vrot.slane %v620, 4
        %v623 = vor.u32 %v622, %v618
        %v624 = vrot.slane %v623, 4
        %v626 = vshll.u32 %v472, 16
        %v628 = vrot.slane %v626, 5
        %v629 = vsel %vm485, %v624, %v628
        %v631 = vshrl.u32 %v431, 16
        %v633 = vrot.slane %v631, 4
        %v634 = vshll.u32 %v431, 16
        %v636 = vrot.slane %v634, 5
        %v637 = vor.u32 %v633, %v636
        %v638 = vrot.slane %v637, 4
        %v640 = vshll.u32 %v432, 16
        %v642 = vrot.slane %v640, 5
        %v643 = vsel %vm485, %v638, %v642
        %v644 = vshrl.u32 %v432, 16
        %v646 = vrot.slane %v644, 4
        %v647 = vor.u32 %v646, %v642
        %v648 = vrot.slane %v647, 4
        %v650 = vshll.u32 %v473, 16
        %v652 = vrot.slane %v650, 5
        %v653 = vsel %vm485, %v648, %v652
        %v655 = vshrl.u32 %v433, 16
        %v657 = vrot.slane %v655, 4
        %v658 = vshll.u32 %v433, 16
        %v660 = vrot.slane %v658, 5
        %v661 = vor.u32 %v657, %v660
        %v662 = vrot.slane %v661, 4
        %v664 = vshll.u32 %v434, 16
        %v666 = vrot.slane %v664, 5
        %v667 = vsel %vm485, %v662, %v666
        %v668 = vshrl.u32 %v434, 16
        %v670 = vrot.slane %v668, 4
        %v671 = vor.u32 %v670, %v666
        %v672 = vrot.slane %v671, 4
        %v674 = vshll.u32 %v474, 16
        %v676 = vrot.slane %v674, 5
        %v677 = vsel %vm485, %v672, %v676
        %v679 = vshrl.u32 %v435, 16
        %v681 = vrot.slane %v679, 4
        %v682 = vshll.u32 %v435, 16
        %v684 = vrot.slane %v682, 5
        %v685 = vor.u32 %v681, %v684
        %v686 = vrot.slane %v685, 4
        %v688 = vshll.u32 %v436, 16
        %v690 = vrot.slane %v688, 5
        %v691 = vsel %vm485, %v686, %v690
        %v692 = vshrl.u32 %v436, 16
        %v694 = vrot.slane %v692, 4
        %v695 = vor.u32 %v694, %v690
        %v696 = vrot.slane %v695, 4
        %v698 = vshll.u32 %v475, 16
        %v700 = vrot.slane %v698, 5
        %v701 = vsel %vm485, %v696, %v700
        %v703 = vshrl.u32 %v437, 16
        %v705 = vrot.slane %v703, 4
        %v706 = vshll.u32 %v437, 16
        %v708 = vrot.slane %v706, 5
        %v709 = vor.u32 %v705, %v708
        %v710 = vrot.slane %v709, 4
        %v712 = vshll.u32 %v438, 16
        %v714 = vrot.slane %v712, 5
        %v715 = vsel %vm485, %v710, %v714
        %v716 = vshrl.u32 %v438, 16
        %v718 = vrot.slane %v716, 4
        %v719 = vor.u32 %v718, %v714
        %v720 = vrot.slane %v719, 4
        %v722 = vshll.u32 %v476, 16
        %v724 = vrot.slane %v722, 5
        %v725 = vsel %vm485, %v720, %v724
        %v727 = vshrl.u32 %v439, 16
        %v729 = vrot.slane %v727, 4
        %v730 = vshll.u32 %v439, 16
        %v732 = vrot.slane %v730, 5
        %v733 = vor.u32 %v729, %v732
        %v734 = vrot.slane %v733, 4
        %v736 = vshll.u32 %v440, 16
        %v738 = vrot.slane %v736, 5
        %v739 = vsel %vm485, %v734, %v738
        %v740 = vshrl.u32 %v440, 16
        %v742 = vrot.slane %v740, 4
        %v743 = vor.u32 %v742, %v738
        %v744 = vrot.slane %v743, 4
        %v746 = vshll.u32 %v477, 16
        %v748 = vrot.slane %v746, 5
        %v749 = vsel %vm485, %v744, %v748
        %v751 = vshrl.u32 %v441, 16
        %v753 = vrot.slane %v751, 4
        %v754 = vshll.u32 %v441, 16
        %v756 = vrot.slane %v754, 5
        %v757 = vor.u32 %v753, %v756
        %v758 = vrot.slane %v757, 4
        %v760 = vshll.u32 %v442, 16
        %v762 = vrot.slane %v760, 5
        %v763 = vsel %vm485, %v758, %v762
        %v764 = vshrl.u32 %v442, 16
        %v766 = vrot.slane %v764, 4
        %v767 = vor.u32 %v766, %v762
        %v768 = vrot.slane %v767, 4
        %v770 = vshll.u32 %v478, 16
        %v772 = vrot.slane %v770, 5
        %v773 = vsel %vm485, %v768, %v772
        %v775 = vshrl.u32 %v443, 16
        %v777 = vrot.slane %v775, 4
        %v778 = vshll.u32 %v443, 16
        %v780 = vrot.slane %v778, 5
        %v781 = vor.u32 %v777, %v780
        %v782 = vrot.slane %v781, 4
        %v784 = vshll.u32 %v444, 16
        %v786 = vrot.slane %v784, 5
        %v787 = vsel %vm485, %v782, %v786
        %v788 = vshrl.u32 %v444, 16
        %v790 = vrot.slane %v788, 4
        %v791 = vor.u32 %v790, %v786
        %v792 = vrot.slane %v791, 4
        %v794 = vshll.u32 %v479, 16
        %v796 = vrot.slane %v794, 5
        %v797 = vsel %vm485, %v792, %v796
        %v799 = vshrl.u32 %v445, 16
        %v801 = vrot.slane %v799, 4
        %v802 = vshll.u32 %v445, 16
        %v804 = vrot.slane %v802, 5
        %v805 = vor.u32 %v801, %v804
        %v806 = vrot.slane %v805, 4
        %v808 = vshll.u32 %v446, 16
        %v810 = vrot.slane %v808, 5
        %v811 = vsel %vm485, %v806, %v810
        %v812 = vshrl.u32 %v446, 16
        %v814 = vrot.slane %v812, 4
        %v815 = vor.u32 %v814, %v810
        %v816 = vrot.slane %v815, 4
        %v818 = vshll.u32 %v480, 16
        %v820 = vrot.slane %v818, 5
        %v821 = vsel %vm485, %v816, %v820
        %v823 = vshrl.u32 %v447, 16
        %v825 = vrot.slane %v823, 4
        %v826 = vshll.u32 %v447, 16
        %v828 = vrot.slane %v826, 5
        %v829 = vor.u32 %v825, %v828
        %v830 = vrot.slane %v829, 4
        %v832 = vshll.u32 %v448, 16
        %v834 = vrot.slane %v832, 5
        %v835 = vsel %vm485, %v830, %v834
        %v836 = vshrl.u32 %v448, 16
        %v838 = vrot.slane %v836, 4
        %v839 = vor.u32 %v838, %v834
        %v840 = vrot.slane %v839, 4
        %v842 = vshll.u32 %v481, 16
        %v844 = vrot.slane %v842, 5
        %v845 = vsel %vm485, %v840, %v844
        %v847 = vshrl.u32 %v449, 16
        %v849 = vrot.slane %v847, 4
        %v850 = vshll.u32 %v449, 16
        %v852 = vrot.slane %v850, 5
        %v853 = vor.u32 %v849, %v852
        %v854 = vrot.slane %v853, 4
        %v856 = vshll.u32 %v450, 16
        %v858 = vrot.slane %v856, 5
        %v859 = vsel %vm485, %v854, %v858
        %v860 = vshrl.u32 %v450, 16
        %v862 = vrot.slane %v860, 4
        %v863 = vor.u32 %v862, %v858
        %v864 = vrot.slane %v863, 4
        %v866 = vshll.u32 %v482, 16
        %v868 = vrot.slane %v866, 5
        %v869 = vsel %vm485, %v864, %v868
        %s870 = scalar_lea.vmem %s1, 64
        %v871 = vld [vmem:[%s870] sm:$0xf]
        %v872 = vld [vmem:[%s870 + $0x4] sm:$0xf]
        %v873 = vld [vmem:[%s870 + $0x8] sm:$0xf]
        %v874 = vld [vmem:[%s870 + $0xc] sm:$0xf]
        %v875 = vld [vmem:[%s870 + $0x10] sm:$0xf]
        %v876 = vld [vmem:[%s870 + $0x14] sm:$0xf]
        %v877 = vld [vmem:[%s870 + $0x18] sm:$0xf]
        %v878 = vld [vmem:[%s870 + $0x1c] sm:$0xf]
        %v879 = vld [vmem:[%s870 + $0x20] sm:$0xf]
        %v880 = vld [vmem:[%s870 + $0x24] sm:$0xf]
        %v881 = vld [vmem:[%s870 + $0x28] sm:$0xf]
        %v882 = vld [vmem:[%s870 + $0x2c] sm:$0xf]
        %v883 = vld [vmem:[%s870 + $0x30] sm:$0xf]
        %v884 = vld [vmem:[%s870 + $0x34] sm:$0xf]
        %v885 = vld [vmem:[%s870 + $0x38] sm:$0xf]
        %v886 = vld [vmem:[%s870 + $0x3c] sm:$0xf]
        %v887 = vunpack.c.l.b16 %v499
        %v888 = vunpack.c.l.b16 %v509
        %v889 = vunpack.c.l.b16 %v523
        %v890 = vunpack.c.l.b16 %v533
        %v891 = vunpack.c.l.b16 %v547
        %v892 = vunpack.c.l.b16 %v557
        %v893 = vunpack.c.l.b16 %v571
        %v894 = vunpack.c.l.b16 %v581
        %v895 = vunpack.c.l.b16 %v595
        %v896 = vunpack.c.l.b16 %v605
        %v897 = vunpack.c.l.b16 %v619
        %v898 = vunpack.c.l.b16 %v629
        %v899 = vunpack.c.l.b16 %v643
        %v900 = vunpack.c.l.b16 %v653
        %v901 = vunpack.c.l.b16 %v667
        %v902 = vunpack.c.l.b16 %v677
        %v903 = vunpack.c.l.b16 %v691
        %v904 = vunpack.c.l.b16 %v701
        %v905 = vunpack.c.l.b16 %v715
        %v906 = vunpack.c.l.b16 %v725
        %v907 = vunpack.c.l.b16 %v739
        %v908 = vunpack.c.l.b16 %v749
        %v909 = vunpack.c.l.b16 %v763
        %v910 = vunpack.c.l.b16 %v773
        %v911 = vunpack.c.l.b16 %v787
        %v912 = vunpack.c.l.b16 %v797
        %v913 = vunpack.c.l.b16 %v811
        %v914 = vunpack.c.l.b16 %v821
        %v915 = vunpack.c.l.b16 %v835
        %v916 = vunpack.c.l.b16 %v845
        %v917 = vunpack.c.l.b16 %v859
        %v918 = vunpack.c.l.b16 %v869
        %v919 = vpack.c.b16 %v888, %v887
        %v920 = vpack.c.b16 %v890, %v889
        %v921 = vpack.c.b16 %v892, %v891
        %v922 = vpack.c.b16 %v894, %v893
        %v923 = vpack.c.b16 %v896, %v895
        %v924 = vpack.c.b16 %v898, %v897
        %v925 = vpack.c.b16 %v900, %v899
        %v926 = vpack.c.b16 %v902, %v901
        %v927 = vpack.c.b16 %v904, %v903
        %v928 = vpack.c.b16 %v906, %v905
        %v929 = vpack.c.b16 %v908, %v907
        %v930 = vpack.c.b16 %v910, %v909
        %v931 = vpack.c.b16 %v912, %v911
        %v932 = vpack.c.b16 %v914, %v913
        %v933 = vpack.c.b16 %v916, %v915
        %v934 = vpack.c.b16 %v918, %v917
        %v967 = vunpack.c.l.b16 %v871
        %v968 = vunpack.c.l.b16 %v872
        %v969 = vunpack.c.l.b16 %v873
        %v970 = vunpack.c.l.b16 %v874
        %v971 = vunpack.c.l.b16 %v875
        %v972 = vunpack.c.l.b16 %v876
        %v973 = vunpack.c.l.b16 %v877
        %v974 = vunpack.c.l.b16 %v878
        %v975 = vunpack.c.l.b16 %v879
        %v976 = vunpack.c.l.b16 %v880
        %v977 = vunpack.c.l.b16 %v881
        %v978 = vunpack.c.l.b16 %v882
        %v979 = vunpack.c.l.b16 %v883
        %v980 = vunpack.c.l.b16 %v884
        %v981 = vunpack.c.l.b16 %v885
        %v982 = vunpack.c.l.b16 %v886
        %v983 = vpack.c.b16 %v968, %v967
        %v984 = vpack.c.b16 %v970, %v969
        %v985 = vpack.c.b16 %v972, %v971
        %v986 = vpack.c.b16 %v974, %v973
        %v987 = vpack.c.b16 %v976, %v975
        %v988 = vpack.c.b16 %v978, %v977
        %v989 = vpack.c.b16 %v980, %v979
        %v990 = vpack.c.b16 %v982, %v981
        %999 = vmatpush.bf16.msra.mxu0 %v990
        %1000 = vmatpush.bf16.msra.mxu0 %v989
        %1001 = vmatpush.bf16.msra.mxu0 %v988
        %1002 = vmatpush.bf16.msra.mxu0 %v987
        %1003 = vmatpush.bf16.msra.mxu0 %v986
        %1004 = vmatpush.bf16.msra.mxu0 %v985
        %1005 = vmatpush.bf16.msra.mxu0 %v984
        %1006 = vmatpush.bf16.msra.mxu0 %v983
        %1007 = vmatmul.bf16.gmra.mxu0 %v919
        %v1008 = vpop.f32.mrf.mxu0
        %v1009 = vadd.f32 0.0, %v1008
        %v1010 = vpop.f32.mrf.mxu0
        %v1011 = vadd.f32 0.0, %v1010
        %1012 = vmatmul.bf16.gmra.mxu0 %v920
        %v1013 = vpop.f32.mrf.mxu0
        %v1014 = vadd.f32 0.0, %v1013
        %v1015 = vpop.f32.mrf.mxu0
        %v1016 = vadd.f32 0.0, %v1015
        %1017 = vmatmul.bf16.gmra.mxu0 %v921
        %v1018 = vpop.f32.mrf.mxu0
        %v1019 = vadd.f32 0.0, %v1018
        %v1020 = vpop.f32.mrf.mxu0
        %v1021 = vadd.f32 0.0, %v1020
        %1022 = vmatmul.bf16.gmra.mxu0 %v922
        %v1023 = vpop.f32.mrf.mxu0
        %v1024 = vadd.f32 0.0, %v1023
        %v1025 = vpop.f32.mrf.mxu0
        %v1026 = vadd.f32 0.0, %v1025
        %1027 = vmatmul.bf16.gmra.mxu0 %v923
        %v1028 = vpop.f32.mrf.mxu0
        %v1029 = vadd.f32 0.0, %v1028
        %v1030 = vpop.f32.mrf.mxu0
        %v1031 = vadd.f32 0.0, %v1030
        %1032 = vmatmul.bf16.gmra.mxu0 %v924
        %v1033 = vpop.f32.mrf.mxu0
        %v1034 = vadd.f32 0.0, %v1033
        %v1035 = vpop.f32.mrf.mxu0
        %v1036 = vadd.f32 0.0, %v1035
        %1037 = vmatmul.bf16.gmra.mxu0 %v925
        %v1038 = vpop.f32.mrf.mxu0
        %v1039 = vadd.f32 0.0, %v1038
        %v1040 = vpop.f32.mrf.mxu0
        %v1041 = vadd.f32 0.0, %v1040
        %1042 = vmatmul.bf16.gmra.mxu0 %v926
        %v1043 = vpop.f32.mrf.mxu0
        %v1044 = vadd.f32 0.0, %v1043
        %v1045 = vpop.f32.mrf.mxu0
        %v1046 = vadd.f32 0.0, %v1045
        %1047 = vmatmul.bf16.gmra.mxu0 %v927
        %v1048 = vpop.f32.mrf.mxu0
        %v1049 = vadd.f32 0.0, %v1048
        %v1050 = vpop.f32.mrf.mxu0
        %v1051 = vadd.f32 0.0, %v1050
        %1052 = vmatmul.bf16.gmra.mxu0 %v928
        %v1053 = vpop.f32.mrf.mxu0
        %v1054 = vadd.f32 0.0, %v1053
        %v1055 = vpop.f32.mrf.mxu0
        %v1056 = vadd.f32 0.0, %v1055
        %1057 = vmatmul.bf16.gmra.mxu0 %v929
        %v1058 = vpop.f32.mrf.mxu0
        %v1059 = vadd.f32 0.0, %v1058
        %v1060 = vpop.f32.mrf.mxu0
        %v1061 = vadd.f32 0.0, %v1060
        %1062 = vmatmul.bf16.gmra.mxu0 %v930
        %v1063 = vpop.f32.mrf.mxu0
        %v1064 = vadd.f32 0.0, %v1063
        %v1065 = vpop.f32.mrf.mxu0
        %v1066 = vadd.f32 0.0, %v1065
        %1067 = vmatmul.bf16.gmra.mxu0 %v931
        %v1068 = vpop.f32.mrf.mxu0
        %v1069 = vadd.f32 0.0, %v1068
        %v1070 = vpop.f32.mrf.mxu0
        %v1071 = vadd.f32 0.0, %v1070
        %1072 = vmatmul.bf16.gmra.mxu0 %v932
        %v1073 = vpop.f32.mrf.mxu0
        %v1074 = vadd.f32 0.0, %v1073
        %v1075 = vpop.f32.mrf.mxu0
        %v1076 = vadd.f32 0.0, %v1075
        %1077 = vmatmul.bf16.gmra.mxu0 %v933
        %v1078 = vpop.f32.mrf.mxu0
        %v1079 = vadd.f32 0.0, %v1078
        %v1080 = vpop.f32.mrf.mxu0
        %v1081 = vadd.f32 0.0, %v1080
        %1082 = vmatmul.bf16.gmra.mxu0 %v934
        %v1083 = vpop.f32.mrf.mxu0
        %v1084 = vadd.f32 0.0, %v1083
        %v1085 = vpop.f32.mrf.mxu0
        %v1086 = vadd.f32 0.0, %v1085
        %1087 = vdwg.mxu0
        %v1120 = vunpack.c.l.b16 %v419
        %v1121 = vunpack.c.l.b16 %v420
        %v1122 = vunpack.c.l.b16 %v421
        %v1123 = vunpack.c.l.b16 %v422
        %v1124 = vunpack.c.l.b16 %v423
        %v1125 = vunpack.c.l.b16 %v424
        %v1126 = vunpack.c.l.b16 %v425
        %v1127 = vunpack.c.l.b16 %v426
        %v1128 = vunpack.c.l.b16 %v427
        %v1129 = vunpack.c.l.b16 %v428
        %v1130 = vunpack.c.l.b16 %v429
        %v1131 = vunpack.c.l.b16 %v430
        %v1132 = vunpack.c.l.b16 %v431
        %v1133 = vunpack.c.l.b16 %v432
        %v1134 = vunpack.c.l.b16 %v433
        %v1135 = vunpack.c.l.b16 %v434
        %v1136 = vunpack.c.l.b16 %v435
        %v1137 = vunpack.c.l.b16 %v436
        %v1138 = vunpack.c.l.b16 %v437
        %v1139 = vunpack.c.l.b16 %v438
        %v1140 = vunpack.c.l.b16 %v439
        %v1141 = vunpack.c.l.b16 %v440
        %v1142 = vunpack.c.l.b16 %v441
        %v1143 = vunpack.c.l.b16 %v442
        %v1144 = vunpack.c.l.b16 %v443
        %v1145 = vunpack.c.l.b16 %v444
        %v1146 = vunpack.c.l.b16 %v445
        %v1147 = vunpack.c.l.b16 %v446
        %v1148 = vunpack.c.l.b16 %v447
        %v1149 = vunpack.c.l.b16 %v448
        %v1150 = vunpack.c.l.b16 %v449
        %v1151 = vunpack.c.l.b16 %v450
        %v1152 = vpack.c.b16 %v1121, %v1120
        %v1153 = vpack.c.b16 %v1123, %v1122
        %v1154 = vpack.c.b16 %v1125, %v1124
        %v1155 = vpack.c.b16 %v1127, %v1126
        %v1156 = vpack.c.b16 %v1129, %v1128
        %v1157 = vpack.c.b16 %v1131, %v1130
        %v1158 = vpack.c.b16 %v1133, %v1132
        %v1159 = vpack.c.b16 %v1135, %v1134
        %v1160 = vpack.c.b16 %v1137, %v1136
        %v1161 = vpack.c.b16 %v1139, %v1138
        %v1162 = vpack.c.b16 %v1141, %v1140
        %v1163 = vpack.c.b16 %v1143, %v1142
        %v1164 = vpack.c.b16 %v1145, %v1144
        %v1165 = vpack.c.b16 %v1147, %v1146
        %v1166 = vpack.c.b16 %v1149, %v1148
        %v1167 = vpack.c.b16 %v1151, %v1150
        %v1200 = vunpack.c.l.b16 %v451
        %v1201 = vunpack.c.l.b16 %v452
        %v1202 = vunpack.c.l.b16 %v453
        %v1203 = vunpack.c.l.b16 %v454
        %v1204 = vunpack.c.l.b16 %v455
        %v1205 = vunpack.c.l.b16 %v456
        %v1206 = vunpack.c.l.b16 %v457
        %v1207 = vunpack.c.l.b16 %v458
        %v1208 = vunpack.c.l.b16 %v459
        %v1209 = vunpack.c.l.b16 %v460
        %v1210 = vunpack.c.l.b16 %v461
        %v1211 = vunpack.c.l.b16 %v462
        %v1212 = vunpack.c.l.b16 %v463
        %v1213 = vunpack.c.l.b16 %v464
        %v1214 = vunpack.c.l.b16 %v465
        %v1215 = vunpack.c.l.b16 %v466
        %v1216 = vpack.c.b16 %v1201, %v1200
        %v1217 = vpack.c.b16 %v1203, %v1202
        %v1218 = vpack.c.b16 %v1205, %v1204
        %v1219 = vpack.c.b16 %v1207, %v1206
        %v1220 = vpack.c.b16 %v1209, %v1208
        %v1221 = vpack.c.b16 %v1211, %v1210
        %v1222 = vpack.c.b16 %v1213, %v1212
        %v1223 = vpack.c.b16 %v1215, %v1214
        %1232 = vmatpush.bf16.msra.mxu0 %v1223
        %1233 = vmatpush.bf16.msra.mxu0 %v1222
        %1234 = vmatpush.bf16.msra.mxu0 %v1221
        %1235 = vmatpush.bf16.msra.mxu0 %v1220
        %1236 = vmatpush.bf16.msra.mxu0 %v1219
        %1237 = vmatpush.bf16.msra.mxu0 %v1218
        %1238 = vmatpush.bf16.msra.mxu0 %v1217
        %1239 = vmatpush.bf16.msra.mxu0 %v1216
        %1240 = vmatmul.bf16.gmra.mxu0 %v1152
        %v1241 = vpop.f32.mrf.mxu0
        %v1242 = vadd.f32 %v1009, %v1241
        %v1243 = vpop.f32.mrf.mxu0
        %v1244 = vadd.f32 %v1011, %v1243
        %1245 = vmatmul.bf16.gmra.mxu0 %v1153
        %v1246 = vpop.f32.mrf.mxu0
        %v1247 = vadd.f32 %v1014, %v1246
        %v1248 = vpop.f32.mrf.mxu0
        %v1249 = vadd.f32 %v1016, %v1248
        %1250 = vmatmul.bf16.gmra.mxu0 %v1154
        %v1251 = vpop.f32.mrf.mxu0
        %v1252 = vadd.f32 %v1019, %v1251
        %v1253 = vpop.f32.mrf.mxu0
        %v1254 = vadd.f32 %v1021, %v1253
        %1255 = vmatmul.bf16.gmra.mxu0 %v1155
        %v1256 = vpop.f32.mrf.mxu0
        %v1257 = vadd.f32 %v1024, %v1256
        %v1258 = vpop.f32.mrf.mxu0
        %v1259 = vadd.f32 %v1026, %v1258
        %1260 = vmatmul.bf16.gmra.mxu0 %v1156
        %v1261 = vpop.f32.mrf.mxu0
        %v1262 = vadd.f32 %v1029, %v1261
        %v1263 = vpop.f32.mrf.mxu0
        %v1264 = vadd.f32 %v1031, %v1263
        %1265 = vmatmul.bf16.gmra.mxu0 %v1157
        %v1266 = vpop.f32.mrf.mxu0
        %v1267 = vadd.f32 %v1034, %v1266
        %v1268 = vpop.f32.mrf.mxu0
        %v1269 = vadd.f32 %v1036, %v1268
        %1270 = vmatmul.bf16.gmra.mxu0 %v1158
        %v1271 = vpop.f32.mrf.mxu0
        %v1272 = vadd.f32 %v1039, %v1271
        %v1273 = vpop.f32.mrf.mxu0
        %v1274 = vadd.f32 %v1041, %v1273
        %1275 = vmatmul.bf16.gmra.mxu0 %v1159
        %v1276 = vpop.f32.mrf.mxu0
        %v1277 = vadd.f32 %v1044, %v1276
        %v1278 = vpop.f32.mrf.mxu0
        %v1279 = vadd.f32 %v1046, %v1278
        %1280 = vmatmul.bf16.gmra.mxu0 %v1160
        %v1281 = vpop.f32.mrf.mxu0
        %v1282 = vadd.f32 %v1049, %v1281
        %v1283 = vpop.f32.mrf.mxu0
        %v1284 = vadd.f32 %v1051, %v1283
        %1285 = vmatmul.bf16.gmra.mxu0 %v1161
        %v1286 = vpop.f32.mrf.mxu0
        %v1287 = vadd.f32 %v1054, %v1286
        %v1288 = vpop.f32.mrf.mxu0
        %v1289 = vadd.f32 %v1056, %v1288
        %1290 = vmatmul.bf16.gmra.mxu0 %v1162
        %v1291 = vpop.f32.mrf.mxu0
        %v1292 = vadd.f32 %v1059, %v1291
        %v1293 = vpop.f32.mrf.mxu0
        %v1294 = vadd.f32 %v1061, %v1293
        %1295 = vmatmul.bf16.gmra.mxu0 %v1163
        %v1296 = vpop.f32.mrf.mxu0
        %v1297 = vadd.f32 %v1064, %v1296
        %v1298 = vpop.f32.mrf.mxu0
        %v1299 = vadd.f32 %v1066, %v1298
        %1300 = vmatmul.bf16.gmra.mxu0 %v1164
        %v1301 = vpop.f32.mrf.mxu0
        %v1302 = vadd.f32 %v1069, %v1301
        %v1303 = vpop.f32.mrf.mxu0
        %v1304 = vadd.f32 %v1071, %v1303
        %1305 = vmatmul.bf16.gmra.mxu0 %v1165
        %v1306 = vpop.f32.mrf.mxu0
        %v1307 = vadd.f32 %v1074, %v1306
        %v1308 = vpop.f32.mrf.mxu0
        %v1309 = vadd.f32 %v1076, %v1308
        %1310 = vmatmul.bf16.gmra.mxu0 %v1166
        %v1311 = vpop.f32.mrf.mxu0
        %v1312 = vadd.f32 %v1079, %v1311
        %v1313 = vpop.f32.mrf.mxu0
        %v1314 = vadd.f32 %v1081, %v1313
        %1315 = vmatmul.bf16.gmra.mxu0 %v1167
        %v1316 = vpop.f32.mrf.mxu0
        %v1317 = vadd.f32 %v1084, %v1316
        %v1318 = vpop.f32.mrf.mxu0
        %v1319 = vadd.f32 %v1086, %v1318
        %1320 = vdwg.mxu0
        %v1321 = vld [vmem:[%s418] sm:$0xe]
        %v1322 = vld [vmem:[%s418 + $0xc] sm:$0xe]
        %v1323 = vld [vmem:[%s418 + $0x18] sm:$0xe]
        %v1324 = vld [vmem:[%s418 + $0x24] sm:$0xe]
        %v1325 = vld [vmem:[%s418 + $0x30] sm:$0xe]
        %v1326 = vld [vmem:[%s418 + $0x3c] sm:$0xe]
        %v1327 = vld [vmem:[%s418 + $0x48] sm:$0xe]
        %v1328 = vld [vmem:[%s418 + $0x54] sm:$0xe]
        %v1329 = vld [vmem:[%s418 + $0x60] sm:$0xe]
        %v1330 = vld [vmem:[%s418 + $0x6c] sm:$0xe]
        %v1331 = vld [vmem:[%s418 + $0x78] sm:$0xe]
        %v1332 = vld [vmem:[%s418 + $0x84] sm:$0xe]
        %v1333 = vld [vmem:[%s418 + $0x90] sm:$0xe]
        %v1334 = vld [vmem:[%s418 + $0x9c] sm:$0xe]
        %v1335 = vld [vmem:[%s418 + $0xa8] sm:$0xe]
        %v1336 = vld [vmem:[%s418 + $0xb4] sm:$0xe]
        %vm1369 = vcmask 1042432
        %vm1370 = vcmask 1046532
        %vm1371 = vmor %vm1369, %vm1370
        %v1372 = vrot.slane %v1321, 5
        %v1373 = vrot.slane %v1372, 4
        %v1374 = vrot.slane %v420, 5
        %v1375 = vsel %vm1371, %v1373, %v1374
        %v1376 = vrot.slane %v1374, 4
        %v1377 = vrot.slane %v467, 5
        %v1378 = vsel %vm1371, %v1376, %v1377
        %v1379 = vrot.slane %v1322, 5
        %v1380 = vrot.slane %v1379, 4
        %v1381 = vrot.slane %v422, 5
        %v1382 = vsel %vm1371, %v1380, %v1381
        %v1383 = vrot.slane %v1381, 4
        %v1384 = vrot.slane %v468, 5
        %v1385 = vsel %vm1371, %v1383, %v1384
        %v1386 = vrot.slane %v1323, 5
        %v1387 = vrot.slane %v1386, 4
        %v1388 = vrot.slane %v424, 5
        %v1389 = vsel %vm1371, %v1387, %v1388
        %v1390 = vrot.slane %v1388, 4
        %v1391 = vrot.slane %v469, 5
        %v1392 = vsel %vm1371, %v1390, %v1391
        %v1393 = vrot.slane %v1324, 5
        %v1394 = vrot.slane %v1393, 4
        %v1395 = vrot.slane %v426, 5
        %v1396 = vsel %vm1371, %v1394, %v1395
        %v1397 = vrot.slane %v1395, 4
        %v1398 = vrot.slane %v470, 5
        %v1399 = vsel %vm1371, %v1397, %v1398
        %v1400 = vrot.slane %v1325, 5
        %v1401 = vrot.slane %v1400, 4
        %v1402 = vrot.slane %v428, 5
        %v1403 = vsel %vm1371, %v1401, %v1402
        %v1404 = vrot.slane %v1402, 4
        %v1405 = vrot.slane %v471, 5
        %v1406 = vsel %vm1371, %v1404, %v1405
        %v1407 = vrot.slane %v1326, 5
        %v1408 = vrot.slane %v1407, 4
        %v1409 = vrot.slane %v430, 5
        %v1410 = vsel %vm1371, %v1408, %v1409
        %v1411 = vrot.slane %v1409, 4
        %v1412 = vrot.slane %v472, 5
        %v1413 = vsel %vm1371, %v1411, %v1412
        %v1414 = vrot.slane %v1327, 5
        %v1415 = vrot.slane %v1414, 4
        %v1416 = vrot.slane %v432, 5
        %v1417 = vsel %vm1371, %v1415, %v1416
        %v1418 = vrot.slane %v1416, 4
        %v1419 = vrot.slane %v473, 5
        %v1420 = vsel %vm1371, %v1418, %v1419
        %v1421 = vrot.slane %v1328, 5
        %v1422 = vrot.slane %v1421, 4
        %v1423 = vrot.slane %v434, 5
        %v1424 = vsel %vm1371, %v1422, %v1423
        %v1425 = vrot.slane %v1423, 4
        %v1426 = vrot.slane %v474, 5
        %v1427 = vsel %vm1371, %v1425, %v1426
        %v1428 = vrot.slane %v1329, 5
        %v1429 = vrot.slane %v1428, 4
        %v1430 = vrot.slane %v436, 5
        %v1431 = vsel %vm1371, %v1429, %v1430
        %v1432 = vrot.slane %v1430, 4
        %v1433 = vrot.slane %v475, 5
        %v1434 = vsel %vm1371, %v1432, %v1433
        %v1435 = vrot.slane %v1330, 5
        %v1436 = vrot.slane %v1435, 4
        %v1437 = vrot.slane %v438, 5
        %v1438 = vsel %vm1371, %v1436, %v1437
        %v1439 = vrot.slane %v1437, 4
        %v1440 = vrot.slane %v476, 5
        %v1441 = vsel %vm1371, %v1439, %v1440
        %v1442 = vrot.slane %v1331, 5
        %v1443 = vrot.slane %v1442, 4
        %v1444 = vrot.slane %v440, 5
        %v1445 = vsel %vm1371, %v1443, %v1444
        %v1446 = vrot.slane %v1444, 4
        %v1447 = vrot.slane %v477, 5
        %v1448 = vsel %vm1371, %v1446, %v1447
        %v1449 = vrot.slane %v1332, 5
        %v1450 = vrot.slane %v1449, 4
        %v1451 = vrot.slane %v442, 5
        %v1452 = vsel %vm1371, %v1450, %v1451
        %v1453 = vrot.slane %v1451, 4
        %v1454 = vrot.slane %v478, 5
        %v1455 = vsel %vm1371, %v1453, %v1454
        %v1456 = vrot.slane %v1333, 5
        %v1457 = vrot.slane %v1456, 4
        %v1458 = vrot.slane %v444, 5
        %v1459 = vsel %vm1371, %v1457, %v1458
        %v1460 = vrot.slane %v1458, 4
        %v1461 = vrot.slane %v479, 5
        %v1462 = vsel %vm1371, %v1460, %v1461
        %v1463 = vrot.slane %v1334, 5
        %v1464 = vrot.slane %v1463, 4
        %v1465 = vrot.slane %v446, 5
        %v1466 = vsel %vm1371, %v1464, %v1465
        %v1467 = vrot.slane %v1465, 4
        %v1468 = vrot.slane %v480, 5
        %v1469 = vsel %vm1371, %v1467, %v1468
        %v1470 = vrot.slane %v1335, 5
        %v1471 = vrot.slane %v1470, 4
        %v1472 = vrot.slane %v448, 5
        %v1473 = vsel %vm1371, %v1471, %v1472
        %v1474 = vrot.slane %v1472, 4
        %v1475 = vrot.slane %v481, 5
        %v1476 = vsel %vm1371, %v1474, %v1475
        %v1477 = vrot.slane %v1336, 5
        %v1478 = vrot.slane %v1477, 4
        %v1479 = vrot.slane %v450, 5
        %v1480 = vsel %vm1371, %v1478, %v1479
        %v1481 = vrot.slane %v1479, 4
        %v1482 = vrot.slane %v482, 5
        %v1483 = vsel %vm1371, %v1481, %v1482
        %s1484 = scalar_lea.vmem %s1, 128
        %v1485 = vld [vmem:[%s1484] sm:$0xf]
        %v1486 = vld [vmem:[%s1484 + $0x4] sm:$0xf]
        %v1487 = vld [vmem:[%s1484 + $0x8] sm:$0xf]
        %v1488 = vld [vmem:[%s1484 + $0xc] sm:$0xf]
        %v1489 = vld [vmem:[%s1484 + $0x10] sm:$0xf]
        %v1490 = vld [vmem:[%s1484 + $0x14] sm:$0xf]
        %v1491 = vld [vmem:[%s1484 + $0x18] sm:$0xf]
        %v1492 = vld [vmem:[%s1484 + $0x1c] sm:$0xf]
        %v1493 = vld [vmem:[%s1484 + $0x20] sm:$0xf]
        %v1494 = vld [vmem:[%s1484 + $0x24] sm:$0xf]
        %v1495 = vld [vmem:[%s1484 + $0x28] sm:$0xf]
        %v1496 = vld [vmem:[%s1484 + $0x2c] sm:$0xf]
        %v1497 = vld [vmem:[%s1484 + $0x30] sm:$0xf]
        %v1498 = vld [vmem:[%s1484 + $0x34] sm:$0xf]
        %v1499 = vld [vmem:[%s1484 + $0x38] sm:$0xf]
        %v1500 = vld [vmem:[%s1484 + $0x3c] sm:$0xf]
        %v1501 = vunpack.c.l.b16 %v1375
        %v1502 = vunpack.c.l.b16 %v1378
        %v1503 = vunpack.c.l.b16 %v1382
        %v1504 = vunpack.c.l.b16 %v1385
        %v1505 = vunpack.c.l.b16 %v1389
        %v1506 = vunpack.c.l.b16 %v1392
        %v1507 = vunpack.c.l.b16 %v1396
        %v1508 = vunpack.c.l.b16 %v1399
        %v1509 = vunpack.c.l.b16 %v1403
        %v1510 = vunpack.c.l.b16 %v1406
        %v1511 = vunpack.c.l.b16 %v1410
        %v1512 = vunpack.c.l.b16 %v1413
        %v1513 = vunpack.c.l.b16 %v1417
        %v1514 = vunpack.c.l.b16 %v1420
        %v1515 = vunpack.c.l.b16 %v1424
        %v1516 = vunpack.c.l.b16 %v1427
        %v1517 = vunpack.c.l.b16 %v1431
        %v1518 = vunpack.c.l.b16 %v1434
        %v1519 = vunpack.c.l.b16 %v1438
        %v1520 = vunpack.c.l.b16 %v1441
        %v1521 = vunpack.c.l.b16 %v1445
        %v1522 = vunpack.c.l.b16 %v1448
        %v1523 = vunpack.c.l.b16 %v1452
        %v1524 = vunpack.c.l.b16 %v1455
        %v1525 = vunpack.c.l.b16 %v1459
        %v1526 = vunpack.c.l.b16 %v1462
        %v1527 = vunpack.c.l.b16 %v1466
        %v1528 = vunpack.c.l.b16 %v1469
        %v1529 = vunpack.c.l.b16 %v1473
        %v1530 = vunpack.c.l.b16 %v1476
        %v1531 = vunpack.c.l.b16 %v1480
        %v1532 = vunpack.c.l.b16 %v1483
        %v1533 = vpack.c.b16 %v1502, %v1501
        %v1534 = vpack.c.b16 %v1504, %v1503
        %v1535 = vpack.c.b16 %v1506, %v1505
        %v1536 = vpack.c.b16 %v1508, %v1507
        %v1537 = vpack.c.b16 %v1510, %v1509
        %v1538 = vpack.c.b16 %v1512, %v1511
        %v1539 = vpack.c.b16 %v1514, %v1513
        %v1540 = vpack.c.b16 %v1516, %v1515
        %v1541 = vpack.c.b16 %v1518, %v1517
        %v1542 = vpack.c.b16 %v1520, %v1519
        %v1543 = vpack.c.b16 %v1522, %v1521
        %v1544 = vpack.c.b16 %v1524, %v1523
        %v1545 = vpack.c.b16 %v1526, %v1525
        %v1546 = vpack.c.b16 %v1528, %v1527
        %v1547 = vpack.c.b16 %v1530, %v1529
        %v1548 = vpack.c.b16 %v1532, %v1531
        %v1581 = vunpack.c.l.b16 %v1485
        %v1582 = vunpack.c.l.b16 %v1486
        %v1583 = vunpack.c.l.b16 %v1487
        %v1584 = vunpack.c.l.b16 %v1488
        %v1585 = vunpack.c.l.b16 %v1489
        %v1586 = vunpack.c.l.b16 %v1490
        %v1587 = vunpack.c.l.b16 %v1491
        %v1588 = vunpack.c.l.b16 %v1492
        %v1589 = vunpack.c.l.b16 %v1493
        %v1590 = vunpack.c.l.b16 %v1494
        %v1591 = vunpack.c.l.b16 %v1495
        %v1592 = vunpack.c.l.b16 %v1496
        %v1593 = vunpack.c.l.b16 %v1497
        %v1594 = vunpack.c.l.b16 %v1498
        %v1595 = vunpack.c.l.b16 %v1499
        %v1596 = vunpack.c.l.b16 %v1500
        %v1597 = vpack.c.b16 %v1582, %v1581
        %v1598 = vpack.c.b16 %v1584, %v1583
        %v1599 = vpack.c.b16 %v1586, %v1585
        %v1600 = vpack.c.b16 %v1588, %v1587
        %v1601 = vpack.c.b16 %v1590, %v1589
        %v1602 = vpack.c.b16 %v1592, %v1591
        %v1603 = vpack.c.b16 %v1594, %v1593
        %v1604 = vpack.c.b16 %v1596, %v1595
        %1613 = vmatpush.bf16.msra.mxu0 %v1604
        %1614 = vmatpush.bf16.msra.mxu0 %v1603
        %1615 = vmatpush.bf16.msra.mxu0 %v1602
        %1616 = vmatpush.bf16.msra.mxu0 %v1601
        %1617 = vmatpush.bf16.msra.mxu0 %v1600
        %1618 = vmatpush.bf16.msra.mxu0 %v1599
        %1619 = vmatpush.bf16.msra.mxu0 %v1598
        %1620 = vmatpush.bf16.msra.mxu0 %v1597
        %1621 = vmatmul.bf16.gmra.mxu0 %v1533
        %v1622 = vpop.f32.mrf.mxu0
        %v1623 = vadd.f32 0.0, %v1622
        %v1624 = vpop.f32.mrf.mxu0
        %v1625 = vadd.f32 0.0, %v1624
        %1626 = vmatmul.bf16.gmra.mxu0 %v1534
        %v1627 = vpop.f32.mrf.mxu0
        %v1628 = vadd.f32 0.0, %v1627
        %v1629 = vpop.f32.mrf.mxu0
        %v1630 = vadd.f32 0.0, %v1629
        %1631 = vmatmul.bf16.gmra.mxu0 %v1535
        %v1632 = vpop.f32.mrf.mxu0
        %v1633 = vadd.f32 0.0, %v1632
        %v1634 = vpop.f32.mrf.mxu0
        %v1635 = vadd.f32 0.0, %v1634
        %1636 = vmatmul.bf16.gmra.mxu0 %v1536
        %v1637 = vpop.f32.mrf.mxu0
        %v1638 = vadd.f32 0.0, %v1637
        %v1639 = vpop.f32.mrf.mxu0
        %v1640 = vadd.f32 0.0, %v1639
        %1641 = vmatmul.bf16.gmra.mxu0 %v1537
        %v1642 = vpop.f32.mrf.mxu0
        %v1643 = vadd.f32 0.0, %v1642
        %v1644 = vpop.f32.mrf.mxu0
        %v1645 = vadd.f32 0.0, %v1644
        %1646 = vmatmul.bf16.gmra.mxu0 %v1538
        %v1647 = vpop.f32.mrf.mxu0
        %v1648 = vadd.f32 0.0, %v1647
        %v1649 = vpop.f32.mrf.mxu0
        %v1650 = vadd.f32 0.0, %v1649
        %1651 = vmatmul.bf16.gmra.mxu0 %v1539
        %v1652 = vpop.f32.mrf.mxu0
        %v1653 = vadd.f32 0.0, %v1652
        %v1654 = vpop.f32.mrf.mxu0
        %v1655 = vadd.f32 0.0, %v1654
        %1656 = vmatmul.bf16.gmra.mxu0 %v1540
        %v1657 = vpop.f32.mrf.mxu0
        %v1658 = vadd.f32 0.0, %v1657
        %v1659 = vpop.f32.mrf.mxu0
        %v1660 = vadd.f32 0.0, %v1659
        %1661 = vmatmul.bf16.gmra.mxu0 %v1541
        %v1662 = vpop.f32.mrf.mxu0
        %v1663 = vadd.f32 0.0, %v1662
        %v1664 = vpop.f32.mrf.mxu0
        %v1665 = vadd.f32 0.0, %v1664
        %1666 = vmatmul.bf16.gmra.mxu0 %v1542
        %v1667 = vpop.f32.mrf.mxu0
        %v1668 = vadd.f32 0.0, %v1667
        %v1669 = vpop.f32.mrf.mxu0
        %v1670 = vadd.f32 0.0, %v1669
        %1671 = vmatmul.bf16.gmra.mxu0 %v1543
        %v1672 = vpop.f32.mrf.mxu0
        %v1673 = vadd.f32 0.0, %v1672
        %v1674 = vpop.f32.mrf.mxu0
        %v1675 = vadd.f32 0.0, %v1674
        %1676 = vmatmul.bf16.gmra.mxu0 %v1544
        %v1677 = vpop.f32.mrf.mxu0
        %v1678 = vadd.f32 0.0, %v1677
        %v1679 = vpop.f32.mrf.mxu0
        %v1680 = vadd.f32 0.0, %v1679
        %1681 = vmatmul.bf16.gmra.mxu0 %v1545
        %v1682 = vpop.f32.mrf.mxu0
        %v1683 = vadd.f32 0.0, %v1682
        %v1684 = vpop.f32.mrf.mxu0
        %v1685 = vadd.f32 0.0, %v1684
        %1686 = vmatmul.bf16.gmra.mxu0 %v1546
        %v1687 = vpop.f32.mrf.mxu0
        %v1688 = vadd.f32 0.0, %v1687
        %v1689 = vpop.f32.mrf.mxu0
        %v1690 = vadd.f32 0.0, %v1689
        %1691 = vmatmul.bf16.gmra.mxu0 %v1547
        %v1692 = vpop.f32.mrf.mxu0
        %v1693 = vadd.f32 0.0, %v1692
        %v1694 = vpop.f32.mrf.mxu0
        %v1695 = vadd.f32 0.0, %v1694
        %1696 = vmatmul.bf16.gmra.mxu0 %v1548
        %v1697 = vpop.f32.mrf.mxu0
        %v1698 = vadd.f32 0.0, %v1697
        %v1699 = vpop.f32.mrf.mxu0
        %v1700 = vadd.f32 0.0, %v1699
        %1701 = vdwg.mxu0
        %v1702 = vadd.f32 %v1242, %v1623
        %v1703 = vadd.f32 %v1244, %v1625
        %v1704 = vadd.f32 %v1247, %v1628
        %v1705 = vadd.f32 %v1249, %v1630
        %v1706 = vadd.f32 %v1252, %v1633
        %v1707 = vadd.f32 %v1254, %v1635
        %v1708 = vadd.f32 %v1257, %v1638
        %v1709 = vadd.f32 %v1259, %v1640
        %v1710 = vadd.f32 %v1262, %v1643
        %v1711 = vadd.f32 %v1264, %v1645
        %v1712 = vadd.f32 %v1267, %v1648
        %v1713 = vadd.f32 %v1269, %v1650
        %v1714 = vadd.f32 %v1272, %v1653
        %v1715 = vadd.f32 %v1274, %v1655
        %v1716 = vadd.f32 %v1277, %v1658
        %v1717 = vadd.f32 %v1279, %v1660
        %v1718 = vadd.f32 %v1282, %v1663
        %v1719 = vadd.f32 %v1284, %v1665
        %v1720 = vadd.f32 %v1287, %v1668
        %v1721 = vadd.f32 %v1289, %v1670
        %v1722 = vadd.f32 %v1292, %v1673
        %v1723 = vadd.f32 %v1294, %v1675
        %v1724 = vadd.f32 %v1297, %v1678
        %v1725 = vadd.f32 %v1299, %v1680
        %v1726 = vadd.f32 %v1302, %v1683
        %v1727 = vadd.f32 %v1304, %v1685
        %v1728 = vadd.f32 %v1307, %v1688
        %v1729 = vadd.f32 %v1309, %v1690
        %v1730 = vadd.f32 %v1312, %v1693
        %v1731 = vadd.f32 %v1314, %v1695
        %v1732 = vadd.f32 %v1317, %v1698
        %v1733 = vadd.f32 %v1319, %v1700
        %s1734 = scalar_lea.vmem %s418, 12
        %v1735 = vld [vmem:[%s1734] sm:$0xf]
        %v1736 = vld [vmem:[%s1734 + $0x4] sm:$0xf]
        %v1737 = vld [vmem:[%s1734 + $0xc] sm:$0xf]
        %v1738 = vld [vmem:[%s1734 + $0x10] sm:$0xf]
        %v1739 = vld [vmem:[%s1734 + $0x18] sm:$0xf]
        %v1740 = vld [vmem:[%s1734 + $0x1c] sm:$0xf]
        %v1741 = vld [vmem:[%s1734 + $0x24] sm:$0xf]
        %v1742 = vld [vmem:[%s1734 + $0x28] sm:$0xf]
        %v1743 = vld [vmem:[%s1734 + $0x30] sm:$0xf]
        %v1744 = vld [vmem:[%s1734 + $0x34] sm:$0xf]
        %v1745 = vld [vmem:[%s1734 + $0x3c] sm:$0xf]
        %v1746 = vld [vmem:[%s1734 + $0x40] sm:$0xf]
        %v1747 = vld [vmem:[%s1734 + $0x48] sm:$0xf]
        %v1748 = vld [vmem:[%s1734 + $0x4c] sm:$0xf]
        %v1749 = vld [vmem:[%s1734 + $0x54] sm:$0xf]
        %v1750 = vld [vmem:[%s1734 + $0x58] sm:$0xf]
        %v1751 = vld [vmem:[%s1734 + $0x60] sm:$0xf]
        %v1752 = vld [vmem:[%s1734 + $0x64] sm:$0xf]
        %v1753 = vld [vmem:[%s1734 + $0x6c] sm:$0xf]
        %v1754 = vld [vmem:[%s1734 + $0x70] sm:$0xf]
        %v1755 = vld [vmem:[%s1734 + $0x78] sm:$0xf]
        %v1756 = vld [vmem:[%s1734 + $0x7c] sm:$0xf]
        %v1757 = vld [vmem:[%s1734 + $0x84] sm:$0xf]
        %v1758 = vld [vmem:[%s1734 + $0x88] sm:$0xf]
        %v1759 = vld [vmem:[%s1734 + $0x90] sm:$0xf]
        %v1760 = vld [vmem:[%s1734 + $0x94] sm:$0xf]
        %v1761 = vld [vmem:[%s1734 + $0x9c] sm:$0xf]
        %v1762 = vld [vmem:[%s1734 + $0xa0] sm:$0xf]
        %v1763 = vld [vmem:[%s1734 + $0xa8] sm:$0xf]
        %v1764 = vld [vmem:[%s1734 + $0xac] sm:$0xf]
        %v1765 = vld [vmem:[%s1734 + $0xb4] sm:$0xf]
        %v1766 = vld [vmem:[%s1734 + $0xb8] sm:$0xf]
        %s1767 = scalar_lea.vmem %s1, 192
        %v1768 = vld [vmem:[%s1767] sm:$0xf]
        %v1769 = vld [vmem:[%s1767 + $0x4] sm:$0xf]
        %v1770 = vld [vmem:[%s1767 + $0x8] sm:$0xf]
        %v1771 = vld [vmem:[%s1767 + $0xc] sm:$0xf]
        %v1772 = vld [vmem:[%s1767 + $0x10] sm:$0xf]
        %v1773 = vld [vmem:[%s1767 + $0x14] sm:$0xf]
        %v1774 = vld [vmem:[%s1767 + $0x18] sm:$0xf]
        %v1775 = vld [vmem:[%s1767 + $0x1c] sm:$0xf]
        %v1776 = vld [vmem:[%s1767 + $0x20] sm:$0xf]
        %v1777 = vld [vmem:[%s1767 + $0x24] sm:$0xf]
        %v1778 = vld [vmem:[%s1767 + $0x28] sm:$0xf]
        %v1779 = vld [vmem:[%s1767 + $0x2c] sm:$0xf]
        %v1780 = vld [vmem:[%s1767 + $0x30] sm:$0xf]
        %v1781 = vld [vmem:[%s1767 + $0x34] sm:$0xf]
        %v1782 = vld [vmem:[%s1767 + $0x38] sm:$0xf]
        %v1783 = vld [vmem:[%s1767 + $0x3c] sm:$0xf]
        %v1816 = vunpack.c.l.b16 %v1735
        %v1817 = vunpack.c.l.b16 %v1736
        %v1818 = vunpack.c.l.b16 %v1737
        %v1819 = vunpack.c.l.b16 %v1738
        %v1820 = vunpack.c.l.b16 %v1739
        %v1821 = vunpack.c.l.b16 %v1740
        %v1822 = vunpack.c.l.b16 %v1741
        %v1823 = vunpack.c.l.b16 %v1742
        %v1824 = vunpack.c.l.b16 %v1743
        %v1825 = vunpack.c.l.b16 %v1744
        %v1826 = vunpack.c.l.b16 %v1745
        %v1827 = vunpack.c.l.b16 %v1746
        %v1828 = vunpack.c.l.b16 %v1747
        %v1829 = vunpack.c.l.b16 %v1748
        %v1830 = vunpack.c.l.b16 %v1749
        %v1831 = vunpack.c.l.b16 %v1750
        %v1832 = vunpack.c.l.b16 %v1751
        %v1833 = vunpack.c.l.b16 %v1752
        %v1834 = vunpack.c.l.b16 %v1753
        %v1835 = vunpack.c.l.b16 %v1754
        %v1836 = vunpack.c.l.b16 %v1755
        %v1837 = vunpack.c.l.b16 %v1756
        %v1838 = vunpack.c.l.b16 %v1757
        %v1839 = vunpack.c.l.b16 %v1758
        %v1840 = vunpack.c.l.b16 %v1759
        %v1841 = vunpack.c.l.b16 %v1760
        %v1842 = vunpack.c.l.b16 %v1761
        %v1843 = vunpack.c.l.b16 %v1762
        %v1844 = vunpack.c.l.b16 %v1763
        %v1845 = vunpack.c.l.b16 %v1764
        %v1846 = vunpack.c.l.b16 %v1765
        %v1847 = vunpack.c.l.b16 %v1766
        %v1848 = vpack.c.b16 %v1817, %v1816
        %v1849 = vpack.c.b16 %v1819, %v1818
        %v1850 = vpack.c.b16 %v1821, %v1820
        %v1851 = vpack.c.b16 %v1823, %v1822
        %v1852 = vpack.c.b16 %v1825, %v1824
        %v1853 = vpack.c.b16 %v1827, %v1826
        %v1854 = vpack.c.b16 %v1829, %v1828
        %v1855 = vpack.c.b16 %v1831, %v1830
        %v1856 = vpack.c.b16 %v1833, %v1832
        %v1857 = vpack.c.b16 %v1835, %v1834
        %v1858 = vpack.c.b16 %v1837, %v1836
        %v1859 = vpack.c.b16 %v1839, %v1838
        %v1860 = vpack.c.b16 %v1841, %v1840
        %v1861 = vpack.c.b16 %v1843, %v1842
        %v1862 = vpack.c.b16 %v1845, %v1844
        %v1863 = vpack.c.b16 %v1847, %v1846
        %v1896 = vunpack.c.l.b16 %v1768
        %v1897 = vunpack.c.l.b16 %v1769
        %v1898 = vunpack.c.l.b16 %v1770
        %v1899 = vunpack.c.l.b16 %v1771
        %v1900 = vunpack.c.l.b16 %v1772
        %v1901 = vunpack.c.l.b16 %v1773
        %v1902 = vunpack.c.l.b16 %v1774
        %v1903 = vunpack.c.l.b16 %v1775
        %v1904 = vunpack.c.l.b16 %v1776
        %v1905 = vunpack.c.l.b16 %v1777
        %v1906 = vunpack.c.l.b16 %v1778
        %v1907 = vunpack.c.l.b16 %v1779
        %v1908 = vunpack.c.l.b16 %v1780
        %v1909 = vunpack.c.l.b16 %v1781
        %v1910 = vunpack.c.l.b16 %v1782
        %v1911 = vunpack.c.l.b16 %v1783
        %v1912 = vpack.c.b16 %v1897, %v1896
        %v1913 = vpack.c.b16 %v1899, %v1898
        %v1914 = vpack.c.b16 %v1901, %v1900
        %v1915 = vpack.c.b16 %v1903, %v1902
        %v1916 = vpack.c.b16 %v1905, %v1904
        %v1917 = vpack.c.b16 %v1907, %v1906
        %v1918 = vpack.c.b16 %v1909, %v1908
        %v1919 = vpack.c.b16 %v1911, %v1910
        %1928 = vmatpush.bf16.msra.mxu0 %v1919
        %1929 = vmatpush.bf16.msra.mxu0 %v1918
        %1930 = vmatpush.bf16.msra.mxu0 %v1917
        %1931 = vmatpush.bf16.msra.mxu0 %v1916
        %1932 = vmatpush.bf16.msra.mxu0 %v1915
        %1933 = vmatpush.bf16.msra.mxu0 %v1914
        %1934 = vmatpush.bf16.msra.mxu0 %v1913
        %1935 = vmatpush.bf16.msra.mxu0 %v1912
        %1936 = vmatmul.bf16.gmra.mxu0 %v1848
        %v1937 = vpop.f32.mrf.mxu0
        %v1938 = vadd.f32 0.0, %v1937
        %v1939 = vpop.f32.mrf.mxu0
        %v1940 = vadd.f32 0.0, %v1939
        %1941 = vmatmul.bf16.gmra.mxu0 %v1849
        %v1942 = vpop.f32.mrf.mxu0
        %v1943 = vadd.f32 0.0, %v1942
        %v1944 = vpop.f32.mrf.mxu0
        %v1945 = vadd.f32 0.0, %v1944
        %1946 = vmatmul.bf16.gmra.mxu0 %v1850
        %v1947 = vpop.f32.mrf.mxu0
        %v1948 = vadd.f32 0.0, %v1947
        %v1949 = vpop.f32.mrf.mxu0
        %v1950 = vadd.f32 0.0, %v1949
        %1951 = vmatmul.bf16.gmra.mxu0 %v1851
        %v1952 = vpop.f32.mrf.mxu0
        %v1953 = vadd.f32 0.0, %v1952
        %v1954 = vpop.f32.mrf.mxu0
        %v1955 = vadd.f32 0.0, %v1954
        %1956 = vmatmul.bf16.gmra.mxu0 %v1852
        %v1957 = vpop.f32.mrf.mxu0
        %v1958 = vadd.f32 0.0, %v1957
        %v1959 = vpop.f32.mrf.mxu0
        %v1960 = vadd.f32 0.0, %v1959
        %1961 = vmatmul.bf16.gmra.mxu0 %v1853
        %v1962 = vpop.f32.mrf.mxu0
        %v1963 = vadd.f32 0.0, %v1962
        %v1964 = vpop.f32.mrf.mxu0
        %v1965 = vadd.f32 0.0, %v1964
        %1966 = vmatmul.bf16.gmra.mxu0 %v1854
        %v1967 = vpop.f32.mrf.mxu0
        %v1968 = vadd.f32 0.0, %v1967
        %v1969 = vpop.f32.mrf.mxu0
        %v1970 = vadd.f32 0.0, %v1969
        %1971 = vmatmul.bf16.gmra.mxu0 %v1855
        %v1972 = vpop.f32.mrf.mxu0
        %v1973 = vadd.f32 0.0, %v1972
        %v1974 = vpop.f32.mrf.mxu0
        %v1975 = vadd.f32 0.0, %v1974
        %1976 = vmatmul.bf16.gmra.mxu0 %v1856
        %v1977 = vpop.f32.mrf.mxu0
        %v1978 = vadd.f32 0.0, %v1977
        %v1979 = vpop.f32.mrf.mxu0
        %v1980 = vadd.f32 0.0, %v1979
        %1981 = vmatmul.bf16.gmra.mxu0 %v1857
        %v1982 = vpop.f32.mrf.mxu0
        %v1983 = vadd.f32 0.0, %v1982
        %v1984 = vpop.f32.mrf.mxu0
        %v1985 = vadd.f32 0.0, %v1984
        %1986 = vmatmul.bf16.gmra.mxu0 %v1858
        %v1987 = vpop.f32.mrf.mxu0
        %v1988 = vadd.f32 0.0, %v1987
        %v1989 = vpop.f32.mrf.mxu0
        %v1990 = vadd.f32 0.0, %v1989
        %1991 = vmatmul.bf16.gmra.mxu0 %v1859
        %v1992 = vpop.f32.mrf.mxu0
        %v1993 = vadd.f32 0.0, %v1992
        %v1994 = vpop.f32.mrf.mxu0
        %v1995 = vadd.f32 0.0, %v1994
        %1996 = vmatmul.bf16.gmra.mxu0 %v1860
        %v1997 = vpop.f32.mrf.mxu0
        %v1998 = vadd.f32 0.0, %v1997
        %v1999 = vpop.f32.mrf.mxu0
        %v2000 = vadd.f32 0.0, %v1999
        %2001 = vmatmul.bf16.gmra.mxu0 %v1861
        %v2002 = vpop.f32.mrf.mxu0
        %v2003 = vadd.f32 0.0, %v2002
        %v2004 = vpop.f32.mrf.mxu0
        %v2005 = vadd.f32 0.0, %v2004
        %2006 = vmatmul.bf16.gmra.mxu0 %v1862
        %v2007 = vpop.f32.mrf.mxu0
        %v2008 = vadd.f32 0.0, %v2007
        %v2009 = vpop.f32.mrf.mxu0
        %v2010 = vadd.f32 0.0, %v2009
        %2011 = vmatmul.bf16.gmra.mxu0 %v1863
        %v2012 = vpop.f32.mrf.mxu0
        %v2013 = vadd.f32 0.0, %v2012
        %v2014 = vpop.f32.mrf.mxu0
        %v2015 = vadd.f32 0.0, %v2014
        %2016 = vdwg.mxu0
        %v2017 = vadd.f32 %v1702, %v1938
        %v2018 = vadd.f32 %v1703, %v1940
        %v2019 = vadd.f32 %v1704, %v1943
        %v2020 = vadd.f32 %v1705, %v1945
        %v2021 = vadd.f32 %v1706, %v1948
        %v2022 = vadd.f32 %v1707, %v1950
        %v2023 = vadd.f32 %v1708, %v1953
        %v2024 = vadd.f32 %v1709, %v1955
        %v2025 = vadd.f32 %v1710, %v1958
        %v2026 = vadd.f32 %v1711, %v1960
        %v2027 = vadd.f32 %v1712, %v1963
        %v2028 = vadd.f32 %v1713, %v1965
        %v2029 = vadd.f32 %v1714, %v1968
        %v2030 = vadd.f32 %v1715, %v1970
        %v2031 = vadd.f32 %v1716, %v1973
        %v2032 = vadd.f32 %v1717, %v1975
        %v2033 = vadd.f32 %v1718, %v1978
        %v2034 = vadd.f32 %v1719, %v1980
        %v2035 = vadd.f32 %v1720, %v1983
        %v2036 = vadd.f32 %v1721, %v1985
        %v2037 = vadd.f32 %v1722, %v1988
        %v2038 = vadd.f32 %v1723, %v1990
        %v2039 = vadd.f32 %v1724, %v1993
        %v2040 = vadd.f32 %v1725, %v1995
        %v2041 = vadd.f32 %v1726, %v1998
        %v2042 = vadd.f32 %v1727, %v2000
        %v2043 = vadd.f32 %v1728, %v2003
        %v2044 = vadd.f32 %v1729, %v2005
        %v2045 = vadd.f32 %v1730, %v2008
        %v2046 = vadd.f32 %v1731, %v2010
        %v2047 = vadd.f32 %v1732, %v2013
        %v2048 = vadd.f32 %v1733, %v2015
        %v2049 = vld [vmem:[%s1734] sm:$0xf]
        %v2050 = vld [vmem:[%s1734 + $0x4] sm:$0xf]
        %v2051 = vld [vmem:[%s1734 + $0x8] sm:$0x1]
        %v2052 = vld [vmem:[%s1734 + $0xc] sm:$0xf]
        %v2053 = vld [vmem:[%s1734 + $0x10] sm:$0xf]
        %v2054 = vld [vmem:[%s1734 + $0x14] sm:$0x1]
        %v2055 = vld [vmem:[%s1734 + $0x18] sm:$0xf]
        %v2056 = vld [vmem:[%s1734 + $0x1c] sm:$0xf]
        %v2057 = vld [vmem:[%s1734 + $0x20] sm:$0x1]
        %v2058 = vld [vmem:[%s1734 + $0x24] sm:$0xf]
        %v2059 = vld [vmem:[%s1734 + $0x28] sm:$0xf]
        %v2060 = vld [vmem:[%s1734 + $0x2c] sm:$0x1]
        %v2061 = vld [vmem:[%s1734 + $0x30] sm:$0xf]
        %v2062 = vld [vmem:[%s1734 + $0x34] sm:$0xf]
        %v2063 = vld [vmem:[%s1734 + $0x38] sm:$0x1]
        %v2064 = vld [vmem:[%s1734 + $0x3c] sm:$0xf]
        %v2065 = vld [vmem:[%s1734 + $0x40] sm:$0xf]
        %v2066 = vld [vmem:[%s1734 + $0x44] sm:$0x1]
        %v2067 = vld [vmem:[%s1734 + $0x48] sm:$0xf]
        %v2068 = vld [vmem:[%s1734 + $0x4c] sm:$0xf]
        %v2069 = vld [vmem:[%s1734 + $0x50] sm:$0x1]
        %v2070 = vld [vmem:[%s1734 + $0x54] sm:$0xf]
        %v2071 = vld [vmem:[%s1734 + $0x58] sm:$0xf]
        %v2072 = vld [vmem:[%s1734 + $0x5c] sm:$0x1]
        %v2073 = vld [vmem:[%s1734 + $0x60] sm:$0xf]
        %v2074 = vld [vmem:[%s1734 + $0x64] sm:$0xf]
        %v2075 = vld [vmem:[%s1734 + $0x68] sm:$0x1]
        %v2076 = vld [vmem:[%s1734 + $0x6c] sm:$0xf]
        %v2077 = vld [vmem:[%s1734 + $0x70] sm:$0xf]
        %v2078 = vld [vmem:[%s1734 + $0x74] sm:$0x1]
        %v2079 = vld [vmem:[%s1734 + $0x78] sm:$0xf]
        %v2080 = vld [vmem:[%s1734 + $0x7c] sm:$0xf]
        %v2081 = vld [vmem:[%s1734 + $0x80] sm:$0x1]
        %v2082 = vld [vmem:[%s1734 + $0x84] sm:$0xf]
        %v2083 = vld [vmem:[%s1734 + $0x88] sm:$0xf]
        %v2084 = vld [vmem:[%s1734 + $0x8c] sm:$0x1]
        %v2085 = vld [vmem:[%s1734 + $0x90] sm:$0xf]
        %v2086 = vld [vmem:[%s1734 + $0x94] sm:$0xf]
        %v2087 = vld [vmem:[%s1734 + $0x98] sm:$0x1]
        %v2088 = vld [vmem:[%s1734 + $0x9c] sm:$0xf]
        %v2089 = vld [vmem:[%s1734 + $0xa0] sm:$0xf]
        %v2090 = vld [vmem:[%s1734 + $0xa4] sm:$0x1]
        %v2091 = vld [vmem:[%s1734 + $0xa8] sm:$0xf]
        %v2092 = vld [vmem:[%s1734 + $0xac] sm:$0xf]
        %v2093 = vld [vmem:[%s1734 + $0xb0] sm:$0x1]
        %v2094 = vld [vmem:[%s1734 + $0xb4] sm:$0xf]
        %v2095 = vld [vmem:[%s1734 + $0xb8] sm:$0xf]
        %v2096 = vld [vmem:[%s1734 + $0xbc] sm:$0x1]
        %v2098 = vshrl.u32 %v2049, 16
        %v2100 = vrot.slane %v2098, 4
        %v2101 = vshll.u32 %v2049, 16
        %v2103 = vrot.slane %v2101, 5
        %v2104 = vor.u32 %v2100, %v2103
        %v2105 = vrot.slane %v2104, 4
        %v2107 = vshll.u32 %v2050, 16
        %v2109 = vrot.slane %v2107, 5
        %v2110 = vsel %vm485, %v2105, %v2109
        %v2111 = vshrl.u32 %v2050, 16
        %v2113 = vrot.slane %v2111, 4
        %v2114 = vor.u32 %v2113, %v2109
        %v2115 = vrot.slane %v2114, 4
        %v2117 = vshll.u32 %v2051, 16
        %v2119 = vrot.slane %v2117, 5
        %v2120 = vsel %vm485, %v2115, %v2119
        %v2122 = vshrl.u32 %v2052, 16
        %v2124 = vrot.slane %v2122, 4
        %v2125 = vshll.u32 %v2052, 16
        %v2127 = vrot.slane %v2125, 5
        %v2128 = vor.u32 %v2124, %v2127
        %v2129 = vrot.slane %v2128, 4
        %v2131 = vshll.u32 %v2053, 16
        %v2133 = vrot.slane %v2131, 5
        %v2134 = vsel %vm485, %v2129, %v2133
        %v2135 = vshrl.u32 %v2053, 16
        %v2137 = vrot.slane %v2135, 4
        %v2138 = vor.u32 %v2137, %v2133
        %v2139 = vrot.slane %v2138, 4
        %v2141 = vshll.u32 %v2054, 16
        %v2143 = vrot.slane %v2141, 5
        %v2144 = vsel %vm485, %v2139, %v2143
        %v2146 = vshrl.u32 %v2055, 16
        %v2148 = vrot.slane %v2146, 4
        %v2149 = vshll.u32 %v2055, 16
        %v2151 = vrot.slane %v2149, 5
        %v2152 = vor.u32 %v2148, %v2151
        %v2153 = vrot.slane %v2152, 4
        %v2155 = vshll.u32 %v2056, 16
        %v2157 = vrot.slane %v2155, 5
        %v2158 = vsel %vm485, %v2153, %v2157
        %v2159 = vshrl.u32 %v2056, 16
        %v2161 = vrot.slane %v2159, 4
        %v2162 = vor.u32 %v2161, %v2157
        %v2163 = vrot.slane %v2162, 4
        %v2165 = vshll.u32 %v2057, 16
        %v2167 = vrot.slane %v2165, 5
        %v2168 = vsel %vm485, %v2163, %v2167
        %v2170 = vshrl.u32 %v2058, 16
        %v2172 = vrot.slane %v2170, 4
        %v2173 = vshll.u32 %v2058, 16
        %v2175 = vrot.slane %v2173, 5
        %v2176 = vor.u32 %v2172, %v2175
        %v2177 = vrot.slane %v2176, 4
        %v2179 = vshll.u32 %v2059, 16
        %v2181 = vrot.slane %v2179, 5
        %v2182 = vsel %vm485, %v2177, %v2181
        %v2183 = vshrl.u32 %v2059, 16
        %v2185 = vrot.slane %v2183, 4
        %v2186 = vor.u32 %v2185, %v2181
        %v2187 = vrot.slane %v2186, 4
        %v2189 = vshll.u32 %v2060, 16
        %v2191 = vrot.slane %v2189, 5
        %v2192 = vsel %vm485, %v2187, %v2191
        %v2194 = vshrl.u32 %v2061, 16
        %v2196 = vrot.slane %v2194, 4
        %v2197 = vshll.u32 %v2061, 16
        %v2199 = vrot.slane %v2197, 5
        %v2200 = vor.u32 %v2196, %v2199
        %v2201 = vrot.slane %v2200, 4
        %v2203 = vshll.u32 %v2062, 16
        %v2205 = vrot.slane %v2203, 5
        %v2206 = vsel %vm485, %v2201, %v2205
        %v2207 = vshrl.u32 %v2062, 16
        %v2209 = vrot.slane %v2207, 4
        %v2210 = vor.u32 %v2209, %v2205
        %v2211 = vrot.slane %v2210, 4
        %v2213 = vshll.u32 %v2063, 16
        %v2215 = vrot.slane %v2213, 5
        %v2216 = vsel %vm485, %v2211, %v2215
        %v2218 = vshrl.u32 %v2064, 16
        %v2220 = vrot.slane %v2218, 4
        %v2221 = vshll.u32 %v2064, 16
        %v2223 = vrot.slane %v2221, 5
        %v2224 = vor.u32 %v2220, %v2223
        %v2225 = vrot.slane %v2224, 4
        %v2227 = vshll.u32 %v2065, 16
        %v2229 = vrot.slane %v2227, 5
        %v2230 = vsel %vm485, %v2225, %v2229
        %v2231 = vshrl.u32 %v2065, 16
        %v2233 = vrot.slane %v2231, 4
        %v2234 = vor.u32 %v2233, %v2229
        %v2235 = vrot.slane %v2234, 4
        %v2237 = vshll.u32 %v2066, 16
        %v2239 = vrot.slane %v2237, 5
        %v2240 = vsel %vm485, %v2235, %v2239
        %v2242 = vshrl.u32 %v2067, 16
        %v2244 = vrot.slane %v2242, 4
        %v2245 = vshll.u32 %v2067, 16
        %v2247 = vrot.slane %v2245, 5
        %v2248 = vor.u32 %v2244, %v2247
        %v2249 = vrot.slane %v2248, 4
        %v2251 = vshll.u32 %v2068, 16
        %v2253 = vrot.slane %v2251, 5
        %v2254 = vsel %vm485, %v2249, %v2253
        %v2255 = vshrl.u32 %v2068, 16
        %v2257 = vrot.slane %v2255, 4
        %v2258 = vor.u32 %v2257, %v2253
        %v2259 = vrot.slane %v2258, 4
        %v2261 = vshll.u32 %v2069, 16
        %v2263 = vrot.slane %v2261, 5
        %v2264 = vsel %vm485, %v2259, %v2263
        %v2266 = vshrl.u32 %v2070, 16
        %v2268 = vrot.slane %v2266, 4
        %v2269 = vshll.u32 %v2070, 16
        %v2271 = vrot.slane %v2269, 5
        %v2272 = vor.u32 %v2268, %v2271
        %v2273 = vrot.slane %v2272, 4
        %v2275 = vshll.u32 %v2071, 16
        %v2277 = vrot.slane %v2275, 5
        %v2278 = vsel %vm485, %v2273, %v2277
        %v2279 = vshrl.u32 %v2071, 16
        %v2281 = vrot.slane %v2279, 4
        %v2282 = vor.u32 %v2281, %v2277
        %v2283 = vrot.slane %v2282, 4
        %v2285 = vshll.u32 %v2072, 16
        %v2287 = vrot.slane %v2285, 5
        %v2288 = vsel %vm485, %v2283, %v2287
        %v2290 = vshrl.u32 %v2073, 16
        %v2292 = vrot.slane %v2290, 4
        %v2293 = vshll.u32 %v2073, 16
        %v2295 = vrot.slane %v2293, 5
        %v2296 = vor.u32 %v2292, %v2295
        %v2297 = vrot.slane %v2296, 4
        %v2299 = vshll.u32 %v2074, 16
        %v2301 = vrot.slane %v2299, 5
        %v2302 = vsel %vm485, %v2297, %v2301
        %v2303 = vshrl.u32 %v2074, 16
        %v2305 = vrot.slane %v2303, 4
        %v2306 = vor.u32 %v2305, %v2301
        %v2307 = vrot.slane %v2306, 4
        %v2309 = vshll.u32 %v2075, 16
        %v2311 = vrot.slane %v2309, 5
        %v2312 = vsel %vm485, %v2307, %v2311
        %v2314 = vshrl.u32 %v2076, 16
        %v2316 = vrot.slane %v2314, 4
        %v2317 = vshll.u32 %v2076, 16
        %v2319 = vrot.slane %v2317, 5
        %v2320 = vor.u32 %v2316, %v2319
        %v2321 = vrot.slane %v2320, 4
        %v2323 = vshll.u32 %v2077, 16
        %v2325 = vrot.slane %v2323, 5
        %v2326 = vsel %vm485, %v2321, %v2325
        %v2327 = vshrl.u32 %v2077, 16
        %v2329 = vrot.slane %v2327, 4
        %v2330 = vor.u32 %v2329, %v2325
        %v2331 = vrot.slane %v2330, 4
        %v2333 = vshll.u32 %v2078, 16
        %v2335 = vrot.slane %v2333, 5
        %v2336 = vsel %vm485, %v2331, %v2335
        %v2338 = vshrl.u32 %v2079, 16
        %v2340 = vrot.slane %v2338, 4
        %v2341 = vshll.u32 %v2079, 16
        %v2343 = vrot.slane %v2341, 5
        %v2344 = vor.u32 %v2340, %v2343
        %v2345 = vrot.slane %v2344, 4
        %v2347 = vshll.u32 %v2080, 16
        %v2349 = vrot.slane %v2347, 5
        %v2350 = vsel %vm485, %v2345, %v2349
        %v2351 = vshrl.u32 %v2080, 16
        %v2353 = vrot.slane %v2351, 4
        %v2354 = vor.u32 %v2353, %v2349
        %v2355 = vrot.slane %v2354, 4
        %v2357 = vshll.u32 %v2081, 16
        %v2359 = vrot.slane %v2357, 5
        %v2360 = vsel %vm485, %v2355, %v2359
        %v2362 = vshrl.u32 %v2082, 16
        %v2364 = vrot.slane %v2362, 4
        %v2365 = vshll.u32 %v2082, 16
        %v2367 = vrot.slane %v2365, 5
        %v2368 = vor.u32 %v2364, %v2367
        %v2369 = vrot.slane %v2368, 4
        %v2371 = vshll.u32 %v2083, 16
        %v2373 = vrot.slane %v2371, 5
        %v2374 = vsel %vm485, %v2369, %v2373
        %v2375 = vshrl.u32 %v2083, 16
        %v2377 = vrot.slane %v2375, 4
        %v2378 = vor.u32 %v2377, %v2373
        %v2379 = vrot.slane %v2378, 4
        %v2381 = vshll.u32 %v2084, 16
        %v2383 = vrot.slane %v2381, 5
        %v2384 = vsel %vm485, %v2379, %v2383
        %v2386 = vshrl.u32 %v2085, 16
        %v2388 = vrot.slane %v2386, 4
        %v2389 = vshll.u32 %v2085, 16
        %v2391 = vrot.slane %v2389, 5
        %v2392 = vor.u32 %v2388, %v2391
        %v2393 = vrot.slane %v2392, 4
        %v2395 = vshll.u32 %v2086, 16
        %v2397 = vrot.slane %v2395, 5
        %v2398 = vsel %vm485, %v2393, %v2397
        %v2399 = vshrl.u32 %v2086, 16
        %v2401 = vrot.slane %v2399, 4
        %v2402 = vor.u32 %v2401, %v2397
        %v2403 = vrot.slane %v2402, 4
        %v2405 = vshll.u32 %v2087, 16
        %v2407 = vrot.slane %v2405, 5
        %v2408 = vsel %vm485, %v2403, %v2407
        %v2410 = vshrl.u32 %v2088, 16
        %v2412 = vrot.slane %v2410, 4
        %v2413 = vshll.u32 %v2088, 16
        %v2415 = vrot.slane %v2413, 5
        %v2416 = vor.u32 %v2412, %v2415
        %v2417 = vrot.slane %v2416, 4
        %v2419 = vshll.u32 %v2089, 16
        %v2421 = vrot.slane %v2419, 5
        %v2422 = vsel %vm485, %v2417, %v2421
        %v2423 = vshrl.u32 %v2089, 16
        %v2425 = vrot.slane %v2423, 4
        %v2426 = vor.u32 %v2425, %v2421
        %v2427 = vrot.slane %v2426, 4
        %v2429 = vshll.u32 %v2090, 16
        %v2431 = vrot.slane %v2429, 5
        %v2432 = vsel %vm485, %v2427, %v2431
        %v2434 = vshrl.u32 %v2091, 16
        %v2436 = vrot.slane %v2434, 4
        %v2437 = vshll.u32 %v2091, 16
        %v2439 = vrot.slane %v2437, 5
        %v2440 = vor.u32 %v2436, %v2439
        %v2441 = vrot.slane %v2440, 4
        %v2443 = vshll.u32 %v2092, 16
        %v2445 = vrot.slane %v2443, 5
        %v2446 = vsel %vm485, %v2441, %v2445
        %v2447 = vshrl.u32 %v2092, 16
        %v2449 = vrot.slane %v2447, 4
        %v2450 = vor.u32 %v2449, %v2445
        %v2451 = vrot.slane %v2450, 4
        %v2453 = vshll.u32 %v2093, 16
        %v2455 = vrot.slane %v2453, 5
        %v2456 = vsel %vm485, %v2451, %v2455
        %v2458 = vshrl.u32 %v2094, 16
        %v2460 = vrot.slane %v2458, 4
        %v2461 = vshll.u32 %v2094, 16
        %v2463 = vrot.slane %v2461, 5
        %v2464 = vor.u32 %v2460, %v2463
        %v2465 = vrot.slane %v2464, 4
        %v2467 = vshll.u32 %v2095, 16
        %v2469 = vrot.slane %v2467, 5
        %v2470 = vsel %vm485, %v2465, %v2469
        %v2471 = vshrl.u32 %v2095, 16
        %v2473 = vrot.slane %v2471, 4
        %v2474 = vor.u32 %v2473, %v2469
        %v2475 = vrot.slane %v2474, 4
        %v2477 = vshll.u32 %v2096, 16
        %v2479 = vrot.slane %v2477, 5
        %v2480 = vsel %vm485, %v2475, %v2479
        %s2481 = scalar_lea.vmem %s1, 256
        %v2482 = vld [vmem:[%s2481] sm:$0xf]
        %v2483 = vld [vmem:[%s2481 + $0x4] sm:$0xf]
        %v2484 = vld [vmem:[%s2481 + $0x8] sm:$0xf]
        %v2485 = vld [vmem:[%s2481 + $0xc] sm:$0xf]
        %v2486 = vld [vmem:[%s2481 + $0x10] sm:$0xf]
        %v2487 = vld [vmem:[%s2481 + $0x14] sm:$0xf]
        %v2488 = vld [vmem:[%s2481 + $0x18] sm:$0xf]
        %v2489 = vld [vmem:[%s2481 + $0x1c] sm:$0xf]
        %v2490 = vld [vmem:[%s2481 + $0x20] sm:$0xf]
        %v2491 = vld [vmem:[%s2481 + $0x24] sm:$0xf]
        %v2492 = vld [vmem:[%s2481 + $0x28] sm:$0xf]
        %v2493 = vld [vmem:[%s2481 + $0x2c] sm:$0xf]
        %v2494 = vld [vmem:[%s2481 + $0x30] sm:$0xf]
        %v2495 = vld [vmem:[%s2481 + $0x34] sm:$0xf]
        %v2496 = vld [vmem:[%s2481 + $0x38] sm:$0xf]
        %v2497 = vld [vmem:[%s2481 + $0x3c] sm:$0xf]
        %v2498 = vunpack.c.l.b16 %v2110
        %v2499 = vunpack.c.l.b16 %v2120
        %v2500 = vunpack.c.l.b16 %v2134
        %v2501 = vunpack.c.l.b16 %v2144
        %v2502 = vunpack.c.l.b16 %v2158
        %v2503 = vunpack.c.l.b16 %v2168
        %v2504 = vunpack.c.l.b16 %v2182
        %v2505 = vunpack.c.l.b16 %v2192
        %v2506 = vunpack.c.l.b16 %v2206
        %v2507 = vunpack.c.l.b16 %v2216
        %v2508 = vunpack.c.l.b16 %v2230
        %v2509 = vunpack.c.l.b16 %v2240
        %v2510 = vunpack.c.l.b16 %v2254
        %v2511 = vunpack.c.l.b16 %v2264
        %v2512 = vunpack.c.l.b16 %v2278
        %v2513 = vunpack.c.l.b16 %v2288
        %v2514 = vunpack.c.l.b16 %v2302
        %v2515 = vunpack.c.l.b16 %v2312
        %v2516 = vunpack.c.l.b16 %v2326
        %v2517 = vunpack.c.l.b16 %v2336
        %v2518 = vunpack.c.l.b16 %v2350
        %v2519 = vunpack.c.l.b16 %v2360
        %v2520 = vunpack.c.l.b16 %v2374
        %v2521 = vunpack.c.l.b16 %v2384
        %v2522 = vunpack.c.l.b16 %v2398
        %v2523 = vunpack.c.l.b16 %v2408
        %v2524 = vunpack.c.l.b16 %v2422
        %v2525 = vunpack.c.l.b16 %v2432
        %v2526 = vunpack.c.l.b16 %v2446
        %v2527 = vunpack.c.l.b16 %v2456
        %v2528 = vunpack.c.l.b16 %v2470
        %v2529 = vunpack.c.l.b16 %v2480
        %v2530 = vpack.c.b16 %v2499, %v2498
        %v2531 = vpack.c.b16 %v2501, %v2500
        %v2532 = vpack.c.b16 %v2503, %v2502
        %v2533 = vpack.c.b16 %v2505, %v2504
        %v2534 = vpack.c.b16 %v2507, %v2506
        %v2535 = vpack.c.b16 %v2509, %v2508
        %v2536 = vpack.c.b16 %v2511, %v2510
        %v2537 = vpack.c.b16 %v2513, %v2512
        %v2538 = vpack.c.b16 %v2515, %v2514
        %v2539 = vpack.c.b16 %v2517, %v2516
        %v2540 = vpack.c.b16 %v2519, %v2518
        %v2541 = vpack.c.b16 %v2521, %v2520
        %v2542 = vpack.c.b16 %v2523, %v2522
        %v2543 = vpack.c.b16 %v2525, %v2524
        %v2544 = vpack.c.b16 %v2527, %v2526
        %v2545 = vpack.c.b16 %v2529, %v2528
        %v2578 = vunpack.c.l.b16 %v2482
        %v2579 = vunpack.c.l.b16 %v2483
        %v2580 = vunpack.c.l.b16 %v2484
        %v2581 = vunpack.c.l.b16 %v2485
        %v2582 = vunpack.c.l.b16 %v2486
        %v2583 = vunpack.c.l.b16 %v2487
        %v2584 = vunpack.c.l.b16 %v2488
        %v2585 = vunpack.c.l.b16 %v2489
        %v2586 = vunpack.c.l.b16 %v2490
        %v2587 = vunpack.c.l.b16 %v2491
        %v2588 = vunpack.c.l.b16 %v2492
        %v2589 = vunpack.c.l.b16 %v2493
        %v2590 = vunpack.c.l.b16 %v2494
        %v2591 = vunpack.c.l.b16 %v2495
        %v2592 = vunpack.c.l.b16 %v2496
        %v2593 = vunpack.c.l.b16 %v2497
        %v2594 = vpack.c.b16 %v2579, %v2578
        %v2595 = vpack.c.b16 %v2581, %v2580
        %v2596 = vpack.c.b16 %v2583, %v2582
        %v2597 = vpack.c.b16 %v2585, %v2584
        %v2598 = vpack.c.b16 %v2587, %v2586
        %v2599 = vpack.c.b16 %v2589, %v2588
        %v2600 = vpack.c.b16 %v2591, %v2590
        %v2601 = vpack.c.b16 %v2593, %v2592
        %2610 = vmatpush.bf16.msra.mxu0 %v2601
        %2611 = vmatpush.bf16.msra.mxu0 %v2600
        %2612 = vmatpush.bf16.msra.mxu0 %v2599
        %2613 = vmatpush.bf16.msra.mxu0 %v2598
        %2614 = vmatpush.bf16.msra.mxu0 %v2597
        %2615 = vmatpush.bf16.msra.mxu0 %v2596
        %2616 = vmatpush.bf16.msra.mxu0 %v2595
        %2617 = vmatpush.bf16.msra.mxu0 %v2594
        %2618 = vmatmul.bf16.gmra.mxu0 %v2530
        %v2619 = vpop.f32.mrf.mxu0
        %v2620 = vadd.f32 0.0, %v2619
        %v2621 = vpop.f32.mrf.mxu0
        %v2622 = vadd.f32 0.0, %v2621
        %2623 = vmatmul.bf16.gmra.mxu0 %v2531
        %v2624 = vpop.f32.mrf.mxu0
        %v2625 = vadd.f32 0.0, %v2624
        %v2626 = vpop.f32.mrf.mxu0
        %v2627 = vadd.f32 0.0, %v2626
        %2628 = vmatmul.bf16.gmra.mxu0 %v2532
        %v2629 = vpop.f32.mrf.mxu0
        %v2630 = vadd.f32 0.0, %v2629
        %v2631 = vpop.f32.mrf.mxu0
        %v2632 = vadd.f32 0.0, %v2631
        %2633 = vmatmul.bf16.gmra.mxu0 %v2533
        %v2634 = vpop.f32.mrf.mxu0
        %v2635 = vadd.f32 0.0, %v2634
        %v2636 = vpop.f32.mrf.mxu0
        %v2637 = vadd.f32 0.0, %v2636
        %2638 = vmatmul.bf16.gmra.mxu0 %v2534
        %v2639 = vpop.f32.mrf.mxu0
        %v2640 = vadd.f32 0.0, %v2639
        %v2641 = vpop.f32.mrf.mxu0
        %v2642 = vadd.f32 0.0, %v2641
        %2643 = vmatmul.bf16.gmra.mxu0 %v2535
        %v2644 = vpop.f32.mrf.mxu0
        %v2645 = vadd.f32 0.0, %v2644
        %v2646 = vpop.f32.mrf.mxu0
        %v2647 = vadd.f32 0.0, %v2646
        %2648 = vmatmul.bf16.gmra.mxu0 %v2536
        %v2649 = vpop.f32.mrf.mxu0
        %v2650 = vadd.f32 0.0, %v2649
        %v2651 = vpop.f32.mrf.mxu0
        %v2652 = vadd.f32 0.0, %v2651
        %2653 = vmatmul.bf16.gmra.mxu0 %v2537
        %v2654 = vpop.f32.mrf.mxu0
        %v2655 = vadd.f32 0.0, %v2654
        %v2656 = vpop.f32.mrf.mxu0
        %v2657 = vadd.f32 0.0, %v2656
        %2658 = vmatmul.bf16.gmra.mxu0 %v2538
        %v2659 = vpop.f32.mrf.mxu0
        %v2660 = vadd.f32 0.0, %v2659
        %v2661 = vpop.f32.mrf.mxu0
        %v2662 = vadd.f32 0.0, %v2661
        %2663 = vmatmul.bf16.gmra.mxu0 %v2539
        %v2664 = vpop.f32.mrf.mxu0
        %v2665 = vadd.f32 0.0, %v2664
        %v2666 = vpop.f32.mrf.mxu0
        %v2667 = vadd.f32 0.0, %v2666
        %2668 = vmatmul.bf16.gmra.mxu0 %v2540
        %v2669 = vpop.f32.mrf.mxu0
        %v2670 = vadd.f32 0.0, %v2669
        %v2671 = vpop.f32.mrf.mxu0
        %v2672 = vadd.f32 0.0, %v2671
        %2673 = vmatmul.bf16.gmra.mxu0 %v2541
        %v2674 = vpop.f32.mrf.mxu0
        %v2675 = vadd.f32 0.0, %v2674
        %v2676 = vpop.f32.mrf.mxu0
        %v2677 = vadd.f32 0.0, %v2676
        %2678 = vmatmul.bf16.gmra.mxu0 %v2542
        %v2679 = vpop.f32.mrf.mxu0
        %v2680 = vadd.f32 0.0, %v2679
        %v2681 = vpop.f32.mrf.mxu0
        %v2682 = vadd.f32 0.0, %v2681
        %2683 = vmatmul.bf16.gmra.mxu0 %v2543
        %v2684 = vpop.f32.mrf.mxu0
        %v2685 = vadd.f32 0.0, %v2684
        %v2686 = vpop.f32.mrf.mxu0
        %v2687 = vadd.f32 0.0, %v2686
        %2688 = vmatmul.bf16.gmra.mxu0 %v2544
        %v2689 = vpop.f32.mrf.mxu0
        %v2690 = vadd.f32 0.0, %v2689
        %v2691 = vpop.f32.mrf.mxu0
        %v2692 = vadd.f32 0.0, %v2691
        %2693 = vmatmul.bf16.gmra.mxu0 %v2545
        %v2694 = vpop.f32.mrf.mxu0
        %v2695 = vadd.f32 0.0, %v2694
        %v2696 = vpop.f32.mrf.mxu0
        %v2697 = vadd.f32 0.0, %v2696
        %2698 = vdwg.mxu0
        %v2699 = vadd.f32 %v2017, %v2620
        %v2700 = vadd.f32 %v2018, %v2622
        %v2701 = vadd.f32 %v2019, %v2625
        %v2702 = vadd.f32 %v2020, %v2627
        %v2703 = vadd.f32 %v2021, %v2630
        %v2704 = vadd.f32 %v2022, %v2632
        %v2705 = vadd.f32 %v2023, %v2635
        %v2706 = vadd.f32 %v2024, %v2637
        %v2707 = vadd.f32 %v2025, %v2640
        %v2708 = vadd.f32 %v2026, %v2642
        %v2709 = vadd.f32 %v2027, %v2645
        %v2710 = vadd.f32 %v2028, %v2647
        %v2711 = vadd.f32 %v2029, %v2650
        %v2712 = vadd.f32 %v2030, %v2652
        %v2713 = vadd.f32 %v2031, %v2655
        %v2714 = vadd.f32 %v2032, %v2657
        %v2715 = vadd.f32 %v2033, %v2660
        %v2716 = vadd.f32 %v2034, %v2662
        %v2717 = vadd.f32 %v2035, %v2665
        %v2718 = vadd.f32 %v2036, %v2667
        %v2719 = vadd.f32 %v2037, %v2670
        %v2720 = vadd.f32 %v2038, %v2672
        %v2721 = vadd.f32 %v2039, %v2675
        %v2722 = vadd.f32 %v2040, %v2677
        %v2723 = vadd.f32 %v2041, %v2680
        %v2724 = vadd.f32 %v2042, %v2682
        %v2725 = vadd.f32 %v2043, %v2685
        %v2726 = vadd.f32 %v2044, %v2687
        %v2727 = vadd.f32 %v2045, %v2690
        %v2728 = vadd.f32 %v2046, %v2692
        %v2729 = vadd.f32 %v2047, %v2695
        %v2730 = vadd.f32 %v2048, %v2697
        %v2731 = vld [vmem:[%s1734] sm:$0xe]
        %v2732 = vld [vmem:[%s1734 + $0xc] sm:$0xe]
        %v2733 = vld [vmem:[%s1734 + $0x18] sm:$0xe]
        %v2734 = vld [vmem:[%s1734 + $0x24] sm:$0xe]
        %v2735 = vld [vmem:[%s1734 + $0x30] sm:$0xe]
        %v2736 = vld [vmem:[%s1734 + $0x3c] sm:$0xe]
        %v2737 = vld [vmem:[%s1734 + $0x48] sm:$0xe]
        %v2738 = vld [vmem:[%s1734 + $0x54] sm:$0xe]
        %v2739 = vld [vmem:[%s1734 + $0x60] sm:$0xe]
        %v2740 = vld [vmem:[%s1734 + $0x6c] sm:$0xe]
        %v2741 = vld [vmem:[%s1734 + $0x78] sm:$0xe]
        %v2742 = vld [vmem:[%s1734 + $0x84] sm:$0xe]
        %v2743 = vld [vmem:[%s1734 + $0x90] sm:$0xe]
        %v2744 = vld [vmem:[%s1734 + $0x9c] sm:$0xe]
        %v2745 = vld [vmem:[%s1734 + $0xa8] sm:$0xe]
        %v2746 = vld [vmem:[%s1734 + $0xb4] sm:$0xe]
        %v2795 = vrot.slane %v2731, 5
        %v2796 = vrot.slane %v2795, 4
        %v2797 = vrot.slane %v2050, 5
        %v2798 = vsel %vm1371, %v2796, %v2797
        %v2799 = vrot.slane %v2797, 4
        %v2800 = vrot.slane %v2051, 5
        %v2801 = vsel %vm1371, %v2799, %v2800
        %v2802 = vrot.slane %v2732, 5
        %v2803 = vrot.slane %v2802, 4
        %v2804 = vrot.slane %v2053, 5
        %v2805 = vsel %vm1371, %v2803, %v2804
        %v2806 = vrot.slane %v2804, 4
        %v2807 = vrot.slane %v2054, 5
        %v2808 = vsel %vm1371, %v2806, %v2807
        %v2809 = vrot.slane %v2733, 5
        %v2810 = vrot.slane %v2809, 4
        %v2811 = vrot.slane %v2056, 5
        %v2812 = vsel %vm1371, %v2810, %v2811
        %v2813 = vrot.slane %v2811, 4
        %v2814 = vrot.slane %v2057, 5
        %v2815 = vsel %vm1371, %v2813, %v2814
        %v2816 = vrot.slane %v2734, 5
        %v2817 = vrot.slane %v2816, 4
        %v2818 = vrot.slane %v2059, 5
        %v2819 = vsel %vm1371, %v2817, %v2818
        %v2820 = vrot.slane %v2818, 4
        %v2821 = vrot.slane %v2060, 5
        %v2822 = vsel %vm1371, %v2820, %v2821
        %v2823 = vrot.slane %v2735, 5
        %v2824 = vrot.slane %v2823, 4
        %v2825 = vrot.slane %v2062, 5
        %v2826 = vsel %vm1371, %v2824, %v2825
        %v2827 = vrot.slane %v2825, 4
        %v2828 = vrot.slane %v2063, 5
        %v2829 = vsel %vm1371, %v2827, %v2828
        %v2830 = vrot.slane %v2736, 5
        %v2831 = vrot.slane %v2830, 4
        %v2832 = vrot.slane %v2065, 5
        %v2833 = vsel %vm1371, %v2831, %v2832
        %v2834 = vrot.slane %v2832, 4
        %v2835 = vrot.slane %v2066, 5
        %v2836 = vsel %vm1371, %v2834, %v2835
        %v2837 = vrot.slane %v2737, 5
        %v2838 = vrot.slane %v2837, 4
        %v2839 = vrot.slane %v2068, 5
        %v2840 = vsel %vm1371, %v2838, %v2839
        %v2841 = vrot.slane %v2839, 4
        %v2842 = vrot.slane %v2069, 5
        %v2843 = vsel %vm1371, %v2841, %v2842
        %v2844 = vrot.slane %v2738, 5
        %v2845 = vrot.slane %v2844, 4
        %v2846 = vrot.slane %v2071, 5
        %v2847 = vsel %vm1371, %v2845, %v2846
        %v2848 = vrot.slane %v2846, 4
        %v2849 = vrot.slane %v2072, 5
        %v2850 = vsel %vm1371, %v2848, %v2849
        %v2851 = vrot.slane %v2739, 5
        %v2852 = vrot.slane %v2851, 4
        %v2853 = vrot.slane %v2074, 5
        %v2854 = vsel %vm1371, %v2852, %v2853
        %v2855 = vrot.slane %v2853, 4
        %v2856 = vrot.slane %v2075, 5
        %v2857 = vsel %vm1371, %v2855, %v2856
        %v2858 = vrot.slane %v2740, 5
        %v2859 = vrot.slane %v2858, 4
        %v2860 = vrot.slane %v2077, 5
        %v2861 = vsel %vm1371, %v2859, %v2860
        %v2862 = vrot.slane %v2860, 4
        %v2863 = vrot.slane %v2078, 5
        %v2864 = vsel %vm1371, %v2862, %v2863
        %v2865 = vrot.slane %v2741, 5
        %v2866 = vrot.slane %v2865, 4
        %v2867 = vrot.slane %v2080, 5
        %v2868 = vsel %vm1371, %v2866, %v2867
        %v2869 = vrot.slane %v2867, 4
        %v2870 = vrot.slane %v2081, 5
        %v2871 = vsel %vm1371, %v2869, %v2870
        %v2872 = vrot.slane %v2742, 5
        %v2873 = vrot.slane %v2872, 4
        %v2874 = vrot.slane %v2083, 5
        %v2875 = vsel %vm1371, %v2873, %v2874
        %v2876 = vrot.slane %v2874, 4
        %v2877 = vrot.slane %v2084, 5
        %v2878 = vsel %vm1371, %v2876, %v2877
        %v2879 = vrot.slane %v2743, 5
        %v2880 = vrot.slane %v2879, 4
        %v2881 = vrot.slane %v2086, 5
        %v2882 = vsel %vm1371, %v2880, %v2881
        %v2883 = vrot.slane %v2881, 4
        %v2884 = vrot.slane %v2087, 5
        %v2885 = vsel %vm1371, %v2883, %v2884
        %v2886 = vrot.slane %v2744, 5
        %v2887 = vrot.slane %v2886, 4
        %v2888 = vrot.slane %v2089, 5
        %v2889 = vsel %vm1371, %v2887, %v2888
        %v2890 = vrot.slane %v2888, 4
        %v2891 = vrot.slane %v2090, 5
        %v2892 = vsel %vm1371, %v2890, %v2891
        %v2893 = vrot.slane %v2745, 5
        %v2894 = vrot.slane %v2893, 4
        %v2895 = vrot.slane %v2092, 5
        %v2896 = vsel %vm1371, %v2894, %v2895
        %v2897 = vrot.slane %v2895, 4
        %v2898 = vrot.slane %v2093, 5
        %v2899 = vsel %vm1371, %v2897, %v2898
        %v2900 = vrot.slane %v2746, 5
        %v2901 = vrot.slane %v2900, 4
        %v2902 = vrot.slane %v2095, 5
        %v2903 = vsel %vm1371, %v2901, %v2902
        %v2904 = vrot.slane %v2902, 4
        %v2905 = vrot.slane %v2096, 5
        %v2906 = vsel %vm1371, %v2904, %v2905
        %s2907 = scalar_lea.vmem %s1, 320
        %v2908 = vld [vmem:[%s2907] sm:$0xf]
        %v2909 = vld [vmem:[%s2907 + $0x4] sm:$0xf]
        %v2910 = vld [vmem:[%s2907 + $0x8] sm:$0xf]
        %v2911 = vld [vmem:[%s2907 + $0xc] sm:$0xf]
        %v2912 = vld [vmem:[%s2907 + $0x10] sm:$0xf]
        %v2913 = vld [vmem:[%s2907 + $0x14] sm:$0xf]
        %v2914 = vld [vmem:[%s2907 + $0x18] sm:$0xf]
        %v2915 = vld [vmem:[%s2907 + $0x1c] sm:$0xf]
        %v2916 = vld [vmem:[%s2907 + $0x20] sm:$0xf]
        %v2917 = vld [vmem:[%s2907 + $0x24] sm:$0xf]
        %v2918 = vld [vmem:[%s2907 + $0x28] sm:$0xf]
        %v2919 = vld [vmem:[%s2907 + $0x2c] sm:$0xf]
        %v2920 = vld [vmem:[%s2907 + $0x30] sm:$0xf]
        %v2921 = vld [vmem:[%s2907 + $0x34] sm:$0xf]
        %v2922 = vld [vmem:[%s2907 + $0x38] sm:$0xf]
        %v2923 = vld [vmem:[%s2907 + $0x3c] sm:$0xf]
        %v2924 = vunpack.c.l.b16 %v2798
        %v2925 = vunpack.c.l.b16 %v2801
        %v2926 = vunpack.c.l.b16 %v2805
        %v2927 = vunpack.c.l.b16 %v2808
        %v2928 = vunpack.c.l.b16 %v2812
        %v2929 = vunpack.c.l.b16 %v2815
        %v2930 = vunpack.c.l.b16 %v2819
        %v2931 = vunpack.c.l.b16 %v2822
        %v2932 = vunpack.c.l.b16 %v2826
        %v2933 = vunpack.c.l.b16 %v2829
        %v2934 = vunpack.c.l.b16 %v2833
        %v2935 = vunpack.c.l.b16 %v2836
        %v2936 = vunpack.c.l.b16 %v2840
        %v2937 = vunpack.c.l.b16 %v2843
        %v2938 = vunpack.c.l.b16 %v2847
        %v2939 = vunpack.c.l.b16 %v2850
        %v2940 = vunpack.c.l.b16 %v2854
        %v2941 = vunpack.c.l.b16 %v2857
        %v2942 = vunpack.c.l.b16 %v2861
        %v2943 = vunpack.c.l.b16 %v2864
        %v2944 = vunpack.c.l.b16 %v2868
        %v2945 = vunpack.c.l.b16 %v2871
        %v2946 = vunpack.c.l.b16 %v2875
        %v2947 = vunpack.c.l.b16 %v2878
        %v2948 = vunpack.c.l.b16 %v2882
        %v2949 = vunpack.c.l.b16 %v2885
        %v2950 = vunpack.c.l.b16 %v2889
        %v2951 = vunpack.c.l.b16 %v2892
        %v2952 = vunpack.c.l.b16 %v2896
        %v2953 = vunpack.c.l.b16 %v2899
        %v2954 = vunpack.c.l.b16 %v2903
        %v2955 = vunpack.c.l.b16 %v2906
        %v2956 = vpack.c.b16 %v2925, %v2924
        %v2957 = vpack.c.b16 %v2927, %v2926
        %v2958 = vpack.c.b16 %v2929, %v2928
        %v2959 = vpack.c.b16 %v2931, %v2930
        %v2960 = vpack.c.b16 %v2933, %v2932
        %v2961 = vpack.c.b16 %v2935, %v2934
        %v2962 = vpack.c.b16 %v2937, %v2936
        %v2963 = vpack.c.b16 %v2939, %v2938
        %v2964 = vpack.c.b16 %v2941, %v2940
        %v2965 = vpack.c.b16 %v2943, %v2942
        %v2966 = vpack.c.b16 %v2945, %v2944
        %v2967 = vpack.c.b16 %v2947, %v2946
        %v2968 = vpack.c.b16 %v2949, %v2948
        %v2969 = vpack.c.b16 %v2951, %v2950
        %v2970 = vpack.c.b16 %v2953, %v2952
        %v2971 = vpack.c.b16 %v2955, %v2954
        %v3004 = vunpack.c.l.b16 %v2908
        %v3005 = vunpack.c.l.b16 %v2909
        %v3006 = vunpack.c.l.b16 %v2910
        %v3007 = vunpack.c.l.b16 %v2911
        %v3008 = vunpack.c.l.b16 %v2912
        %v3009 = vunpack.c.l.b16 %v2913
        %v3010 = vunpack.c.l.b16 %v2914
        %v3011 = vunpack.c.l.b16 %v2915
        %v3012 = vunpack.c.l.b16 %v2916
        %v3013 = vunpack.c.l.b16 %v2917
        %v3014 = vunpack.c.l.b16 %v2918
        %v3015 = vunpack.c.l.b16 %v2919
        %v3016 = vunpack.c.l.b16 %v2920
        %v3017 = vunpack.c.l.b16 %v2921
        %v3018 = vunpack.c.l.b16 %v2922
        %v3019 = vunpack.c.l.b16 %v2923
        %v3020 = vpack.c.b16 %v3005, %v3004
        %v3021 = vpack.c.b16 %v3007, %v3006
        %v3022 = vpack.c.b16 %v3009, %v3008
        %v3023 = vpack.c.b16 %v3011, %v3010
        %v3024 = vpack.c.b16 %v3013, %v3012
        %v3025 = vpack.c.b16 %v3015, %v3014
        %v3026 = vpack.c.b16 %v3017, %v3016
        %v3027 = vpack.c.b16 %v3019, %v3018
        %3036 = vmatpush.bf16.msra.mxu0 %v3027
        %3037 = vmatpush.bf16.msra.mxu0 %v3026
        %3038 = vmatpush.bf16.msra.mxu0 %v3025
        %3039 = vmatpush.bf16.msra.mxu0 %v3024
        %3040 = vmatpush.bf16.msra.mxu0 %v3023
        %3041 = vmatpush.bf16.msra.mxu0 %v3022
        %3042 = vmatpush.bf16.msra.mxu0 %v3021
        %3043 = vmatpush.bf16.msra.mxu0 %v3020
        %3044 = vmatmul.bf16.gmra.mxu0 %v2956
        %v3045 = vpop.f32.mrf.mxu0
        %v3046 = vadd.f32 0.0, %v3045
        %v3047 = vpop.f32.mrf.mxu0
        %v3048 = vadd.f32 0.0, %v3047
        %3049 = vmatmul.bf16.gmra.mxu0 %v2957
        %v3050 = vpop.f32.mrf.mxu0
        %v3051 = vadd.f32 0.0, %v3050
        %v3052 = vpop.f32.mrf.mxu0
        %v3053 = vadd.f32 0.0, %v3052
        %3054 = vmatmul.bf16.gmra.mxu0 %v2958
        %v3055 = vpop.f32.mrf.mxu0
        %v3056 = vadd.f32 0.0, %v3055
        %v3057 = vpop.f32.mrf.mxu0
        %v3058 = vadd.f32 0.0, %v3057
        %3059 = vmatmul.bf16.gmra.mxu0 %v2959
        %v3060 = vpop.f32.mrf.mxu0
        %v3061 = vadd.f32 0.0, %v3060
        %v3062 = vpop.f32.mrf.mxu0
        %v3063 = vadd.f32 0.0, %v3062
        %3064 = vmatmul.bf16.gmra.mxu0 %v2960
        %v3065 = vpop.f32.mrf.mxu0
        %v3066 = vadd.f32 0.0, %v3065
        %v3067 = vpop.f32.mrf.mxu0
        %v3068 = vadd.f32 0.0, %v3067
        %3069 = vmatmul.bf16.gmra.mxu0 %v2961
        %v3070 = vpop.f32.mrf.mxu0
        %v3071 = vadd.f32 0.0, %v3070
        %v3072 = vpop.f32.mrf.mxu0
        %v3073 = vadd.f32 0.0, %v3072
        %3074 = vmatmul.bf16.gmra.mxu0 %v2962
        %v3075 = vpop.f32.mrf.mxu0
        %v3076 = vadd.f32 0.0, %v3075
        %v3077 = vpop.f32.mrf.mxu0
        %v3078 = vadd.f32 0.0, %v3077
        %3079 = vmatmul.bf16.gmra.mxu0 %v2963
        %v3080 = vpop.f32.mrf.mxu0
        %v3081 = vadd.f32 0.0, %v3080
        %v3082 = vpop.f32.mrf.mxu0
        %v3083 = vadd.f32 0.0, %v3082
        %3084 = vmatmul.bf16.gmra.mxu0 %v2964
        %v3085 = vpop.f32.mrf.mxu0
        %v3086 = vadd.f32 0.0, %v3085
        %v3087 = vpop.f32.mrf.mxu0
        %v3088 = vadd.f32 0.0, %v3087
        %3089 = vmatmul.bf16.gmra.mxu0 %v2965
        %v3090 = vpop.f32.mrf.mxu0
        %v3091 = vadd.f32 0.0, %v3090
        %v3092 = vpop.f32.mrf.mxu0
        %v3093 = vadd.f32 0.0, %v3092
        %3094 = vmatmul.bf16.gmra.mxu0 %v2966
        %v3095 = vpop.f32.mrf.mxu0
        %v3096 = vadd.f32 0.0, %v3095
        %v3097 = vpop.f32.mrf.mxu0
        %v3098 = vadd.f32 0.0, %v3097
        %3099 = vmatmul.bf16.gmra.mxu0 %v2967
        %v3100 = vpop.f32.mrf.mxu0
        %v3101 = vadd.f32 0.0, %v3100
        %v3102 = vpop.f32.mrf.mxu0
        %v3103 = vadd.f32 0.0, %v3102
        %3104 = vmatmul.bf16.gmra.mxu0 %v2968
        %v3105 = vpop.f32.mrf.mxu0
        %v3106 = vadd.f32 0.0, %v3105
        %v3107 = vpop.f32.mrf.mxu0
        %v3108 = vadd.f32 0.0, %v3107
        %3109 = vmatmul.bf16.gmra.mxu0 %v2969
        %v3110 = vpop.f32.mrf.mxu0
        %v3111 = vadd.f32 0.0, %v3110
        %v3112 = vpop.f32.mrf.mxu0
        %v3113 = vadd.f32 0.0, %v3112
        %3114 = vmatmul.bf16.gmra.mxu0 %v2970
        %v3115 = vpop.f32.mrf.mxu0
        %v3116 = vadd.f32 0.0, %v3115
        %v3117 = vpop.f32.mrf.mxu0
        %v3118 = vadd.f32 0.0, %v3117
        %3119 = vmatmul.bf16.gmra.mxu0 %v2971
        %v3120 = vpop.f32.mrf.mxu0
        %v3121 = vadd.f32 0.0, %v3120
        %v3122 = vpop.f32.mrf.mxu0
        %v3123 = vadd.f32 0.0, %v3122
        %3124 = vdwg.mxu0
        %v3125 = vadd.f32 %v2699, %v3046
        %v3126 = vadd.f32 %v2700, %v3048
        %v3127 = vadd.f32 %v2701, %v3051
        %v3128 = vadd.f32 %v2702, %v3053
        %v3129 = vadd.f32 %v2703, %v3056
        %v3130 = vadd.f32 %v2704, %v3058
        %v3131 = vadd.f32 %v2705, %v3061
        %v3132 = vadd.f32 %v2706, %v3063
        %v3133 = vadd.f32 %v2707, %v3066
        %v3134 = vadd.f32 %v2708, %v3068
        %v3135 = vadd.f32 %v2709, %v3071
        %v3136 = vadd.f32 %v2710, %v3073
        %v3137 = vadd.f32 %v2711, %v3076
        %v3138 = vadd.f32 %v2712, %v3078
        %v3139 = vadd.f32 %v2713, %v3081
        %v3140 = vadd.f32 %v2714, %v3083
        %v3141 = vadd.f32 %v2715, %v3086
        %v3142 = vadd.f32 %v2716, %v3088
        %v3143 = vadd.f32 %v2717, %v3091
        %v3144 = vadd.f32 %v2718, %v3093
        %v3145 = vadd.f32 %v2719, %v3096
        %v3146 = vadd.f32 %v2720, %v3098
        %v3147 = vadd.f32 %v2721, %v3101
        %v3148 = vadd.f32 %v2722, %v3103
        %v3149 = vadd.f32 %v2723, %v3106
        %v3150 = vadd.f32 %v2724, %v3108
        %v3151 = vadd.f32 %v2725, %v3111
        %v3152 = vadd.f32 %v2726, %v3113
        %v3153 = vadd.f32 %v2727, %v3116
        %v3154 = vadd.f32 %v2728, %v3118
        %v3155 = vadd.f32 %v2729, %v3121
        %v3156 = vadd.f32 %v2730, %v3123
        %s3157 = scalar_lea.vmem %s418, 24
        %v3158 = vld [vmem:[%s3157] sm:$0xf]
        %v3159 = vld [vmem:[%s3157 + $0x4] sm:$0xf]
        %v3160 = vld [vmem:[%s3157 + $0xc] sm:$0xf]
        %v3161 = vld [vmem:[%s3157 + $0x10] sm:$0xf]
        %v3162 = vld [vmem:[%s3157 + $0x18] sm:$0xf]
        %v3163 = vld [vmem:[%s3157 + $0x1c] sm:$0xf]
        %v3164 = vld [vmem:[%s3157 + $0x24] sm:$0xf]
        %v3165 = vld [vmem:[%s3157 + $0x28] sm:$0xf]
        %v3166 = vld [vmem:[%s3157 + $0x30] sm:$0xf]
        %v3167 = vld [vmem:[%s3157 + $0x34] sm:$0xf]
        %v3168 = vld [vmem:[%s3157 + $0x3c] sm:$0xf]
        %v3169 = vld [vmem:[%s3157 + $0x40] sm:$0xf]
        %v3170 = vld [vmem:[%s3157 + $0x48] sm:$0xf]
        %v3171 = vld [vmem:[%s3157 + $0x4c] sm:$0xf]
        %v3172 = vld [vmem:[%s3157 + $0x54] sm:$0xf]
        %v3173 = vld [vmem:[%s3157 + $0x58] sm:$0xf]
        %v3174 = vld [vmem:[%s3157 + $0x60] sm:$0xf]
        %v3175 = vld [vmem:[%s3157 + $0x64] sm:$0xf]
        %v3176 = vld [vmem:[%s3157 + $0x6c] sm:$0xf]
        %v3177 = vld [vmem:[%s3157 + $0x70] sm:$0xf]
        %v3178 = vld [vmem:[%s3157 + $0x78] sm:$0xf]
        %v3179 = vld [vmem:[%s3157 + $0x7c] sm:$0xf]
        %v3180 = vld [vmem:[%s3157 + $0x84] sm:$0xf]
        %v3181 = vld [vmem:[%s3157 + $0x88] sm:$0xf]
        %v3182 = vld [vmem:[%s3157 + $0x90] sm:$0xf]
        %v3183 = vld [vmem:[%s3157 + $0x94] sm:$0xf]
        %v3184 = vld [vmem:[%s3157 + $0x9c] sm:$0xf]
        %v3185 = vld [vmem:[%s3157 + $0xa0] sm:$0xf]
        %v3186 = vld [vmem:[%s3157 + $0xa8] sm:$0xf]
        %v3187 = vld [vmem:[%s3157 + $0xac] sm:$0xf]
        %v3188 = vld [vmem:[%s3157 + $0xb4] sm:$0xf]
        %v3189 = vld [vmem:[%s3157 + $0xb8] sm:$0xf]
        %s3190 = scalar_lea.vmem %s1, 384
        %v3191 = vld [vmem:[%s3190] sm:$0xf]
        %v3192 = vld [vmem:[%s3190 + $0x4] sm:$0xf]
        %v3193 = vld [vmem:[%s3190 + $0x8] sm:$0xf]
        %v3194 = vld [vmem:[%s3190 + $0xc] sm:$0xf]
        %v3195 = vld [vmem:[%s3190 + $0x10] sm:$0xf]
        %v3196 = vld [vmem:[%s3190 + $0x14] sm:$0xf]
        %v3197 = vld [vmem:[%s3190 + $0x18] sm:$0xf]
        %v3198 = vld [vmem:[%s3190 + $0x1c] sm:$0xf]
        %v3199 = vld [vmem:[%s3190 + $0x20] sm:$0xf]
        %v3200 = vld [vmem:[%s3190 + $0x24] sm:$0xf]
        %v3201 = vld [vmem:[%s3190 + $0x28] sm:$0xf]
        %v3202 = vld [vmem:[%s3190 + $0x2c] sm:$0xf]
        %v3203 = vld [vmem:[%s3190 + $0x30] sm:$0xf]
        %v3204 = vld [vmem:[%s3190 + $0x34] sm:$0xf]
        %v3205 = vld [vmem:[%s3190 + $0x38] sm:$0xf]
        %v3206 = vld [vmem:[%s3190 + $0x3c] sm:$0xf]
        %v3239 = vunpack.c.l.b16 %v3158
        %v3240 = vunpack.c.l.b16 %v3159
        %v3241 = vunpack.c.l.b16 %v3160
        %v3242 = vunpack.c.l.b16 %v3161
        %v3243 = vunpack.c.l.b16 %v3162
        %v3244 = vunpack.c.l.b16 %v3163
        %v3245 = vunpack.c.l.b16 %v3164
        %v3246 = vunpack.c.l.b16 %v3165
        %v3247 = vunpack.c.l.b16 %v3166
        %v3248 = vunpack.c.l.b16 %v3167
        %v3249 = vunpack.c.l.b16 %v3168
        %v3250 = vunpack.c.l.b16 %v3169
        %v3251 = vunpack.c.l.b16 %v3170
        %v3252 = vunpack.c.l.b16 %v3171
        %v3253 = vunpack.c.l.b16 %v3172
        %v3254 = vunpack.c.l.b16 %v3173
        %v3255 = vunpack.c.l.b16 %v3174
        %v3256 = vunpack.c.l.b16 %v3175
        %v3257 = vunpack.c.l.b16 %v3176
        %v3258 = vunpack.c.l.b16 %v3177
        %v3259 = vunpack.c.l.b16 %v3178
        %v3260 = vunpack.c.l.b16 %v3179
        %v3261 = vunpack.c.l.b16 %v3180
        %v3262 = vunpack.c.l.b16 %v3181
        %v3263 = vunpack.c.l.b16 %v3182
        %v3264 = vunpack.c.l.b16 %v3183
        %v3265 = vunpack.c.l.b16 %v3184
        %v3266 = vunpack.c.l.b16 %v3185
        %v3267 = vunpack.c.l.b16 %v3186
        %v3268 = vunpack.c.l.b16 %v3187
        %v3269 = vunpack.c.l.b16 %v3188
        %v3270 = vunpack.c.l.b16 %v3189
        %v3271 = vpack.c.b16 %v3240, %v3239
        %v3272 = vpack.c.b16 %v3242, %v3241
        %v3273 = vpack.c.b16 %v3244, %v3243
        %v3274 = vpack.c.b16 %v3246, %v3245
        %v3275 = vpack.c.b16 %v3248, %v3247
        %v3276 = vpack.c.b16 %v3250, %v3249
        %v3277 = vpack.c.b16 %v3252, %v3251
        %v3278 = vpack.c.b16 %v3254, %v3253
        %v3279 = vpack.c.b16 %v3256, %v3255
        %v3280 = vpack.c.b16 %v3258, %v3257
        %v3281 = vpack.c.b16 %v3260, %v3259
        %v3282 = vpack.c.b16 %v3262, %v3261
        %v3283 = vpack.c.b16 %v3264, %v3263
        %v3284 = vpack.c.b16 %v3266, %v3265
        %v3285 = vpack.c.b16 %v3268, %v3267
        %v3286 = vpack.c.b16 %v3270, %v3269
        %v3319 = vunpack.c.l.b16 %v3191
        %v3320 = vunpack.c.l.b16 %v3192
        %v3321 = vunpack.c.l.b16 %v3193
        %v3322 = vunpack.c.l.b16 %v3194
        %v3323 = vunpack.c.l.b16 %v3195
        %v3324 = vunpack.c.l.b16 %v3196
        %v3325 = vunpack.c.l.b16 %v3197
        %v3326 = vunpack.c.l.b16 %v3198
        %v3327 = vunpack.c.l.b16 %v3199
        %v3328 = vunpack.c.l.b16 %v3200
        %v3329 = vunpack.c.l.b16 %v3201
        %v3330 = vunpack.c.l.b16 %v3202
        %v3331 = vunpack.c.l.b16 %v3203
        %v3332 = vunpack.c.l.b16 %v3204
        %v3333 = vunpack.c.l.b16 %v3205
        %v3334 = vunpack.c.l.b16 %v3206
        %v3335 = vpack.c.b16 %v3320, %v3319
        %v3336 = vpack.c.b16 %v3322, %v3321
        %v3337 = vpack.c.b16 %v3324, %v3323
        %v3338 = vpack.c.b16 %v3326, %v3325
        %v3339 = vpack.c.b16 %v3328, %v3327
        %v3340 = vpack.c.b16 %v3330, %v3329
        %v3341 = vpack.c.b16 %v3332, %v3331
        %v3342 = vpack.c.b16 %v3334, %v3333
        %3351 = vmatpush.bf16.msra.mxu0 %v3342
        %3352 = vmatpush.bf16.msra.mxu0 %v3341
        %3353 = vmatpush.bf16.msra.mxu0 %v3340
        %3354 = vmatpush.bf16.msra.mxu0 %v3339
        %3355 = vmatpush.bf16.msra.mxu0 %v3338
        %3356 = vmatpush.bf16.msra.mxu0 %v3337
        %3357 = vmatpush.bf16.msra.mxu0 %v3336
        %3358 = vmatpush.bf16.msra.mxu0 %v3335
        %3359 = vmatmul.bf16.gmra.mxu0 %v3271
        %v3360 = vpop.f32.mrf.mxu0
        %v3361 = vadd.f32 0.0, %v3360
        %v3362 = vpop.f32.mrf.mxu0
        %v3363 = vadd.f32 0.0, %v3362
        %3364 = vmatmul.bf16.gmra.mxu0 %v3272
        %v3365 = vpop.f32.mrf.mxu0
        %v3366 = vadd.f32 0.0, %v3365
        %v3367 = vpop.f32.mrf.mxu0
        %v3368 = vadd.f32 0.0, %v3367
        %3369 = vmatmul.bf16.gmra.mxu0 %v3273
        %v3370 = vpop.f32.mrf.mxu0
        %v3371 = vadd.f32 0.0, %v3370
        %v3372 = vpop.f32.mrf.mxu0
        %v3373 = vadd.f32 0.0, %v3372
        %3374 = vmatmul.bf16.gmra.mxu0 %v3274
        %v3375 = vpop.f32.mrf.mxu0
        %v3376 = vadd.f32 0.0, %v3375
        %v3377 = vpop.f32.mrf.mxu0
        %v3378 = vadd.f32 0.0, %v3377
        %3379 = vmatmul.bf16.gmra.mxu0 %v3275
        %v3380 = vpop.f32.mrf.mxu0
        %v3381 = vadd.f32 0.0, %v3380
        %v3382 = vpop.f32.mrf.mxu0
        %v3383 = vadd.f32 0.0, %v3382
        %3384 = vmatmul.bf16.gmra.mxu0 %v3276
        %v3385 = vpop.f32.mrf.mxu0
        %v3386 = vadd.f32 0.0, %v3385
        %v3387 = vpop.f32.mrf.mxu0
        %v3388 = vadd.f32 0.0, %v3387
        %3389 = vmatmul.bf16.gmra.mxu0 %v3277
        %v3390 = vpop.f32.mrf.mxu0
        %v3391 = vadd.f32 0.0, %v3390
        %v3392 = vpop.f32.mrf.mxu0
        %v3393 = vadd.f32 0.0, %v3392
        %3394 = vmatmul.bf16.gmra.mxu0 %v3278
        %v3395 = vpop.f32.mrf.mxu0
        %v3396 = vadd.f32 0.0, %v3395
        %v3397 = vpop.f32.mrf.mxu0
        %v3398 = vadd.f32 0.0, %v3397
        %3399 = vmatmul.bf16.gmra.mxu0 %v3279
        %v3400 = vpop.f32.mrf.mxu0
        %v3401 = vadd.f32 0.0, %v3400
        %v3402 = vpop.f32.mrf.mxu0
        %v3403 = vadd.f32 0.0, %v3402
        %3404 = vmatmul.bf16.gmra.mxu0 %v3280
        %v3405 = vpop.f32.mrf.mxu0
        %v3406 = vadd.f32 0.0, %v3405
        %v3407 = vpop.f32.mrf.mxu0
        %v3408 = vadd.f32 0.0, %v3407
        %3409 = vmatmul.bf16.gmra.mxu0 %v3281
        %v3410 = vpop.f32.mrf.mxu0
        %v3411 = vadd.f32 0.0, %v3410
        %v3412 = vpop.f32.mrf.mxu0
        %v3413 = vadd.f32 0.0, %v3412
        %3414 = vmatmul.bf16.gmra.mxu0 %v3282
        %v3415 = vpop.f32.mrf.mxu0
        %v3416 = vadd.f32 0.0, %v3415
        %v3417 = vpop.f32.mrf.mxu0
        %v3418 = vadd.f32 0.0, %v3417
        %3419 = vmatmul.bf16.gmra.mxu0 %v3283
        %v3420 = vpop.f32.mrf.mxu0
        %v3421 = vadd.f32 0.0, %v3420
        %v3422 = vpop.f32.mrf.mxu0
        %v3423 = vadd.f32 0.0, %v3422
        %3424 = vmatmul.bf16.gmra.mxu0 %v3284
        %v3425 = vpop.f32.mrf.mxu0
        %v3426 = vadd.f32 0.0, %v3425
        %v3427 = vpop.f32.mrf.mxu0
        %v3428 = vadd.f32 0.0, %v3427
        %3429 = vmatmul.bf16.gmra.mxu0 %v3285
        %v3430 = vpop.f32.mrf.mxu0
        %v3431 = vadd.f32 0.0, %v3430
        %v3432 = vpop.f32.mrf.mxu0
        %v3433 = vadd.f32 0.0, %v3432
        %3434 = vmatmul.bf16.gmra.mxu0 %v3286
        %v3435 = vpop.f32.mrf.mxu0
        %v3436 = vadd.f32 0.0, %v3435
        %v3437 = vpop.f32.mrf.mxu0
        %v3438 = vadd.f32 0.0, %v3437
        %3439 = vdwg.mxu0
        %v3440 = vadd.f32 %v3125, %v3361
        %v3441 = vadd.f32 %v3126, %v3363
        %v3442 = vadd.f32 %v3127, %v3366
        %v3443 = vadd.f32 %v3128, %v3368
        %v3444 = vadd.f32 %v3129, %v3371
        %v3445 = vadd.f32 %v3130, %v3373
        %v3446 = vadd.f32 %v3131, %v3376
        %v3447 = vadd.f32 %v3132, %v3378
        %v3448 = vadd.f32 %v3133, %v3381
        %v3449 = vadd.f32 %v3134, %v3383
        %v3450 = vadd.f32 %v3135, %v3386
        %v3451 = vadd.f32 %v3136, %v3388
        %v3452 = vadd.f32 %v3137, %v3391
        %v3453 = vadd.f32 %v3138, %v3393
        %v3454 = vadd.f32 %v3139, %v3396
        %v3455 = vadd.f32 %v3140, %v3398
        %v3456 = vadd.f32 %v3141, %v3401
        %v3457 = vadd.f32 %v3142, %v3403
        %v3458 = vadd.f32 %v3143, %v3406
        %v3459 = vadd.f32 %v3144, %v3408
        %v3460 = vadd.f32 %v3145, %v3411
        %v3461 = vadd.f32 %v3146, %v3413
        %v3462 = vadd.f32 %v3147, %v3416
        %v3463 = vadd.f32 %v3148, %v3418
        %v3464 = vadd.f32 %v3149, %v3421
        %v3465 = vadd.f32 %v3150, %v3423
        %v3466 = vadd.f32 %v3151, %v3426
        %v3467 = vadd.f32 %v3152, %v3428
        %v3468 = vadd.f32 %v3153, %v3431
        %v3469 = vadd.f32 %v3154, %v3433
        %v3470 = vadd.f32 %v3155, %v3436
        %v3471 = vadd.f32 %v3156, %v3438
        %v3472 = vld [vmem:[%s3157] sm:$0xf]
        %v3473 = vld [vmem:[%s3157 + $0x4] sm:$0xf]
        %v3474 = vld [vmem:[%s3157 + $0x8] sm:$0x1]
        %v3475 = vld [vmem:[%s3157 + $0xc] sm:$0xf]
        %v3476 = vld [vmem:[%s3157 + $0x10] sm:$0xf]
        %v3477 = vld [vmem:[%s3157 + $0x14] sm:$0x1]
        %v3478 = vld [vmem:[%s3157 + $0x18] sm:$0xf]
        %v3479 = vld [vmem:[%s3157 + $0x1c] sm:$0xf]
        %v3480 = vld [vmem:[%s3157 + $0x20] sm:$0x1]
        %v3481 = vld [vmem:[%s3157 + $0x24] sm:$0xf]
        %v3482 = vld [vmem:[%s3157 + $0x28] sm:$0xf]
        %v3483 = vld [vmem:[%s3157 + $0x2c] sm:$0x1]
        %v3484 = vld [vmem:[%s3157 + $0x30] sm:$0xf]
        %v3485 = vld [vmem:[%s3157 + $0x34] sm:$0xf]
        %v3486 = vld [vmem:[%s3157 + $0x38] sm:$0x1]
        %v3487 = vld [vmem:[%s3157 + $0x3c] sm:$0xf]
        %v3488 = vld [vmem:[%s3157 + $0x40] sm:$0xf]
        %v3489 = vld [vmem:[%s3157 + $0x44] sm:$0x1]
        %v3490 = vld [vmem:[%s3157 + $0x48] sm:$0xf]
        %v3491 = vld [vmem:[%s3157 + $0x4c] sm:$0xf]
        %v3492 = vld [vmem:[%s3157 + $0x50] sm:$0x1]
        %v3493 = vld [vmem:[%s3157 + $0x54] sm:$0xf]
        %v3494 = vld [vmem:[%s3157 + $0x58] sm:$0xf]
        %v3495 = vld [vmem:[%s3157 + $0x5c] sm:$0x1]
        %v3496 = vld [vmem:[%s3157 + $0x60] sm:$0xf]
        %v3497 = vld [vmem:[%s3157 + $0x64] sm:$0xf]
        %v3498 = vld [vmem:[%s3157 + $0x68] sm:$0x1]
        %v3499 = vld [vmem:[%s3157 + $0x6c] sm:$0xf]
        %v3500 = vld [vmem:[%s3157 + $0x70] sm:$0xf]
        %v3501 = vld [vmem:[%s3157 + $0x74] sm:$0x1]
        %v3502 = vld [vmem:[%s3157 + $0x78] sm:$0xf]
        %v3503 = vld [vmem:[%s3157 + $0x7c] sm:$0xf]
        %v3504 = vld [vmem:[%s3157 + $0x80] sm:$0x1]
        %v3505 = vld [vmem:[%s3157 + $0x84] sm:$0xf]
        %v3506 = vld [vmem:[%s3157 + $0x88] sm:$0xf]
        %v3507 = vld [vmem:[%s3157 + $0x8c] sm:$0x1]
        %v3508 = vld [vmem:[%s3157 + $0x90] sm:$0xf]
        %v3509 = vld [vmem:[%s3157 + $0x94] sm:$0xf]
        %v3510 = vld [vmem:[%s3157 + $0x98] sm:$0x1]
        %v3511 = vld [vmem:[%s3157 + $0x9c] sm:$0xf]
        %v3512 = vld [vmem:[%s3157 + $0xa0] sm:$0xf]
        %v3513 = vld [vmem:[%s3157 + $0xa4] sm:$0x1]
        %v3514 = vld [vmem:[%s3157 + $0xa8] sm:$0xf]
        %v3515 = vld [vmem:[%s3157 + $0xac] sm:$0xf]
        %v3516 = vld [vmem:[%s3157 + $0xb0] sm:$0x1]
        %v3517 = vld [vmem:[%s3157 + $0xb4] sm:$0xf]
        %v3518 = vld [vmem:[%s3157 + $0xb8] sm:$0xf]
        %v3519 = vld [vmem:[%s3157 + $0xbc] sm:$0x1]
        %v3521 = vshrl.u32 %v3472, 16
        %v3523 = vrot.slane %v3521, 4
        %v3524 = vshll.u32 %v3472, 16
        %v3526 = vrot.slane %v3524, 5
        %v3527 = vor.u32 %v3523, %v3526
        %v3528 = vrot.slane %v3527, 4
        %v3530 = vshll.u32 %v3473, 16
        %v3532 = vrot.slane %v3530, 5
        %v3533 = vsel %vm485, %v3528, %v3532
        %v3534 = vshrl.u32 %v3473, 16
        %v3536 = vrot.slane %v3534, 4
        %v3537 = vor.u32 %v3536, %v3532
        %v3538 = vrot.slane %v3537, 4
        %v3540 = vshll.u32 %v3474, 16
        %v3542 = vrot.slane %v3540, 5
        %v3543 = vsel %vm485, %v3538, %v3542
        %v3545 = vshrl.u32 %v3475, 16
        %v3547 = vrot.slane %v3545, 4
        %v3548 = vshll.u32 %v3475, 16
        %v3550 = vrot.slane %v3548, 5
        %v3551 = vor.u32 %v3547, %v3550
        %v3552 = vrot.slane %v3551, 4
        %v3554 = vshll.u32 %v3476, 16
        %v3556 = vrot.slane %v3554, 5
        %v3557 = vsel %vm485, %v3552, %v3556
        %v3558 = vshrl.u32 %v3476, 16
        %v3560 = vrot.slane %v3558, 4
        %v3561 = vor.u32 %v3560, %v3556
        %v3562 = vrot.slane %v3561, 4
        %v3564 = vshll.u32 %v3477, 16
        %v3566 = vrot.slane %v3564, 5
        %v3567 = vsel %vm485, %v3562, %v3566
        %v3569 = vshrl.u32 %v3478, 16
        %v3571 = vrot.slane %v3569, 4
        %v3572 = vshll.u32 %v3478, 16
        %v3574 = vrot.slane %v3572, 5
        %v3575 = vor.u32 %v3571, %v3574
        %v3576 = vrot.slane %v3575, 4
        %v3578 = vshll.u32 %v3479, 16
        %v3580 = vrot.slane %v3578, 5
        %v3581 = vsel %vm485, %v3576, %v3580
        %v3582 = vshrl.u32 %v3479, 16
        %v3584 = vrot.slane %v3582, 4
        %v3585 = vor.u32 %v3584, %v3580
        %v3586 = vrot.slane %v3585, 4
        %v3588 = vshll.u32 %v3480, 16
        %v3590 = vrot.slane %v3588, 5
        %v3591 = vsel %vm485, %v3586, %v3590
        %v3593 = vshrl.u32 %v3481, 16
        %v3595 = vrot.slane %v3593, 4
        %v3596 = vshll.u32 %v3481, 16
        %v3598 = vrot.slane %v3596, 5
        %v3599 = vor.u32 %v3595, %v3598
        %v3600 = vrot.slane %v3599, 4
        %v3602 = vshll.u32 %v3482, 16
        %v3604 = vrot.slane %v3602, 5
        %v3605 = vsel %vm485, %v3600, %v3604
        %v3606 = vshrl.u32 %v3482, 16
        %v3608 = vrot.slane %v3606, 4
        %v3609 = vor.u32 %v3608, %v3604
        %v3610 = vrot.slane %v3609, 4
        %v3612 = vshll.u32 %v3483, 16
        %v3614 = vrot.slane %v3612, 5
        %v3615 = vsel %vm485, %v3610, %v3614
        %v3617 = vshrl.u32 %v3484, 16
        %v3619 = vrot.slane %v3617, 4
        %v3620 = vshll.u32 %v3484, 16
        %v3622 = vrot.slane %v3620, 5
        %v3623 = vor.u32 %v3619, %v3622
        %v3624 = vrot.slane %v3623, 4
        %v3626 = vshll.u32 %v3485, 16
        %v3628 = vrot.slane %v3626, 5
        %v3629 = vsel %vm485, %v3624, %v3628
        %v3630 = vshrl.u32 %v3485, 16
        %v3632 = vrot.slane %v3630, 4
        %v3633 = vor.u32 %v3632, %v3628
        %v3634 = vrot.slane %v3633, 4
        %v3636 = vshll.u32 %v3486, 16
        %v3638 = vrot.slane %v3636, 5
        %v3639 = vsel %vm485, %v3634, %v3638
        %v3641 = vshrl.u32 %v3487, 16
        %v3643 = vrot.slane %v3641, 4
        %v3644 = vshll.u32 %v3487, 16
        %v3646 = vrot.slane %v3644, 5
        %v3647 = vor.u32 %v3643, %v3646
        %v3648 = vrot.slane %v3647, 4
        %v3650 = vshll.u32 %v3488, 16
        %v3652 = vrot.slane %v3650, 5
        %v3653 = vsel %vm485, %v3648, %v3652
        %v3654 = vshrl.u32 %v3488, 16
        %v3656 = vrot.slane %v3654, 4
        %v3657 = vor.u32 %v3656, %v3652
        %v3658 = vrot.slane %v3657, 4
        %v3660 = vshll.u32 %v3489, 16
        %v3662 = vrot.slane %v3660, 5
        %v3663 = vsel %vm485, %v3658, %v3662
        %v3665 = vshrl.u32 %v3490, 16
        %v3667 = vrot.slane %v3665, 4
        %v3668 = vshll.u32 %v3490, 16
        %v3670 = vrot.slane %v3668, 5
        %v3671 = vor.u32 %v3667, %v3670
        %v3672 = vrot.slane %v3671, 4
        %v3674 = vshll.u32 %v3491, 16
        %v3676 = vrot.slane %v3674, 5
        %v3677 = vsel %vm485, %v3672, %v3676
        %v3678 = vshrl.u32 %v3491, 16
        %v3680 = vrot.slane %v3678, 4
        %v3681 = vor.u32 %v3680, %v3676
        %v3682 = vrot.slane %v3681, 4
        %v3684 = vshll.u32 %v3492, 16
        %v3686 = vrot.slane %v3684, 5
        %v3687 = vsel %vm485, %v3682, %v3686
        %v3689 = vshrl.u32 %v3493, 16
        %v3691 = vrot.slane %v3689, 4
        %v3692 = vshll.u32 %v3493, 16
        %v3694 = vrot.slane %v3692, 5
        %v3695 = vor.u32 %v3691, %v3694
        %v3696 = vrot.slane %v3695, 4
        %v3698 = vshll.u32 %v3494, 16
        %v3700 = vrot.slane %v3698, 5
        %v3701 = vsel %vm485, %v3696, %v3700
        %v3702 = vshrl.u32 %v3494, 16
        %v3704 = vrot.slane %v3702, 4
        %v3705 = vor.u32 %v3704, %v3700
        %v3706 = vrot.slane %v3705, 4
        %v3708 = vshll.u32 %v3495, 16
        %v3710 = vrot.slane %v3708, 5
        %v3711 = vsel %vm485, %v3706, %v3710
        %v3713 = vshrl.u32 %v3496, 16
        %v3715 = vrot.slane %v3713, 4
        %v3716 = vshll.u32 %v3496, 16
        %v3718 = vrot.slane %v3716, 5
        %v3719 = vor.u32 %v3715, %v3718
        %v3720 = vrot.slane %v3719, 4
        %v3722 = vshll.u32 %v3497, 16
        %v3724 = vrot.slane %v3722, 5
        %v3725 = vsel %vm485, %v3720, %v3724
        %v3726 = vshrl.u32 %v3497, 16
        %v3728 = vrot.slane %v3726, 4
        %v3729 = vor.u32 %v3728, %v3724
        %v3730 = vrot.slane %v3729, 4
        %v3732 = vshll.u32 %v3498, 16
        %v3734 = vrot.slane %v3732, 5
        %v3735 = vsel %vm485, %v3730, %v3734
        %v3737 = vshrl.u32 %v3499, 16
        %v3739 = vrot.slane %v3737, 4
        %v3740 = vshll.u32 %v3499, 16
        %v3742 = vrot.slane %v3740, 5
        %v3743 = vor.u32 %v3739, %v3742
        %v3744 = vrot.slane %v3743, 4
        %v3746 = vshll.u32 %v3500, 16
        %v3748 = vrot.slane %v3746, 5
        %v3749 = vsel %vm485, %v3744, %v3748
        %v3750 = vshrl.u32 %v3500, 16
        %v3752 = vrot.slane %v3750, 4
        %v3753 = vor.u32 %v3752, %v3748
        %v3754 = vrot.slane %v3753, 4
        %v3756 = vshll.u32 %v3501, 16
        %v3758 = vrot.slane %v3756, 5
        %v3759 = vsel %vm485, %v3754, %v3758
        %v3761 = vshrl.u32 %v3502, 16
        %v3763 = vrot.slane %v3761, 4
        %v3764 = vshll.u32 %v3502, 16
        %v3766 = vrot.slane %v3764, 5
        %v3767 = vor.u32 %v3763, %v3766
        %v3768 = vrot.slane %v3767, 4
        %v3770 = vshll.u32 %v3503, 16
        %v3772 = vrot.slane %v3770, 5
        %v3773 = vsel %vm485, %v3768, %v3772
        %v3774 = vshrl.u32 %v3503, 16
        %v3776 = vrot.slane %v3774, 4
        %v3777 = vor.u32 %v3776, %v3772
        %v3778 = vrot.slane %v3777, 4
        %v3780 = vshll.u32 %v3504, 16
        %v3782 = vrot.slane %v3780, 5
        %v3783 = vsel %vm485, %v3778, %v3782
        %v3785 = vshrl.u32 %v3505, 16
        %v3787 = vrot.slane %v3785, 4
        %v3788 = vshll.u32 %v3505, 16
        %v3790 = vrot.slane %v3788, 5
        %v3791 = vor.u32 %v3787, %v3790
        %v3792 = vrot.slane %v3791, 4
        %v3794 = vshll.u32 %v3506, 16
        %v3796 = vrot.slane %v3794, 5
        %v3797 = vsel %vm485, %v3792, %v3796
        %v3798 = vshrl.u32 %v3506, 16
        %v3800 = vrot.slane %v3798, 4
        %v3801 = vor.u32 %v3800, %v3796
        %v3802 = vrot.slane %v3801, 4
        %v3804 = vshll.u32 %v3507, 16
        %v3806 = vrot.slane %v3804, 5
        %v3807 = vsel %vm485, %v3802, %v3806
        %v3809 = vshrl.u32 %v3508, 16
        %v3811 = vrot.slane %v3809, 4
        %v3812 = vshll.u32 %v3508, 16
        %v3814 = vrot.slane %v3812, 5
        %v3815 = vor.u32 %v3811, %v3814
        %v3816 = vrot.slane %v3815, 4
        %v3818 = vshll.u32 %v3509, 16
        %v3820 = vrot.slane %v3818, 5
        %v3821 = vsel %vm485, %v3816, %v3820
        %v3822 = vshrl.u32 %v3509, 16
        %v3824 = vrot.slane %v3822, 4
        %v3825 = vor.u32 %v3824, %v3820
        %v3826 = vrot.slane %v3825, 4
        %v3828 = vshll.u32 %v3510, 16
        %v3830 = vrot.slane %v3828, 5
        %v3831 = vsel %vm485, %v3826, %v3830
        %v3833 = vshrl.u32 %v3511, 16
        %v3835 = vrot.slane %v3833, 4
        %v3836 = vshll.u32 %v3511, 16
        %v3838 = vrot.slane %v3836, 5
        %v3839 = vor.u32 %v3835, %v3838
        %v3840 = vrot.slane %v3839, 4
        %v3842 = vshll.u32 %v3512, 16
        %v3844 = vrot.slane %v3842, 5
        %v3845 = vsel %vm485, %v3840, %v3844
        %v3846 = vshrl.u32 %v3512, 16
        %v3848 = vrot.slane %v3846, 4
        %v3849 = vor.u32 %v3848, %v3844
        %v3850 = vrot.slane %v3849, 4
        %v3852 = vshll.u32 %v3513, 16
        %v3854 = vrot.slane %v3852, 5
        %v3855 = vsel %vm485, %v3850, %v3854
        %v3857 = vshrl.u32 %v3514, 16
        %v3859 = vrot.slane %v3857, 4
        %v3860 = vshll.u32 %v3514, 16
        %v3862 = vrot.slane %v3860, 5
        %v3863 = vor.u32 %v3859, %v3862
        %v3864 = vrot.slane %v3863, 4
        %v3866 = vshll.u32 %v3515, 16
        %v3868 = vrot.slane %v3866, 5
        %v3869 = vsel %vm485, %v3864, %v3868
        %v3870 = vshrl.u32 %v3515, 16
        %v3872 = vrot.slane %v3870, 4
        %v3873 = vor.u32 %v3872, %v3868
        %v3874 = vrot.slane %v3873, 4
        %v3876 = vshll.u32 %v3516, 16
        %v3878 = vrot.slane %v3876, 5
        %v3879 = vsel %vm485, %v3874, %v3878
        %v3881 = vshrl.u32 %v3517, 16
        %v3883 = vrot.slane %v3881, 4
        %v3884 = vshll.u32 %v3517, 16
        %v3886 = vrot.slane %v3884, 5
        %v3887 = vor.u32 %v3883, %v3886
        %v3888 = vrot.slane %v3887, 4
        %v3890 = vshll.u32 %v3518, 16
        %v3892 = vrot.slane %v3890, 5
        %v3893 = vsel %vm485, %v3888, %v3892
        %v3894 = vshrl.u32 %v3518, 16
        %v3896 = vrot.slane %v3894, 4
        %v3897 = vor.u32 %v3896, %v3892
        %v3898 = vrot.slane %v3897, 4
        %v3900 = vshll.u32 %v3519, 16
        %v3902 = vrot.slane %v3900, 5
        %v3903 = vsel %vm485, %v3898, %v3902
        %s3904 = scalar_lea.vmem %s1, 448
        %v3905 = vld [vmem:[%s3904] sm:$0xf]
        %v3906 = vld [vmem:[%s3904 + $0x4] sm:$0xf]
        %v3907 = vld [vmem:[%s3904 + $0x8] sm:$0xf]
        %v3908 = vld [vmem:[%s3904 + $0xc] sm:$0xf]
        %v3909 = vld [vmem:[%s3904 + $0x10] sm:$0xf]
        %v3910 = vld [vmem:[%s3904 + $0x14] sm:$0xf]
        %v3911 = vld [vmem:[%s3904 + $0x18] sm:$0xf]
        %v3912 = vld [vmem:[%s3904 + $0x1c] sm:$0xf]
        %v3913 = vld [vmem:[%s3904 + $0x20] sm:$0xf]
        %v3914 = vld [vmem:[%s3904 + $0x24] sm:$0xf]
        %v3915 = vld [vmem:[%s3904 + $0x28] sm:$0xf]
        %v3916 = vld [vmem:[%s3904 + $0x2c] sm:$0xf]
        %v3917 = vld [vmem:[%s3904 + $0x30] sm:$0xf]
        %v3918 = vld [vmem:[%s3904 + $0x34] sm:$0xf]
        %v3919 = vld [vmem:[%s3904 + $0x38] sm:$0xf]
        %v3920 = vld [vmem:[%s3904 + $0x3c] sm:$0xf]
        %v3921 = vunpack.c.l.b16 %v3533
        %v3922 = vunpack.c.l.b16 %v3543
        %v3923 = vunpack.c.l.b16 %v3557
        %v3924 = vunpack.c.l.b16 %v3567
        %v3925 = vunpack.c.l.b16 %v3581
        %v3926 = vunpack.c.l.b16 %v3591
        %v3927 = vunpack.c.l.b16 %v3605
        %v3928 = vunpack.c.l.b16 %v3615
        %v3929 = vunpack.c.l.b16 %v3629
        %v3930 = vunpack.c.l.b16 %v3639
        %v3931 = vunpack.c.l.b16 %v3653
        %v3932 = vunpack.c.l.b16 %v3663
        %v3933 = vunpack.c.l.b16 %v3677
        %v3934 = vunpack.c.l.b16 %v3687
        %v3935 = vunpack.c.l.b16 %v3701
        %v3936 = vunpack.c.l.b16 %v3711
        %v3937 = vunpack.c.l.b16 %v3725
        %v3938 = vunpack.c.l.b16 %v3735
        %v3939 = vunpack.c.l.b16 %v3749
        %v3940 = vunpack.c.l.b16 %v3759
        %v3941 = vunpack.c.l.b16 %v3773
        %v3942 = vunpack.c.l.b16 %v3783
        %v3943 = vunpack.c.l.b16 %v3797
        %v3944 = vunpack.c.l.b16 %v3807
        %v3945 = vunpack.c.l.b16 %v3821
        %v3946 = vunpack.c.l.b16 %v3831
        %v3947 = vunpack.c.l.b16 %v3845
        %v3948 = vunpack.c.l.b16 %v3855
        %v3949 = vunpack.c.l.b16 %v3869
        %v3950 = vunpack.c.l.b16 %v3879
        %v3951 = vunpack.c.l.b16 %v3893
        %v3952 = vunpack.c.l.b16 %v3903
        %v3953 = vpack.c.b16 %v3922, %v3921
        %v3954 = vpack.c.b16 %v3924, %v3923
        %v3955 = vpack.c.b16 %v3926, %v3925
        %v3956 = vpack.c.b16 %v3928, %v3927
        %v3957 = vpack.c.b16 %v3930, %v3929
        %v3958 = vpack.c.b16 %v3932, %v3931
        %v3959 = vpack.c.b16 %v3934, %v3933
        %v3960 = vpack.c.b16 %v3936, %v3935
        %v3961 = vpack.c.b16 %v3938, %v3937
        %v3962 = vpack.c.b16 %v3940, %v3939
        %v3963 = vpack.c.b16 %v3942, %v3941
        %v3964 = vpack.c.b16 %v3944, %v3943
        %v3965 = vpack.c.b16 %v3946, %v3945
        %v3966 = vpack.c.b16 %v3948, %v3947
        %v3967 = vpack.c.b16 %v3950, %v3949
        %v3968 = vpack.c.b16 %v3952, %v3951
        %v4001 = vunpack.c.l.b16 %v3905
        %v4002 = vunpack.c.l.b16 %v3906
        %v4003 = vunpack.c.l.b16 %v3907
        %v4004 = vunpack.c.l.b16 %v3908
        %v4005 = vunpack.c.l.b16 %v3909
        %v4006 = vunpack.c.l.b16 %v3910
        %v4007 = vunpack.c.l.b16 %v3911
        %v4008 = vunpack.c.l.b16 %v3912
        %v4009 = vunpack.c.l.b16 %v3913
        %v4010 = vunpack.c.l.b16 %v3914
        %v4011 = vunpack.c.l.b16 %v3915
        %v4012 = vunpack.c.l.b16 %v3916
        %v4013 = vunpack.c.l.b16 %v3917
        %v4014 = vunpack.c.l.b16 %v3918
        %v4015 = vunpack.c.l.b16 %v3919
        %v4016 = vunpack.c.l.b16 %v3920
        %v4017 = vpack.c.b16 %v4002, %v4001
        %v4018 = vpack.c.b16 %v4004, %v4003
        %v4019 = vpack.c.b16 %v4006, %v4005
        %v4020 = vpack.c.b16 %v4008, %v4007
        %v4021 = vpack.c.b16 %v4010, %v4009
        %v4022 = vpack.c.b16 %v4012, %v4011
        %v4023 = vpack.c.b16 %v4014, %v4013
        %v4024 = vpack.c.b16 %v4016, %v4015
        %4033 = vmatpush.bf16.msra.mxu0 %v4024
        %4034 = vmatpush.bf16.msra.mxu0 %v4023
        %4035 = vmatpush.bf16.msra.mxu0 %v4022
        %4036 = vmatpush.bf16.msra.mxu0 %v4021
        %4037 = vmatpush.bf16.msra.mxu0 %v4020
        %4038 = vmatpush.bf16.msra.mxu0 %v4019
        %4039 = vmatpush.bf16.msra.mxu0 %v4018
        %4040 = vmatpush.bf16.msra.mxu0 %v4017
        %4041 = vmatmul.bf16.gmra.mxu0 %v3953
        %v4042 = vpop.f32.mrf.mxu0
        %v4043 = vadd.f32 0.0, %v4042
        %v4044 = vpop.f32.mrf.mxu0
        %v4045 = vadd.f32 0.0, %v4044
        %4046 = vmatmul.bf16.gmra.mxu0 %v3954
        %v4047 = vpop.f32.mrf.mxu0
        %v4048 = vadd.f32 0.0, %v4047
        %v4049 = vpop.f32.mrf.mxu0
        %v4050 = vadd.f32 0.0, %v4049
        %4051 = vmatmul.bf16.gmra.mxu0 %v3955
        %v4052 = vpop.f32.mrf.mxu0
        %v4053 = vadd.f32 0.0, %v4052
        %v4054 = vpop.f32.mrf.mxu0
        %v4055 = vadd.f32 0.0, %v4054
        %4056 = vmatmul.bf16.gmra.mxu0 %v3956
        %v4057 = vpop.f32.mrf.mxu0
        %v4058 = vadd.f32 0.0, %v4057
        %v4059 = vpop.f32.mrf.mxu0
        %v4060 = vadd.f32 0.0, %v4059
        %4061 = vmatmul.bf16.gmra.mxu0 %v3957
        %v4062 = vpop.f32.mrf.mxu0
        %v4063 = vadd.f32 0.0, %v4062
        %v4064 = vpop.f32.mrf.mxu0
        %v4065 = vadd.f32 0.0, %v4064
        %4066 = vmatmul.bf16.gmra.mxu0 %v3958
        %v4067 = vpop.f32.mrf.mxu0
        %v4068 = vadd.f32 0.0, %v4067
        %v4069 = vpop.f32.mrf.mxu0
        %v4070 = vadd.f32 0.0, %v4069
        %4071 = vmatmul.bf16.gmra.mxu0 %v3959
        %v4072 = vpop.f32.mrf.mxu0
        %v4073 = vadd.f32 0.0, %v4072
        %v4074 = vpop.f32.mrf.mxu0
        %v4075 = vadd.f32 0.0, %v4074
        %4076 = vmatmul.bf16.gmra.mxu0 %v3960
        %v4077 = vpop.f32.mrf.mxu0
        %v4078 = vadd.f32 0.0, %v4077
        %v4079 = vpop.f32.mrf.mxu0
        %v4080 = vadd.f32 0.0, %v4079
        %4081 = vmatmul.bf16.gmra.mxu0 %v3961
        %v4082 = vpop.f32.mrf.mxu0
        %v4083 = vadd.f32 0.0, %v4082
        %v4084 = vpop.f32.mrf.mxu0
        %v4085 = vadd.f32 0.0, %v4084
        %4086 = vmatmul.bf16.gmra.mxu0 %v3962
        %v4087 = vpop.f32.mrf.mxu0
        %v4088 = vadd.f32 0.0, %v4087
        %v4089 = vpop.f32.mrf.mxu0
        %v4090 = vadd.f32 0.0, %v4089
        %4091 = vmatmul.bf16.gmra.mxu0 %v3963
        %v4092 = vpop.f32.mrf.mxu0
        %v4093 = vadd.f32 0.0, %v4092
        %v4094 = vpop.f32.mrf.mxu0
        %v4095 = vadd.f32 0.0, %v4094
        %4096 = vmatmul.bf16.gmra.mxu0 %v3964
        %v4097 = vpop.f32.mrf.mxu0
        %v4098 = vadd.f32 0.0, %v4097
        %v4099 = vpop.f32.mrf.mxu0
        %v4100 = vadd.f32 0.0, %v4099
        %4101 = vmatmul.bf16.gmra.mxu0 %v3965
        %v4102 = vpop.f32.mrf.mxu0
        %v4103 = vadd.f32 0.0, %v4102
        %v4104 = vpop.f32.mrf.mxu0
        %v4105 = vadd.f32 0.0, %v4104
        %4106 = vmatmul.bf16.gmra.mxu0 %v3966
        %v4107 = vpop.f32.mrf.mxu0
        %v4108 = vadd.f32 0.0, %v4107
        %v4109 = vpop.f32.mrf.mxu0
        %v4110 = vadd.f32 0.0, %v4109
        %4111 = vmatmul.bf16.gmra.mxu0 %v3967
        %v4112 = vpop.f32.mrf.mxu0
        %v4113 = vadd.f32 0.0, %v4112
        %v4114 = vpop.f32.mrf.mxu0
        %v4115 = vadd.f32 0.0, %v4114
        %4116 = vmatmul.bf16.gmra.mxu0 %v3968
        %v4117 = vpop.f32.mrf.mxu0
        %v4118 = vadd.f32 0.0, %v4117
        %v4119 = vpop.f32.mrf.mxu0
        %v4120 = vadd.f32 0.0, %v4119
        %4121 = vdwg.mxu0
        %v4122 = vadd.f32 %v3440, %v4043
        %v4123 = vadd.f32 %v3441, %v4045
        %v4124 = vadd.f32 %v3442, %v4048
        %v4125 = vadd.f32 %v3443, %v4050
        %v4126 = vadd.f32 %v3444, %v4053
        %v4127 = vadd.f32 %v3445, %v4055
        %v4128 = vadd.f32 %v3446, %v4058
        %v4129 = vadd.f32 %v3447, %v4060
        %v4130 = vadd.f32 %v3448, %v4063
        %v4131 = vadd.f32 %v3449, %v4065
        %v4132 = vadd.f32 %v3450, %v4068
        %v4133 = vadd.f32 %v3451, %v4070
        %v4134 = vadd.f32 %v3452, %v4073
        %v4135 = vadd.f32 %v3453, %v4075
        %v4136 = vadd.f32 %v3454, %v4078
        %v4137 = vadd.f32 %v3455, %v4080
        %v4138 = vadd.f32 %v3456, %v4083
        %v4139 = vadd.f32 %v3457, %v4085
        %v4140 = vadd.f32 %v3458, %v4088
        %v4141 = vadd.f32 %v3459, %v4090
        %v4142 = vadd.f32 %v3460, %v4093
        %v4143 = vadd.f32 %v3461, %v4095
        %v4144 = vadd.f32 %v3462, %v4098
        %v4145 = vadd.f32 %v3463, %v4100
        %v4146 = vadd.f32 %v3464, %v4103
        %v4147 = vadd.f32 %v3465, %v4105
        %v4148 = vadd.f32 %v3466, %v4108
        %v4149 = vadd.f32 %v3467, %v4110
        %v4150 = vadd.f32 %v3468, %v4113
        %v4151 = vadd.f32 %v3469, %v4115
        %v4152 = vadd.f32 %v3470, %v4118
        %v4153 = vadd.f32 %v3471, %v4120
        %v4154 = vld [vmem:[%s3157] sm:$0xe]
        %v4155 = vld [vmem:[%s3157 + $0xc] sm:$0xe]
        %v4156 = vld [vmem:[%s3157 + $0x18] sm:$0xe]
        %v4157 = vld [vmem:[%s3157 + $0x24] sm:$0xe]
        %v4158 = vld [vmem:[%s3157 + $0x30] sm:$0xe]
        %v4159 = vld [vmem:[%s3157 + $0x3c] sm:$0xe]
        %v4160 = vld [vmem:[%s3157 + $0x48] sm:$0xe]
        %v4161 = vld [vmem:[%s3157 + $0x54] sm:$0xe]
        %v4162 = vld [vmem:[%s3157 + $0x60] sm:$0xe]
        %v4163 = vld [vmem:[%s3157 + $0x6c] sm:$0xe]
        %v4164 = vld [vmem:[%s3157 + $0x78] sm:$0xe]
        %v4165 = vld [vmem:[%s3157 + $0x84] sm:$0xe]
        %v4166 = vld [vmem:[%s3157 + $0x90] sm:$0xe]
        %v4167 = vld [vmem:[%s3157 + $0x9c] sm:$0xe]
        %v4168 = vld [vmem:[%s3157 + $0xa8] sm:$0xe]
        %v4169 = vld [vmem:[%s3157 + $0xb4] sm:$0xe]
        %v4218 = vrot.slane %v4154, 5
        %v4219 = vrot.slane %v4218, 4
        %v4220 = vrot.slane %v3473, 5
        %v4221 = vsel %vm1371, %v4219, %v4220
        %v4222 = vrot.slane %v4220, 4
        %v4223 = vrot.slane %v3474, 5
        %v4224 = vsel %vm1371, %v4222, %v4223
        %v4225 = vrot.slane %v4155, 5
        %v4226 = vrot.slane %v4225, 4
        %v4227 = vrot.slane %v3476, 5
        %v4228 = vsel %vm1371, %v4226, %v4227
        %v4229 = vrot.slane %v4227, 4
        %v4230 = vrot.slane %v3477, 5
        %v4231 = vsel %vm1371, %v4229, %v4230
        %v4232 = vrot.slane %v4156, 5
        %v4233 = vrot.slane %v4232, 4
        %v4234 = vrot.slane %v3479, 5
        %v4235 = vsel %vm1371, %v4233, %v4234
        %v4236 = vrot.slane %v4234, 4
        %v4237 = vrot.slane %v3480, 5
        %v4238 = vsel %vm1371, %v4236, %v4237
        %v4239 = vrot.slane %v4157, 5
        %v4240 = vrot.slane %v4239, 4
        %v4241 = vrot.slane %v3482, 5
        %v4242 = vsel %vm1371, %v4240, %v4241
        %v4243 = vrot.slane %v4241, 4
        %v4244 = vrot.slane %v3483, 5
        %v4245 = vsel %vm1371, %v4243, %v4244
        %v4246 = vrot.slane %v4158, 5
        %v4247 = vrot.slane %v4246, 4
        %v4248 = vrot.slane %v3485, 5
        %v4249 = vsel %vm1371, %v4247, %v4248
        %v4250 = vrot.slane %v4248, 4
        %v4251 = vrot.slane %v3486, 5
        %v4252 = vsel %vm1371, %v4250, %v4251
        %v4253 = vrot.slane %v4159, 5
        %v4254 = vrot.slane %v4253, 4
        %v4255 = vrot.slane %v3488, 5
        %v4256 = vsel %vm1371, %v4254, %v4255
        %v4257 = vrot.slane %v4255, 4
        %v4258 = vrot.slane %v3489, 5
        %v4259 = vsel %vm1371, %v4257, %v4258
        %v4260 = vrot.slane %v4160, 5
        %v4261 = vrot.slane %v4260, 4
        %v4262 = vrot.slane %v3491, 5
        %v4263 = vsel %vm1371, %v4261, %v4262
        %v4264 = vrot.slane %v4262, 4
        %v4265 = vrot.slane %v3492, 5
        %v4266 = vsel %vm1371, %v4264, %v4265
        %v4267 = vrot.slane %v4161, 5
        %v4268 = vrot.slane %v4267, 4
        %v4269 = vrot.slane %v3494, 5
        %v4270 = vsel %vm1371, %v4268, %v4269
        %v4271 = vrot.slane %v4269, 4
        %v4272 = vrot.slane %v3495, 5
        %v4273 = vsel %vm1371, %v4271, %v4272
        %v4274 = vrot.slane %v4162, 5
        %v4275 = vrot.slane %v4274, 4
        %v4276 = vrot.slane %v3497, 5
        %v4277 = vsel %vm1371, %v4275, %v4276
        %v4278 = vrot.slane %v4276, 4
        %v4279 = vrot.slane %v3498, 5
        %v4280 = vsel %vm1371, %v4278, %v4279
        %v4281 = vrot.slane %v4163, 5
        %v4282 = vrot.slane %v4281, 4
        %v4283 = vrot.slane %v3500, 5
        %v4284 = vsel %vm1371, %v4282, %v4283
        %v4285 = vrot.slane %v4283, 4
        %v4286 = vrot.slane %v3501, 5
        %v4287 = vsel %vm1371, %v4285, %v4286
        %v4288 = vrot.slane %v4164, 5
        %v4289 = vrot.slane %v4288, 4
        %v4290 = vrot.slane %v3503, 5
        %v4291 = vsel %vm1371, %v4289, %v4290
        %v4292 = vrot.slane %v4290, 4
        %v4293 = vrot.slane %v3504, 5
        %v4294 = vsel %vm1371, %v4292, %v4293
        %v4295 = vrot.slane %v4165, 5
        %v4296 = vrot.slane %v4295, 4
        %v4297 = vrot.slane %v3506, 5
        %v4298 = vsel %vm1371, %v4296, %v4297
        %v4299 = vrot.slane %v4297, 4
        %v4300 = vrot.slane %v3507, 5
        %v4301 = vsel %vm1371, %v4299, %v4300
        %v4302 = vrot.slane %v4166, 5
        %v4303 = vrot.slane %v4302, 4
        %v4304 = vrot.slane %v3509, 5
        %v4305 = vsel %vm1371, %v4303, %v4304
        %v4306 = vrot.slane %v4304, 4
        %v4307 = vrot.slane %v3510, 5
        %v4308 = vsel %vm1371, %v4306, %v4307
        %v4309 = vrot.slane %v4167, 5
        %v4310 = vrot.slane %v4309, 4
        %v4311 = vrot.slane %v3512, 5
        %v4312 = vsel %vm1371, %v4310, %v4311
        %v4313 = vrot.slane %v4311, 4
        %v4314 = vrot.slane %v3513, 5
        %v4315 = vsel %vm1371, %v4313, %v4314
        %v4316 = vrot.slane %v4168, 5
        %v4317 = vrot.slane %v4316, 4
        %v4318 = vrot.slane %v3515, 5
        %v4319 = vsel %vm1371, %v4317, %v4318
        %v4320 = vrot.slane %v4318, 4
        %v4321 = vrot.slane %v3516, 5
        %v4322 = vsel %vm1371, %v4320, %v4321
        %v4323 = vrot.slane %v4169, 5
        %v4324 = vrot.slane %v4323, 4
        %v4325 = vrot.slane %v3518, 5
        %v4326 = vsel %vm1371, %v4324, %v4325
        %v4327 = vrot.slane %v4325, 4
        %v4328 = vrot.slane %v3519, 5
        %v4329 = vsel %vm1371, %v4327, %v4328
        %s4330 = scalar_lea.vmem %s1, 512
        %v4331 = vld [vmem:[%s4330] sm:$0xf]
        %v4332 = vld [vmem:[%s4330 + $0x4] sm:$0xf]
        %v4333 = vld [vmem:[%s4330 + $0x8] sm:$0xf]
        %v4334 = vld [vmem:[%s4330 + $0xc] sm:$0xf]
        %v4335 = vld [vmem:[%s4330 + $0x10] sm:$0xf]
        %v4336 = vld [vmem:[%s4330 + $0x14] sm:$0xf]
        %v4337 = vld [vmem:[%s4330 + $0x18] sm:$0xf]
        %v4338 = vld [vmem:[%s4330 + $0x1c] sm:$0xf]
        %v4339 = vld [vmem:[%s4330 + $0x20] sm:$0xf]
        %v4340 = vld [vmem:[%s4330 + $0x24] sm:$0xf]
        %v4341 = vld [vmem:[%s4330 + $0x28] sm:$0xf]
        %v4342 = vld [vmem:[%s4330 + $0x2c] sm:$0xf]
        %v4343 = vld [vmem:[%s4330 + $0x30] sm:$0xf]
        %v4344 = vld [vmem:[%s4330 + $0x34] sm:$0xf]
        %v4345 = vld [vmem:[%s4330 + $0x38] sm:$0xf]
        %v4346 = vld [vmem:[%s4330 + $0x3c] sm:$0xf]
        %v4347 = vunpack.c.l.b16 %v4221
        %v4348 = vunpack.c.l.b16 %v4224
        %v4349 = vunpack.c.l.b16 %v4228
        %v4350 = vunpack.c.l.b16 %v4231
        %v4351 = vunpack.c.l.b16 %v4235
        %v4352 = vunpack.c.l.b16 %v4238
        %v4353 = vunpack.c.l.b16 %v4242
        %v4354 = vunpack.c.l.b16 %v4245
        %v4355 = vunpack.c.l.b16 %v4249
        %v4356 = vunpack.c.l.b16 %v4252
        %v4357 = vunpack.c.l.b16 %v4256
        %v4358 = vunpack.c.l.b16 %v4259
        %v4359 = vunpack.c.l.b16 %v4263
        %v4360 = vunpack.c.l.b16 %v4266
        %v4361 = vunpack.c.l.b16 %v4270
        %v4362 = vunpack.c.l.b16 %v4273
        %v4363 = vunpack.c.l.b16 %v4277
        %v4364 = vunpack.c.l.b16 %v4280
        %v4365 = vunpack.c.l.b16 %v4284
        %v4366 = vunpack.c.l.b16 %v4287
        %v4367 = vunpack.c.l.b16 %v4291
        %v4368 = vunpack.c.l.b16 %v4294
        %v4369 = vunpack.c.l.b16 %v4298
        %v4370 = vunpack.c.l.b16 %v4301
        %v4371 = vunpack.c.l.b16 %v4305
        %v4372 = vunpack.c.l.b16 %v4308
        %v4373 = vunpack.c.l.b16 %v4312
        %v4374 = vunpack.c.l.b16 %v4315
        %v4375 = vunpack.c.l.b16 %v4319
        %v4376 = vunpack.c.l.b16 %v4322
        %v4377 = vunpack.c.l.b16 %v4326
        %v4378 = vunpack.c.l.b16 %v4329
        %v4379 = vpack.c.b16 %v4348, %v4347
        %v4380 = vpack.c.b16 %v4350, %v4349
        %v4381 = vpack.c.b16 %v4352, %v4351
        %v4382 = vpack.c.b16 %v4354, %v4353
        %v4383 = vpack.c.b16 %v4356, %v4355
        %v4384 = vpack.c.b16 %v4358, %v4357
        %v4385 = vpack.c.b16 %v4360, %v4359
        %v4386 = vpack.c.b16 %v4362, %v4361
        %v4387 = vpack.c.b16 %v4364, %v4363
        %v4388 = vpack.c.b16 %v4366, %v4365
        %v4389 = vpack.c.b16 %v4368, %v4367
        %v4390 = vpack.c.b16 %v4370, %v4369
        %v4391 = vpack.c.b16 %v4372, %v4371
        %v4392 = vpack.c.b16 %v4374, %v4373
        %v4393 = vpack.c.b16 %v4376, %v4375
        %v4394 = vpack.c.b16 %v4378, %v4377
        %v4427 = vunpack.c.l.b16 %v4331
        %v4428 = vunpack.c.l.b16 %v4332
        %v4429 = vunpack.c.l.b16 %v4333
        %v4430 = vunpack.c.l.b16 %v4334
        %v4431 = vunpack.c.l.b16 %v4335
        %v4432 = vunpack.c.l.b16 %v4336
        %v4433 = vunpack.c.l.b16 %v4337
        %v4434 = vunpack.c.l.b16 %v4338
        %v4435 = vunpack.c.l.b16 %v4339
        %v4436 = vunpack.c.l.b16 %v4340
        %v4437 = vunpack.c.l.b16 %v4341
        %v4438 = vunpack.c.l.b16 %v4342
        %v4439 = vunpack.c.l.b16 %v4343
        %v4440 = vunpack.c.l.b16 %v4344
        %v4441 = vunpack.c.l.b16 %v4345
        %v4442 = vunpack.c.l.b16 %v4346
        %v4443 = vpack.c.b16 %v4428, %v4427
        %v4444 = vpack.c.b16 %v4430, %v4429
        %v4445 = vpack.c.b16 %v4432, %v4431
        %v4446 = vpack.c.b16 %v4434, %v4433
        %v4447 = vpack.c.b16 %v4436, %v4435
        %v4448 = vpack.c.b16 %v4438, %v4437
        %v4449 = vpack.c.b16 %v4440, %v4439
        %v4450 = vpack.c.b16 %v4442, %v4441
        %4459 = vmatpush.bf16.msra.mxu0 %v4450
        %4460 = vmatpush.bf16.msra.mxu0 %v4449
        %4461 = vmatpush.bf16.msra.mxu0 %v4448
        %4462 = vmatpush.bf16.msra.mxu0 %v4447
        %4463 = vmatpush.bf16.msra.mxu0 %v4446
        %4464 = vmatpush.bf16.msra.mxu0 %v4445
        %4465 = vmatpush.bf16.msra.mxu0 %v4444
        %4466 = vmatpush.bf16.msra.mxu0 %v4443
        %4467 = vmatmul.bf16.gmra.mxu0 %v4379
        %v4468 = vpop.f32.mrf.mxu0
        %v4469 = vadd.f32 0.0, %v4468
        %v4470 = vpop.f32.mrf.mxu0
        %v4471 = vadd.f32 0.0, %v4470
        %4472 = vmatmul.bf16.gmra.mxu0 %v4380
        %v4473 = vpop.f32.mrf.mxu0
        %v4474 = vadd.f32 0.0, %v4473
        %v4475 = vpop.f32.mrf.mxu0
        %v4476 = vadd.f32 0.0, %v4475
        %4477 = vmatmul.bf16.gmra.mxu0 %v4381
        %v4478 = vpop.f32.mrf.mxu0
        %v4479 = vadd.f32 0.0, %v4478
        %v4480 = vpop.f32.mrf.mxu0
        %v4481 = vadd.f32 0.0, %v4480
        %4482 = vmatmul.bf16.gmra.mxu0 %v4382
        %v4483 = vpop.f32.mrf.mxu0
        %v4484 = vadd.f32 0.0, %v4483
        %v4485 = vpop.f32.mrf.mxu0
        %v4486 = vadd.f32 0.0, %v4485
        %4487 = vmatmul.bf16.gmra.mxu0 %v4383
        %v4488 = vpop.f32.mrf.mxu0
        %v4489 = vadd.f32 0.0, %v4488
        %v4490 = vpop.f32.mrf.mxu0
        %v4491 = vadd.f32 0.0, %v4490
        %4492 = vmatmul.bf16.gmra.mxu0 %v4384
        %v4493 = vpop.f32.mrf.mxu0
        %v4494 = vadd.f32 0.0, %v4493
        %v4495 = vpop.f32.mrf.mxu0
        %v4496 = vadd.f32 0.0, %v4495
        %4497 = vmatmul.bf16.gmra.mxu0 %v4385
        %v4498 = vpop.f32.mrf.mxu0
        %v4499 = vadd.f32 0.0, %v4498
        %v4500 = vpop.f32.mrf.mxu0
        %v4501 = vadd.f32 0.0, %v4500
        %4502 = vmatmul.bf16.gmra.mxu0 %v4386
        %v4503 = vpop.f32.mrf.mxu0
        %v4504 = vadd.f32 0.0, %v4503
        %v4505 = vpop.f32.mrf.mxu0
        %v4506 = vadd.f32 0.0, %v4505
        %4507 = vmatmul.bf16.gmra.mxu0 %v4387
        %v4508 = vpop.f32.mrf.mxu0
        %v4509 = vadd.f32 0.0, %v4508
        %v4510 = vpop.f32.mrf.mxu0
        %v4511 = vadd.f32 0.0, %v4510
        %4512 = vmatmul.bf16.gmra.mxu0 %v4388
        %v4513 = vpop.f32.mrf.mxu0
        %v4514 = vadd.f32 0.0, %v4513
        %v4515 = vpop.f32.mrf.mxu0
        %v4516 = vadd.f32 0.0, %v4515
        %4517 = vmatmul.bf16.gmra.mxu0 %v4389
        %v4518 = vpop.f32.mrf.mxu0
        %v4519 = vadd.f32 0.0, %v4518
        %v4520 = vpop.f32.mrf.mxu0
        %v4521 = vadd.f32 0.0, %v4520
        %4522 = vmatmul.bf16.gmra.mxu0 %v4390
        %v4523 = vpop.f32.mrf.mxu0
        %v4524 = vadd.f32 0.0, %v4523
        %v4525 = vpop.f32.mrf.mxu0
        %v4526 = vadd.f32 0.0, %v4525
        %4527 = vmatmul.bf16.gmra.mxu0 %v4391
        %v4528 = vpop.f32.mrf.mxu0
        %v4529 = vadd.f32 0.0, %v4528
        %v4530 = vpop.f32.mrf.mxu0
        %v4531 = vadd.f32 0.0, %v4530
        %4532 = vmatmul.bf16.gmra.mxu0 %v4392
        %v4533 = vpop.f32.mrf.mxu0
        %v4534 = vadd.f32 0.0, %v4533
        %v4535 = vpop.f32.mrf.mxu0
        %v4536 = vadd.f32 0.0, %v4535
        %4537 = vmatmul.bf16.gmra.mxu0 %v4393
        %v4538 = vpop.f32.mrf.mxu0
        %v4539 = vadd.f32 0.0, %v4538
        %v4540 = vpop.f32.mrf.mxu0
        %v4541 = vadd.f32 0.0, %v4540
        %4542 = vmatmul.bf16.gmra.mxu0 %v4394
        %v4543 = vpop.f32.mrf.mxu0
        %v4544 = vadd.f32 0.0, %v4543
        %v4545 = vpop.f32.mrf.mxu0
        %v4546 = vadd.f32 0.0, %v4545
        %4547 = vdwg.mxu0
        %v4548 = vadd.f32 %v4122, %v4469
        %v4549 = vadd.f32 %v4123, %v4471
        %v4550 = vadd.f32 %v4124, %v4474
        %v4551 = vadd.f32 %v4125, %v4476
        %v4552 = vadd.f32 %v4126, %v4479
        %v4553 = vadd.f32 %v4127, %v4481
        %v4554 = vadd.f32 %v4128, %v4484
        %v4555 = vadd.f32 %v4129, %v4486
        %v4556 = vadd.f32 %v4130, %v4489
        %v4557 = vadd.f32 %v4131, %v4491
        %v4558 = vadd.f32 %v4132, %v4494
        %v4559 = vadd.f32 %v4133, %v4496
        %v4560 = vadd.f32 %v4134, %v4499
        %v4561 = vadd.f32 %v4135, %v4501
        %v4562 = vadd.f32 %v4136, %v4504
        %v4563 = vadd.f32 %v4137, %v4506
        %v4564 = vadd.f32 %v4138, %v4509
        %v4565 = vadd.f32 %v4139, %v4511
        %v4566 = vadd.f32 %v4140, %v4514
        %v4567 = vadd.f32 %v4141, %v4516
        %v4568 = vadd.f32 %v4142, %v4519
        %v4569 = vadd.f32 %v4143, %v4521
        %v4570 = vadd.f32 %v4144, %v4524
        %v4571 = vadd.f32 %v4145, %v4526
        %v4572 = vadd.f32 %v4146, %v4529
        %v4573 = vadd.f32 %v4147, %v4531
        %v4574 = vadd.f32 %v4148, %v4534
        %v4575 = vadd.f32 %v4149, %v4536
        %v4576 = vadd.f32 %v4150, %v4539
        %v4577 = vadd.f32 %v4151, %v4541
        %v4578 = vadd.f32 %v4152, %v4544
        %v4579 = vadd.f32 %v4153, %v4546
        %v4580 = vld [vmem:[%s5] sm:$0x1]
        %v4582 = vperm.slane %v4580, 0
        %v4584 = vmul.f32 %v4548, %v4582
        %v4585 = vmul.f32 %v4549, %v4582
        %v4586 = vmul.f32 %v4550, %v4582
        %v4587 = vmul.f32 %v4551, %v4582
        %v4588 = vmul.f32 %v4552, %v4582
        %v4589 = vmul.f32 %v4553, %v4582
        %v4590 = vmul.f32 %v4554, %v4582
        %v4591 = vmul.f32 %v4555, %v4582
        %v4592 = vmul.f32 %v4556, %v4582
        %v4593 = vmul.f32 %v4557, %v4582
        %v4594 = vmul.f32 %v4558, %v4582
        %v4595 = vmul.f32 %v4559, %v4582
        %v4596 = vmul.f32 %v4560, %v4582
        %v4597 = vmul.f32 %v4561, %v4582
        %v4598 = vmul.f32 %v4562, %v4582
        %v4599 = vmul.f32 %v4563, %v4582
        %v4600 = vmul.f32 %v4564, %v4582
        %v4601 = vmul.f32 %v4565, %v4582
        %v4602 = vmul.f32 %v4566, %v4582
        %v4603 = vmul.f32 %v4567, %v4582
        %v4604 = vmul.f32 %v4568, %v4582
        %v4605 = vmul.f32 %v4569, %v4582
        %v4606 = vmul.f32 %v4570, %v4582
        %v4607 = vmul.f32 %v4571, %v4582
        %v4608 = vmul.f32 %v4572, %v4582
        %v4609 = vmul.f32 %v4573, %v4582
        %v4610 = vmul.f32 %v4574, %v4582
        %v4611 = vmul.f32 %v4575, %v4582
        %v4612 = vmul.f32 %v4576, %v4582
        %v4613 = vmul.f32 %v4577, %v4582
        %v4614 = vmul.f32 %v4578, %v4582
        %v4615 = vmul.f32 %v4579, %v4582
        %v4616 = vld [vmem:[%s6] sm:$0x1]
        %v4618 = vperm.slane %v4616, 0
        %v4620 = vadd.f32 %v4584, %v4618
        %v4621 = vadd.f32 %v4585, %v4618
        %v4622 = vadd.f32 %v4586, %v4618
        %v4623 = vadd.f32 %v4587, %v4618
        %v4624 = vadd.f32 %v4588, %v4618
        %v4625 = vadd.f32 %v4589, %v4618
        %v4626 = vadd.f32 %v4590, %v4618
        %v4627 = vadd.f32 %v4591, %v4618
        %v4628 = vadd.f32 %v4592, %v4618
        %v4629 = vadd.f32 %v4593, %v4618
        %v4630 = vadd.f32 %v4594, %v4618
        %v4631 = vadd.f32 %v4595, %v4618
        %v4632 = vadd.f32 %v4596, %v4618
        %v4633 = vadd.f32 %v4597, %v4618
        %v4634 = vadd.f32 %v4598, %v4618
        %v4635 = vadd.f32 %v4599, %v4618
        %v4636 = vadd.f32 %v4600, %v4618
        %v4637 = vadd.f32 %v4601, %v4618
        %v4638 = vadd.f32 %v4602, %v4618
        %v4639 = vadd.f32 %v4603, %v4618
        %v4640 = vadd.f32 %v4604, %v4618
        %v4641 = vadd.f32 %v4605, %v4618
        %v4642 = vadd.f32 %v4606, %v4618
        %v4643 = vadd.f32 %v4607, %v4618
        %v4644 = vadd.f32 %v4608, %v4618
        %v4645 = vadd.f32 %v4609, %v4618
        %v4646 = vadd.f32 %v4610, %v4618
        %v4647 = vadd.f32 %v4611, %v4618
        %v4648 = vadd.f32 %v4612, %v4618
        %v4649 = vadd.f32 %v4613, %v4618
        %v4650 = vadd.f32 %v4614, %v4618
        %v4651 = vadd.f32 %v4615, %v4618
        %v4652 = vmax.f32 %v4620, 0.0
        %v4653 = vmax.f32 %v4621, 0.0
        %v4654 = vmax.f32 %v4622, 0.0
        %v4655 = vmax.f32 %v4623, 0.0
        %v4656 = vmax.f32 %v4624, 0.0
        %v4657 = vmax.f32 %v4625, 0.0
        %v4658 = vmax.f32 %v4626, 0.0
        %v4659 = vmax.f32 %v4627, 0.0
        %v4660 = vmax.f32 %v4628, 0.0
        %v4661 = vmax.f32 %v4629, 0.0
        %v4662 = vmax.f32 %v4630, 0.0
        %v4663 = vmax.f32 %v4631, 0.0
        %v4664 = vmax.f32 %v4632, 0.0
        %v4665 = vmax.f32 %v4633, 0.0
        %v4666 = vmax.f32 %v4634, 0.0
        %v4667 = vmax.f32 %v4635, 0.0
        %v4668 = vmax.f32 %v4636, 0.0
        %v4669 = vmax.f32 %v4637, 0.0
        %v4670 = vmax.f32 %v4638, 0.0
        %v4671 = vmax.f32 %v4639, 0.0
        %v4672 = vmax.f32 %v4640, 0.0
        %v4673 = vmax.f32 %v4641, 0.0
        %v4674 = vmax.f32 %v4642, 0.0
        %v4675 = vmax.f32 %v4643, 0.0
        %v4676 = vmax.f32 %v4644, 0.0
        %v4677 = vmax.f32 %v4645, 0.0
        %v4678 = vmax.f32 %v4646, 0.0
        %v4679 = vmax.f32 %v4647, 0.0
        %v4680 = vmax.f32 %v4648, 0.0
        %v4681 = vmax.f32 %v4649, 0.0
        %v4682 = vmax.f32 %v4650, 0.0
        %v4683 = vmax.f32 %v4651, 0.0
        %v4684 = vpack.c.bf16 %v4653, %v4652
        %v4685 = vpack.c.bf16 %v4655, %v4654
        %v4686 = vpack.c.bf16 %v4657, %v4656
        %v4687 = vpack.c.bf16 %v4659, %v4658
        %v4688 = vpack.c.bf16 %v4661, %v4660
        %v4689 = vpack.c.bf16 %v4663, %v4662
        %v4690 = vpack.c.bf16 %v4665, %v4664
        %v4691 = vpack.c.bf16 %v4667, %v4666
        %v4692 = vpack.c.bf16 %v4669, %v4668
        %v4693 = vpack.c.bf16 %v4671, %v4670
        %v4694 = vpack.c.bf16 %v4673, %v4672
        %v4695 = vpack.c.bf16 %v4675, %v4674
        %v4696 = vpack.c.bf16 %v4677, %v4676
        %v4697 = vpack.c.bf16 %v4679, %v4678
        %v4698 = vpack.c.bf16 %v4681, %v4680
        %v4699 = vpack.c.bf16 %v4683, %v4682
        %4700 = vst [vmem:[#allocation2] sm:$0xff] 0.0
        %4701 = vst [vmem:[#allocation2 + $0x8] sm:$0xff] 0.0
        %4702 = vst [vmem:[#allocation2 + $0x10] sm:$0xff] 0.0
        %4703 = vst [vmem:[#allocation2 + $0x18] sm:$0x1] 0.0
        %4704 = vst [vmem:[#allocation2 + $0x20] sm:$0xff] 0.0
        %4705 = vst [vmem:[#allocation2 + $0x28] sm:$0xff] 0.0
        %4706 = vst [vmem:[#allocation2 + $0x30] sm:$0xff] 0.0
        %4707 = vst [vmem:[#allocation2 + $0x38] sm:$0x1] 0.0
        %4708 = vst [vmem:[#allocation2 + $0x40] sm:$0xff] 0.0
        %4709 = vst [vmem:[#allocation2 + $0x48] sm:$0xff] 0.0
        %4710 = vst [vmem:[#allocation2 + $0x50] sm:$0xff] 0.0
        %4711 = vst [vmem:[#allocation2 + $0x58] sm:$0x1] 0.0
        %4712 = vst [vmem:[#allocation2 + $0x60] sm:$0xff] 0.0
        %4713 = vst [vmem:[#allocation2 + $0x68] sm:$0xff] 0.0
        %4714 = vst [vmem:[#allocation2 + $0x70] sm:$0xff] 0.0
        %4715 = vst [vmem:[#allocation2 + $0x78] sm:$0x1] 0.0
        %4716 = vst [vmem:[#allocation2 + $0x80] sm:$0xff] 0.0
        %4717 = vst [vmem:[#allocation2 + $0x88] sm:$0xff] 0.0
        %4718 = vst [vmem:[#allocation2 + $0x90] sm:$0xff] 0.0
        %4719 = vst [vmem:[#allocation2 + $0x98] sm:$0x1] 0.0
        %4720 = vst [vmem:[#allocation2 + $0xa0] sm:$0xff] 0.0
        %4721 = vst [vmem:[#allocation2 + $0xa8] sm:$0xff] 0.0
        %4722 = vst [vmem:[#allocation2 + $0xb0] sm:$0xff] 0.0
        %4723 = vst [vmem:[#allocation2 + $0xb8] sm:$0x1] 0.0
        %4724 = vst [vmem:[#allocation2 + $0xc0] sm:$0xff] 0.0
        %4725 = vst [vmem:[#allocation2 + $0xc8] sm:$0xff] 0.0
        %4726 = vst [vmem:[#allocation2 + $0xd0] sm:$0xff] 0.0
        %4727 = vst [vmem:[#allocation2 + $0xd8] sm:$0x1] 0.0
        %4728 = vst [vmem:[#allocation2 + $0xe0] sm:$0xff] 0.0
        %4729 = vst [vmem:[#allocation2 + $0xe8] sm:$0xff] 0.0
        %4730 = vst [vmem:[#allocation2 + $0xf0] sm:$0xff] 0.0
        %4731 = vst [vmem:[#allocation2 + $0xf8] sm:$0x1] 0.0
        %4732 = vst [vmem:[#allocation2 + $0x100] sm:$0xff] 0.0
        %4733 = vst [vmem:[#allocation2 + $0x108] sm:$0xff] 0.0
        %4734 = vst [vmem:[#allocation2 + $0x110] sm:$0xff] 0.0
        %4735 = vst [vmem:[#allocation2 + $0x118] sm:$0x1] 0.0
        %4736 = vst [vmem:[#allocation2 + $0x120] sm:$0xff] 0.0
        %4737 = vst [vmem:[#allocation2 + $0x128] sm:$0xff] 0.0
        %4738 = vst [vmem:[#allocation2 + $0x130] sm:$0xff] 0.0
        %4739 = vst [vmem:[#allocation2 + $0x138] sm:$0x1] 0.0
        %4740 = vst [vmem:[#allocation2 + $0x140] sm:$0xff] 0.0
        %4741 = vst [vmem:[#allocation2 + $0x148] sm:$0xff] 0.0
        %4742 = vst [vmem:[#allocation2 + $0x150] sm:$0xff] 0.0
        %4743 = vst [vmem:[#allocation2 + $0x158] sm:$0x1] 0.0
        %4744 = vst [vmem:[#allocation2 + $0x160] sm:$0xff] 0.0
        %4745 = vst [vmem:[#allocation2 + $0x168] sm:$0xff] 0.0
        %4746 = vst [vmem:[#allocation2 + $0x170] sm:$0xff] 0.0
        %4747 = vst [vmem:[#allocation2 + $0x178] sm:$0x1] 0.0
        %4748 = vst [vmem:[#allocation2 + $0x180] sm:$0xff] 0.0
        %4749 = vst [vmem:[#allocation2 + $0x188] sm:$0xff] 0.0
        %4750 = vst [vmem:[#allocation2 + $0x190] sm:$0xff] 0.0
        %4751 = vst [vmem:[#allocation2 + $0x198] sm:$0x1] 0.0
        %4752 = vst [vmem:[#allocation2 + $0x1a0] sm:$0xff] 0.0
        %4753 = vst [vmem:[#allocation2 + $0x1a8] sm:$0xff] 0.0
        %4754 = vst [vmem:[#allocation2 + $0x1b0] sm:$0xff] 0.0
        %4755 = vst [vmem:[#allocation2 + $0x1b8] sm:$0x1] 0.0
        %4756 = vst [vmem:[#allocation2 + $0x1c0] sm:$0xff] 0.0
        %4757 = vst [vmem:[#allocation2 + $0x1c8] sm:$0xff] 0.0
        %4758 = vst [vmem:[#allocation2 + $0x1d0] sm:$0xff] 0.0
        %4759 = vst [vmem:[#allocation2 + $0x1d8] sm:$0x1] 0.0
        %4760 = vst [vmem:[#allocation2 + $0x1e0] sm:$0xff] 0.0
        %4761 = vst [vmem:[#allocation2 + $0x1e8] sm:$0xff] 0.0
        %4762 = vst [vmem:[#allocation2 + $0x1f0] sm:$0xff] 0.0
        %4763 = vst [vmem:[#allocation2 + $0x1f8] sm:$0x1] 0.0
        %4764 = vst [vmem:[#allocation2 + $0x200] sm:$0xff] 0.0
        %4765 = vst [vmem:[#allocation2 + $0x208] sm:$0xff] 0.0
        %4766 = vst [vmem:[#allocation2 + $0x210] sm:$0xff] 0.0
        %4767 = vst [vmem:[#allocation2 + $0x218] sm:$0x1] 0.0
        %4768 = vst [vmem:[#allocation2 + $0x220] sm:$0xff] 0.0
        %4769 = vst [vmem:[#allocation2 + $0x228] sm:$0xff] 0.0
        %4770 = vst [vmem:[#allocation2 + $0x230] sm:$0xff] 0.0
        %4771 = vst [vmem:[#allocation2 + $0x238] sm:$0x1] 0.0
        %s4772 = scalar_lea.vmem [#allocation2], 32
        %4773 = vst [vmem:[%s4772 + $0x8] sm:$0xff] %v4652
        %4774 = vst [vmem:[%s4772 + $0x10] sm:$0xff] %v4653
        %4775 = vst [vmem:[%s4772 + $0x28] sm:$0xff] %v4654
        %4776 = vst [vmem:[%s4772 + $0x30] sm:$0xff] %v4655
        %4777 = vst [vmem:[%s4772 + $0x48] sm:$0xff] %v4656
        %4778 = vst [vmem:[%s4772 + $0x50] sm:$0xff] %v4657
        %4779 = vst [vmem:[%s4772 + $0x68] sm:$0xff] %v4658
        %4780 = vst [vmem:[%s4772 + $0x70] sm:$0xff] %v4659
        %4781 = vst [vmem:[%s4772 + $0x88] sm:$0xff] %v4660
        %4782 = vst [vmem:[%s4772 + $0x90] sm:$0xff] %v4661
        %4783 = vst [vmem:[%s4772 + $0xa8] sm:$0xff] %v4662
        %4784 = vst [vmem:[%s4772 + $0xb0] sm:$0xff] %v4663
        %4785 = vst [vmem:[%s4772 + $0xc8] sm:$0xff] %v4664
        %4786 = vst [vmem:[%s4772 + $0xd0] sm:$0xff] %v4665
        %4787 = vst [vmem:[%s4772 + $0xe8] sm:$0xff] %v4666
        %4788 = vst [vmem:[%s4772 + $0xf0] sm:$0xff] %v4667
        %4789 = vst [vmem:[%s4772 + $0x108] sm:$0xff] %v4668
        %4790 = vst [vmem:[%s4772 + $0x110] sm:$0xff] %v4669
        %4791 = vst [vmem:[%s4772 + $0x128] sm:$0xff] %v4670
        %4792 = vst [vmem:[%s4772 + $0x130] sm:$0xff] %v4671
        %4793 = vst [vmem:[%s4772 + $0x148] sm:$0xff] %v4672
        %4794 = vst [vmem:[%s4772 + $0x150] sm:$0xff] %v4673
        %4795 = vst [vmem:[%s4772 + $0x168] sm:$0xff] %v4674
        %4796 = vst [vmem:[%s4772 + $0x170] sm:$0xff] %v4675
        %4797 = vst [vmem:[%s4772 + $0x188] sm:$0xff] %v4676
        %4798 = vst [vmem:[%s4772 + $0x190] sm:$0xff] %v4677
        %4799 = vst [vmem:[%s4772 + $0x1a8] sm:$0xff] %v4678
        %4800 = vst [vmem:[%s4772 + $0x1b0] sm:$0xff] %v4679
        %4801 = vst [vmem:[%s4772 + $0x1c8] sm:$0xff] %v4680
        %4802 = vst [vmem:[%s4772 + $0x1d0] sm:$0xff] %v4681
        %4803 = vst [vmem:[%s4772 + $0x1e8] sm:$0xff] %v4682
        %4804 = vst [vmem:[%s4772 + $0x1f0] sm:$0xff] %v4683
        %v4805 = vld [vmem:[#allocation2 + $0x7] sm:$0xff]
        %v4806 = vld [vmem:[#allocation2 + $0xf] sm:$0xff]
        %v4807 = vld [vmem:[#allocation2 + $0x27] sm:$0xff]
        %v4808 = vld [vmem:[#allocation2 + $0x2f] sm:$0xff]
        %v4809 = vld [vmem:[#allocation2 + $0x47] sm:$0xff]
        %v4810 = vld [vmem:[#allocation2 + $0x4f] sm:$0xff]
        %v4811 = vld [vmem:[#allocation2 + $0x67] sm:$0xff]
        %v4812 = vld [vmem:[#allocation2 + $0x6f] sm:$0xff]
        %v4813 = vld [vmem:[#allocation2 + $0x87] sm:$0xff]
        %v4814 = vld [vmem:[#allocation2 + $0x8f] sm:$0xff]
        %v4815 = vld [vmem:[#allocation2 + $0xa7] sm:$0xff]
        %v4816 = vld [vmem:[#allocation2 + $0xaf] sm:$0xff]
        %v4817 = vld [vmem:[#allocation2 + $0xc7] sm:$0xff]
        %v4818 = vld [vmem:[#allocation2 + $0xcf] sm:$0xff]
        %v4819 = vld [vmem:[#allocation2 + $0xe7] sm:$0xff]
        %v4820 = vld [vmem:[#allocation2 + $0xef] sm:$0xff]
        %v4821 = vld [vmem:[#allocation2 + $0x107] sm:$0xff]
        %v4822 = vld [vmem:[#allocation2 + $0x10f] sm:$0xff]
        %v4823 = vld [vmem:[#allocation2 + $0x127] sm:$0xff]
        %v4824 = vld [vmem:[#allocation2 + $0x12f] sm:$0xff]
        %v4825 = vld [vmem:[#allocation2 + $0x147] sm:$0xff]
        %v4826 = vld [vmem:[#allocation2 + $0x14f] sm:$0xff]
        %v4827 = vld [vmem:[#allocation2 + $0x167] sm:$0xff]
        %v4828 = vld [vmem:[#allocation2 + $0x16f] sm:$0xff]
        %v4829 = vld [vmem:[#allocation2 + $0x187] sm:$0xff]
        %v4830 = vld [vmem:[#allocation2 + $0x18f] sm:$0xff]
        %v4831 = vld [vmem:[#allocation2 + $0x1a7] sm:$0xff]
        %v4832 = vld [vmem:[#allocation2 + $0x1af] sm:$0xff]
        %v4833 = vld [vmem:[#allocation2 + $0x1c7] sm:$0xff]
        %v4834 = vld [vmem:[#allocation2 + $0x1cf] sm:$0xff]
        %v4835 = vld [vmem:[#allocation2 + $0x1e7] sm:$0xff]
        %v4836 = vld [vmem:[#allocation2 + $0x1ef] sm:$0xff]
        %v4837 = vpack.c.bf16 %v4806, %v4805
        %v4838 = vpack.c.bf16 %v4808, %v4807
        %v4839 = vpack.c.bf16 %v4810, %v4809
        %v4840 = vpack.c.bf16 %v4812, %v4811
        %v4841 = vpack.c.bf16 %v4814, %v4813
        %v4842 = vpack.c.bf16 %v4816, %v4815
        %v4843 = vpack.c.bf16 %v4818, %v4817
        %v4844 = vpack.c.bf16 %v4820, %v4819
        %v4845 = vpack.c.bf16 %v4822, %v4821
        %v4846 = vpack.c.bf16 %v4824, %v4823
        %v4847 = vpack.c.bf16 %v4826, %v4825
        %v4848 = vpack.c.bf16 %v4828, %v4827
        %v4849 = vpack.c.bf16 %v4830, %v4829
        %v4850 = vpack.c.bf16 %v4832, %v4831
        %v4851 = vpack.c.bf16 %v4834, %v4833
        %v4852 = vpack.c.bf16 %v4836, %v4835
        %v4853 = vld [vmem:[#allocation4] sm:$0xf]
        %v4854 = vld [vmem:[#allocation4 + $0x4] sm:$0xf]
        %v4855 = vld [vmem:[#allocation4 + $0x8] sm:$0xf]
        %v4856 = vld [vmem:[#allocation4 + $0xc] sm:$0xf]
        %v4857 = vld [vmem:[#allocation4 + $0x10] sm:$0xf]
        %v4858 = vld [vmem:[#allocation4 + $0x14] sm:$0xf]
        %v4859 = vld [vmem:[#allocation4 + $0x18] sm:$0xf]
        %v4860 = vld [vmem:[#allocation4 + $0x1c] sm:$0xf]
        %v4861 = vld [vmem:[#allocation4 + $0x20] sm:$0xf]
        %v4862 = vld [vmem:[#allocation4 + $0x24] sm:$0xf]
        %v4863 = vld [vmem:[#allocation4 + $0x28] sm:$0xf]
        %v4864 = vld [vmem:[#allocation4 + $0x2c] sm:$0xf]
        %v4865 = vld [vmem:[#allocation4 + $0x30] sm:$0xf]
        %v4866 = vld [vmem:[#allocation4 + $0x34] sm:$0xf]
        %v4867 = vld [vmem:[#allocation4 + $0x38] sm:$0xf]
        %v4868 = vld [vmem:[#allocation4 + $0x3c] sm:$0xf]
        %v4869 = vld [vmem:[#allocation2 + $0x8] sm:$0xff]
        %v4870 = vld [vmem:[#allocation2 + $0x10] sm:$0xff]
        %v4871 = vld [vmem:[#allocation2 + $0x28] sm:$0xff]
        %v4872 = vld [vmem:[#allocation2 + $0x30] sm:$0xff]
        %v4873 = vld [vmem:[#allocation2 + $0x48] sm:$0xff]
        %v4874 = vld [vmem:[#allocation2 + $0x50] sm:$0xff]
        %v4875 = vld [vmem:[#allocation2 + $0x68] sm:$0xff]
        %v4876 = vld [vmem:[#allocation2 + $0x70] sm:$0xff]
        %v4877 = vld [vmem:[#allocation2 + $0x88] sm:$0xff]
        %v4878 = vld [vmem:[#allocation2 + $0x90] sm:$0xff]
        %v4879 = vld [vmem:[#allocation2 + $0xa8] sm:$0xff]
        %v4880 = vld [vmem:[#allocation2 + $0xb0] sm:$0xff]
        %v4881 = vld [vmem:[#allocation2 + $0xc8] sm:$0xff]
        %v4882 = vld [vmem:[#allocation2 + $0xd0] sm:$0xff]
        %v4883 = vld [vmem:[#allocation2 + $0xe8] sm:$0xff]
        %v4884 = vld [vmem:[#allocation2 + $0xf0] sm:$0xff]
        %v4885 = vld [vmem:[#allocation2 + $0x108] sm:$0xff]
        %v4886 = vld [vmem:[#allocation2 + $0x110] sm:$0xff]
        %v4887 = vld [vmem:[#allocation2 + $0x128] sm:$0xff]
        %v4888 = vld [vmem:[#allocation2 + $0x130] sm:$0xff]
        %v4889 = vld [vmem:[#allocation2 + $0x148] sm:$0xff]
        %v4890 = vld [vmem:[#allocation2 + $0x150] sm:$0xff]
        %v4891 = vld [vmem:[#allocation2 + $0x168] sm:$0xff]
        %v4892 = vld [vmem:[#allocation2 + $0x170] sm:$0xff]
        %v4893 = vld [vmem:[#allocation2 + $0x188] sm:$0xff]
        %v4894 = vld [vmem:[#allocation2 + $0x190] sm:$0xff]
        %v4895 = vld [vmem:[#allocation2 + $0x1a8] sm:$0xff]
        %v4896 = vld [vmem:[#allocation2 + $0x1b0] sm:$0xff]
        %v4897 = vld [vmem:[#allocation2 + $0x1c8] sm:$0xff]
        %v4898 = vld [vmem:[#allocation2 + $0x1d0] sm:$0xff]
        %v4899 = vld [vmem:[#allocation2 + $0x1e8] sm:$0xff]
        %v4900 = vld [vmem:[#allocation2 + $0x1f0] sm:$0xff]
        %v4901 = vpack.c.bf16 %v4870, %v4869
        %v4902 = vpack.c.bf16 %v4872, %v4871
        %v4903 = vpack.c.bf16 %v4874, %v4873
        %v4904 = vpack.c.bf16 %v4876, %v4875
        %v4905 = vpack.c.bf16 %v4878, %v4877
        %v4906 = vpack.c.bf16 %v4880, %v4879
        %v4907 = vpack.c.bf16 %v4882, %v4881
        %v4908 = vpack.c.bf16 %v4884, %v4883
        %v4909 = vpack.c.bf16 %v4886, %v4885
        %v4910 = vpack.c.bf16 %v4888, %v4887
        %v4911 = vpack.c.bf16 %v4890, %v4889
        %v4912 = vpack.c.bf16 %v4892, %v4891
        %v4913 = vpack.c.bf16 %v4894, %v4893
        %v4914 = vpack.c.bf16 %v4896, %v4895
        %v4915 = vpack.c.bf16 %v4898, %v4897
        %v4916 = vpack.c.bf16 %v4900, %v4899
        %s4917 = scalar_lea.vmem [#allocation4], 64
        %v4918 = vld [vmem:[%s4917] sm:$0xf]
        %v4919 = vld [vmem:[%s4917 + $0x4] sm:$0xf]
        %v4920 = vld [vmem:[%s4917 + $0x8] sm:$0xf]
        %v4921 = vld [vmem:[%s4917 + $0xc] sm:$0xf]
        %v4922 = vld [vmem:[%s4917 + $0x10] sm:$0xf]
        %v4923 = vld [vmem:[%s4917 + $0x14] sm:$0xf]
        %v4924 = vld [vmem:[%s4917 + $0x18] sm:$0xf]
        %v4925 = vld [vmem:[%s4917 + $0x1c] sm:$0xf]
        %v4926 = vld [vmem:[%s4917 + $0x20] sm:$0xf]
        %v4927 = vld [vmem:[%s4917 + $0x24] sm:$0xf]
        %v4928 = vld [vmem:[%s4917 + $0x28] sm:$0xf]
        %v4929 = vld [vmem:[%s4917 + $0x2c] sm:$0xf]
        %v4930 = vld [vmem:[%s4917 + $0x30] sm:$0xf]
        %v4931 = vld [vmem:[%s4917 + $0x34] sm:$0xf]
        %v4932 = vld [vmem:[%s4917 + $0x38] sm:$0xf]
        %v4933 = vld [vmem:[%s4917 + $0x3c] sm:$0xf]
        %v4950 = vunpack.c.l.b16 %v4918
        %v4951 = vunpack.c.l.b16 %v4919
        %v4952 = vunpack.c.l.b16 %v4920
        %v4953 = vunpack.c.l.b16 %v4921
        %v4954 = vunpack.c.l.b16 %v4922
        %v4955 = vunpack.c.l.b16 %v4923
        %v4956 = vunpack.c.l.b16 %v4924
        %v4957 = vunpack.c.l.b16 %v4925
        %v4958 = vunpack.c.l.b16 %v4926
        %v4959 = vunpack.c.l.b16 %v4927
        %v4960 = vunpack.c.l.b16 %v4928
        %v4961 = vunpack.c.l.b16 %v4929
        %v4962 = vunpack.c.l.b16 %v4930
        %v4963 = vunpack.c.l.b16 %v4931
        %v4964 = vunpack.c.l.b16 %v4932
        %v4965 = vunpack.c.l.b16 %v4933
        %v4966 = vpack.c.b16 %v4951, %v4950
        %v4967 = vpack.c.b16 %v4953, %v4952
        %v4968 = vpack.c.b16 %v4955, %v4954
        %v4969 = vpack.c.b16 %v4957, %v4956
        %v4970 = vpack.c.b16 %v4959, %v4958
        %v4971 = vpack.c.b16 %v4961, %v4960
        %v4972 = vpack.c.b16 %v4963, %v4962
        %v4973 = vpack.c.b16 %v4965, %v4964
        %4982 = vmatpush.bf16.msra.mxu0 %v4973
        %4983 = vmatpush.bf16.msra.mxu0 %v4972
        %4984 = vmatpush.bf16.msra.mxu0 %v4971
        %4985 = vmatpush.bf16.msra.mxu0 %v4970
        %4986 = vmatpush.bf16.msra.mxu0 %v4969
        %4987 = vmatpush.bf16.msra.mxu0 %v4968
        %4988 = vmatpush.bf16.msra.mxu0 %v4967
        %4989 = vmatpush.bf16.msra.mxu0 %v4966
        %4990 = vmatmul.bf16.gmra.mxu0 %v4901
        %v4991 = vpop.f32.mrf.mxu0
        %v4992 = vadd.f32 0.0, %v4991
        %v4993 = vpop.f32.mrf.mxu0
        %v4994 = vadd.f32 0.0, %v4993
        %4995 = vmatmul.bf16.gmra.mxu0 %v4902
        %v4996 = vpop.f32.mrf.mxu0
        %v4997 = vadd.f32 0.0, %v4996
        %v4998 = vpop.f32.mrf.mxu0
        %v4999 = vadd.f32 0.0, %v4998
        %5000 = vmatmul.bf16.gmra.mxu0 %v4903
        %v5001 = vpop.f32.mrf.mxu0
        %v5002 = vadd.f32 0.0, %v5001
        %v5003 = vpop.f32.mrf.mxu0
        %v5004 = vadd.f32 0.0, %v5003
        %5005 = vmatmul.bf16.gmra.mxu0 %v4904
        %v5006 = vpop.f32.mrf.mxu0
        %v5007 = vadd.f32 0.0, %v5006
        %v5008 = vpop.f32.mrf.mxu0
        %v5009 = vadd.f32 0.0, %v5008
        %5010 = vmatmul.bf16.gmra.mxu0 %v4905
        %v5011 = vpop.f32.mrf.mxu0
        %v5012 = vadd.f32 0.0, %v5011
        %v5013 = vpop.f32.mrf.mxu0
        %v5014 = vadd.f32 0.0, %v5013
        %5015 = vmatmul.bf16.gmra.mxu0 %v4906
        %v5016 = vpop.f32.mrf.mxu0
        %v5017 = vadd.f32 0.0, %v5016
        %v5018 = vpop.f32.mrf.mxu0
        %v5019 = vadd.f32 0.0, %v5018
        %5020 = vmatmul.bf16.gmra.mxu0 %v4907
        %v5021 = vpop.f32.mrf.mxu0
        %v5022 = vadd.f32 0.0, %v5021
        %v5023 = vpop.f32.mrf.mxu0
        %v5024 = vadd.f32 0.0, %v5023
        %5025 = vmatmul.bf16.gmra.mxu0 %v4908
        %v5026 = vpop.f32.mrf.mxu0
        %v5027 = vadd.f32 0.0, %v5026
        %v5028 = vpop.f32.mrf.mxu0
        %v5029 = vadd.f32 0.0, %v5028
        %5030 = vmatmul.bf16.gmra.mxu0 %v4909
        %v5031 = vpop.f32.mrf.mxu0
        %v5032 = vadd.f32 0.0, %v5031
        %v5033 = vpop.f32.mrf.mxu0
        %v5034 = vadd.f32 0.0, %v5033
        %5035 = vmatmul.bf16.gmra.mxu0 %v4910
        %v5036 = vpop.f32.mrf.mxu0
        %v5037 = vadd.f32 0.0, %v5036
        %v5038 = vpop.f32.mrf.mxu0
        %v5039 = vadd.f32 0.0, %v5038
        %5040 = vmatmul.bf16.gmra.mxu0 %v4911
        %v5041 = vpop.f32.mrf.mxu0
        %v5042 = vadd.f32 0.0, %v5041
        %v5043 = vpop.f32.mrf.mxu0
        %v5044 = vadd.f32 0.0, %v5043
        %5045 = vmatmul.bf16.gmra.mxu0 %v4912
        %v5046 = vpop.f32.mrf.mxu0
        %v5047 = vadd.f32 0.0, %v5046
        %v5048 = vpop.f32.mrf.mxu0
        %v5049 = vadd.f32 0.0, %v5048
        %5050 = vmatmul.bf16.gmra.mxu0 %v4913
        %v5051 = vpop.f32.mrf.mxu0
        %v5052 = vadd.f32 0.0, %v5051
        %v5053 = vpop.f32.mrf.mxu0
        %v5054 = vadd.f32 0.0, %v5053
        %5055 = vmatmul.bf16.gmra.mxu0 %v4914
        %v5056 = vpop.f32.mrf.mxu0
        %v5057 = vadd.f32 0.0, %v5056
        %v5058 = vpop.f32.mrf.mxu0
        %v5059 = vadd.f32 0.0, %v5058
        %5060 = vmatmul.bf16.gmra.mxu0 %v4915
        %v5061 = vpop.f32.mrf.mxu0
        %v5062 = vadd.f32 0.0, %v5061
        %v5063 = vpop.f32.mrf.mxu0
        %v5064 = vadd.f32 0.0, %v5063
        %5065 = vmatmul.bf16.gmra.mxu0 %v4916
        %v5066 = vpop.f32.mrf.mxu0
        %v5067 = vadd.f32 0.0, %v5066
        %v5068 = vpop.f32.mrf.mxu0
        %v5069 = vadd.f32 0.0, %v5068
        %5070 = vdwg.mxu0
        %v5087 = vunpack.c.l.b16 %v4853
        %v5088 = vunpack.c.l.b16 %v4854
        %v5089 = vunpack.c.l.b16 %v4855
        %v5090 = vunpack.c.l.b16 %v4856
        %v5091 = vunpack.c.l.b16 %v4857
        %v5092 = vunpack.c.l.b16 %v4858
        %v5093 = vunpack.c.l.b16 %v4859
        %v5094 = vunpack.c.l.b16 %v4860
        %v5095 = vunpack.c.l.b16 %v4861
        %v5096 = vunpack.c.l.b16 %v4862
        %v5097 = vunpack.c.l.b16 %v4863
        %v5098 = vunpack.c.l.b16 %v4864
        %v5099 = vunpack.c.l.b16 %v4865
        %v5100 = vunpack.c.l.b16 %v4866
        %v5101 = vunpack.c.l.b16 %v4867
        %v5102 = vunpack.c.l.b16 %v4868
        %v5103 = vpack.c.b16 %v5088, %v5087
        %v5104 = vpack.c.b16 %v5090, %v5089
        %v5105 = vpack.c.b16 %v5092, %v5091
        %v5106 = vpack.c.b16 %v5094, %v5093
        %v5107 = vpack.c.b16 %v5096, %v5095
        %v5108 = vpack.c.b16 %v5098, %v5097
        %v5109 = vpack.c.b16 %v5100, %v5099
        %v5110 = vpack.c.b16 %v5102, %v5101
        %5119 = vmatpush.bf16.msra.mxu0 %v5110
        %5120 = vmatpush.bf16.msra.mxu0 %v5109
        %5121 = vmatpush.bf16.msra.mxu0 %v5108
        %5122 = vmatpush.bf16.msra.mxu0 %v5107
        %5123 = vmatpush.bf16.msra.mxu0 %v5106
        %5124 = vmatpush.bf16.msra.mxu0 %v5105
        %5125 = vmatpush.bf16.msra.mxu0 %v5104
        %5126 = vmatpush.bf16.msra.mxu0 %v5103
        %5127 = vmatmul.bf16.gmra.mxu0 %v4837
        %v5128 = vpop.f32.mrf.mxu0
        %v5129 = vadd.f32 %v4992, %v5128
        %v5130 = vpop.f32.mrf.mxu0
        %v5131 = vadd.f32 %v4994, %v5130
        %5132 = vmatmul.bf16.gmra.mxu0 %v4838
        %v5133 = vpop.f32.mrf.mxu0
        %v5134 = vadd.f32 %v4997, %v5133
        %v5135 = vpop.f32.mrf.mxu0
        %v5136 = vadd.f32 %v4999, %v5135
        %5137 = vmatmul.bf16.gmra.mxu0 %v4839
        %v5138 = vpop.f32.mrf.mxu0
        %v5139 = vadd.f32 %v5002, %v5138
        %v5140 = vpop.f32.mrf.mxu0
        %v5141 = vadd.f32 %v5004, %v5140
        %5142 = vmatmul.bf16.gmra.mxu0 %v4840
        %v5143 = vpop.f32.mrf.mxu0
        %v5144 = vadd.f32 %v5007, %v5143
        %v5145 = vpop.f32.mrf.mxu0
        %v5146 = vadd.f32 %v5009, %v5145
        %5147 = vmatmul.bf16.gmra.mxu0 %v4841
        %v5148 = vpop.f32.mrf.mxu0
        %v5149 = vadd.f32 %v5012, %v5148
        %v5150 = vpop.f32.mrf.mxu0
        %v5151 = vadd.f32 %v5014, %v5150
        %5152 = vmatmul.bf16.gmra.mxu0 %v4842
        %v5153 = vpop.f32.mrf.mxu0
        %v5154 = vadd.f32 %v5017, %v5153
        %v5155 = vpop.f32.mrf.mxu0
        %v5156 = vadd.f32 %v5019, %v5155
        %5157 = vmatmul.bf16.gmra.mxu0 %v4843
        %v5158 = vpop.f32.mrf.mxu0
        %v5159 = vadd.f32 %v5022, %v5158
        %v5160 = vpop.f32.mrf.mxu0
        %v5161 = vadd.f32 %v5024, %v5160
        %5162 = vmatmul.bf16.gmra.mxu0 %v4844
        %v5163 = vpop.f32.mrf.mxu0
        %v5164 = vadd.f32 %v5027, %v5163
        %v5165 = vpop.f32.mrf.mxu0
        %v5166 = vadd.f32 %v5029, %v5165
        %5167 = vmatmul.bf16.gmra.mxu0 %v4845
        %v5168 = vpop.f32.mrf.mxu0
        %v5169 = vadd.f32 %v5032, %v5168
        %v5170 = vpop.f32.mrf.mxu0
        %v5171 = vadd.f32 %v5034, %v5170
        %5172 = vmatmul.bf16.gmra.mxu0 %v4846
        %v5173 = vpop.f32.mrf.mxu0
        %v5174 = vadd.f32 %v5037, %v5173
        %v5175 = vpop.f32.mrf.mxu0
        %v5176 = vadd.f32 %v5039, %v5175
        %5177 = vmatmul.bf16.gmra.mxu0 %v4847
        %v5178 = vpop.f32.mrf.mxu0
        %v5179 = vadd.f32 %v5042, %v5178
        %v5180 = vpop.f32.mrf.mxu0
        %v5181 = vadd.f32 %v5044, %v5180
        %5182 = vmatmul.bf16.gmra.mxu0 %v4848
        %v5183 = vpop.f32.mrf.mxu0
        %v5184 = vadd.f32 %v5047, %v5183
        %v5185 = vpop.f32.mrf.mxu0
        %v5186 = vadd.f32 %v5049, %v5185
        %5187 = vmatmul.bf16.gmra.mxu0 %v4849
        %v5188 = vpop.f32.mrf.mxu0
        %v5189 = vadd.f32 %v5052, %v5188
        %v5190 = vpop.f32.mrf.mxu0
        %v5191 = vadd.f32 %v5054, %v5190
        %5192 = vmatmul.bf16.gmra.mxu0 %v4850
        %v5193 = vpop.f32.mrf.mxu0
        %v5194 = vadd.f32 %v5057, %v5193
        %v5195 = vpop.f32.mrf.mxu0
        %v5196 = vadd.f32 %v5059, %v5195
        %5197 = vmatmul.bf16.gmra.mxu0 %v4851
        %v5198 = vpop.f32.mrf.mxu0
        %v5199 = vadd.f32 %v5062, %v5198
        %v5200 = vpop.f32.mrf.mxu0
        %v5201 = vadd.f32 %v5064, %v5200
        %5202 = vmatmul.bf16.gmra.mxu0 %v4852
        %v5203 = vpop.f32.mrf.mxu0
        %v5204 = vadd.f32 %v5067, %v5203
        %v5205 = vpop.f32.mrf.mxu0
        %v5206 = vadd.f32 %v5069, %v5205
        %5207 = vdwg.mxu0
        %v5208 = vld [vmem:[#allocation2 + $0x9] sm:$0xff]
        %v5209 = vld [vmem:[#allocation2 + $0x11] sm:$0xff]
        %v5210 = vld [vmem:[#allocation2 + $0x29] sm:$0xff]
        %v5211 = vld [vmem:[#allocation2 + $0x31] sm:$0xff]
        %v5212 = vld [vmem:[#allocation2 + $0x49] sm:$0xff]
        %v5213 = vld [vmem:[#allocation2 + $0x51] sm:$0xff]
        %v5214 = vld [vmem:[#allocation2 + $0x69] sm:$0xff]
        %v5215 = vld [vmem:[#allocation2 + $0x71] sm:$0xff]
        %v5216 = vld [vmem:[#allocation2 + $0x89] sm:$0xff]
        %v5217 = vld [vmem:[#allocation2 + $0x91] sm:$0xff]
        %v5218 = vld [vmem:[#allocation2 + $0xa9] sm:$0xff]
        %v5219 = vld [vmem:[#allocation2 + $0xb1] sm:$0xff]
        %v5220 = vld [vmem:[#allocation2 + $0xc9] sm:$0xff]
        %v5221 = vld [vmem:[#allocation2 + $0xd1] sm:$0xff]
        %v5222 = vld [vmem:[#allocation2 + $0xe9] sm:$0xff]
        %v5223 = vld [vmem:[#allocation2 + $0xf1] sm:$0xff]
        %v5224 = vld [vmem:[#allocation2 + $0x109] sm:$0xff]
        %v5225 = vld [vmem:[#allocation2 + $0x111] sm:$0xff]
        %v5226 = vld [vmem:[#allocation2 + $0x129] sm:$0xff]
        %v5227 = vld [vmem:[#allocation2 + $0x131] sm:$0xff]
        %v5228 = vld [vmem:[#allocation2 + $0x149] sm:$0xff]
        %v5229 = vld [vmem:[#allocation2 + $0x151] sm:$0xff]
        %v5230 = vld [vmem:[#allocation2 + $0x169] sm:$0xff]
        %v5231 = vld [vmem:[#allocation2 + $0x171] sm:$0xff]
        %v5232 = vld [vmem:[#allocation2 + $0x189] sm:$0xff]
        %v5233 = vld [vmem:[#allocation2 + $0x191] sm:$0xff]
        %v5234 = vld [vmem:[#allocation2 + $0x1a9] sm:$0xff]
        %v5235 = vld [vmem:[#allocation2 + $0x1b1] sm:$0xff]
        %v5236 = vld [vmem:[#allocation2 + $0x1c9] sm:$0xff]
        %v5237 = vld [vmem:[#allocation2 + $0x1d1] sm:$0xff]
        %v5238 = vld [vmem:[#allocation2 + $0x1e9] sm:$0xff]
        %v5239 = vld [vmem:[#allocation2 + $0x1f1] sm:$0xff]
        %v5240 = vpack.c.bf16 %v5209, %v5208
        %v5241 = vpack.c.bf16 %v5211, %v5210
        %v5242 = vpack.c.bf16 %v5213, %v5212
        %v5243 = vpack.c.bf16 %v5215, %v5214
        %v5244 = vpack.c.bf16 %v5217, %v5216
        %v5245 = vpack.c.bf16 %v5219, %v5218
        %v5246 = vpack.c.bf16 %v5221, %v5220
        %v5247 = vpack.c.bf16 %v5223, %v5222
        %v5248 = vpack.c.bf16 %v5225, %v5224
        %v5249 = vpack.c.bf16 %v5227, %v5226
        %v5250 = vpack.c.bf16 %v5229, %v5228
        %v5251 = vpack.c.bf16 %v5231, %v5230
        %v5252 = vpack.c.bf16 %v5233, %v5232
        %v5253 = vpack.c.bf16 %v5235, %v5234
        %v5254 = vpack.c.bf16 %v5237, %v5236
        %v5255 = vpack.c.bf16 %v5239, %v5238
        %s5256 = scalar_lea.vmem [#allocation4], 128
        %v5257 = vld [vmem:[%s5256] sm:$0xf]
        %v5258 = vld [vmem:[%s5256 + $0x4] sm:$0xf]
        %v5259 = vld [vmem:[%s5256 + $0x8] sm:$0xf]
        %v5260 = vld [vmem:[%s5256 + $0xc] sm:$0xf]
        %v5261 = vld [vmem:[%s5256 + $0x10] sm:$0xf]
        %v5262 = vld [vmem:[%s5256 + $0x14] sm:$0xf]
        %v5263 = vld [vmem:[%s5256 + $0x18] sm:$0xf]
        %v5264 = vld [vmem:[%s5256 + $0x1c] sm:$0xf]
        %v5265 = vld [vmem:[%s5256 + $0x20] sm:$0xf]
        %v5266 = vld [vmem:[%s5256 + $0x24] sm:$0xf]
        %v5267 = vld [vmem:[%s5256 + $0x28] sm:$0xf]
        %v5268 = vld [vmem:[%s5256 + $0x2c] sm:$0xf]
        %v5269 = vld [vmem:[%s5256 + $0x30] sm:$0xf]
        %v5270 = vld [vmem:[%s5256 + $0x34] sm:$0xf]
        %v5271 = vld [vmem:[%s5256 + $0x38] sm:$0xf]
        %v5272 = vld [vmem:[%s5256 + $0x3c] sm:$0xf]
        %v5289 = vunpack.c.l.b16 %v5257
        %v5290 = vunpack.c.l.b16 %v5258
        %v5291 = vunpack.c.l.b16 %v5259
        %v5292 = vunpack.c.l.b16 %v5260
        %v5293 = vunpack.c.l.b16 %v5261
        %v5294 = vunpack.c.l.b16 %v5262
        %v5295 = vunpack.c.l.b16 %v5263
        %v5296 = vunpack.c.l.b16 %v5264
        %v5297 = vunpack.c.l.b16 %v5265
        %v5298 = vunpack.c.l.b16 %v5266
        %v5299 = vunpack.c.l.b16 %v5267
        %v5300 = vunpack.c.l.b16 %v5268
        %v5301 = vunpack.c.l.b16 %v5269
        %v5302 = vunpack.c.l.b16 %v5270
        %v5303 = vunpack.c.l.b16 %v5271
        %v5304 = vunpack.c.l.b16 %v5272
        %v5305 = vpack.c.b16 %v5290, %v5289
        %v5306 = vpack.c.b16 %v5292, %v5291
        %v5307 = vpack.c.b16 %v5294, %v5293
        %v5308 = vpack.c.b16 %v5296, %v5295
        %v5309 = vpack.c.b16 %v5298, %v5297
        %v5310 = vpack.c.b16 %v5300, %v5299
        %v5311 = vpack.c.b16 %v5302, %v5301
        %v5312 = vpack.c.b16 %v5304, %v5303
        %5321 = vmatpush.bf16.msra.mxu0 %v5312
        %5322 = vmatpush.bf16.msra.mxu0 %v5311
        %5323 = vmatpush.bf16.msra.mxu0 %v5310
        %5324 = vmatpush.bf16.msra.mxu0 %v5309
        %5325 = vmatpush.bf16.msra.mxu0 %v5308
        %5326 = vmatpush.bf16.msra.mxu0 %v5307
        %5327 = vmatpush.bf16.msra.mxu0 %v5306
        %5328 = vmatpush.bf16.msra.mxu0 %v5305
        %5329 = vmatmul.bf16.gmra.mxu0 %v5240
        %v5330 = vpop.f32.mrf.mxu0
        %v5331 = vadd.f32 0.0, %v5330
        %v5332 = vpop.f32.mrf.mxu0
        %v5333 = vadd.f32 0.0, %v5332
        %5334 = vmatmul.bf16.gmra.mxu0 %v5241
        %v5335 = vpop.f32.mrf.mxu0
        %v5336 = vadd.f32 0.0, %v5335
        %v5337 = vpop.f32.mrf.mxu0
        %v5338 = vadd.f32 0.0, %v5337
        %5339 = vmatmul.bf16.gmra.mxu0 %v5242
        %v5340 = vpop.f32.mrf.mxu0
        %v5341 = vadd.f32 0.0, %v5340
        %v5342 = vpop.f32.mrf.mxu0
        %v5343 = vadd.f32 0.0, %v5342
        %5344 = vmatmul.bf16.gmra.mxu0 %v5243
        %v5345 = vpop.f32.mrf.mxu0
        %v5346 = vadd.f32 0.0, %v5345
        %v5347 = vpop.f32.mrf.mxu0
        %v5348 = vadd.f32 0.0, %v5347
        %5349 = vmatmul.bf16.gmra.mxu0 %v5244
        %v5350 = vpop.f32.mrf.mxu0
        %v5351 = vadd.f32 0.0, %v5350
        %v5352 = vpop.f32.mrf.mxu0
        %v5353 = vadd.f32 0.0, %v5352
        %5354 = vmatmul.bf16.gmra.mxu0 %v5245
        %v5355 = vpop.f32.mrf.mxu0
        %v5356 = vadd.f32 0.0, %v5355
        %v5357 = vpop.f32.mrf.mxu0
        %v5358 = vadd.f32 0.0, %v5357
        %5359 = vmatmul.bf16.gmra.mxu0 %v5246
        %v5360 = vpop.f32.mrf.mxu0
        %v5361 = vadd.f32 0.0, %v5360
        %v5362 = vpop.f32.mrf.mxu0
        %v5363 = vadd.f32 0.0, %v5362
        %5364 = vmatmul.bf16.gmra.mxu0 %v5247
        %v5365 = vpop.f32.mrf.mxu0
        %v5366 = vadd.f32 0.0, %v5365
        %v5367 = vpop.f32.mrf.mxu0
        %v5368 = vadd.f32 0.0, %v5367
        %5369 = vmatmul.bf16.gmra.mxu0 %v5248
        %v5370 = vpop.f32.mrf.mxu0
        %v5371 = vadd.f32 0.0, %v5370
        %v5372 = vpop.f32.mrf.mxu0
        %v5373 = vadd.f32 0.0, %v5372
        %5374 = vmatmul.bf16.gmra.mxu0 %v5249
        %v5375 = vpop.f32.mrf.mxu0
        %v5376 = vadd.f32 0.0, %v5375
        %v5377 = vpop.f32.mrf.mxu0
        %v5378 = vadd.f32 0.0, %v5377
        %5379 = vmatmul.bf16.gmra.mxu0 %v5250
        %v5380 = vpop.f32.mrf.mxu0
        %v5381 = vadd.f32 0.0, %v5380
        %v5382 = vpop.f32.mrf.mxu0
        %v5383 = vadd.f32 0.0, %v5382
        %5384 = vmatmul.bf16.gmra.mxu0 %v5251
        %v5385 = vpop.f32.mrf.mxu0
        %v5386 = vadd.f32 0.0, %v5385
        %v5387 = vpop.f32.mrf.mxu0
        %v5388 = vadd.f32 0.0, %v5387
        %5389 = vmatmul.bf16.gmra.mxu0 %v5252
        %v5390 = vpop.f32.mrf.mxu0
        %v5391 = vadd.f32 0.0, %v5390
        %v5392 = vpop.f32.mrf.mxu0
        %v5393 = vadd.f32 0.0, %v5392
        %5394 = vmatmul.bf16.gmra.mxu0 %v5253
        %v5395 = vpop.f32.mrf.mxu0
        %v5396 = vadd.f32 0.0, %v5395
        %v5397 = vpop.f32.mrf.mxu0
        %v5398 = vadd.f32 0.0, %v5397
        %5399 = vmatmul.bf16.gmra.mxu0 %v5254
        %v5400 = vpop.f32.mrf.mxu0
        %v5401 = vadd.f32 0.0, %v5400
        %v5402 = vpop.f32.mrf.mxu0
        %v5403 = vadd.f32 0.0, %v5402
        %5404 = vmatmul.bf16.gmra.mxu0 %v5255
        %v5405 = vpop.f32.mrf.mxu0
        %v5406 = vadd.f32 0.0, %v5405
        %v5407 = vpop.f32.mrf.mxu0
        %v5408 = vadd.f32 0.0, %v5407
        %5409 = vdwg.mxu0
        %v5410 = vadd.f32 %v5129, %v5331
        %v5411 = vadd.f32 %v5131, %v5333
        %v5412 = vadd.f32 %v5134, %v5336
        %v5413 = vadd.f32 %v5136, %v5338
        %v5414 = vadd.f32 %v5139, %v5341
        %v5415 = vadd.f32 %v5141, %v5343
        %v5416 = vadd.f32 %v5144, %v5346
        %v5417 = vadd.f32 %v5146, %v5348
        %v5418 = vadd.f32 %v5149, %v5351
        %v5419 = vadd.f32 %v5151, %v5353
        %v5420 = vadd.f32 %v5154, %v5356
        %v5421 = vadd.f32 %v5156, %v5358
        %v5422 = vadd.f32 %v5159, %v5361
        %v5423 = vadd.f32 %v5161, %v5363
        %v5424 = vadd.f32 %v5164, %v5366
        %v5425 = vadd.f32 %v5166, %v5368
        %v5426 = vadd.f32 %v5169, %v5371
        %v5427 = vadd.f32 %v5171, %v5373
        %v5428 = vadd.f32 %v5174, %v5376
        %v5429 = vadd.f32 %v5176, %v5378
        %v5430 = vadd.f32 %v5179, %v5381
        %v5431 = vadd.f32 %v5181, %v5383
        %v5432 = vadd.f32 %v5184, %v5386
        %v5433 = vadd.f32 %v5186, %v5388
        %v5434 = vadd.f32 %v5189, %v5391
        %v5435 = vadd.f32 %v5191, %v5393
        %v5436 = vadd.f32 %v5194, %v5396
        %v5437 = vadd.f32 %v5196, %v5398
        %v5438 = vadd.f32 %v5199, %v5401
        %v5439 = vadd.f32 %v5201, %v5403
        %v5440 = vadd.f32 %v5204, %v5406
        %v5441 = vadd.f32 %v5206, %v5408
        %v5442 = vld [vmem:[%s4772 + $0x7] sm:$0xff]
        %v5443 = vld [vmem:[%s4772 + $0xf] sm:$0xff]
        %v5444 = vld [vmem:[%s4772 + $0x27] sm:$0xff]
        %v5445 = vld [vmem:[%s4772 + $0x2f] sm:$0xff]
        %v5446 = vld [vmem:[%s4772 + $0x47] sm:$0xff]
        %v5447 = vld [vmem:[%s4772 + $0x4f] sm:$0xff]
        %v5448 = vld [vmem:[%s4772 + $0x67] sm:$0xff]
        %v5449 = vld [vmem:[%s4772 + $0x6f] sm:$0xff]
        %v5450 = vld [vmem:[%s4772 + $0x87] sm:$0xff]
        %v5451 = vld [vmem:[%s4772 + $0x8f] sm:$0xff]
        %v5452 = vld [vmem:[%s4772 + $0xa7] sm:$0xff]
        %v5453 = vld [vmem:[%s4772 + $0xaf] sm:$0xff]
        %v5454 = vld [vmem:[%s4772 + $0xc7] sm:$0xff]
        %v5455 = vld [vmem:[%s4772 + $0xcf] sm:$0xff]
        %v5456 = vld [vmem:[%s4772 + $0xe7] sm:$0xff]
        %v5457 = vld [vmem:[%s4772 + $0xef] sm:$0xff]
        %v5458 = vld [vmem:[%s4772 + $0x107] sm:$0xff]
        %v5459 = vld [vmem:[%s4772 + $0x10f] sm:$0xff]
        %v5460 = vld [vmem:[%s4772 + $0x127] sm:$0xff]
        %v5461 = vld [vmem:[%s4772 + $0x12f] sm:$0xff]
        %v5462 = vld [vmem:[%s4772 + $0x147] sm:$0xff]
        %v5463 = vld [vmem:[%s4772 + $0x14f] sm:$0xff]
        %v5464 = vld [vmem:[%s4772 + $0x167] sm:$0xff]
        %v5465 = vld [vmem:[%s4772 + $0x16f] sm:$0xff]
        %v5466 = vld [vmem:[%s4772 + $0x187] sm:$0xff]
        %v5467 = vld [vmem:[%s4772 + $0x18f] sm:$0xff]
        %v5468 = vld [vmem:[%s4772 + $0x1a7] sm:$0xff]
        %v5469 = vld [vmem:[%s4772 + $0x1af] sm:$0xff]
        %v5470 = vld [vmem:[%s4772 + $0x1c7] sm:$0xff]
        %v5471 = vld [vmem:[%s4772 + $0x1cf] sm:$0xff]
        %v5472 = vld [vmem:[%s4772 + $0x1e7] sm:$0xff]
        %v5473 = vld [vmem:[%s4772 + $0x1ef] sm:$0xff]
        %v5474 = vpack.c.bf16 %v5443, %v5442
        %v5475 = vpack.c.bf16 %v5445, %v5444
        %v5476 = vpack.c.bf16 %v5447, %v5446
        %v5477 = vpack.c.bf16 %v5449, %v5448
        %v5478 = vpack.c.bf16 %v5451, %v5450
        %v5479 = vpack.c.bf16 %v5453, %v5452
        %v5480 = vpack.c.bf16 %v5455, %v5454
        %v5481 = vpack.c.bf16 %v5457, %v5456
        %v5482 = vpack.c.bf16 %v5459, %v5458
        %v5483 = vpack.c.bf16 %v5461, %v5460
        %v5484 = vpack.c.bf16 %v5463, %v5462
        %v5485 = vpack.c.bf16 %v5465, %v5464
        %v5486 = vpack.c.bf16 %v5467, %v5466
        %v5487 = vpack.c.bf16 %v5469, %v5468
        %v5488 = vpack.c.bf16 %v5471, %v5470
        %v5489 = vpack.c.bf16 %v5473, %v5472
        %s5490 = scalar_lea.vmem [#allocation4], 192
        %v5491 = vld [vmem:[%s5490] sm:$0xf]
        %v5492 = vld [vmem:[%s5490 + $0x4] sm:$0xf]
        %v5493 = vld [vmem:[%s5490 + $0x8] sm:$0xf]
        %v5494 = vld [vmem:[%s5490 + $0xc] sm:$0xf]
        %v5495 = vld [vmem:[%s5490 + $0x10] sm:$0xf]
        %v5496 = vld [vmem:[%s5490 + $0x14] sm:$0xf]
        %v5497 = vld [vmem:[%s5490 + $0x18] sm:$0xf]
        %v5498 = vld [vmem:[%s5490 + $0x1c] sm:$0xf]
        %v5499 = vld [vmem:[%s5490 + $0x20] sm:$0xf]
        %v5500 = vld [vmem:[%s5490 + $0x24] sm:$0xf]
        %v5501 = vld [vmem:[%s5490 + $0x28] sm:$0xf]
        %v5502 = vld [vmem:[%s5490 + $0x2c] sm:$0xf]
        %v5503 = vld [vmem:[%s5490 + $0x30] sm:$0xf]
        %v5504 = vld [vmem:[%s5490 + $0x34] sm:$0xf]
        %v5505 = vld [vmem:[%s5490 + $0x38] sm:$0xf]
        %v5506 = vld [vmem:[%s5490 + $0x3c] sm:$0xf]
        %v5523 = vunpack.c.l.b16 %v5491
        %v5524 = vunpack.c.l.b16 %v5492
        %v5525 = vunpack.c.l.b16 %v5493
        %v5526 = vunpack.c.l.b16 %v5494
        %v5527 = vunpack.c.l.b16 %v5495
        %v5528 = vunpack.c.l.b16 %v5496
        %v5529 = vunpack.c.l.b16 %v5497
        %v5530 = vunpack.c.l.b16 %v5498
        %v5531 = vunpack.c.l.b16 %v5499
        %v5532 = vunpack.c.l.b16 %v5500
        %v5533 = vunpack.c.l.b16 %v5501
        %v5534 = vunpack.c.l.b16 %v5502
        %v5535 = vunpack.c.l.b16 %v5503
        %v5536 = vunpack.c.l.b16 %v5504
        %v5537 = vunpack.c.l.b16 %v5505
        %v5538 = vunpack.c.l.b16 %v5506
        %v5539 = vpack.c.b16 %v5524, %v5523
        %v5540 = vpack.c.b16 %v5526, %v5525
        %v5541 = vpack.c.b16 %v5528, %v5527
        %v5542 = vpack.c.b16 %v5530, %v5529
        %v5543 = vpack.c.b16 %v5532, %v5531
        %v5544 = vpack.c.b16 %v5534, %v5533
        %v5545 = vpack.c.b16 %v5536, %v5535
        %v5546 = vpack.c.b16 %v5538, %v5537
        %5555 = vmatpush.bf16.msra.mxu0 %v5546
        %5556 = vmatpush.bf16.msra.mxu0 %v5545
        %5557 = vmatpush.bf16.msra.mxu0 %v5544
        %5558 = vmatpush.bf16.msra.mxu0 %v5543
        %5559 = vmatpush.bf16.msra.mxu0 %v5542
        %5560 = vmatpush.bf16.msra.mxu0 %v5541
        %5561 = vmatpush.bf16.msra.mxu0 %v5540
        %5562 = vmatpush.bf16.msra.mxu0 %v5539
        %5563 = vmatmul.bf16.gmra.mxu0 %v5474
        %v5564 = vpop.f32.mrf.mxu0
        %v5565 = vadd.f32 0.0, %v5564
        %v5566 = vpop.f32.mrf.mxu0
        %v5567 = vadd.f32 0.0, %v5566
        %5568 = vmatmul.bf16.gmra.mxu0 %v5475
        %v5569 = vpop.f32.mrf.mxu0
        %v5570 = vadd.f32 0.0, %v5569
        %v5571 = vpop.f32.mrf.mxu0
        %v5572 = vadd.f32 0.0, %v5571
        %5573 = vmatmul.bf16.gmra.mxu0 %v5476
        %v5574 = vpop.f32.mrf.mxu0
        %v5575 = vadd.f32 0.0, %v5574
        %v5576 = vpop.f32.mrf.mxu0
        %v5577 = vadd.f32 0.0, %v5576
        %5578 = vmatmul.bf16.gmra.mxu0 %v5477
        %v5579 = vpop.f32.mrf.mxu0
        %v5580 = vadd.f32 0.0, %v5579
        %v5581 = vpop.f32.mrf.mxu0
        %v5582 = vadd.f32 0.0, %v5581
        %5583 = vmatmul.bf16.gmra.mxu0 %v5478
        %v5584 = vpop.f32.mrf.mxu0
        %v5585 = vadd.f32 0.0, %v5584
        %v5586 = vpop.f32.mrf.mxu0
        %v5587 = vadd.f32 0.0, %v5586
        %5588 = vmatmul.bf16.gmra.mxu0 %v5479
        %v5589 = vpop.f32.mrf.mxu0
        %v5590 = vadd.f32 0.0, %v5589
        %v5591 = vpop.f32.mrf.mxu0
        %v5592 = vadd.f32 0.0, %v5591
        %5593 = vmatmul.bf16.gmra.mxu0 %v5480
        %v5594 = vpop.f32.mrf.mxu0
        %v5595 = vadd.f32 0.0, %v5594
        %v5596 = vpop.f32.mrf.mxu0
        %v5597 = vadd.f32 0.0, %v5596
        %5598 = vmatmul.bf16.gmra.mxu0 %v5481
        %v5599 = vpop.f32.mrf.mxu0
        %v5600 = vadd.f32 0.0, %v5599
        %v5601 = vpop.f32.mrf.mxu0
        %v5602 = vadd.f32 0.0, %v5601
        %5603 = vmatmul.bf16.gmra.mxu0 %v5482
        %v5604 = vpop.f32.mrf.mxu0
        %v5605 = vadd.f32 0.0, %v5604
        %v5606 = vpop.f32.mrf.mxu0
        %v5607 = vadd.f32 0.0, %v5606
        %5608 = vmatmul.bf16.gmra.mxu0 %v5483
        %v5609 = vpop.f32.mrf.mxu0
        %v5610 = vadd.f32 0.0, %v5609
        %v5611 = vpop.f32.mrf.mxu0
        %v5612 = vadd.f32 0.0, %v5611
        %5613 = vmatmul.bf16.gmra.mxu0 %v5484
        %v5614 = vpop.f32.mrf.mxu0
        %v5615 = vadd.f32 0.0, %v5614
        %v5616 = vpop.f32.mrf.mxu0
        %v5617 = vadd.f32 0.0, %v5616
        %5618 = vmatmul.bf16.gmra.mxu0 %v5485
        %v5619 = vpop.f32.mrf.mxu0
        %v5620 = vadd.f32 0.0, %v5619
        %v5621 = vpop.f32.mrf.mxu0
        %v5622 = vadd.f32 0.0, %v5621
        %5623 = vmatmul.bf16.gmra.mxu0 %v5486
        %v5624 = vpop.f32.mrf.mxu0
        %v5625 = vadd.f32 0.0, %v5624
        %v5626 = vpop.f32.mrf.mxu0
        %v5627 = vadd.f32 0.0, %v5626
        %5628 = vmatmul.bf16.gmra.mxu0 %v5487
        %v5629 = vpop.f32.mrf.mxu0
        %v5630 = vadd.f32 0.0, %v5629
        %v5631 = vpop.f32.mrf.mxu0
        %v5632 = vadd.f32 0.0, %v5631
        %5633 = vmatmul.bf16.gmra.mxu0 %v5488
        %v5634 = vpop.f32.mrf.mxu0
        %v5635 = vadd.f32 0.0, %v5634
        %v5636 = vpop.f32.mrf.mxu0
        %v5637 = vadd.f32 0.0, %v5636
        %5638 = vmatmul.bf16.gmra.mxu0 %v5489
        %v5639 = vpop.f32.mrf.mxu0
        %v5640 = vadd.f32 0.0, %v5639
        %v5641 = vpop.f32.mrf.mxu0
        %v5642 = vadd.f32 0.0, %v5641
        %5643 = vdwg.mxu0
        %v5644 = vadd.f32 %v5410, %v5565
        %v5645 = vadd.f32 %v5411, %v5567
        %v5646 = vadd.f32 %v5412, %v5570
        %v5647 = vadd.f32 %v5413, %v5572
        %v5648 = vadd.f32 %v5414, %v5575
        %v5649 = vadd.f32 %v5415, %v5577
        %v5650 = vadd.f32 %v5416, %v5580
        %v5651 = vadd.f32 %v5417, %v5582
        %v5652 = vadd.f32 %v5418, %v5585
        %v5653 = vadd.f32 %v5419, %v5587
        %v5654 = vadd.f32 %v5420, %v5590
        %v5655 = vadd.f32 %v5421, %v5592
        %v5656 = vadd.f32 %v5422, %v5595
        %v5657 = vadd.f32 %v5423, %v5597
        %v5658 = vadd.f32 %v5424, %v5600
        %v5659 = vadd.f32 %v5425, %v5602
        %v5660 = vadd.f32 %v5426, %v5605
        %v5661 = vadd.f32 %v5427, %v5607
        %v5662 = vadd.f32 %v5428, %v5610
        %v5663 = vadd.f32 %v5429, %v5612
        %v5664 = vadd.f32 %v5430, %v5615
        %v5665 = vadd.f32 %v5431, %v5617
        %v5666 = vadd.f32 %v5432, %v5620
        %v5667 = vadd.f32 %v5433, %v5622
        %v5668 = vadd.f32 %v5434, %v5625
        %v5669 = vadd.f32 %v5435, %v5627
        %v5670 = vadd.f32 %v5436, %v5630
        %v5671 = vadd.f32 %v5437, %v5632
        %v5672 = vadd.f32 %v5438, %v5635
        %v5673 = vadd.f32 %v5439, %v5637
        %v5674 = vadd.f32 %v5440, %v5640
        %v5675 = vadd.f32 %v5441, %v5642
        %v5676 = vld [vmem:[%s4772 + $0x8] sm:$0xff]
        %v5677 = vld [vmem:[%s4772 + $0x10] sm:$0xff]
        %v5678 = vld [vmem:[%s4772 + $0x28] sm:$0xff]
        %v5679 = vld [vmem:[%s4772 + $0x30] sm:$0xff]
        %v5680 = vld [vmem:[%s4772 + $0x48] sm:$0xff]
        %v5681 = vld [vmem:[%s4772 + $0x50] sm:$0xff]
        %v5682 = vld [vmem:[%s4772 + $0x68] sm:$0xff]
        %v5683 = vld [vmem:[%s4772 + $0x70] sm:$0xff]
        %v5684 = vld [vmem:[%s4772 + $0x88] sm:$0xff]
        %v5685 = vld [vmem:[%s4772 + $0x90] sm:$0xff]
        %v5686 = vld [vmem:[%s4772 + $0xa8] sm:$0xff]
        %v5687 = vld [vmem:[%s4772 + $0xb0] sm:$0xff]
        %v5688 = vld [vmem:[%s4772 + $0xc8] sm:$0xff]
        %v5689 = vld [vmem:[%s4772 + $0xd0] sm:$0xff]
        %v5690 = vld [vmem:[%s4772 + $0xe8] sm:$0xff]
        %v5691 = vld [vmem:[%s4772 + $0xf0] sm:$0xff]
        %v5692 = vld [vmem:[%s4772 + $0x108] sm:$0xff]
        %v5693 = vld [vmem:[%s4772 + $0x110] sm:$0xff]
        %v5694 = vld [vmem:[%s4772 + $0x128] sm:$0xff]
        %v5695 = vld [vmem:[%s4772 + $0x130] sm:$0xff]
        %v5696 = vld [vmem:[%s4772 + $0x148] sm:$0xff]
        %v5697 = vld [vmem:[%s4772 + $0x150] sm:$0xff]
        %v5698 = vld [vmem:[%s4772 + $0x168] sm:$0xff]
        %v5699 = vld [vmem:[%s4772 + $0x170] sm:$0xff]
        %v5700 = vld [vmem:[%s4772 + $0x188] sm:$0xff]
        %v5701 = vld [vmem:[%s4772 + $0x190] sm:$0xff]
        %v5702 = vld [vmem:[%s4772 + $0x1a8] sm:$0xff]
        %v5703 = vld [vmem:[%s4772 + $0x1b0] sm:$0xff]
        %v5704 = vld [vmem:[%s4772 + $0x1c8] sm:$0xff]
        %v5705 = vld [vmem:[%s4772 + $0x1d0] sm:$0xff]
        %v5706 = vld [vmem:[%s4772 + $0x1e8] sm:$0xff]
        %v5707 = vld [vmem:[%s4772 + $0x1f0] sm:$0xff]
        %v5708 = vpack.c.bf16 %v5677, %v5676
        %v5709 = vpack.c.bf16 %v5679, %v5678
        %v5710 = vpack.c.bf16 %v5681, %v5680
        %v5711 = vpack.c.bf16 %v5683, %v5682
        %v5712 = vpack.c.bf16 %v5685, %v5684
        %v5713 = vpack.c.bf16 %v5687, %v5686
        %v5714 = vpack.c.bf16 %v5689, %v5688
        %v5715 = vpack.c.bf16 %v5691, %v5690
        %v5716 = vpack.c.bf16 %v5693, %v5692
        %v5717 = vpack.c.bf16 %v5695, %v5694
        %v5718 = vpack.c.bf16 %v5697, %v5696
        %v5719 = vpack.c.bf16 %v5699, %v5698
        %v5720 = vpack.c.bf16 %v5701, %v5700
        %v5721 = vpack.c.bf16 %v5703, %v5702
        %v5722 = vpack.c.bf16 %v5705, %v5704
        %v5723 = vpack.c.bf16 %v5707, %v5706
        %s5724 = scalar_lea.vmem [#allocation4], 256
        %v5725 = vld [vmem:[%s5724] sm:$0xf]
        %v5726 = vld [vmem:[%s5724 + $0x4] sm:$0xf]
        %v5727 = vld [vmem:[%s5724 + $0x8] sm:$0xf]
        %v5728 = vld [vmem:[%s5724 + $0xc] sm:$0xf]
        %v5729 = vld [vmem:[%s5724 + $0x10] sm:$0xf]
        %v5730 = vld [vmem:[%s5724 + $0x14] sm:$0xf]
        %v5731 = vld [vmem:[%s5724 + $0x18] sm:$0xf]
        %v5732 = vld [vmem:[%s5724 + $0x1c] sm:$0xf]
        %v5733 = vld [vmem:[%s5724 + $0x20] sm:$0xf]
        %v5734 = vld [vmem:[%s5724 + $0x24] sm:$0xf]
        %v5735 = vld [vmem:[%s5724 + $0x28] sm:$0xf]
        %v5736 = vld [vmem:[%s5724 + $0x2c] sm:$0xf]
        %v5737 = vld [vmem:[%s5724 + $0x30] sm:$0xf]
        %v5738 = vld [vmem:[%s5724 + $0x34] sm:$0xf]
        %v5739 = vld [vmem:[%s5724 + $0x38] sm:$0xf]
        %v5740 = vld [vmem:[%s5724 + $0x3c] sm:$0xf]
        %v5757 = vunpack.c.l.b16 %v5725
        %v5758 = vunpack.c.l.b16 %v5726
        %v5759 = vunpack.c.l.b16 %v5727
        %v5760 = vunpack.c.l.b16 %v5728
        %v5761 = vunpack.c.l.b16 %v5729
        %v5762 = vunpack.c.l.b16 %v5730
        %v5763 = vunpack.c.l.b16 %v5731
        %v5764 = vunpack.c.l.b16 %v5732
        %v5765 = vunpack.c.l.b16 %v5733
        %v5766 = vunpack.c.l.b16 %v5734
        %v5767 = vunpack.c.l.b16 %v5735
        %v5768 = vunpack.c.l.b16 %v5736
        %v5769 = vunpack.c.l.b16 %v5737
        %v5770 = vunpack.c.l.b16 %v5738
        %v5771 = vunpack.c.l.b16 %v5739
        %v5772 = vunpack.c.l.b16 %v5740
        %v5773 = vpack.c.b16 %v5758, %v5757
        %v5774 = vpack.c.b16 %v5760, %v5759
        %v5775 = vpack.c.b16 %v5762, %v5761
        %v5776 = vpack.c.b16 %v5764, %v5763
        %v5777 = vpack.c.b16 %v5766, %v5765
        %v5778 = vpack.c.b16 %v5768, %v5767
        %v5779 = vpack.c.b16 %v5770, %v5769
        %v5780 = vpack.c.b16 %v5772, %v5771
        %5789 = vmatpush.bf16.msra.mxu0 %v5780
        %5790 = vmatpush.bf16.msra.mxu0 %v5779
        %5791 = vmatpush.bf16.msra.mxu0 %v5778
        %5792 = vmatpush.bf16.msra.mxu0 %v5777
        %5793 = vmatpush.bf16.msra.mxu0 %v5776
        %5794 = vmatpush.bf16.msra.mxu0 %v5775
        %5795 = vmatpush.bf16.msra.mxu0 %v5774
        %5796 = vmatpush.bf16.msra.mxu0 %v5773
        %5797 = vmatmul.bf16.gmra.mxu0 %v5708
        %v5798 = vpop.f32.mrf.mxu0
        %v5799 = vadd.f32 0.0, %v5798
        %v5800 = vpop.f32.mrf.mxu0
        %v5801 = vadd.f32 0.0, %v5800
        %5802 = vmatmul.bf16.gmra.mxu0 %v5709
        %v5803 = vpop.f32.mrf.mxu0
        %v5804 = vadd.f32 0.0, %v5803
        %v5805 = vpop.f32.mrf.mxu0
        %v5806 = vadd.f32 0.0, %v5805
        %5807 = vmatmul.bf16.gmra.mxu0 %v5710
        %v5808 = vpop.f32.mrf.mxu0
        %v5809 = vadd.f32 0.0, %v5808
        %v5810 = vpop.f32.mrf.mxu0
        %v5811 = vadd.f32 0.0, %v5810
        %5812 = vmatmul.bf16.gmra.mxu0 %v5711
        %v5813 = vpop.f32.mrf.mxu0
        %v5814 = vadd.f32 0.0, %v5813
        %v5815 = vpop.f32.mrf.mxu0
        %v5816 = vadd.f32 0.0, %v5815
        %5817 = vmatmul.bf16.gmra.mxu0 %v5712
        %v5818 = vpop.f32.mrf.mxu0
        %v5819 = vadd.f32 0.0, %v5818
        %v5820 = vpop.f32.mrf.mxu0
        %v5821 = vadd.f32 0.0, %v5820
        %5822 = vmatmul.bf16.gmra.mxu0 %v5713
        %v5823 = vpop.f32.mrf.mxu0
        %v5824 = vadd.f32 0.0, %v5823
        %v5825 = vpop.f32.mrf.mxu0
        %v5826 = vadd.f32 0.0, %v5825
        %5827 = vmatmul.bf16.gmra.mxu0 %v5714
        %v5828 = vpop.f32.mrf.mxu0
        %v5829 = vadd.f32 0.0, %v5828
        %v5830 = vpop.f32.mrf.mxu0
        %v5831 = vadd.f32 0.0, %v5830
        %5832 = vmatmul.bf16.gmra.mxu0 %v5715
        %v5833 = vpop.f32.mrf.mxu0
        %v5834 = vadd.f32 0.0, %v5833
        %v5835 = vpop.f32.mrf.mxu0
        %v5836 = vadd.f32 0.0, %v5835
        %5837 = vmatmul.bf16.gmra.mxu0 %v5716
        %v5838 = vpop.f32.mrf.mxu0
        %v5839 = vadd.f32 0.0, %v5838
        %v5840 = vpop.f32.mrf.mxu0
        %v5841 = vadd.f32 0.0, %v5840
        %5842 = vmatmul.bf16.gmra.mxu0 %v5717
        %v5843 = vpop.f32.mrf.mxu0
        %v5844 = vadd.f32 0.0, %v5843
        %v5845 = vpop.f32.mrf.mxu0
        %v5846 = vadd.f32 0.0, %v5845
        %5847 = vmatmul.bf16.gmra.mxu0 %v5718
        %v5848 = vpop.f32.mrf.mxu0
        %v5849 = vadd.f32 0.0, %v5848
        %v5850 = vpop.f32.mrf.mxu0
        %v5851 = vadd.f32 0.0, %v5850
        %5852 = vmatmul.bf16.gmra.mxu0 %v5719
        %v5853 = vpop.f32.mrf.mxu0
        %v5854 = vadd.f32 0.0, %v5853
        %v5855 = vpop.f32.mrf.mxu0
        %v5856 = vadd.f32 0.0, %v5855
        %5857 = vmatmul.bf16.gmra.mxu0 %v5720
        %v5858 = vpop.f32.mrf.mxu0
        %v5859 = vadd.f32 0.0, %v5858
        %v5860 = vpop.f32.mrf.mxu0
        %v5861 = vadd.f32 0.0, %v5860
        %5862 = vmatmul.bf16.gmra.mxu0 %v5721
        %v5863 = vpop.f32.mrf.mxu0
        %v5864 = vadd.f32 0.0, %v5863
        %v5865 = vpop.f32.mrf.mxu0
        %v5866 = vadd.f32 0.0, %v5865
        %5867 = vmatmul.bf16.gmra.mxu0 %v5722
        %v5868 = vpop.f32.mrf.mxu0
        %v5869 = vadd.f32 0.0, %v5868
        %v5870 = vpop.f32.mrf.mxu0
        %v5871 = vadd.f32 0.0, %v5870
        %5872 = vmatmul.bf16.gmra.mxu0 %v5723
        %v5873 = vpop.f32.mrf.mxu0
        %v5874 = vadd.f32 0.0, %v5873
        %v5875 = vpop.f32.mrf.mxu0
        %v5876 = vadd.f32 0.0, %v5875
        %5877 = vdwg.mxu0
        %v5878 = vadd.f32 %v5644, %v5799
        %v5879 = vadd.f32 %v5645, %v5801
        %v5880 = vadd.f32 %v5646, %v5804
        %v5881 = vadd.f32 %v5647, %v5806
        %v5882 = vadd.f32 %v5648, %v5809
        %v5883 = vadd.f32 %v5649, %v5811
        %v5884 = vadd.f32 %v5650, %v5814
        %v5885 = vadd.f32 %v5651, %v5816
        %v5886 = vadd.f32 %v5652, %v5819
        %v5887 = vadd.f32 %v5653, %v5821
        %v5888 = vadd.f32 %v5654, %v5824
        %v5889 = vadd.f32 %v5655, %v5826
        %v5890 = vadd.f32 %v5656, %v5829
        %v5891 = vadd.f32 %v5657, %v5831
        %v5892 = vadd.f32 %v5658, %v5834
        %v5893 = vadd.f32 %v5659, %v5836
        %v5894 = vadd.f32 %v5660, %v5839
        %v5895 = vadd.f32 %v5661, %v5841
        %v5896 = vadd.f32 %v5662, %v5844
        %v5897 = vadd.f32 %v5663, %v5846
        %v5898 = vadd.f32 %v5664, %v5849
        %v5899 = vadd.f32 %v5665, %v5851
        %v5900 = vadd.f32 %v5666, %v5854
        %v5901 = vadd.f32 %v5667, %v5856
        %v5902 = vadd.f32 %v5668, %v5859
        %v5903 = vadd.f32 %v5669, %v5861
        %v5904 = vadd.f32 %v5670, %v5864
        %v5905 = vadd.f32 %v5671, %v5866
        %v5906 = vadd.f32 %v5672, %v5869
        %v5907 = vadd.f32 %v5673, %v5871
        %v5908 = vadd.f32 %v5674, %v5874
        %v5909 = vadd.f32 %v5675, %v5876
        %v5910 = vld [vmem:[%s4772 + $0x9] sm:$0xff]
        %v5911 = vld [vmem:[%s4772 + $0x11] sm:$0xff]
        %v5912 = vld [vmem:[%s4772 + $0x29] sm:$0xff]
        %v5913 = vld [vmem:[%s4772 + $0x31] sm:$0xff]
        %v5914 = vld [vmem:[%s4772 + $0x49] sm:$0xff]
        %v5915 = vld [vmem:[%s4772 + $0x51] sm:$0xff]
        %v5916 = vld [vmem:[%s4772 + $0x69] sm:$0xff]
        %v5917 = vld [vmem:[%s4772 + $0x71] sm:$0xff]
        %v5918 = vld [vmem:[%s4772 + $0x89] sm:$0xff]
        %v5919 = vld [vmem:[%s4772 + $0x91] sm:$0xff]
        %v5920 = vld [vmem:[%s4772 + $0xa9] sm:$0xff]
        %v5921 = vld [vmem:[%s4772 + $0xb1] sm:$0xff]
        %v5922 = vld [vmem:[%s4772 + $0xc9] sm:$0xff]
        %v5923 = vld [vmem:[%s4772 + $0xd1] sm:$0xff]
        %v5924 = vld [vmem:[%s4772 + $0xe9] sm:$0xff]
        %v5925 = vld [vmem:[%s4772 + $0xf1] sm:$0xff]
        %v5926 = vld [vmem:[%s4772 + $0x109] sm:$0xff]
        %v5927 = vld [vmem:[%s4772 + $0x111] sm:$0xff]
        %v5928 = vld [vmem:[%s4772 + $0x129] sm:$0xff]
        %v5929 = vld [vmem:[%s4772 + $0x131] sm:$0xff]
        %v5930 = vld [vmem:[%s4772 + $0x149] sm:$0xff]
        %v5931 = vld [vmem:[%s4772 + $0x151] sm:$0xff]
        %v5932 = vld [vmem:[%s4772 + $0x169] sm:$0xff]
        %v5933 = vld [vmem:[%s4772 + $0x171] sm:$0xff]
        %v5934 = vld [vmem:[%s4772 + $0x189] sm:$0xff]
        %v5935 = vld [vmem:[%s4772 + $0x191] sm:$0xff]
        %v5936 = vld [vmem:[%s4772 + $0x1a9] sm:$0xff]
        %v5937 = vld [vmem:[%s4772 + $0x1b1] sm:$0xff]
        %v5938 = vld [vmem:[%s4772 + $0x1c9] sm:$0xff]
        %v5939 = vld [vmem:[%s4772 + $0x1d1] sm:$0xff]
        %v5940 = vld [vmem:[%s4772 + $0x1e9] sm:$0xff]
        %v5941 = vld [vmem:[%s4772 + $0x1f1] sm:$0xff]
        %v5942 = vpack.c.bf16 %v5911, %v5910
        %v5943 = vpack.c.bf16 %v5913, %v5912
        %v5944 = vpack.c.bf16 %v5915, %v5914
        %v5945 = vpack.c.bf16 %v5917, %v5916
        %v5946 = vpack.c.bf16 %v5919, %v5918
        %v5947 = vpack.c.bf16 %v5921, %v5920
        %v5948 = vpack.c.bf16 %v5923, %v5922
        %v5949 = vpack.c.bf16 %v5925, %v5924
        %v5950 = vpack.c.bf16 %v5927, %v5926
        %v5951 = vpack.c.bf16 %v5929, %v5928
        %v5952 = vpack.c.bf16 %v5931, %v5930
        %v5953 = vpack.c.bf16 %v5933, %v5932
        %v5954 = vpack.c.bf16 %v5935, %v5934
        %v5955 = vpack.c.bf16 %v5937, %v5936
        %v5956 = vpack.c.bf16 %v5939, %v5938
        %v5957 = vpack.c.bf16 %v5941, %v5940
        %s5958 = scalar_lea.vmem [#allocation4], 320
        %v5959 = vld [vmem:[%s5958] sm:$0xf]
        %v5960 = vld [vmem:[%s5958 + $0x4] sm:$0xf]
        %v5961 = vld [vmem:[%s5958 + $0x8] sm:$0xf]
        %v5962 = vld [vmem:[%s5958 + $0xc] sm:$0xf]
        %v5963 = vld [vmem:[%s5958 + $0x10] sm:$0xf]
        %v5964 = vld [vmem:[%s5958 + $0x14] sm:$0xf]
        %v5965 = vld [vmem:[%s5958 + $0x18] sm:$0xf]
        %v5966 = vld [vmem:[%s5958 + $0x1c] sm:$0xf]
        %v5967 = vld [vmem:[%s5958 + $0x20] sm:$0xf]
        %v5968 = vld [vmem:[%s5958 + $0x24] sm:$0xf]
        %v5969 = vld [vmem:[%s5958 + $0x28] sm:$0xf]
        %v5970 = vld [vmem:[%s5958 + $0x2c] sm:$0xf]
        %v5971 = vld [vmem:[%s5958 + $0x30] sm:$0xf]
        %v5972 = vld [vmem:[%s5958 + $0x34] sm:$0xf]
        %v5973 = vld [vmem:[%s5958 + $0x38] sm:$0xf]
        %v5974 = vld [vmem:[%s5958 + $0x3c] sm:$0xf]
        %v5991 = vunpack.c.l.b16 %v5959
        %v5992 = vunpack.c.l.b16 %v5960
        %v5993 = vunpack.c.l.b16 %v5961
        %v5994 = vunpack.c.l.b16 %v5962
        %v5995 = vunpack.c.l.b16 %v5963
        %v5996 = vunpack.c.l.b16 %v5964
        %v5997 = vunpack.c.l.b16 %v5965
        %v5998 = vunpack.c.l.b16 %v5966
        %v5999 = vunpack.c.l.b16 %v5967
        %v6000 = vunpack.c.l.b16 %v5968
        %v6001 = vunpack.c.l.b16 %v5969
        %v6002 = vunpack.c.l.b16 %v5970
        %v6003 = vunpack.c.l.b16 %v5971
        %v6004 = vunpack.c.l.b16 %v5972
        %v6005 = vunpack.c.l.b16 %v5973
        %v6006 = vunpack.c.l.b16 %v5974
        %v6007 = vpack.c.b16 %v5992, %v5991
        %v6008 = vpack.c.b16 %v5994, %v5993
        %v6009 = vpack.c.b16 %v5996, %v5995
        %v6010 = vpack.c.b16 %v5998, %v5997
        %v6011 = vpack.c.b16 %v6000, %v5999
        %v6012 = vpack.c.b16 %v6002, %v6001
        %v6013 = vpack.c.b16 %v6004, %v6003
        %v6014 = vpack.c.b16 %v6006, %v6005
        %6023 = vmatpush.bf16.msra.mxu0 %v6014
        %6024 = vmatpush.bf16.msra.mxu0 %v6013
        %6025 = vmatpush.bf16.msra.mxu0 %v6012
        %6026 = vmatpush.bf16.msra.mxu0 %v6011
        %6027 = vmatpush.bf16.msra.mxu0 %v6010
        %6028 = vmatpush.bf16.msra.mxu0 %v6009
        %6029 = vmatpush.bf16.msra.mxu0 %v6008
        %6030 = vmatpush.bf16.msra.mxu0 %v6007
        %6031 = vmatmul.bf16.gmra.mxu0 %v5942
        %v6032 = vpop.f32.mrf.mxu0
        %v6033 = vadd.f32 0.0, %v6032
        %v6034 = vpop.f32.mrf.mxu0
        %v6035 = vadd.f32 0.0, %v6034
        %6036 = vmatmul.bf16.gmra.mxu0 %v5943
        %v6037 = vpop.f32.mrf.mxu0
        %v6038 = vadd.f32 0.0, %v6037
        %v6039 = vpop.f32.mrf.mxu0
        %v6040 = vadd.f32 0.0, %v6039
        %6041 = vmatmul.bf16.gmra.mxu0 %v5944
        %v6042 = vpop.f32.mrf.mxu0
        %v6043 = vadd.f32 0.0, %v6042
        %v6044 = vpop.f32.mrf.mxu0
        %v6045 = vadd.f32 0.0, %v6044
        %6046 = vmatmul.bf16.gmra.mxu0 %v5945
        %v6047 = vpop.f32.mrf.mxu0
        %v6048 = vadd.f32 0.0, %v6047
        %v6049 = vpop.f32.mrf.mxu0
        %v6050 = vadd.f32 0.0, %v6049
        %6051 = vmatmul.bf16.gmra.mxu0 %v5946
        %v6052 = vpop.f32.mrf.mxu0
        %v6053 = vadd.f32 0.0, %v6052
        %v6054 = vpop.f32.mrf.mxu0
        %v6055 = vadd.f32 0.0, %v6054
        %6056 = vmatmul.bf16.gmra.mxu0 %v5947
        %v6057 = vpop.f32.mrf.mxu0
        %v6058 = vadd.f32 0.0, %v6057
        %v6059 = vpop.f32.mrf.mxu0
        %v6060 = vadd.f32 0.0, %v6059
        %6061 = vmatmul.bf16.gmra.mxu0 %v5948
        %v6062 = vpop.f32.mrf.mxu0
        %v6063 = vadd.f32 0.0, %v6062
        %v6064 = vpop.f32.mrf.mxu0
        %v6065 = vadd.f32 0.0, %v6064
        %6066 = vmatmul.bf16.gmra.mxu0 %v5949
        %v6067 = vpop.f32.mrf.mxu0
        %v6068 = vadd.f32 0.0, %v6067
        %v6069 = vpop.f32.mrf.mxu0
        %v6070 = vadd.f32 0.0, %v6069
        %6071 = vmatmul.bf16.gmra.mxu0 %v5950
        %v6072 = vpop.f32.mrf.mxu0
        %v6073 = vadd.f32 0.0, %v6072
        %v6074 = vpop.f32.mrf.mxu0
        %v6075 = vadd.f32 0.0, %v6074
        %6076 = vmatmul.bf16.gmra.mxu0 %v5951
        %v6077 = vpop.f32.mrf.mxu0
        %v6078 = vadd.f32 0.0, %v6077
        %v6079 = vpop.f32.mrf.mxu0
        %v6080 = vadd.f32 0.0, %v6079
        %6081 = vmatmul.bf16.gmra.mxu0 %v5952
        %v6082 = vpop.f32.mrf.mxu0
        %v6083 = vadd.f32 0.0, %v6082
        %v6084 = vpop.f32.mrf.mxu0
        %v6085 = vadd.f32 0.0, %v6084
        %6086 = vmatmul.bf16.gmra.mxu0 %v5953
        %v6087 = vpop.f32.mrf.mxu0
        %v6088 = vadd.f32 0.0, %v6087
        %v6089 = vpop.f32.mrf.mxu0
        %v6090 = vadd.f32 0.0, %v6089
        %6091 = vmatmul.bf16.gmra.mxu0 %v5954
        %v6092 = vpop.f32.mrf.mxu0
        %v6093 = vadd.f32 0.0, %v6092
        %v6094 = vpop.f32.mrf.mxu0
        %v6095 = vadd.f32 0.0, %v6094
        %6096 = vmatmul.bf16.gmra.mxu0 %v5955
        %v6097 = vpop.f32.mrf.mxu0
        %v6098 = vadd.f32 0.0, %v6097
        %v6099 = vpop.f32.mrf.mxu0
        %v6100 = vadd.f32 0.0, %v6099
        %6101 = vmatmul.bf16.gmra.mxu0 %v5956
        %v6102 = vpop.f32.mrf.mxu0
        %v6103 = vadd.f32 0.0, %v6102
        %v6104 = vpop.f32.mrf.mxu0
        %v6105 = vadd.f32 0.0, %v6104
        %6106 = vmatmul.bf16.gmra.mxu0 %v5957
        %v6107 = vpop.f32.mrf.mxu0
        %v6108 = vadd.f32 0.0, %v6107
        %v6109 = vpop.f32.mrf.mxu0
        %v6110 = vadd.f32 0.0, %v6109
        %6111 = vdwg.mxu0
        %v6112 = vadd.f32 %v5878, %v6033
        %v6113 = vadd.f32 %v5879, %v6035
        %v6114 = vadd.f32 %v5880, %v6038
        %v6115 = vadd.f32 %v5881, %v6040
        %v6116 = vadd.f32 %v5882, %v6043
        %v6117 = vadd.f32 %v5883, %v6045
        %v6118 = vadd.f32 %v5884, %v6048
        %v6119 = vadd.f32 %v5885, %v6050
        %v6120 = vadd.f32 %v5886, %v6053
        %v6121 = vadd.f32 %v5887, %v6055
        %v6122 = vadd.f32 %v5888, %v6058
        %v6123 = vadd.f32 %v5889, %v6060
        %v6124 = vadd.f32 %v5890, %v6063
        %v6125 = vadd.f32 %v5891, %v6065
        %v6126 = vadd.f32 %v5892, %v6068
        %v6127 = vadd.f32 %v5893, %v6070
        %v6128 = vadd.f32 %v5894, %v6073
        %v6129 = vadd.f32 %v5895, %v6075
        %v6130 = vadd.f32 %v5896, %v6078
        %v6131 = vadd.f32 %v5897, %v6080
        %v6132 = vadd.f32 %v5898, %v6083
        %v6133 = vadd.f32 %v5899, %v6085
        %v6134 = vadd.f32 %v5900, %v6088
        %v6135 = vadd.f32 %v5901, %v6090
        %v6136 = vadd.f32 %v5902, %v6093
        %v6137 = vadd.f32 %v5903, %v6095
        %v6138 = vadd.f32 %v5904, %v6098
        %v6139 = vadd.f32 %v5905, %v6100
        %v6140 = vadd.f32 %v5906, %v6103
        %v6141 = vadd.f32 %v5907, %v6105
        %v6142 = vadd.f32 %v5908, %v6108
        %v6143 = vadd.f32 %v5909, %v6110
        %s6144 = scalar_lea.vmem [#allocation2], 64
        %v6145 = vld [vmem:[%s6144 + $0x7] sm:$0xff]
        %v6146 = vld [vmem:[%s6144 + $0xf] sm:$0xff]
        %v6147 = vld [vmem:[%s6144 + $0x27] sm:$0xff]
        %v6148 = vld [vmem:[%s6144 + $0x2f] sm:$0xff]
        %v6149 = vld [vmem:[%s6144 + $0x47] sm:$0xff]
        %v6150 = vld [vmem:[%s6144 + $0x4f] sm:$0xff]
        %v6151 = vld [vmem:[%s6144 + $0x67] sm:$0xff]
        %v6152 = vld [vmem:[%s6144 + $0x6f] sm:$0xff]
        %v6153 = vld [vmem:[%s6144 + $0x87] sm:$0xff]
        %v6154 = vld [vmem:[%s6144 + $0x8f] sm:$0xff]
        %v6155 = vld [vmem:[%s6144 + $0xa7] sm:$0xff]
        %v6156 = vld [vmem:[%s6144 + $0xaf] sm:$0xff]
        %v6157 = vld [vmem:[%s6144 + $0xc7] sm:$0xff]
        %v6158 = vld [vmem:[%s6144 + $0xcf] sm:$0xff]
        %v6159 = vld [vmem:[%s6144 + $0xe7] sm:$0xff]
        %v6160 = vld [vmem:[%s6144 + $0xef] sm:$0xff]
        %v6161 = vld [vmem:[%s6144 + $0x107] sm:$0xff]
        %v6162 = vld [vmem:[%s6144 + $0x10f] sm:$0xff]
        %v6163 = vld [vmem:[%s6144 + $0x127] sm:$0xff]
        %v6164 = vld [vmem:[%s6144 + $0x12f] sm:$0xff]
        %v6165 = vld [vmem:[%s6144 + $0x147] sm:$0xff]
        %v6166 = vld [vmem:[%s6144 + $0x14f] sm:$0xff]
        %v6167 = vld [vmem:[%s6144 + $0x167] sm:$0xff]
        %v6168 = vld [vmem:[%s6144 + $0x16f] sm:$0xff]
        %v6169 = vld [vmem:[%s6144 + $0x187] sm:$0xff]
        %v6170 = vld [vmem:[%s6144 + $0x18f] sm:$0xff]
        %v6171 = vld [vmem:[%s6144 + $0x1a7] sm:$0xff]
        %v6172 = vld [vmem:[%s6144 + $0x1af] sm:$0xff]
        %v6173 = vld [vmem:[%s6144 + $0x1c7] sm:$0xff]
        %v6174 = vld [vmem:[%s6144 + $0x1cf] sm:$0xff]
        %v6175 = vld [vmem:[%s6144 + $0x1e7] sm:$0xff]
        %v6176 = vld [vmem:[%s6144 + $0x1ef] sm:$0xff]
        %v6177 = vpack.c.bf16 %v6146, %v6145
        %v6178 = vpack.c.bf16 %v6148, %v6147
        %v6179 = vpack.c.bf16 %v6150, %v6149
        %v6180 = vpack.c.bf16 %v6152, %v6151
        %v6181 = vpack.c.bf16 %v6154, %v6153
        %v6182 = vpack.c.bf16 %v6156, %v6155
        %v6183 = vpack.c.bf16 %v6158, %v6157
        %v6184 = vpack.c.bf16 %v6160, %v6159
        %v6185 = vpack.c.bf16 %v6162, %v6161
        %v6186 = vpack.c.bf16 %v6164, %v6163
        %v6187 = vpack.c.bf16 %v6166, %v6165
        %v6188 = vpack.c.bf16 %v6168, %v6167
        %v6189 = vpack.c.bf16 %v6170, %v6169
        %v6190 = vpack.c.bf16 %v6172, %v6171
        %v6191 = vpack.c.bf16 %v6174, %v6173
        %v6192 = vpack.c.bf16 %v6176, %v6175
        %s6193 = scalar_lea.vmem [#allocation4], 384
        %v6194 = vld [vmem:[%s6193] sm:$0xf]
        %v6195 = vld [vmem:[%s6193 + $0x4] sm:$0xf]
        %v6196 = vld [vmem:[%s6193 + $0x8] sm:$0xf]
        %v6197 = vld [vmem:[%s6193 + $0xc] sm:$0xf]
        %v6198 = vld [vmem:[%s6193 + $0x10] sm:$0xf]
        %v6199 = vld [vmem:[%s6193 + $0x14] sm:$0xf]
        %v6200 = vld [vmem:[%s6193 + $0x18] sm:$0xf]
        %v6201 = vld [vmem:[%s6193 + $0x1c] sm:$0xf]
        %v6202 = vld [vmem:[%s6193 + $0x20] sm:$0xf]
        %v6203 = vld [vmem:[%s6193 + $0x24] sm:$0xf]
        %v6204 = vld [vmem:[%s6193 + $0x28] sm:$0xf]
        %v6205 = vld [vmem:[%s6193 + $0x2c] sm:$0xf]
        %v6206 = vld [vmem:[%s6193 + $0x30] sm:$0xf]
        %v6207 = vld [vmem:[%s6193 + $0x34] sm:$0xf]
        %v6208 = vld [vmem:[%s6193 + $0x38] sm:$0xf]
        %v6209 = vld [vmem:[%s6193 + $0x3c] sm:$0xf]
        %v6226 = vunpack.c.l.b16 %v6194
        %v6227 = vunpack.c.l.b16 %v6195
        %v6228 = vunpack.c.l.b16 %v6196
        %v6229 = vunpack.c.l.b16 %v6197
        %v6230 = vunpack.c.l.b16 %v6198
        %v6231 = vunpack.c.l.b16 %v6199
        %v6232 = vunpack.c.l.b16 %v6200
        %v6233 = vunpack.c.l.b16 %v6201
        %v6234 = vunpack.c.l.b16 %v6202
        %v6235 = vunpack.c.l.b16 %v6203
        %v6236 = vunpack.c.l.b16 %v6204
        %v6237 = vunpack.c.l.b16 %v6205
        %v6238 = vunpack.c.l.b16 %v6206
        %v6239 = vunpack.c.l.b16 %v6207
        %v6240 = vunpack.c.l.b16 %v6208
        %v6241 = vunpack.c.l.b16 %v6209
        %v6242 = vpack.c.b16 %v6227, %v6226
        %v6243 = vpack.c.b16 %v6229, %v6228
        %v6244 = vpack.c.b16 %v6231, %v6230
        %v6245 = vpack.c.b16 %v6233, %v6232
        %v6246 = vpack.c.b16 %v6235, %v6234
        %v6247 = vpack.c.b16 %v6237, %v6236
        %v6248 = vpack.c.b16 %v6239, %v6238
        %v6249 = vpack.c.b16 %v6241, %v6240
        %6258 = vmatpush.bf16.msra.mxu0 %v6249
        %6259 = vmatpush.bf16.msra.mxu0 %v6248
        %6260 = vmatpush.bf16.msra.mxu0 %v6247
        %6261 = vmatpush.bf16.msra.mxu0 %v6246
        %6262 = vmatpush.bf16.msra.mxu0 %v6245
        %6263 = vmatpush.bf16.msra.mxu0 %v6244
        %6264 = vmatpush.bf16.msra.mxu0 %v6243
        %6265 = vmatpush.bf16.msra.mxu0 %v6242
        %6266 = vmatmul.bf16.gmra.mxu0 %v6177
        %v6267 = vpop.f32.mrf.mxu0
        %v6268 = vadd.f32 0.0, %v6267
        %v6269 = vpop.f32.mrf.mxu0
        %v6270 = vadd.f32 0.0, %v6269
        %6271 = vmatmul.bf16.gmra.mxu0 %v6178
        %v6272 = vpop.f32.mrf.mxu0
        %v6273 = vadd.f32 0.0, %v6272
        %v6274 = vpop.f32.mrf.mxu0
        %v6275 = vadd.f32 0.0, %v6274
        %6276 = vmatmul.bf16.gmra.mxu0 %v6179
        %v6277 = vpop.f32.mrf.mxu0
        %v6278 = vadd.f32 0.0, %v6277
        %v6279 = vpop.f32.mrf.mxu0
        %v6280 = vadd.f32 0.0, %v6279
        %6281 = vmatmul.bf16.gmra.mxu0 %v6180
        %v6282 = vpop.f32.mrf.mxu0
        %v6283 = vadd.f32 0.0, %v6282
        %v6284 = vpop.f32.mrf.mxu0
        %v6285 = vadd.f32 0.0, %v6284
        %6286 = vmatmul.bf16.gmra.mxu0 %v6181
        %v6287 = vpop.f32.mrf.mxu0
        %v6288 = vadd.f32 0.0, %v6287
        %v6289 = vpop.f32.mrf.mxu0
        %v6290 = vadd.f32 0.0, %v6289
        %6291 = vmatmul.bf16.gmra.mxu0 %v6182
        %v6292 = vpop.f32.mrf.mxu0
        %v6293 = vadd.f32 0.0, %v6292
        %v6294 = vpop.f32.mrf.mxu0
        %v6295 = vadd.f32 0.0, %v6294
        %6296 = vmatmul.bf16.gmra.mxu0 %v6183
        %v6297 = vpop.f32.mrf.mxu0
        %v6298 = vadd.f32 0.0, %v6297
        %v6299 = vpop.f32.mrf.mxu0
        %v6300 = vadd.f32 0.0, %v6299
        %6301 = vmatmul.bf16.gmra.mxu0 %v6184
        %v6302 = vpop.f32.mrf.mxu0
        %v6303 = vadd.f32 0.0, %v6302
        %v6304 = vpop.f32.mrf.mxu0
        %v6305 = vadd.f32 0.0, %v6304
        %6306 = vmatmul.bf16.gmra.mxu0 %v6185
        %v6307 = vpop.f32.mrf.mxu0
        %v6308 = vadd.f32 0.0, %v6307
        %v6309 = vpop.f32.mrf.mxu0
        %v6310 = vadd.f32 0.0, %v6309
        %6311 = vmatmul.bf16.gmra.mxu0 %v6186
        %v6312 = vpop.f32.mrf.mxu0
        %v6313 = vadd.f32 0.0, %v6312
        %v6314 = vpop.f32.mrf.mxu0
        %v6315 = vadd.f32 0.0, %v6314
        %6316 = vmatmul.bf16.gmra.mxu0 %v6187
        %v6317 = vpop.f32.mrf.mxu0
        %v6318 = vadd.f32 0.0, %v6317
        %v6319 = vpop.f32.mrf.mxu0
        %v6320 = vadd.f32 0.0, %v6319
        %6321 = vmatmul.bf16.gmra.mxu0 %v6188
        %v6322 = vpop.f32.mrf.mxu0
        %v6323 = vadd.f32 0.0, %v6322
        %v6324 = vpop.f32.mrf.mxu0
        %v6325 = vadd.f32 0.0, %v6324
        %6326 = vmatmul.bf16.gmra.mxu0 %v6189
        %v6327 = vpop.f32.mrf.mxu0
        %v6328 = vadd.f32 0.0, %v6327
        %v6329 = vpop.f32.mrf.mxu0
        %v6330 = vadd.f32 0.0, %v6329
        %6331 = vmatmul.bf16.gmra.mxu0 %v6190
        %v6332 = vpop.f32.mrf.mxu0
        %v6333 = vadd.f32 0.0, %v6332
        %v6334 = vpop.f32.mrf.mxu0
        %v6335 = vadd.f32 0.0, %v6334
        %6336 = vmatmul.bf16.gmra.mxu0 %v6191
        %v6337 = vpop.f32.mrf.mxu0
        %v6338 = vadd.f32 0.0, %v6337
        %v6339 = vpop.f32.mrf.mxu0
        %v6340 = vadd.f32 0.0, %v6339
        %6341 = vmatmul.bf16.gmra.mxu0 %v6192
        %v6342 = vpop.f32.mrf.mxu0
        %v6343 = vadd.f32 0.0, %v6342
        %v6344 = vpop.f32.mrf.mxu0
        %v6345 = vadd.f32 0.0, %v6344
        %6346 = vdwg.mxu0
        %v6347 = vadd.f32 %v6112, %v6268
        %v6348 = vadd.f32 %v6113, %v6270
        %v6349 = vadd.f32 %v6114, %v6273
        %v6350 = vadd.f32 %v6115, %v6275
        %v6351 = vadd.f32 %v6116, %v6278
        %v6352 = vadd.f32 %v6117, %v6280
        %v6353 = vadd.f32 %v6118, %v6283
        %v6354 = vadd.f32 %v6119, %v6285
        %v6355 = vadd.f32 %v6120, %v6288
        %v6356 = vadd.f32 %v6121, %v6290
        %v6357 = vadd.f32 %v6122, %v6293
        %v6358 = vadd.f32 %v6123, %v6295
        %v6359 = vadd.f32 %v6124, %v6298
        %v6360 = vadd.f32 %v6125, %v6300
        %v6361 = vadd.f32 %v6126, %v6303
        %v6362 = vadd.f32 %v6127, %v6305
        %v6363 = vadd.f32 %v6128, %v6308
        %v6364 = vadd.f32 %v6129, %v6310
        %v6365 = vadd.f32 %v6130, %v6313
        %v6366 = vadd.f32 %v6131, %v6315
        %v6367 = vadd.f32 %v6132, %v6318
        %v6368 = vadd.f32 %v6133, %v6320
        %v6369 = vadd.f32 %v6134, %v6323
        %v6370 = vadd.f32 %v6135, %v6325
        %v6371 = vadd.f32 %v6136, %v6328
        %v6372 = vadd.f32 %v6137, %v6330
        %v6373 = vadd.f32 %v6138, %v6333
        %v6374 = vadd.f32 %v6139, %v6335
        %v6375 = vadd.f32 %v6140, %v6338
        %v6376 = vadd.f32 %v6141, %v6340
        %v6377 = vadd.f32 %v6142, %v6343
        %v6378 = vadd.f32 %v6143, %v6345
        %v6379 = vld [vmem:[%s6144 + $0x8] sm:$0xff]
        %v6380 = vld [vmem:[%s6144 + $0x10] sm:$0xff]
        %v6381 = vld [vmem:[%s6144 + $0x28] sm:$0xff]
        %v6382 = vld [vmem:[%s6144 + $0x30] sm:$0xff]
        %v6383 = vld [vmem:[%s6144 + $0x48] sm:$0xff]
        %v6384 = vld [vmem:[%s6144 + $0x50] sm:$0xff]
        %v6385 = vld [vmem:[%s6144 + $0x68] sm:$0xff]
        %v6386 = vld [vmem:[%s6144 + $0x70] sm:$0xff]
        %v6387 = vld [vmem:[%s6144 + $0x88] sm:$0xff]
        %v6388 = vld [vmem:[%s6144 + $0x90] sm:$0xff]
        %v6389 = vld [vmem:[%s6144 + $0xa8] sm:$0xff]
        %v6390 = vld [vmem:[%s6144 + $0xb0] sm:$0xff]
        %v6391 = vld [vmem:[%s6144 + $0xc8] sm:$0xff]
        %v6392 = vld [vmem:[%s6144 + $0xd0] sm:$0xff]
        %v6393 = vld [vmem:[%s6144 + $0xe8] sm:$0xff]
        %v6394 = vld [vmem:[%s6144 + $0xf0] sm:$0xff]
        %v6395 = vld [vmem:[%s6144 + $0x108] sm:$0xff]
        %v6396 = vld [vmem:[%s6144 + $0x110] sm:$0xff]
        %v6397 = vld [vmem:[%s6144 + $0x128] sm:$0xff]
        %v6398 = vld [vmem:[%s6144 + $0x130] sm:$0xff]
        %v6399 = vld [vmem:[%s6144 + $0x148] sm:$0xff]
        %v6400 = vld [vmem:[%s6144 + $0x150] sm:$0xff]
        %v6401 = vld [vmem:[%s6144 + $0x168] sm:$0xff]
        %v6402 = vld [vmem:[%s6144 + $0x170] sm:$0xff]
        %v6403 = vld [vmem:[%s6144 + $0x188] sm:$0xff]
        %v6404 = vld [vmem:[%s6144 + $0x190] sm:$0xff]
        %v6405 = vld [vmem:[%s6144 + $0x1a8] sm:$0xff]
        %v6406 = vld [vmem:[%s6144 + $0x1b0] sm:$0xff]
        %v6407 = vld [vmem:[%s6144 + $0x1c8] sm:$0xff]
        %v6408 = vld [vmem:[%s6144 + $0x1d0] sm:$0xff]
        %v6409 = vld [vmem:[%s6144 + $0x1e8] sm:$0xff]
        %v6410 = vld [vmem:[%s6144 + $0x1f0] sm:$0xff]
        %v6411 = vpack.c.bf16 %v6380, %v6379
        %v6412 = vpack.c.bf16 %v6382, %v6381
        %v6413 = vpack.c.bf16 %v6384, %v6383
        %v6414 = vpack.c.bf16 %v6386, %v6385
        %v6415 = vpack.c.bf16 %v6388, %v6387
        %v6416 = vpack.c.bf16 %v6390, %v6389
        %v6417 = vpack.c.bf16 %v6392, %v6391
        %v6418 = vpack.c.bf16 %v6394, %v6393
        %v6419 = vpack.c.bf16 %v6396, %v6395
        %v6420 = vpack.c.bf16 %v6398, %v6397
        %v6421 = vpack.c.bf16 %v6400, %v6399
        %v6422 = vpack.c.bf16 %v6402, %v6401
        %v6423 = vpack.c.bf16 %v6404, %v6403
        %v6424 = vpack.c.bf16 %v6406, %v6405
        %v6425 = vpack.c.bf16 %v6408, %v6407
        %v6426 = vpack.c.bf16 %v6410, %v6409
        %s6427 = scalar_lea.vmem [#allocation4], 448
        %v6428 = vld [vmem:[%s6427] sm:$0xf]
        %v6429 = vld [vmem:[%s6427 + $0x4] sm:$0xf]
        %v6430 = vld [vmem:[%s6427 + $0x8] sm:$0xf]
        %v6431 = vld [vmem:[%s6427 + $0xc] sm:$0xf]
        %v6432 = vld [vmem:[%s6427 + $0x10] sm:$0xf]
        %v6433 = vld [vmem:[%s6427 + $0x14] sm:$0xf]
        %v6434 = vld [vmem:[%s6427 + $0x18] sm:$0xf]
        %v6435 = vld [vmem:[%s6427 + $0x1c] sm:$0xf]
        %v6436 = vld [vmem:[%s6427 + $0x20] sm:$0xf]
        %v6437 = vld [vmem:[%s6427 + $0x24] sm:$0xf]
        %v6438 = vld [vmem:[%s6427 + $0x28] sm:$0xf]
        %v6439 = vld [vmem:[%s6427 + $0x2c] sm:$0xf]
        %v6440 = vld [vmem:[%s6427 + $0x30] sm:$0xf]
        %v6441 = vld [vmem:[%s6427 + $0x34] sm:$0xf]
        %v6442 = vld [vmem:[%s6427 + $0x38] sm:$0xf]
        %v6443 = vld [vmem:[%s6427 + $0x3c] sm:$0xf]
        %v6460 = vunpack.c.l.b16 %v6428
        %v6461 = vunpack.c.l.b16 %v6429
        %v6462 = vunpack.c.l.b16 %v6430
        %v6463 = vunpack.c.l.b16 %v6431
        %v6464 = vunpack.c.l.b16 %v6432
        %v6465 = vunpack.c.l.b16 %v6433
        %v6466 = vunpack.c.l.b16 %v6434
        %v6467 = vunpack.c.l.b16 %v6435
        %v6468 = vunpack.c.l.b16 %v6436
        %v6469 = vunpack.c.l.b16 %v6437
        %v6470 = vunpack.c.l.b16 %v6438
        %v6471 = vunpack.c.l.b16 %v6439
        %v6472 = vunpack.c.l.b16 %v6440
        %v6473 = vunpack.c.l.b16 %v6441
        %v6474 = vunpack.c.l.b16 %v6442
        %v6475 = vunpack.c.l.b16 %v6443
        %v6476 = vpack.c.b16 %v6461, %v6460
        %v6477 = vpack.c.b16 %v6463, %v6462
        %v6478 = vpack.c.b16 %v6465, %v6464
        %v6479 = vpack.c.b16 %v6467, %v6466
        %v6480 = vpack.c.b16 %v6469, %v6468
        %v6481 = vpack.c.b16 %v6471, %v6470
        %v6482 = vpack.c.b16 %v6473, %v6472
        %v6483 = vpack.c.b16 %v6475, %v6474
        %6492 = vmatpush.bf16.msra.mxu0 %v6483
        %6493 = vmatpush.bf16.msra.mxu0 %v6482
        %6494 = vmatpush.bf16.msra.mxu0 %v6481
        %6495 = vmatpush.bf16.msra.mxu0 %v6480
        %6496 = vmatpush.bf16.msra.mxu0 %v6479
        %6497 = vmatpush.bf16.msra.mxu0 %v6478
        %6498 = vmatpush.bf16.msra.mxu0 %v6477
        %6499 = vmatpush.bf16.msra.mxu0 %v6476
        %6500 = vmatmul.bf16.gmra.mxu0 %v6411
        %v6501 = vpop.f32.mrf.mxu0
        %v6502 = vadd.f32 0.0, %v6501
        %v6503 = vpop.f32.mrf.mxu0
        %v6504 = vadd.f32 0.0, %v6503
        %6505 = vmatmul.bf16.gmra.mxu0 %v6412
        %v6506 = vpop.f32.mrf.mxu0
        %v6507 = vadd.f32 0.0, %v6506
        %v6508 = vpop.f32.mrf.mxu0
        %v6509 = vadd.f32 0.0, %v6508
        %6510 = vmatmul.bf16.gmra.mxu0 %v6413
        %v6511 = vpop.f32.mrf.mxu0
        %v6512 = vadd.f32 0.0, %v6511
        %v6513 = vpop.f32.mrf.mxu0
        %v6514 = vadd.f32 0.0, %v6513
        %6515 = vmatmul.bf16.gmra.mxu0 %v6414
        %v6516 = vpop.f32.mrf.mxu0
        %v6517 = vadd.f32 0.0, %v6516
        %v6518 = vpop.f32.mrf.mxu0
        %v6519 = vadd.f32 0.0, %v6518
        %6520 = vmatmul.bf16.gmra.mxu0 %v6415
        %v6521 = vpop.f32.mrf.mxu0
        %v6522 = vadd.f32 0.0, %v6521
        %v6523 = vpop.f32.mrf.mxu0
        %v6524 = vadd.f32 0.0, %v6523
        %6525 = vmatmul.bf16.gmra.mxu0 %v6416
        %v6526 = vpop.f32.mrf.mxu0
        %v6527 = vadd.f32 0.0, %v6526
        %v6528 = vpop.f32.mrf.mxu0
        %v6529 = vadd.f32 0.0, %v6528
        %6530 = vmatmul.bf16.gmra.mxu0 %v6417
        %v6531 = vpop.f32.mrf.mxu0
        %v6532 = vadd.f32 0.0, %v6531
        %v6533 = vpop.f32.mrf.mxu0
        %v6534 = vadd.f32 0.0, %v6533
        %6535 = vmatmul.bf16.gmra.mxu0 %v6418
        %v6536 = vpop.f32.mrf.mxu0
        %v6537 = vadd.f32 0.0, %v6536
        %v6538 = vpop.f32.mrf.mxu0
        %v6539 = vadd.f32 0.0, %v6538
        %6540 = vmatmul.bf16.gmra.mxu0 %v6419
        %v6541 = vpop.f32.mrf.mxu0
        %v6542 = vadd.f32 0.0, %v6541
        %v6543 = vpop.f32.mrf.mxu0
        %v6544 = vadd.f32 0.0, %v6543
        %6545 = vmatmul.bf16.gmra.mxu0 %v6420
        %v6546 = vpop.f32.mrf.mxu0
        %v6547 = vadd.f32 0.0, %v6546
        %v6548 = vpop.f32.mrf.mxu0
        %v6549 = vadd.f32 0.0, %v6548
        %6550 = vmatmul.bf16.gmra.mxu0 %v6421
        %v6551 = vpop.f32.mrf.mxu0
        %v6552 = vadd.f32 0.0, %v6551
        %v6553 = vpop.f32.mrf.mxu0
        %v6554 = vadd.f32 0.0, %v6553
        %6555 = vmatmul.bf16.gmra.mxu0 %v6422
        %v6556 = vpop.f32.mrf.mxu0
        %v6557 = vadd.f32 0.0, %v6556
        %v6558 = vpop.f32.mrf.mxu0
        %v6559 = vadd.f32 0.0, %v6558
        %6560 = vmatmul.bf16.gmra.mxu0 %v6423
        %v6561 = vpop.f32.mrf.mxu0
        %v6562 = vadd.f32 0.0, %v6561
        %v6563 = vpop.f32.mrf.mxu0
        %v6564 = vadd.f32 0.0, %v6563
        %6565 = vmatmul.bf16.gmra.mxu0 %v6424
        %v6566 = vpop.f32.mrf.mxu0
        %v6567 = vadd.f32 0.0, %v6566
        %v6568 = vpop.f32.mrf.mxu0
        %v6569 = vadd.f32 0.0, %v6568
        %6570 = vmatmul.bf16.gmra.mxu0 %v6425
        %v6571 = vpop.f32.mrf.mxu0
        %v6572 = vadd.f32 0.0, %v6571
        %v6573 = vpop.f32.mrf.mxu0
        %v6574 = vadd.f32 0.0, %v6573
        %6575 = vmatmul.bf16.gmra.mxu0 %v6426
        %v6576 = vpop.f32.mrf.mxu0
        %v6577 = vadd.f32 0.0, %v6576
        %v6578 = vpop.f32.mrf.mxu0
        %v6579 = vadd.f32 0.0, %v6578
        %6580 = vdwg.mxu0
        %v6581 = vadd.f32 %v6347, %v6502
        %v6582 = vadd.f32 %v6348, %v6504
        %v6583 = vadd.f32 %v6349, %v6507
        %v6584 = vadd.f32 %v6350, %v6509
        %v6585 = vadd.f32 %v6351, %v6512
        %v6586 = vadd.f32 %v6352, %v6514
        %v6587 = vadd.f32 %v6353, %v6517
        %v6588 = vadd.f32 %v6354, %v6519
        %v6589 = vadd.f32 %v6355, %v6522
        %v6590 = vadd.f32 %v6356, %v6524
        %v6591 = vadd.f32 %v6357, %v6527
        %v6592 = vadd.f32 %v6358, %v6529
        %v6593 = vadd.f32 %v6359, %v6532
        %v6594 = vadd.f32 %v6360, %v6534
        %v6595 = vadd.f32 %v6361, %v6537
        %v6596 = vadd.f32 %v6362, %v6539
        %v6597 = vadd.f32 %v6363, %v6542
        %v6598 = vadd.f32 %v6364, %v6544
        %v6599 = vadd.f32 %v6365, %v6547
        %v6600 = vadd.f32 %v6366, %v6549
        %v6601 = vadd.f32 %v6367, %v6552
        %v6602 = vadd.f32 %v6368, %v6554
        %v6603 = vadd.f32 %v6369, %v6557
        %v6604 = vadd.f32 %v6370, %v6559
        %v6605 = vadd.f32 %v6371, %v6562
        %v6606 = vadd.f32 %v6372, %v6564
        %v6607 = vadd.f32 %v6373, %v6567
        %v6608 = vadd.f32 %v6374, %v6569
        %v6609 = vadd.f32 %v6375, %v6572
        %v6610 = vadd.f32 %v6376, %v6574
        %v6611 = vadd.f32 %v6377, %v6577
        %v6612 = vadd.f32 %v6378, %v6579
        %v6613 = vld [vmem:[%s6144 + $0x9] sm:$0xff]
        %v6614 = vld [vmem:[%s6144 + $0x11] sm:$0xff]
        %v6615 = vld [vmem:[%s6144 + $0x29] sm:$0xff]
        %v6616 = vld [vmem:[%s6144 + $0x31] sm:$0xff]
        %v6617 = vld [vmem:[%s6144 + $0x49] sm:$0xff]
        %v6618 = vld [vmem:[%s6144 + $0x51] sm:$0xff]
        %v6619 = vld [vmem:[%s6144 + $0x69] sm:$0xff]
        %v6620 = vld [vmem:[%s6144 + $0x71] sm:$0xff]
        %v6621 = vld [vmem:[%s6144 + $0x89] sm:$0xff]
        %v6622 = vld [vmem:[%s6144 + $0x91] sm:$0xff]
        %v6623 = vld [vmem:[%s6144 + $0xa9] sm:$0xff]
        %v6624 = vld [vmem:[%s6144 + $0xb1] sm:$0xff]
        %v6625 = vld [vmem:[%s6144 + $0xc9] sm:$0xff]
        %v6626 = vld [vmem:[%s6144 + $0xd1] sm:$0xff]
        %v6627 = vld [vmem:[%s6144 + $0xe9] sm:$0xff]
        %v6628 = vld [vmem:[%s6144 + $0xf1] sm:$0xff]
        %v6629 = vld [vmem:[%s6144 + $0x109] sm:$0xff]
        %v6630 = vld [vmem:[%s6144 + $0x111] sm:$0xff]
        %v6631 = vld [vmem:[%s6144 + $0x129] sm:$0xff]
        %v6632 = vld [vmem:[%s6144 + $0x131] sm:$0xff]
        %v6633 = vld [vmem:[%s6144 + $0x149] sm:$0xff]
        %v6634 = vld [vmem:[%s6144 + $0x151] sm:$0xff]
        %v6635 = vld [vmem:[%s6144 + $0x169] sm:$0xff]
        %v6636 = vld [vmem:[%s6144 + $0x171] sm:$0xff]
        %v6637 = vld [vmem:[%s6144 + $0x189] sm:$0xff]
        %v6638 = vld [vmem:[%s6144 + $0x191] sm:$0xff]
        %v6639 = vld [vmem:[%s6144 + $0x1a9] sm:$0xff]
        %v6640 = vld [vmem:[%s6144 + $0x1b1] sm:$0xff]
        %v6641 = vld [vmem:[%s6144 + $0x1c9] sm:$0xff]
        %v6642 = vld [vmem:[%s6144 + $0x1d1] sm:$0xff]
        %v6643 = vld [vmem:[%s6144 + $0x1e9] sm:$0xff]
        %v6644 = vld [vmem:[%s6144 + $0x1f1] sm:$0xff]
        %v6645 = vpack.c.bf16 %v6614, %v6613
        %v6646 = vpack.c.bf16 %v6616, %v6615
        %v6647 = vpack.c.bf16 %v6618, %v6617
        %v6648 = vpack.c.bf16 %v6620, %v6619
        %v6649 = vpack.c.bf16 %v6622, %v6621
        %v6650 = vpack.c.bf16 %v6624, %v6623
        %v6651 = vpack.c.bf16 %v6626, %v6625
        %v6652 = vpack.c.bf16 %v6628, %v6627
        %v6653 = vpack.c.bf16 %v6630, %v6629
        %v6654 = vpack.c.bf16 %v6632, %v6631
        %v6655 = vpack.c.bf16 %v6634, %v6633
        %v6656 = vpack.c.bf16 %v6636, %v6635
        %v6657 = vpack.c.bf16 %v6638, %v6637
        %v6658 = vpack.c.bf16 %v6640, %v6639
        %v6659 = vpack.c.bf16 %v6642, %v6641
        %v6660 = vpack.c.bf16 %v6644, %v6643
        %s6661 = scalar_lea.vmem [#allocation4], 512
        %v6662 = vld [vmem:[%s6661] sm:$0xf]
        %v6663 = vld [vmem:[%s6661 + $0x4] sm:$0xf]
        %v6664 = vld [vmem:[%s6661 + $0x8] sm:$0xf]
        %v6665 = vld [vmem:[%s6661 + $0xc] sm:$0xf]
        %v6666 = vld [vmem:[%s6661 + $0x10] sm:$0xf]
        %v6667 = vld [vmem:[%s6661 + $0x14] sm:$0xf]
        %v6668 = vld [vmem:[%s6661 + $0x18] sm:$0xf]
        %v6669 = vld [vmem:[%s6661 + $0x1c] sm:$0xf]
        %v6670 = vld [vmem:[%s6661 + $0x20] sm:$0xf]
        %v6671 = vld [vmem:[%s6661 + $0x24] sm:$0xf]
        %v6672 = vld [vmem:[%s6661 + $0x28] sm:$0xf]
        %v6673 = vld [vmem:[%s6661 + $0x2c] sm:$0xf]
        %v6674 = vld [vmem:[%s6661 + $0x30] sm:$0xf]
        %v6675 = vld [vmem:[%s6661 + $0x34] sm:$0xf]
        %v6676 = vld [vmem:[%s6661 + $0x38] sm:$0xf]
        %v6677 = vld [vmem:[%s6661 + $0x3c] sm:$0xf]
        %v6694 = vunpack.c.l.b16 %v6662
        %v6695 = vunpack.c.l.b16 %v6663
        %v6696 = vunpack.c.l.b16 %v6664
        %v6697 = vunpack.c.l.b16 %v6665
        %v6698 = vunpack.c.l.b16 %v6666
        %v6699 = vunpack.c.l.b16 %v6667
        %v6700 = vunpack.c.l.b16 %v6668
        %v6701 = vunpack.c.l.b16 %v6669
        %v6702 = vunpack.c.l.b16 %v6670
        %v6703 = vunpack.c.l.b16 %v6671
        %v6704 = vunpack.c.l.b16 %v6672
        %v6705 = vunpack.c.l.b16 %v6673
        %v6706 = vunpack.c.l.b16 %v6674
        %v6707 = vunpack.c.l.b16 %v6675
        %v6708 = vunpack.c.l.b16 %v6676
        %v6709 = vunpack.c.l.b16 %v6677
        %v6710 = vpack.c.b16 %v6695, %v6694
        %v6711 = vpack.c.b16 %v6697, %v6696
        %v6712 = vpack.c.b16 %v6699, %v6698
        %v6713 = vpack.c.b16 %v6701, %v6700
        %v6714 = vpack.c.b16 %v6703, %v6702
        %v6715 = vpack.c.b16 %v6705, %v6704
        %v6716 = vpack.c.b16 %v6707, %v6706
        %v6717 = vpack.c.b16 %v6709, %v6708
        %6726 = vmatpush.bf16.msra.mxu0 %v6717
        %6727 = vmatpush.bf16.msra.mxu0 %v6716
        %6728 = vmatpush.bf16.msra.mxu0 %v6715
        %6729 = vmatpush.bf16.msra.mxu0 %v6714
        %6730 = vmatpush.bf16.msra.mxu0 %v6713
        %6731 = vmatpush.bf16.msra.mxu0 %v6712
        %6732 = vmatpush.bf16.msra.mxu0 %v6711
        %6733 = vmatpush.bf16.msra.mxu0 %v6710
        %6734 = vmatmul.bf16.gmra.mxu0 %v6645
        %v6735 = vpop.f32.mrf.mxu0
        %v6736 = vadd.f32 0.0, %v6735
        %v6737 = vpop.f32.mrf.mxu0
        %v6738 = vadd.f32 0.0, %v6737
        %6739 = vmatmul.bf16.gmra.mxu0 %v6646
        %v6740 = vpop.f32.mrf.mxu0
        %v6741 = vadd.f32 0.0, %v6740
        %v6742 = vpop.f32.mrf.mxu0
        %v6743 = vadd.f32 0.0, %v6742
        %6744 = vmatmul.bf16.gmra.mxu0 %v6647
        %v6745 = vpop.f32.mrf.mxu0
        %v6746 = vadd.f32 0.0, %v6745
        %v6747 = vpop.f32.mrf.mxu0
        %v6748 = vadd.f32 0.0, %v6747
        %6749 = vmatmul.bf16.gmra.mxu0 %v6648
        %v6750 = vpop.f32.mrf.mxu0
        %v6751 = vadd.f32 0.0, %v6750
        %v6752 = vpop.f32.mrf.mxu0
        %v6753 = vadd.f32 0.0, %v6752
        %6754 = vmatmul.bf16.gmra.mxu0 %v6649
        %v6755 = vpop.f32.mrf.mxu0
        %v6756 = vadd.f32 0.0, %v6755
        %v6757 = vpop.f32.mrf.mxu0
        %v6758 = vadd.f32 0.0, %v6757
        %6759 = vmatmul.bf16.gmra.mxu0 %v6650
        %v6760 = vpop.f32.mrf.mxu0
        %v6761 = vadd.f32 0.0, %v6760
        %v6762 = vpop.f32.mrf.mxu0
        %v6763 = vadd.f32 0.0, %v6762
        %6764 = vmatmul.bf16.gmra.mxu0 %v6651
        %v6765 = vpop.f32.mrf.mxu0
        %v6766 = vadd.f32 0.0, %v6765
        %v6767 = vpop.f32.mrf.mxu0
        %v6768 = vadd.f32 0.0, %v6767
        %6769 = vmatmul.bf16.gmra.mxu0 %v6652
        %v6770 = vpop.f32.mrf.mxu0
        %v6771 = vadd.f32 0.0, %v6770
        %v6772 = vpop.f32.mrf.mxu0
        %v6773 = vadd.f32 0.0, %v6772
        %6774 = vmatmul.bf16.gmra.mxu0 %v6653
        %v6775 = vpop.f32.mrf.mxu0
        %v6776 = vadd.f32 0.0, %v6775
        %v6777 = vpop.f32.mrf.mxu0
        %v6778 = vadd.f32 0.0, %v6777
        %6779 = vmatmul.bf16.gmra.mxu0 %v6654
        %v6780 = vpop.f32.mrf.mxu0
        %v6781 = vadd.f32 0.0, %v6780
        %v6782 = vpop.f32.mrf.mxu0
        %v6783 = vadd.f32 0.0, %v6782
        %6784 = vmatmul.bf16.gmra.mxu0 %v6655
        %v6785 = vpop.f32.mrf.mxu0
        %v6786 = vadd.f32 0.0, %v6785
        %v6787 = vpop.f32.mrf.mxu0
        %v6788 = vadd.f32 0.0, %v6787
        %6789 = vmatmul.bf16.gmra.mxu0 %v6656
        %v6790 = vpop.f32.mrf.mxu0
        %v6791 = vadd.f32 0.0, %v6790
        %v6792 = vpop.f32.mrf.mxu0
        %v6793 = vadd.f32 0.0, %v6792
        %6794 = vmatmul.bf16.gmra.mxu0 %v6657
        %v6795 = vpop.f32.mrf.mxu0
        %v6796 = vadd.f32 0.0, %v6795
        %v6797 = vpop.f32.mrf.mxu0
        %v6798 = vadd.f32 0.0, %v6797
        %6799 = vmatmul.bf16.gmra.mxu0 %v6658
        %v6800 = vpop.f32.mrf.mxu0
        %v6801 = vadd.f32 0.0, %v6800
        %v6802 = vpop.f32.mrf.mxu0
        %v6803 = vadd.f32 0.0, %v6802
        %6804 = vmatmul.bf16.gmra.mxu0 %v6659
        %v6805 = vpop.f32.mrf.mxu0
        %v6806 = vadd.f32 0.0, %v6805
        %v6807 = vpop.f32.mrf.mxu0
        %v6808 = vadd.f32 0.0, %v6807
        %6809 = vmatmul.bf16.gmra.mxu0 %v6660
        %v6810 = vpop.f32.mrf.mxu0
        %v6811 = vadd.f32 0.0, %v6810
        %v6812 = vpop.f32.mrf.mxu0
        %v6813 = vadd.f32 0.0, %v6812
        %6814 = vdwg.mxu0
        %v6815 = vadd.f32 %v6581, %v6736
        %v6816 = vadd.f32 %v6582, %v6738
        %v6817 = vadd.f32 %v6583, %v6741
        %v6818 = vadd.f32 %v6584, %v6743
        %v6819 = vadd.f32 %v6585, %v6746
        %v6820 = vadd.f32 %v6586, %v6748
        %v6821 = vadd.f32 %v6587, %v6751
        %v6822 = vadd.f32 %v6588, %v6753
        %v6823 = vadd.f32 %v6589, %v6756
        %v6824 = vadd.f32 %v6590, %v6758
        %v6825 = vadd.f32 %v6591, %v6761
        %v6826 = vadd.f32 %v6592, %v6763
        %v6827 = vadd.f32 %v6593, %v6766
        %v6828 = vadd.f32 %v6594, %v6768
        %v6829 = vadd.f32 %v6595, %v6771
        %v6830 = vadd.f32 %v6596, %v6773
        %v6831 = vadd.f32 %v6597, %v6776
        %v6832 = vadd.f32 %v6598, %v6778
        %v6833 = vadd.f32 %v6599, %v6781
        %v6834 = vadd.f32 %v6600, %v6783
        %v6835 = vadd.f32 %v6601, %v6786
        %v6836 = vadd.f32 %v6602, %v6788
        %v6837 = vadd.f32 %v6603, %v6791
        %v6838 = vadd.f32 %v6604, %v6793
        %v6839 = vadd.f32 %v6605, %v6796
        %v6840 = vadd.f32 %v6606, %v6798
        %v6841 = vadd.f32 %v6607, %v6801
        %v6842 = vadd.f32 %v6608, %v6803
        %v6843 = vadd.f32 %v6609, %v6806
        %v6844 = vadd.f32 %v6610, %v6808
        %v6845 = vadd.f32 %v6611, %v6811
        %v6846 = vadd.f32 %v6612, %v6813
        %v6847 = vld [vmem:[%s7] sm:$0x1]
        %v6849 = vperm.slane %v6847, 0
        %v6851 = vmul.f32 %v6815, %v6849
        %v6852 = vmul.f32 %v6816, %v6849
        %v6853 = vmul.f32 %v6817, %v6849
        %v6854 = vmul.f32 %v6818, %v6849
        %v6855 = vmul.f32 %v6819, %v6849
        %v6856 = vmul.f32 %v6820, %v6849
        %v6857 = vmul.f32 %v6821, %v6849
        %v6858 = vmul.f32 %v6822, %v6849
        %v6859 = vmul.f32 %v6823, %v6849
        %v6860 = vmul.f32 %v6824, %v6849
        %v6861 = vmul.f32 %v6825, %v6849
        %v6862 = vmul.f32 %v6826, %v6849
        %v6863 = vmul.f32 %v6827, %v6849
        %v6864 = vmul.f32 %v6828, %v6849
        %v6865 = vmul.f32 %v6829, %v6849
        %v6866 = vmul.f32 %v6830, %v6849
        %v6867 = vmul.f32 %v6831, %v6849
        %v6868 = vmul.f32 %v6832, %v6849
        %v6869 = vmul.f32 %v6833, %v6849
        %v6870 = vmul.f32 %v6834, %v6849
        %v6871 = vmul.f32 %v6835, %v6849
        %v6872 = vmul.f32 %v6836, %v6849
        %v6873 = vmul.f32 %v6837, %v6849
        %v6874 = vmul.f32 %v6838, %v6849
        %v6875 = vmul.f32 %v6839, %v6849
        %v6876 = vmul.f32 %v6840, %v6849
        %v6877 = vmul.f32 %v6841, %v6849
        %v6878 = vmul.f32 %v6842, %v6849
        %v6879 = vmul.f32 %v6843, %v6849
        %v6880 = vmul.f32 %v6844, %v6849
        %v6881 = vmul.f32 %v6845, %v6849
        %v6882 = vmul.f32 %v6846, %v6849
        %v6883 = vld [vmem:[%s8] sm:$0x1]
        %v6885 = vperm.slane %v6883, 0
        %v6887 = vadd.f32 %v6851, %v6885
        %v6888 = vadd.f32 %v6852, %v6885
        %v6889 = vadd.f32 %v6853, %v6885
        %v6890 = vadd.f32 %v6854, %v6885
        %v6891 = vadd.f32 %v6855, %v6885
        %v6892 = vadd.f32 %v6856, %v6885
        %v6893 = vadd.f32 %v6857, %v6885
        %v6894 = vadd.f32 %v6858, %v6885
        %v6895 = vadd.f32 %v6859, %v6885
        %v6896 = vadd.f32 %v6860, %v6885
        %v6897 = vadd.f32 %v6861, %v6885
        %v6898 = vadd.f32 %v6862, %v6885
        %v6899 = vadd.f32 %v6863, %v6885
        %v6900 = vadd.f32 %v6864, %v6885
        %v6901 = vadd.f32 %v6865, %v6885
        %v6902 = vadd.f32 %v6866, %v6885
        %v6903 = vadd.f32 %v6867, %v6885
        %v6904 = vadd.f32 %v6868, %v6885
        %v6905 = vadd.f32 %v6869, %v6885
        %v6906 = vadd.f32 %v6870, %v6885
        %v6907 = vadd.f32 %v6871, %v6885
        %v6908 = vadd.f32 %v6872, %v6885
        %v6909 = vadd.f32 %v6873, %v6885
        %v6910 = vadd.f32 %v6874, %v6885
        %v6911 = vadd.f32 %v6875, %v6885
        %v6912 = vadd.f32 %v6876, %v6885
        %v6913 = vadd.f32 %v6877, %v6885
        %v6914 = vadd.f32 %v6878, %v6885
        %v6915 = vadd.f32 %v6879, %v6885
        %v6916 = vadd.f32 %v6880, %v6885
        %v6917 = vadd.f32 %v6881, %v6885
        %v6918 = vadd.f32 %v6882, %v6885
        %v6919 = vmax.f32 %v6887, 0.0
        %v6920 = vmax.f32 %v6888, 0.0
        %v6921 = vmax.f32 %v6889, 0.0
        %v6922 = vmax.f32 %v6890, 0.0
        %v6923 = vmax.f32 %v6891, 0.0
        %v6924 = vmax.f32 %v6892, 0.0
        %v6925 = vmax.f32 %v6893, 0.0
        %v6926 = vmax.f32 %v6894, 0.0
        %v6927 = vmax.f32 %v6895, 0.0
        %v6928 = vmax.f32 %v6896, 0.0
        %v6929 = vmax.f32 %v6897, 0.0
        %v6930 = vmax.f32 %v6898, 0.0
        %v6931 = vmax.f32 %v6899, 0.0
        %v6932 = vmax.f32 %v6900, 0.0
        %v6933 = vmax.f32 %v6901, 0.0
        %v6934 = vmax.f32 %v6902, 0.0
        %v6935 = vmax.f32 %v6903, 0.0
        %v6936 = vmax.f32 %v6904, 0.0
        %v6937 = vmax.f32 %v6905, 0.0
        %v6938 = vmax.f32 %v6906, 0.0
        %v6939 = vmax.f32 %v6907, 0.0
        %v6940 = vmax.f32 %v6908, 0.0
        %v6941 = vmax.f32 %v6909, 0.0
        %v6942 = vmax.f32 %v6910, 0.0
        %v6943 = vmax.f32 %v6911, 0.0
        %v6944 = vmax.f32 %v6912, 0.0
        %v6945 = vmax.f32 %v6913, 0.0
        %v6946 = vmax.f32 %v6914, 0.0
        %v6947 = vmax.f32 %v6915, 0.0
        %v6948 = vmax.f32 %v6916, 0.0
        %v6949 = vmax.f32 %v6917, 0.0
        %v6950 = vmax.f32 %v6918, 0.0
        %6951 = vst [vmem:[#allocation3] sm:$0xff] 0.0
        %6952 = vst [vmem:[#allocation3 + $0x8] sm:$0xff] 0.0
        %6953 = vst [vmem:[#allocation3 + $0x10] sm:$0xff] 0.0
        %6954 = vst [vmem:[#allocation3 + $0x18] sm:$0x1] 0.0
        %6955 = vst [vmem:[#allocation3 + $0x20] sm:$0xff] 0.0
        %6956 = vst [vmem:[#allocation3 + $0x28] sm:$0xff] 0.0
        %6957 = vst [vmem:[#allocation3 + $0x30] sm:$0xff] 0.0
        %6958 = vst [vmem:[#allocation3 + $0x38] sm:$0x1] 0.0
        %6959 = vst [vmem:[#allocation3 + $0x40] sm:$0xff] 0.0
        %6960 = vst [vmem:[#allocation3 + $0x48] sm:$0xff] 0.0
        %6961 = vst [vmem:[#allocation3 + $0x50] sm:$0xff] 0.0
        %6962 = vst [vmem:[#allocation3 + $0x58] sm:$0x1] 0.0
        %6963 = vst [vmem:[#allocation3 + $0x60] sm:$0xff] 0.0
        %6964 = vst [vmem:[#allocation3 + $0x68] sm:$0xff] 0.0
        %6965 = vst [vmem:[#allocation3 + $0x70] sm:$0xff] 0.0
        %6966 = vst [vmem:[#allocation3 + $0x78] sm:$0x1] 0.0
        %6967 = vst [vmem:[#allocation3 + $0x80] sm:$0xff] 0.0
        %6968 = vst [vmem:[#allocation3 + $0x88] sm:$0xff] 0.0
        %6969 = vst [vmem:[#allocation3 + $0x90] sm:$0xff] 0.0
        %6970 = vst [vmem:[#allocation3 + $0x98] sm:$0x1] 0.0
        %6971 = vst [vmem:[#allocation3 + $0xa0] sm:$0xff] 0.0
        %6972 = vst [vmem:[#allocation3 + $0xa8] sm:$0xff] 0.0
        %6973 = vst [vmem:[#allocation3 + $0xb0] sm:$0xff] 0.0
        %6974 = vst [vmem:[#allocation3 + $0xb8] sm:$0x1] 0.0
        %6975 = vst [vmem:[#allocation3 + $0xc0] sm:$0xff] 0.0
        %6976 = vst [vmem:[#allocation3 + $0xc8] sm:$0xff] 0.0
        %6977 = vst [vmem:[#allocation3 + $0xd0] sm:$0xff] 0.0
        %6978 = vst [vmem:[#allocation3 + $0xd8] sm:$0x1] 0.0
        %6979 = vst [vmem:[#allocation3 + $0xe0] sm:$0xff] 0.0
        %6980 = vst [vmem:[#allocation3 + $0xe8] sm:$0xff] 0.0
        %6981 = vst [vmem:[#allocation3 + $0xf0] sm:$0xff] 0.0
        %6982 = vst [vmem:[#allocation3 + $0xf8] sm:$0x1] 0.0
        %6983 = vst [vmem:[#allocation3 + $0x100] sm:$0xff] 0.0
        %6984 = vst [vmem:[#allocation3 + $0x108] sm:$0xff] 0.0
        %6985 = vst [vmem:[#allocation3 + $0x110] sm:$0xff] 0.0
        %6986 = vst [vmem:[#allocation3 + $0x118] sm:$0x1] 0.0
        %6987 = vst [vmem:[#allocation3 + $0x120] sm:$0xff] 0.0
        %6988 = vst [vmem:[#allocation3 + $0x128] sm:$0xff] 0.0
        %6989 = vst [vmem:[#allocation3 + $0x130] sm:$0xff] 0.0
        %6990 = vst [vmem:[#allocation3 + $0x138] sm:$0x1] 0.0
        %6991 = vst [vmem:[#allocation3 + $0x140] sm:$0xff] 0.0
        %6992 = vst [vmem:[#allocation3 + $0x148] sm:$0xff] 0.0
        %6993 = vst [vmem:[#allocation3 + $0x150] sm:$0xff] 0.0
        %6994 = vst [vmem:[#allocation3 + $0x158] sm:$0x1] 0.0
        %6995 = vst [vmem:[#allocation3 + $0x160] sm:$0xff] 0.0
        %6996 = vst [vmem:[#allocation3 + $0x168] sm:$0xff] 0.0
        %6997 = vst [vmem:[#allocation3 + $0x170] sm:$0xff] 0.0
        %6998 = vst [vmem:[#allocation3 + $0x178] sm:$0x1] 0.0
        %6999 = vst [vmem:[#allocation3 + $0x180] sm:$0xff] 0.0
        %7000 = vst [vmem:[#allocation3 + $0x188] sm:$0xff] 0.0
        %7001 = vst [vmem:[#allocation3 + $0x190] sm:$0xff] 0.0
        %7002 = vst [vmem:[#allocation3 + $0x198] sm:$0x1] 0.0
        %7003 = vst [vmem:[#allocation3 + $0x1a0] sm:$0xff] 0.0
        %7004 = vst [vmem:[#allocation3 + $0x1a8] sm:$0xff] 0.0
        %7005 = vst [vmem:[#allocation3 + $0x1b0] sm:$0xff] 0.0
        %7006 = vst [vmem:[#allocation3 + $0x1b8] sm:$0x1] 0.0
        %7007 = vst [vmem:[#allocation3 + $0x1c0] sm:$0xff] 0.0
        %7008 = vst [vmem:[#allocation3 + $0x1c8] sm:$0xff] 0.0
        %7009 = vst [vmem:[#allocation3 + $0x1d0] sm:$0xff] 0.0
        %7010 = vst [vmem:[#allocation3 + $0x1d8] sm:$0x1] 0.0
        %7011 = vst [vmem:[#allocation3 + $0x1e0] sm:$0xff] 0.0
        %7012 = vst [vmem:[#allocation3 + $0x1e8] sm:$0xff] 0.0
        %7013 = vst [vmem:[#allocation3 + $0x1f0] sm:$0xff] 0.0
        %7014 = vst [vmem:[#allocation3 + $0x1f8] sm:$0x1] 0.0
        %7015 = vst [vmem:[#allocation3 + $0x200] sm:$0xff] 0.0
        %7016 = vst [vmem:[#allocation3 + $0x208] sm:$0xff] 0.0
        %7017 = vst [vmem:[#allocation3 + $0x210] sm:$0xff] 0.0
        %7018 = vst [vmem:[#allocation3 + $0x218] sm:$0x1] 0.0
        %7019 = vst [vmem:[#allocation3 + $0x220] sm:$0xff] 0.0
        %7020 = vst [vmem:[#allocation3 + $0x228] sm:$0xff] 0.0
        %7021 = vst [vmem:[#allocation3 + $0x230] sm:$0xff] 0.0
        %7022 = vst [vmem:[#allocation3 + $0x238] sm:$0x1] 0.0
        %s7023 = scalar_lea.vmem [#allocation3], 32
        %7024 = vst [vmem:[%s7023 + $0x8] sm:$0xff] %v6919
        %7025 = vst [vmem:[%s7023 + $0x10] sm:$0xff] %v6920
        %7026 = vst [vmem:[%s7023 + $0x28] sm:$0xff] %v6921
        %7027 = vst [vmem:[%s7023 + $0x30] sm:$0xff] %v6922
        %7028 = vst [vmem:[%s7023 + $0x48] sm:$0xff] %v6923
        %7029 = vst [vmem:[%s7023 + $0x50] sm:$0xff] %v6924
        %7030 = vst [vmem:[%s7023 + $0x68] sm:$0xff] %v6925
        %7031 = vst [vmem:[%s7023 + $0x70] sm:$0xff] %v6926
        %7032 = vst [vmem:[%s7023 + $0x88] sm:$0xff] %v6927
        %7033 = vst [vmem:[%s7023 + $0x90] sm:$0xff] %v6928
        %7034 = vst [vmem:[%s7023 + $0xa8] sm:$0xff] %v6929
        %7035 = vst [vmem:[%s7023 + $0xb0] sm:$0xff] %v6930
        %7036 = vst [vmem:[%s7023 + $0xc8] sm:$0xff] %v6931
        %7037 = vst [vmem:[%s7023 + $0xd0] sm:$0xff] %v6932
        %7038 = vst [vmem:[%s7023 + $0xe8] sm:$0xff] %v6933
        %7039 = vst [vmem:[%s7023 + $0xf0] sm:$0xff] %v6934
        %7040 = vst [vmem:[%s7023 + $0x108] sm:$0xff] %v6935
        %7041 = vst [vmem:[%s7023 + $0x110] sm:$0xff] %v6936
        %7042 = vst [vmem:[%s7023 + $0x128] sm:$0xff] %v6937
        %7043 = vst [vmem:[%s7023 + $0x130] sm:$0xff] %v6938
        %7044 = vst [vmem:[%s7023 + $0x148] sm:$0xff] %v6939
        %7045 = vst [vmem:[%s7023 + $0x150] sm:$0xff] %v6940
        %7046 = vst [vmem:[%s7023 + $0x168] sm:$0xff] %v6941
        %7047 = vst [vmem:[%s7023 + $0x170] sm:$0xff] %v6942
        %7048 = vst [vmem:[%s7023 + $0x188] sm:$0xff] %v6943
        %7049 = vst [vmem:[%s7023 + $0x190] sm:$0xff] %v6944
        %7050 = vst [vmem:[%s7023 + $0x1a8] sm:$0xff] %v6945
        %7051 = vst [vmem:[%s7023 + $0x1b0] sm:$0xff] %v6946
        %7052 = vst [vmem:[%s7023 + $0x1c8] sm:$0xff] %v6947
        %7053 = vst [vmem:[%s7023 + $0x1d0] sm:$0xff] %v6948
        %7054 = vst [vmem:[%s7023 + $0x1e8] sm:$0xff] %v6949
        %7055 = vst [vmem:[%s7023 + $0x1f0] sm:$0xff] %v6950
        %v7056 = vld [vmem:[%s4] sm:$0xf]
        %v7057 = vld [vmem:[%s4 + $0x4] sm:$0xf]
        %v7058 = vld [vmem:[%s4 + $0x8] sm:$0xf]
        %v7059 = vld [vmem:[%s4 + $0xc] sm:$0xf]
        %v7060 = vld [vmem:[%s4 + $0x10] sm:$0xf]
        %v7061 = vld [vmem:[%s4 + $0x14] sm:$0xf]
        %v7062 = vld [vmem:[%s4 + $0x18] sm:$0xf]
        %v7063 = vld [vmem:[%s4 + $0x1c] sm:$0xf]
        %v7064 = vld [vmem:[%s4 + $0x20] sm:$0xf]
        %v7065 = vld [vmem:[%s4 + $0x24] sm:$0xf]
        %v7066 = vld [vmem:[%s4 + $0x28] sm:$0xf]
        %v7067 = vld [vmem:[%s4 + $0x2c] sm:$0xf]
        %v7068 = vld [vmem:[%s4 + $0x30] sm:$0xf]
        %v7069 = vld [vmem:[%s4 + $0x34] sm:$0xf]
        %v7070 = vld [vmem:[%s4 + $0x38] sm:$0xf]
        %v7071 = vld [vmem:[%s4 + $0x3c] sm:$0xf]
        %v7072 = vld [vmem:[#allocation3 + $0x7] sm:$0xff]
        %v7073 = vld [vmem:[#allocation3 + $0xf] sm:$0xff]
        %v7074 = vld [vmem:[#allocation3 + $0x27] sm:$0xff]
        %v7075 = vld [vmem:[#allocation3 + $0x2f] sm:$0xff]
        %v7076 = vld [vmem:[#allocation3 + $0x47] sm:$0xff]
        %v7077 = vld [vmem:[#allocation3 + $0x4f] sm:$0xff]
        %v7078 = vld [vmem:[#allocation3 + $0x67] sm:$0xff]
        %v7079 = vld [vmem:[#allocation3 + $0x6f] sm:$0xff]
        %v7080 = vld [vmem:[#allocation3 + $0x87] sm:$0xff]
        %v7081 = vld [vmem:[#allocation3 + $0x8f] sm:$0xff]
        %v7082 = vld [vmem:[#allocation3 + $0xa7] sm:$0xff]
        %v7083 = vld [vmem:[#allocation3 + $0xaf] sm:$0xff]
        %v7084 = vld [vmem:[#allocation3 + $0xc7] sm:$0xff]
        %v7085 = vld [vmem:[#allocation3 + $0xcf] sm:$0xff]
        %v7086 = vld [vmem:[#allocation3 + $0xe7] sm:$0xff]
        %v7087 = vld [vmem:[#allocation3 + $0xef] sm:$0xff]
        %v7088 = vld [vmem:[#allocation3 + $0x107] sm:$0xff]
        %v7089 = vld [vmem:[#allocation3 + $0x10f] sm:$0xff]
        %v7090 = vld [vmem:[#allocation3 + $0x127] sm:$0xff]
        %v7091 = vld [vmem:[#allocation3 + $0x12f] sm:$0xff]
        %v7092 = vld [vmem:[#allocation3 + $0x147] sm:$0xff]
        %v7093 = vld [vmem:[#allocation3 + $0x14f] sm:$0xff]
        %v7094 = vld [vmem:[#allocation3 + $0x167] sm:$0xff]
        %v7095 = vld [vmem:[#allocation3 + $0x16f] sm:$0xff]
        %v7096 = vld [vmem:[#allocation3 + $0x187] sm:$0xff]
        %v7097 = vld [vmem:[#allocation3 + $0x18f] sm:$0xff]
        %v7098 = vld [vmem:[#allocation3 + $0x1a7] sm:$0xff]
        %v7099 = vld [vmem:[#allocation3 + $0x1af] sm:$0xff]
        %v7100 = vld [vmem:[#allocation3 + $0x1c7] sm:$0xff]
        %v7101 = vld [vmem:[#allocation3 + $0x1cf] sm:$0xff]
        %v7102 = vld [vmem:[#allocation3 + $0x1e7] sm:$0xff]
        %v7103 = vld [vmem:[#allocation3 + $0x1ef] sm:$0xff]
        %v7104 = vpack.c.bf16 %v7073, %v7072
        %v7105 = vpack.c.bf16 %v7075, %v7074
        %v7106 = vpack.c.bf16 %v7077, %v7076
        %v7107 = vpack.c.bf16 %v7079, %v7078
        %v7108 = vpack.c.bf16 %v7081, %v7080
        %v7109 = vpack.c.bf16 %v7083, %v7082
        %v7110 = vpack.c.bf16 %v7085, %v7084
        %v7111 = vpack.c.bf16 %v7087, %v7086
        %v7112 = vpack.c.bf16 %v7089, %v7088
        %v7113 = vpack.c.bf16 %v7091, %v7090
        %v7114 = vpack.c.bf16 %v7093, %v7092
        %v7115 = vpack.c.bf16 %v7095, %v7094
        %v7116 = vpack.c.bf16 %v7097, %v7096
        %v7117 = vpack.c.bf16 %v7099, %v7098
        %v7118 = vpack.c.bf16 %v7101, %v7100
        %v7119 = vpack.c.bf16 %v7103, %v7102
        %v7120 = vld [vmem:[#allocation7] sm:$0xf]
        %v7121 = vld [vmem:[#allocation7 + $0x4] sm:$0xf]
        %v7122 = vld [vmem:[#allocation7 + $0x8] sm:$0xf]
        %v7123 = vld [vmem:[#allocation7 + $0xc] sm:$0xf]
        %v7124 = vld [vmem:[#allocation7 + $0x10] sm:$0xf]
        %v7125 = vld [vmem:[#allocation7 + $0x14] sm:$0xf]
        %v7126 = vld [vmem:[#allocation7 + $0x18] sm:$0xf]
        %v7127 = vld [vmem:[#allocation7 + $0x1c] sm:$0xf]
        %v7128 = vld [vmem:[#allocation7 + $0x20] sm:$0xf]
        %v7129 = vld [vmem:[#allocation7 + $0x24] sm:$0xf]
        %v7130 = vld [vmem:[#allocation7 + $0x28] sm:$0xf]
        %v7131 = vld [vmem:[#allocation7 + $0x2c] sm:$0xf]
        %v7132 = vld [vmem:[#allocation7 + $0x30] sm:$0xf]
        %v7133 = vld [vmem:[#allocation7 + $0x34] sm:$0xf]
        %v7134 = vld [vmem:[#allocation7 + $0x38] sm:$0xf]
        %v7135 = vld [vmem:[#allocation7 + $0x3c] sm:$0xf]
        %v7152 = vunpack.c.l.b16 %v7120
        %v7153 = vunpack.c.l.b16 %v7121
        %v7154 = vunpack.c.l.b16 %v7122
        %v7155 = vunpack.c.l.b16 %v7123
        %v7156 = vunpack.c.l.b16 %v7124
        %v7157 = vunpack.c.l.b16 %v7125
        %v7158 = vunpack.c.l.b16 %v7126
        %v7159 = vunpack.c.l.b16 %v7127
        %v7160 = vunpack.c.l.b16 %v7128
        %v7161 = vunpack.c.l.b16 %v7129
        %v7162 = vunpack.c.l.b16 %v7130
        %v7163 = vunpack.c.l.b16 %v7131
        %v7164 = vunpack.c.l.b16 %v7132
        %v7165 = vunpack.c.l.b16 %v7133
        %v7166 = vunpack.c.l.b16 %v7134
        %v7167 = vunpack.c.l.b16 %v7135
        %v7168 = vpack.c.b16 %v7153, %v7152
        %v7169 = vpack.c.b16 %v7155, %v7154
        %v7170 = vpack.c.b16 %v7157, %v7156
        %v7171 = vpack.c.b16 %v7159, %v7158
        %v7172 = vpack.c.b16 %v7161, %v7160
        %v7173 = vpack.c.b16 %v7163, %v7162
        %v7174 = vpack.c.b16 %v7165, %v7164
        %v7175 = vpack.c.b16 %v7167, %v7166
        %7184 = vmatpush.bf16.msra.mxu0 %v7175
        %7185 = vmatpush.bf16.msra.mxu0 %v7174
        %7186 = vmatpush.bf16.msra.mxu0 %v7173
        %7187 = vmatpush.bf16.msra.mxu0 %v7172
        %7188 = vmatpush.bf16.msra.mxu0 %v7171
        %7189 = vmatpush.bf16.msra.mxu0 %v7170
        %7190 = vmatpush.bf16.msra.mxu0 %v7169
        %7191 = vmatpush.bf16.msra.mxu0 %v7168
        %7192 = vmatmul.bf16.gmra.mxu0 %v7104
        %v7193 = vpop.f32.mrf.mxu0
        %v7194 = vadd.f32 0.0, %v7193
        %v7195 = vpop.f32.mrf.mxu0
        %v7196 = vadd.f32 0.0, %v7195
        %7197 = vmatmul.bf16.gmra.mxu0 %v7105
        %v7198 = vpop.f32.mrf.mxu0
        %v7199 = vadd.f32 0.0, %v7198
        %v7200 = vpop.f32.mrf.mxu0
        %v7201 = vadd.f32 0.0, %v7200
        %7202 = vmatmul.bf16.gmra.mxu0 %v7106
        %v7203 = vpop.f32.mrf.mxu0
        %v7204 = vadd.f32 0.0, %v7203
        %v7205 = vpop.f32.mrf.mxu0
        %v7206 = vadd.f32 0.0, %v7205
        %7207 = vmatmul.bf16.gmra.mxu0 %v7107
        %v7208 = vpop.f32.mrf.mxu0
        %v7209 = vadd.f32 0.0, %v7208
        %v7210 = vpop.f32.mrf.mxu0
        %v7211 = vadd.f32 0.0, %v7210
        %7212 = vmatmul.bf16.gmra.mxu0 %v7108
        %v7213 = vpop.f32.mrf.mxu0
        %v7214 = vadd.f32 0.0, %v7213
        %v7215 = vpop.f32.mrf.mxu0
        %v7216 = vadd.f32 0.0, %v7215
        %7217 = vmatmul.bf16.gmra.mxu0 %v7109
        %v7218 = vpop.f32.mrf.mxu0
        %v7219 = vadd.f32 0.0, %v7218
        %v7220 = vpop.f32.mrf.mxu0
        %v7221 = vadd.f32 0.0, %v7220
        %7222 = vmatmul.bf16.gmra.mxu0 %v7110
        %v7223 = vpop.f32.mrf.mxu0
        %v7224 = vadd.f32 0.0, %v7223
        %v7225 = vpop.f32.mrf.mxu0
        %v7226 = vadd.f32 0.0, %v7225
        %7227 = vmatmul.bf16.gmra.mxu0 %v7111
        %v7228 = vpop.f32.mrf.mxu0
        %v7229 = vadd.f32 0.0, %v7228
        %v7230 = vpop.f32.mrf.mxu0
        %v7231 = vadd.f32 0.0, %v7230
        %7232 = vmatmul.bf16.gmra.mxu0 %v7112
        %v7233 = vpop.f32.mrf.mxu0
        %v7234 = vadd.f32 0.0, %v7233
        %v7235 = vpop.f32.mrf.mxu0
        %v7236 = vadd.f32 0.0, %v7235
        %7237 = vmatmul.bf16.gmra.mxu0 %v7113
        %v7238 = vpop.f32.mrf.mxu0
        %v7239 = vadd.f32 0.0, %v7238
        %v7240 = vpop.f32.mrf.mxu0
        %v7241 = vadd.f32 0.0, %v7240
        %7242 = vmatmul.bf16.gmra.mxu0 %v7114
        %v7243 = vpop.f32.mrf.mxu0
        %v7244 = vadd.f32 0.0, %v7243
        %v7245 = vpop.f32.mrf.mxu0
        %v7246 = vadd.f32 0.0, %v7245
        %7247 = vmatmul.bf16.gmra.mxu0 %v7115
        %v7248 = vpop.f32.mrf.mxu0
        %v7249 = vadd.f32 0.0, %v7248
        %v7250 = vpop.f32.mrf.mxu0
        %v7251 = vadd.f32 0.0, %v7250
        %7252 = vmatmul.bf16.gmra.mxu0 %v7116
        %v7253 = vpop.f32.mrf.mxu0
        %v7254 = vadd.f32 0.0, %v7253
        %v7255 = vpop.f32.mrf.mxu0
        %v7256 = vadd.f32 0.0, %v7255
        %7257 = vmatmul.bf16.gmra.mxu0 %v7117
        %v7258 = vpop.f32.mrf.mxu0
        %v7259 = vadd.f32 0.0, %v7258
        %v7260 = vpop.f32.mrf.mxu0
        %v7261 = vadd.f32 0.0, %v7260
        %7262 = vmatmul.bf16.gmra.mxu0 %v7118
        %v7263 = vpop.f32.mrf.mxu0
        %v7264 = vadd.f32 0.0, %v7263
        %v7265 = vpop.f32.mrf.mxu0
        %v7266 = vadd.f32 0.0, %v7265
        %7267 = vmatmul.bf16.gmra.mxu0 %v7119
        %v7268 = vpop.f32.mrf.mxu0
        %v7269 = vadd.f32 0.0, %v7268
        %v7270 = vpop.f32.mrf.mxu0
        %v7271 = vadd.f32 0.0, %v7270
        %7272 = vdwg.mxu0
        %v7289 = vunpack.c.l.b16 %v7056
        %v7290 = vunpack.c.l.b16 %v7057
        %v7291 = vunpack.c.l.b16 %v7058
        %v7292 = vunpack.c.l.b16 %v7059
        %v7293 = vunpack.c.l.b16 %v7060
        %v7294 = vunpack.c.l.b16 %v7061
        %v7295 = vunpack.c.l.b16 %v7062
        %v7296 = vunpack.c.l.b16 %v7063
        %v7297 = vunpack.c.l.b16 %v7064
        %v7298 = vunpack.c.l.b16 %v7065
        %v7299 = vunpack.c.l.b16 %v7066
        %v7300 = vunpack.c.l.b16 %v7067
        %v7301 = vunpack.c.l.b16 %v7068
        %v7302 = vunpack.c.l.b16 %v7069
        %v7303 = vunpack.c.l.b16 %v7070
        %v7304 = vunpack.c.l.b16 %v7071
        %v7305 = vpack.c.b16 %v7290, %v7289
        %v7306 = vpack.c.b16 %v7292, %v7291
        %v7307 = vpack.c.b16 %v7294, %v7293
        %v7308 = vpack.c.b16 %v7296, %v7295
        %v7309 = vpack.c.b16 %v7298, %v7297
        %v7310 = vpack.c.b16 %v7300, %v7299
        %v7311 = vpack.c.b16 %v7302, %v7301
        %v7312 = vpack.c.b16 %v7304, %v7303
        %7321 = vmatpush.bf16.msra.mxu0 %v7312
        %7322 = vmatpush.bf16.msra.mxu0 %v7311
        %7323 = vmatpush.bf16.msra.mxu0 %v7310
        %7324 = vmatpush.bf16.msra.mxu0 %v7309
        %7325 = vmatpush.bf16.msra.mxu0 %v7308
        %7326 = vmatpush.bf16.msra.mxu0 %v7307
        %7327 = vmatpush.bf16.msra.mxu0 %v7306
        %7328 = vmatpush.bf16.msra.mxu0 %v7305
        %7329 = vmatmul.bf16.gmra.mxu0 %v4684
        %v7330 = vpop.f32.mrf.mxu0
        %v7331 = vadd.f32 %v7194, %v7330
        %v7332 = vpop.f32.mrf.mxu0
        %v7333 = vadd.f32 %v7196, %v7332
        %7334 = vmatmul.bf16.gmra.mxu0 %v4685
        %v7335 = vpop.f32.mrf.mxu0
        %v7336 = vadd.f32 %v7199, %v7335
        %v7337 = vpop.f32.mrf.mxu0
        %v7338 = vadd.f32 %v7201, %v7337
        %7339 = vmatmul.bf16.gmra.mxu0 %v4686
        %v7340 = vpop.f32.mrf.mxu0
        %v7341 = vadd.f32 %v7204, %v7340
        %v7342 = vpop.f32.mrf.mxu0
        %v7343 = vadd.f32 %v7206, %v7342
        %7344 = vmatmul.bf16.gmra.mxu0 %v4687
        %v7345 = vpop.f32.mrf.mxu0
        %v7346 = vadd.f32 %v7209, %v7345
        %v7347 = vpop.f32.mrf.mxu0
        %v7348 = vadd.f32 %v7211, %v7347
        %7349 = vmatmul.bf16.gmra.mxu0 %v4688
        %v7350 = vpop.f32.mrf.mxu0
        %v7351 = vadd.f32 %v7214, %v7350
        %v7352 = vpop.f32.mrf.mxu0
        %v7353 = vadd.f32 %v7216, %v7352
        %7354 = vmatmul.bf16.gmra.mxu0 %v4689
        %v7355 = vpop.f32.mrf.mxu0
        %v7356 = vadd.f32 %v7219, %v7355
        %v7357 = vpop.f32.mrf.mxu0
        %v7358 = vadd.f32 %v7221, %v7357
        %7359 = vmatmul.bf16.gmra.mxu0 %v4690
        %v7360 = vpop.f32.mrf.mxu0
        %v7361 = vadd.f32 %v7224, %v7360
        %v7362 = vpop.f32.mrf.mxu0
        %v7363 = vadd.f32 %v7226, %v7362
        %7364 = vmatmul.bf16.gmra.mxu0 %v4691
        %v7365 = vpop.f32.mrf.mxu0
        %v7366 = vadd.f32 %v7229, %v7365
        %v7367 = vpop.f32.mrf.mxu0
        %v7368 = vadd.f32 %v7231, %v7367
        %7369 = vmatmul.bf16.gmra.mxu0 %v4692
        %v7370 = vpop.f32.mrf.mxu0
        %v7371 = vadd.f32 %v7234, %v7370
        %v7372 = vpop.f32.mrf.mxu0
        %v7373 = vadd.f32 %v7236, %v7372
        %7374 = vmatmul.bf16.gmra.mxu0 %v4693
        %v7375 = vpop.f32.mrf.mxu0
        %v7376 = vadd.f32 %v7239, %v7375
        %v7377 = vpop.f32.mrf.mxu0
        %v7378 = vadd.f32 %v7241, %v7377
        %7379 = vmatmul.bf16.gmra.mxu0 %v4694
        %v7380 = vpop.f32.mrf.mxu0
        %v7381 = vadd.f32 %v7244, %v7380
        %v7382 = vpop.f32.mrf.mxu0
        %v7383 = vadd.f32 %v7246, %v7382
        %7384 = vmatmul.bf16.gmra.mxu0 %v4695
        %v7385 = vpop.f32.mrf.mxu0
        %v7386 = vadd.f32 %v7249, %v7385
        %v7387 = vpop.f32.mrf.mxu0
        %v7388 = vadd.f32 %v7251, %v7387
        %7389 = vmatmul.bf16.gmra.mxu0 %v4696
        %v7390 = vpop.f32.mrf.mxu0
        %v7391 = vadd.f32 %v7254, %v7390
        %v7392 = vpop.f32.mrf.mxu0
        %v7393 = vadd.f32 %v7256, %v7392
        %7394 = vmatmul.bf16.gmra.mxu0 %v4697
        %v7395 = vpop.f32.mrf.mxu0
        %v7396 = vadd.f32 %v7259, %v7395
        %v7397 = vpop.f32.mrf.mxu0
        %v7398 = vadd.f32 %v7261, %v7397
        %7399 = vmatmul.bf16.gmra.mxu0 %v4698
        %v7400 = vpop.f32.mrf.mxu0
        %v7401 = vadd.f32 %v7264, %v7400
        %v7402 = vpop.f32.mrf.mxu0
        %v7403 = vadd.f32 %v7266, %v7402
        %7404 = vmatmul.bf16.gmra.mxu0 %v4699
        %v7405 = vpop.f32.mrf.mxu0
        %v7406 = vadd.f32 %v7269, %v7405
        %v7407 = vpop.f32.mrf.mxu0
        %v7408 = vadd.f32 %v7271, %v7407
        %7409 = vdwg.mxu0
        %v7410 = vld [vmem:[#allocation3 + $0x8] sm:$0xff]
        %v7411 = vld [vmem:[#allocation3 + $0x10] sm:$0xff]
        %v7412 = vld [vmem:[#allocation3 + $0x28] sm:$0xff]
        %v7413 = vld [vmem:[#allocation3 + $0x30] sm:$0xff]
        %v7414 = vld [vmem:[#allocation3 + $0x48] sm:$0xff]
        %v7415 = vld [vmem:[#allocation3 + $0x50] sm:$0xff]
        %v7416 = vld [vmem:[#allocation3 + $0x68] sm:$0xff]
        %v7417 = vld [vmem:[#allocation3 + $0x70] sm:$0xff]
        %v7418 = vld [vmem:[#allocation3 + $0x88] sm:$0xff]
        %v7419 = vld [vmem:[#allocation3 + $0x90] sm:$0xff]
        %v7420 = vld [vmem:[#allocation3 + $0xa8] sm:$0xff]
        %v7421 = vld [vmem:[#allocation3 + $0xb0] sm:$0xff]
        %v7422 = vld [vmem:[#allocation3 + $0xc8] sm:$0xff]
        %v7423 = vld [vmem:[#allocation3 + $0xd0] sm:$0xff]
        %v7424 = vld [vmem:[#allocation3 + $0xe8] sm:$0xff]
        %v7425 = vld [vmem:[#allocation3 + $0xf0] sm:$0xff]
        %v7426 = vld [vmem:[#allocation3 + $0x108] sm:$0xff]
        %v7427 = vld [vmem:[#allocation3 + $0x110] sm:$0xff]
        %v7428 = vld [vmem:[#allocation3 + $0x128] sm:$0xff]
        %v7429 = vld [vmem:[#allocation3 + $0x130] sm:$0xff]
        %v7430 = vld [vmem:[#allocation3 + $0x148] sm:$0xff]
        %v7431 = vld [vmem:[#allocation3 + $0x150] sm:$0xff]
        %v7432 = vld [vmem:[#allocation3 + $0x168] sm:$0xff]
        %v7433 = vld [vmem:[#allocation3 + $0x170] sm:$0xff]
        %v7434 = vld [vmem:[#allocation3 + $0x188] sm:$0xff]
        %v7435 = vld [vmem:[#allocation3 + $0x190] sm:$0xff]
        %v7436 = vld [vmem:[#allocation3 + $0x1a8] sm:$0xff]
        %v7437 = vld [vmem:[#allocation3 + $0x1b0] sm:$0xff]
        %v7438 = vld [vmem:[#allocation3 + $0x1c8] sm:$0xff]
        %v7439 = vld [vmem:[#allocation3 + $0x1d0] sm:$0xff]
        %v7440 = vld [vmem:[#allocation3 + $0x1e8] sm:$0xff]
        %v7441 = vld [vmem:[#allocation3 + $0x1f0] sm:$0xff]
        %v7442 = vpack.c.bf16 %v7411, %v7410
        %v7443 = vpack.c.bf16 %v7413, %v7412
        %v7444 = vpack.c.bf16 %v7415, %v7414
        %v7445 = vpack.c.bf16 %v7417, %v7416
        %v7446 = vpack.c.bf16 %v7419, %v7418
        %v7447 = vpack.c.bf16 %v7421, %v7420
        %v7448 = vpack.c.bf16 %v7423, %v7422
        %v7449 = vpack.c.bf16 %v7425, %v7424
        %v7450 = vpack.c.bf16 %v7427, %v7426
        %v7451 = vpack.c.bf16 %v7429, %v7428
        %v7452 = vpack.c.bf16 %v7431, %v7430
        %v7453 = vpack.c.bf16 %v7433, %v7432
        %v7454 = vpack.c.bf16 %v7435, %v7434
        %v7455 = vpack.c.bf16 %v7437, %v7436
        %v7456 = vpack.c.bf16 %v7439, %v7438
        %v7457 = vpack.c.bf16 %v7441, %v7440
        %s7458 = scalar_lea.vmem [#allocation7], 64
        %v7459 = vld [vmem:[%s7458] sm:$0xf]
        %v7460 = vld [vmem:[%s7458 + $0x4] sm:$0xf]
        %v7461 = vld [vmem:[%s7458 + $0x8] sm:$0xf]
        %v7462 = vld [vmem:[%s7458 + $0xc] sm:$0xf]
        %v7463 = vld [vmem:[%s7458 + $0x10] sm:$0xf]
        %v7464 = vld [vmem:[%s7458 + $0x14] sm:$0xf]
        %v7465 = vld [vmem:[%s7458 + $0x18] sm:$0xf]
        %v7466 = vld [vmem:[%s7458 + $0x1c] sm:$0xf]
        %v7467 = vld [vmem:[%s7458 + $0x20] sm:$0xf]
        %v7468 = vld [vmem:[%s7458 + $0x24] sm:$0xf]
        %v7469 = vld [vmem:[%s7458 + $0x28] sm:$0xf]
        %v7470 = vld [vmem:[%s7458 + $0x2c] sm:$0xf]
        %v7471 = vld [vmem:[%s7458 + $0x30] sm:$0xf]
        %v7472 = vld [vmem:[%s7458 + $0x34] sm:$0xf]
        %v7473 = vld [vmem:[%s7458 + $0x38] sm:$0xf]
        %v7474 = vld [vmem:[%s7458 + $0x3c] sm:$0xf]
        %v7491 = vunpack.c.l.b16 %v7459
        %v7492 = vunpack.c.l.b16 %v7460
        %v7493 = vunpack.c.l.b16 %v7461
        %v7494 = vunpack.c.l.b16 %v7462
        %v7495 = vunpack.c.l.b16 %v7463
        %v7496 = vunpack.c.l.b16 %v7464
        %v7497 = vunpack.c.l.b16 %v7465
        %v7498 = vunpack.c.l.b16 %v7466
        %v7499 = vunpack.c.l.b16 %v7467
        %v7500 = vunpack.c.l.b16 %v7468
        %v7501 = vunpack.c.l.b16 %v7469
        %v7502 = vunpack.c.l.b16 %v7470
        %v7503 = vunpack.c.l.b16 %v7471
        %v7504 = vunpack.c.l.b16 %v7472
        %v7505 = vunpack.c.l.b16 %v7473
        %v7506 = vunpack.c.l.b16 %v7474
        %v7507 = vpack.c.b16 %v7492, %v7491
        %v7508 = vpack.c.b16 %v7494, %v7493
        %v7509 = vpack.c.b16 %v7496, %v7495
        %v7510 = vpack.c.b16 %v7498, %v7497
        %v7511 = vpack.c.b16 %v7500, %v7499
        %v7512 = vpack.c.b16 %v7502, %v7501
        %v7513 = vpack.c.b16 %v7504, %v7503
        %v7514 = vpack.c.b16 %v7506, %v7505
        %7523 = vmatpush.bf16.msra.mxu0 %v7514
        %7524 = vmatpush.bf16.msra.mxu0 %v7513
        %7525 = vmatpush.bf16.msra.mxu0 %v7512
        %7526 = vmatpush.bf16.msra.mxu0 %v7511
        %7527 = vmatpush.bf16.msra.mxu0 %v7510
        %7528 = vmatpush.bf16.msra.mxu0 %v7509
        %7529 = vmatpush.bf16.msra.mxu0 %v7508
        %7530 = vmatpush.bf16.msra.mxu0 %v7507
        %7531 = vmatmul.bf16.gmra.mxu0 %v7442
        %v7532 = vpop.f32.mrf.mxu0
        %v7533 = vadd.f32 0.0, %v7532
        %v7534 = vpop.f32.mrf.mxu0
        %v7535 = vadd.f32 0.0, %v7534
        %7536 = vmatmul.bf16.gmra.mxu0 %v7443
        %v7537 = vpop.f32.mrf.mxu0
        %v7538 = vadd.f32 0.0, %v7537
        %v7539 = vpop.f32.mrf.mxu0
        %v7540 = vadd.f32 0.0, %v7539
        %7541 = vmatmul.bf16.gmra.mxu0 %v7444
        %v7542 = vpop.f32.mrf.mxu0
        %v7543 = vadd.f32 0.0, %v7542
        %v7544 = vpop.f32.mrf.mxu0
        %v7545 = vadd.f32 0.0, %v7544
        %7546 = vmatmul.bf16.gmra.mxu0 %v7445
        %v7547 = vpop.f32.mrf.mxu0
        %v7548 = vadd.f32 0.0, %v7547
        %v7549 = vpop.f32.mrf.mxu0
        %v7550 = vadd.f32 0.0, %v7549
        %7551 = vmatmul.bf16.gmra.mxu0 %v7446
        %v7552 = vpop.f32.mrf.mxu0
        %v7553 = vadd.f32 0.0, %v7552
        %v7554 = vpop.f32.mrf.mxu0
        %v7555 = vadd.f32 0.0, %v7554
        %7556 = vmatmul.bf16.gmra.mxu0 %v7447
        %v7557 = vpop.f32.mrf.mxu0
        %v7558 = vadd.f32 0.0, %v7557
        %v7559 = vpop.f32.mrf.mxu0
        %v7560 = vadd.f32 0.0, %v7559
        %7561 = vmatmul.bf16.gmra.mxu0 %v7448
        %v7562 = vpop.f32.mrf.mxu0
        %v7563 = vadd.f32 0.0, %v7562
        %v7564 = vpop.f32.mrf.mxu0
        %v7565 = vadd.f32 0.0, %v7564
        %7566 = vmatmul.bf16.gmra.mxu0 %v7449
        %v7567 = vpop.f32.mrf.mxu0
        %v7568 = vadd.f32 0.0, %v7567
        %v7569 = vpop.f32.mrf.mxu0
        %v7570 = vadd.f32 0.0, %v7569
        %7571 = vmatmul.bf16.gmra.mxu0 %v7450
        %v7572 = vpop.f32.mrf.mxu0
        %v7573 = vadd.f32 0.0, %v7572
        %v7574 = vpop.f32.mrf.mxu0
        %v7575 = vadd.f32 0.0, %v7574
        %7576 = vmatmul.bf16.gmra.mxu0 %v7451
        %v7577 = vpop.f32.mrf.mxu0
        %v7578 = vadd.f32 0.0, %v7577
        %v7579 = vpop.f32.mrf.mxu0
        %v7580 = vadd.f32 0.0, %v7579
        %7581 = vmatmul.bf16.gmra.mxu0 %v7452
        %v7582 = vpop.f32.mrf.mxu0
        %v7583 = vadd.f32 0.0, %v7582
        %v7584 = vpop.f32.mrf.mxu0
        %v7585 = vadd.f32 0.0, %v7584
        %7586 = vmatmul.bf16.gmra.mxu0 %v7453
        %v7587 = vpop.f32.mrf.mxu0
        %v7588 = vadd.f32 0.0, %v7587
        %v7589 = vpop.f32.mrf.mxu0
        %v7590 = vadd.f32 0.0, %v7589
        %7591 = vmatmul.bf16.gmra.mxu0 %v7454
        %v7592 = vpop.f32.mrf.mxu0
        %v7593 = vadd.f32 0.0, %v7592
        %v7594 = vpop.f32.mrf.mxu0
        %v7595 = vadd.f32 0.0, %v7594
        %7596 = vmatmul.bf16.gmra.mxu0 %v7455
        %v7597 = vpop.f32.mrf.mxu0
        %v7598 = vadd.f32 0.0, %v7597
        %v7599 = vpop.f32.mrf.mxu0
        %v7600 = vadd.f32 0.0, %v7599
        %7601 = vmatmul.bf16.gmra.mxu0 %v7456
        %v7602 = vpop.f32.mrf.mxu0
        %v7603 = vadd.f32 0.0, %v7602
        %v7604 = vpop.f32.mrf.mxu0
        %v7605 = vadd.f32 0.0, %v7604
        %7606 = vmatmul.bf16.gmra.mxu0 %v7457
        %v7607 = vpop.f32.mrf.mxu0
        %v7608 = vadd.f32 0.0, %v7607
        %v7609 = vpop.f32.mrf.mxu0
        %v7610 = vadd.f32 0.0, %v7609
        %7611 = vdwg.mxu0
        %v7612 = vadd.f32 %v7331, %v7533
        %v7613 = vadd.f32 %v7333, %v7535
        %v7614 = vadd.f32 %v7336, %v7538
        %v7615 = vadd.f32 %v7338, %v7540
        %v7616 = vadd.f32 %v7341, %v7543
        %v7617 = vadd.f32 %v7343, %v7545
        %v7618 = vadd.f32 %v7346, %v7548
        %v7619 = vadd.f32 %v7348, %v7550
        %v7620 = vadd.f32 %v7351, %v7553
        %v7621 = vadd.f32 %v7353, %v7555
        %v7622 = vadd.f32 %v7356, %v7558
        %v7623 = vadd.f32 %v7358, %v7560
        %v7624 = vadd.f32 %v7361, %v7563
        %v7625 = vadd.f32 %v7363, %v7565
        %v7626 = vadd.f32 %v7366, %v7568
        %v7627 = vadd.f32 %v7368, %v7570
        %v7628 = vadd.f32 %v7371, %v7573
        %v7629 = vadd.f32 %v7373, %v7575
        %v7630 = vadd.f32 %v7376, %v7578
        %v7631 = vadd.f32 %v7378, %v7580
        %v7632 = vadd.f32 %v7381, %v7583
        %v7633 = vadd.f32 %v7383, %v7585
        %v7634 = vadd.f32 %v7386, %v7588
        %v7635 = vadd.f32 %v7388, %v7590
        %v7636 = vadd.f32 %v7391, %v7593
        %v7637 = vadd.f32 %v7393, %v7595
        %v7638 = vadd.f32 %v7396, %v7598
        %v7639 = vadd.f32 %v7398, %v7600
        %v7640 = vadd.f32 %v7401, %v7603
        %v7641 = vadd.f32 %v7403, %v7605
        %v7642 = vadd.f32 %v7406, %v7608
        %v7643 = vadd.f32 %v7408, %v7610
        %v7644 = vld [vmem:[#allocation3 + $0x9] sm:$0xff]
        %v7645 = vld [vmem:[#allocation3 + $0x11] sm:$0xff]
        %v7646 = vld [vmem:[#allocation3 + $0x29] sm:$0xff]
        %v7647 = vld [vmem:[#allocation3 + $0x31] sm:$0xff]
        %v7648 = vld [vmem:[#allocation3 + $0x49] sm:$0xff]
        %v7649 = vld [vmem:[#allocation3 + $0x51] sm:$0xff]
        %v7650 = vld [vmem:[#allocation3 + $0x69] sm:$0xff]
        %v7651 = vld [vmem:[#allocation3 + $0x71] sm:$0xff]
        %v7652 = vld [vmem:[#allocation3 + $0x89] sm:$0xff]
        %v7653 = vld [vmem:[#allocation3 + $0x91] sm:$0xff]
        %v7654 = vld [vmem:[#allocation3 + $0xa9] sm:$0xff]
        %v7655 = vld [vmem:[#allocation3 + $0xb1] sm:$0xff]
        %v7656 = vld [vmem:[#allocation3 + $0xc9] sm:$0xff]
        %v7657 = vld [vmem:[#allocation3 + $0xd1] sm:$0xff]
        %v7658 = vld [vmem:[#allocation3 + $0xe9] sm:$0xff]
        %v7659 = vld [vmem:[#allocation3 + $0xf1] sm:$0xff]
        %v7660 = vld [vmem:[#allocation3 + $0x109] sm:$0xff]
        %v7661 = vld [vmem:[#allocation3 + $0x111] sm:$0xff]
        %v7662 = vld [vmem:[#allocation3 + $0x129] sm:$0xff]
        %v7663 = vld [vmem:[#allocation3 + $0x131] sm:$0xff]
        %v7664 = vld [vmem:[#allocation3 + $0x149] sm:$0xff]
        %v7665 = vld [vmem:[#allocation3 + $0x151] sm:$0xff]
        %v7666 = vld [vmem:[#allocation3 + $0x169] sm:$0xff]
        %v7667 = vld [vmem:[#allocation3 + $0x171] sm:$0xff]
        %v7668 = vld [vmem:[#allocation3 + $0x189] sm:$0xff]
        %v7669 = vld [vmem:[#allocation3 + $0x191] sm:$0xff]
        %v7670 = vld [vmem:[#allocation3 + $0x1a9] sm:$0xff]
        %v7671 = vld [vmem:[#allocation3 + $0x1b1] sm:$0xff]
        %v7672 = vld [vmem:[#allocation3 + $0x1c9] sm:$0xff]
        %v7673 = vld [vmem:[#allocation3 + $0x1d1] sm:$0xff]
        %v7674 = vld [vmem:[#allocation3 + $0x1e9] sm:$0xff]
        %v7675 = vld [vmem:[#allocation3 + $0x1f1] sm:$0xff]
        %v7676 = vpack.c.bf16 %v7645, %v7644
        %v7677 = vpack.c.bf16 %v7647, %v7646
        %v7678 = vpack.c.bf16 %v7649, %v7648
        %v7679 = vpack.c.bf16 %v7651, %v7650
        %v7680 = vpack.c.bf16 %v7653, %v7652
        %v7681 = vpack.c.bf16 %v7655, %v7654
        %v7682 = vpack.c.bf16 %v7657, %v7656
        %v7683 = vpack.c.bf16 %v7659, %v7658
        %v7684 = vpack.c.bf16 %v7661, %v7660
        %v7685 = vpack.c.bf16 %v7663, %v7662
        %v7686 = vpack.c.bf16 %v7665, %v7664
        %v7687 = vpack.c.bf16 %v7667, %v7666
        %v7688 = vpack.c.bf16 %v7669, %v7668
        %v7689 = vpack.c.bf16 %v7671, %v7670
        %v7690 = vpack.c.bf16 %v7673, %v7672
        %v7691 = vpack.c.bf16 %v7675, %v7674
        %s7692 = scalar_lea.vmem [#allocation7], 128
        %v7693 = vld [vmem:[%s7692] sm:$0xf]
        %v7694 = vld [vmem:[%s7692 + $0x4] sm:$0xf]
        %v7695 = vld [vmem:[%s7692 + $0x8] sm:$0xf]
        %v7696 = vld [vmem:[%s7692 + $0xc] sm:$0xf]
        %v7697 = vld [vmem:[%s7692 + $0x10] sm:$0xf]
        %v7698 = vld [vmem:[%s7692 + $0x14] sm:$0xf]
        %v7699 = vld [vmem:[%s7692 + $0x18] sm:$0xf]
        %v7700 = vld [vmem:[%s7692 + $0x1c] sm:$0xf]
        %v7701 = vld [vmem:[%s7692 + $0x20] sm:$0xf]
        %v7702 = vld [vmem:[%s7692 + $0x24] sm:$0xf]
        %v7703 = vld [vmem:[%s7692 + $0x28] sm:$0xf]
        %v7704 = vld [vmem:[%s7692 + $0x2c] sm:$0xf]
        %v7705 = vld [vmem:[%s7692 + $0x30] sm:$0xf]
        %v7706 = vld [vmem:[%s7692 + $0x34] sm:$0xf]
        %v7707 = vld [vmem:[%s7692 + $0x38] sm:$0xf]
        %v7708 = vld [vmem:[%s7692 + $0x3c] sm:$0xf]
        %v7725 = vunpack.c.l.b16 %v7693
        %v7726 = vunpack.c.l.b16 %v7694
        %v7727 = vunpack.c.l.b16 %v7695
        %v7728 = vunpack.c.l.b16 %v7696
        %v7729 = vunpack.c.l.b16 %v7697
        %v7730 = vunpack.c.l.b16 %v7698
        %v7731 = vunpack.c.l.b16 %v7699
        %v7732 = vunpack.c.l.b16 %v7700
        %v7733 = vunpack.c.l.b16 %v7701
        %v7734 = vunpack.c.l.b16 %v7702
        %v7735 = vunpack.c.l.b16 %v7703
        %v7736 = vunpack.c.l.b16 %v7704
        %v7737 = vunpack.c.l.b16 %v7705
        %v7738 = vunpack.c.l.b16 %v7706
        %v7739 = vunpack.c.l.b16 %v7707
        %v7740 = vunpack.c.l.b16 %v7708
        %v7741 = vpack.c.b16 %v7726, %v7725
        %v7742 = vpack.c.b16 %v7728, %v7727
        %v7743 = vpack.c.b16 %v7730, %v7729
        %v7744 = vpack.c.b16 %v7732, %v7731
        %v7745 = vpack.c.b16 %v7734, %v7733
        %v7746 = vpack.c.b16 %v7736, %v7735
        %v7747 = vpack.c.b16 %v7738, %v7737
        %v7748 = vpack.c.b16 %v7740, %v7739
        %7757 = vmatpush.bf16.msra.mxu0 %v7748
        %7758 = vmatpush.bf16.msra.mxu0 %v7747
        %7759 = vmatpush.bf16.msra.mxu0 %v7746
        %7760 = vmatpush.bf16.msra.mxu0 %v7745
        %7761 = vmatpush.bf16.msra.mxu0 %v7744
        %7762 = vmatpush.bf16.msra.mxu0 %v7743
        %7763 = vmatpush.bf16.msra.mxu0 %v7742
        %7764 = vmatpush.bf16.msra.mxu0 %v7741
        %7765 = vmatmul.bf16.gmra.mxu0 %v7676
        %v7766 = vpop.f32.mrf.mxu0
        %v7767 = vadd.f32 0.0, %v7766
        %v7768 = vpop.f32.mrf.mxu0
        %v7769 = vadd.f32 0.0, %v7768
        %7770 = vmatmul.bf16.gmra.mxu0 %v7677
        %v7771 = vpop.f32.mrf.mxu0
        %v7772 = vadd.f32 0.0, %v7771
        %v7773 = vpop.f32.mrf.mxu0
        %v7774 = vadd.f32 0.0, %v7773
        %7775 = vmatmul.bf16.gmra.mxu0 %v7678
        %v7776 = vpop.f32.mrf.mxu0
        %v7777 = vadd.f32 0.0, %v7776
        %v7778 = vpop.f32.mrf.mxu0
        %v7779 = vadd.f32 0.0, %v7778
        %7780 = vmatmul.bf16.gmra.mxu0 %v7679
        %v7781 = vpop.f32.mrf.mxu0
        %v7782 = vadd.f32 0.0, %v7781
        %v7783 = vpop.f32.mrf.mxu0
        %v7784 = vadd.f32 0.0, %v7783
        %7785 = vmatmul.bf16.gmra.mxu0 %v7680
        %v7786 = vpop.f32.mrf.mxu0
        %v7787 = vadd.f32 0.0, %v7786
        %v7788 = vpop.f32.mrf.mxu0
        %v7789 = vadd.f32 0.0, %v7788
        %7790 = vmatmul.bf16.gmra.mxu0 %v7681
        %v7791 = vpop.f32.mrf.mxu0
        %v7792 = vadd.f32 0.0, %v7791
        %v7793 = vpop.f32.mrf.mxu0
        %v7794 = vadd.f32 0.0, %v7793
        %7795 = vmatmul.bf16.gmra.mxu0 %v7682
        %v7796 = vpop.f32.mrf.mxu0
        %v7797 = vadd.f32 0.0, %v7796
        %v7798 = vpop.f32.mrf.mxu0
        %v7799 = vadd.f32 0.0, %v7798
        %7800 = vmatmul.bf16.gmra.mxu0 %v7683
        %v7801 = vpop.f32.mrf.mxu0
        %v7802 = vadd.f32 0.0, %v7801
        %v7803 = vpop.f32.mrf.mxu0
        %v7804 = vadd.f32 0.0, %v7803
        %7805 = vmatmul.bf16.gmra.mxu0 %v7684
        %v7806 = vpop.f32.mrf.mxu0
        %v7807 = vadd.f32 0.0, %v7806
        %v7808 = vpop.f32.mrf.mxu0
        %v7809 = vadd.f32 0.0, %v7808
        %7810 = vmatmul.bf16.gmra.mxu0 %v7685
        %v7811 = vpop.f32.mrf.mxu0
        %v7812 = vadd.f32 0.0, %v7811
        %v7813 = vpop.f32.mrf.mxu0
        %v7814 = vadd.f32 0.0, %v7813
        %7815 = vmatmul.bf16.gmra.mxu0 %v7686
        %v7816 = vpop.f32.mrf.mxu0
        %v7817 = vadd.f32 0.0, %v7816
        %v7818 = vpop.f32.mrf.mxu0
        %v7819 = vadd.f32 0.0, %v7818
        %7820 = vmatmul.bf16.gmra.mxu0 %v7687
        %v7821 = vpop.f32.mrf.mxu0
        %v7822 = vadd.f32 0.0, %v7821
        %v7823 = vpop.f32.mrf.mxu0
        %v7824 = vadd.f32 0.0, %v7823
        %7825 = vmatmul.bf16.gmra.mxu0 %v7688
        %v7826 = vpop.f32.mrf.mxu0
        %v7827 = vadd.f32 0.0, %v7826
        %v7828 = vpop.f32.mrf.mxu0
        %v7829 = vadd.f32 0.0, %v7828
        %7830 = vmatmul.bf16.gmra.mxu0 %v7689
        %v7831 = vpop.f32.mrf.mxu0
        %v7832 = vadd.f32 0.0, %v7831
        %v7833 = vpop.f32.mrf.mxu0
        %v7834 = vadd.f32 0.0, %v7833
        %7835 = vmatmul.bf16.gmra.mxu0 %v7690
        %v7836 = vpop.f32.mrf.mxu0
        %v7837 = vadd.f32 0.0, %v7836
        %v7838 = vpop.f32.mrf.mxu0
        %v7839 = vadd.f32 0.0, %v7838
        %7840 = vmatmul.bf16.gmra.mxu0 %v7691
        %v7841 = vpop.f32.mrf.mxu0
        %v7842 = vadd.f32 0.0, %v7841
        %v7843 = vpop.f32.mrf.mxu0
        %v7844 = vadd.f32 0.0, %v7843
        %7845 = vdwg.mxu0
        %v7846 = vadd.f32 %v7612, %v7767
        %v7847 = vadd.f32 %v7613, %v7769
        %v7848 = vadd.f32 %v7614, %v7772
        %v7849 = vadd.f32 %v7615, %v7774
        %v7850 = vadd.f32 %v7616, %v7777
        %v7851 = vadd.f32 %v7617, %v7779
        %v7852 = vadd.f32 %v7618, %v7782
        %v7853 = vadd.f32 %v7619, %v7784
        %v7854 = vadd.f32 %v7620, %v7787
        %v7855 = vadd.f32 %v7621, %v7789
        %v7856 = vadd.f32 %v7622, %v7792
        %v7857 = vadd.f32 %v7623, %v7794
        %v7858 = vadd.f32 %v7624, %v7797
        %v7859 = vadd.f32 %v7625, %v7799
        %v7860 = vadd.f32 %v7626, %v7802
        %v7861 = vadd.f32 %v7627, %v7804
        %v7862 = vadd.f32 %v7628, %v7807
        %v7863 = vadd.f32 %v7629, %v7809
        %v7864 = vadd.f32 %v7630, %v7812
        %v7865 = vadd.f32 %v7631, %v7814
        %v7866 = vadd.f32 %v7632, %v7817
        %v7867 = vadd.f32 %v7633, %v7819
        %v7868 = vadd.f32 %v7634, %v7822
        %v7869 = vadd.f32 %v7635, %v7824
        %v7870 = vadd.f32 %v7636, %v7827
        %v7871 = vadd.f32 %v7637, %v7829
        %v7872 = vadd.f32 %v7638, %v7832
        %v7873 = vadd.f32 %v7639, %v7834
        %v7874 = vadd.f32 %v7640, %v7837
        %v7875 = vadd.f32 %v7641, %v7839
        %v7876 = vadd.f32 %v7642, %v7842
        %v7877 = vadd.f32 %v7643, %v7844
        %v7878 = vld [vmem:[%s7023 + $0x7] sm:$0xff]
        %v7879 = vld [vmem:[%s7023 + $0xf] sm:$0xff]
        %v7880 = vld [vmem:[%s7023 + $0x27] sm:$0xff]
        %v7881 = vld [vmem:[%s7023 + $0x2f] sm:$0xff]
        %v7882 = vld [vmem:[%s7023 + $0x47] sm:$0xff]
        %v7883 = vld [vmem:[%s7023 + $0x4f] sm:$0xff]
        %v7884 = vld [vmem:[%s7023 + $0x67] sm:$0xff]
        %v7885 = vld [vmem:[%s7023 + $0x6f] sm:$0xff]
        %v7886 = vld [vmem:[%s7023 + $0x87] sm:$0xff]
        %v7887 = vld [vmem:[%s7023 + $0x8f] sm:$0xff]
        %v7888 = vld [vmem:[%s7023 + $0xa7] sm:$0xff]
        %v7889 = vld [vmem:[%s7023 + $0xaf] sm:$0xff]
        %v7890 = vld [vmem:[%s7023 + $0xc7] sm:$0xff]
        %v7891 = vld [vmem:[%s7023 + $0xcf] sm:$0xff]
        %v7892 = vld [vmem:[%s7023 + $0xe7] sm:$0xff]
        %v7893 = vld [vmem:[%s7023 + $0xef] sm:$0xff]
        %v7894 = vld [vmem:[%s7023 + $0x107] sm:$0xff]
        %v7895 = vld [vmem:[%s7023 + $0x10f] sm:$0xff]
        %v7896 = vld [vmem:[%s7023 + $0x127] sm:$0xff]
        %v7897 = vld [vmem:[%s7023 + $0x12f] sm:$0xff]
        %v7898 = vld [vmem:[%s7023 + $0x147] sm:$0xff]
        %v7899 = vld [vmem:[%s7023 + $0x14f] sm:$0xff]
        %v7900 = vld [vmem:[%s7023 + $0x167] sm:$0xff]
        %v7901 = vld [vmem:[%s7023 + $0x16f] sm:$0xff]
        %v7902 = vld [vmem:[%s7023 + $0x187] sm:$0xff]
        %v7903 = vld [vmem:[%s7023 + $0x18f] sm:$0xff]
        %v7904 = vld [vmem:[%s7023 + $0x1a7] sm:$0xff]
        %v7905 = vld [vmem:[%s7023 + $0x1af] sm:$0xff]
        %v7906 = vld [vmem:[%s7023 + $0x1c7] sm:$0xff]
        %v7907 = vld [vmem:[%s7023 + $0x1cf] sm:$0xff]
        %v7908 = vld [vmem:[%s7023 + $0x1e7] sm:$0xff]
        %v7909 = vld [vmem:[%s7023 + $0x1ef] sm:$0xff]
        %v7910 = vpack.c.bf16 %v7879, %v7878
        %v7911 = vpack.c.bf16 %v7881, %v7880
        %v7912 = vpack.c.bf16 %v7883, %v7882
        %v7913 = vpack.c.bf16 %v7885, %v7884
        %v7914 = vpack.c.bf16 %v7887, %v7886
        %v7915 = vpack.c.bf16 %v7889, %v7888
        %v7916 = vpack.c.bf16 %v7891, %v7890
        %v7917 = vpack.c.bf16 %v7893, %v7892
        %v7918 = vpack.c.bf16 %v7895, %v7894
        %v7919 = vpack.c.bf16 %v7897, %v7896
        %v7920 = vpack.c.bf16 %v7899, %v7898
        %v7921 = vpack.c.bf16 %v7901, %v7900
        %v7922 = vpack.c.bf16 %v7903, %v7902
        %v7923 = vpack.c.bf16 %v7905, %v7904
        %v7924 = vpack.c.bf16 %v7907, %v7906
        %v7925 = vpack.c.bf16 %v7909, %v7908
        %s7926 = scalar_lea.vmem [#allocation7], 192
        %v7927 = vld [vmem:[%s7926] sm:$0xf]
        %v7928 = vld [vmem:[%s7926 + $0x4] sm:$0xf]
        %v7929 = vld [vmem:[%s7926 + $0x8] sm:$0xf]
        %v7930 = vld [vmem:[%s7926 + $0xc] sm:$0xf]
        %v7931 = vld [vmem:[%s7926 + $0x10] sm:$0xf]
        %v7932 = vld [vmem:[%s7926 + $0x14] sm:$0xf]
        %v7933 = vld [vmem:[%s7926 + $0x18] sm:$0xf]
        %v7934 = vld [vmem:[%s7926 + $0x1c] sm:$0xf]
        %v7935 = vld [vmem:[%s7926 + $0x20] sm:$0xf]
        %v7936 = vld [vmem:[%s7926 + $0x24] sm:$0xf]
        %v7937 = vld [vmem:[%s7926 + $0x28] sm:$0xf]
        %v7938 = vld [vmem:[%s7926 + $0x2c] sm:$0xf]
        %v7939 = vld [vmem:[%s7926 + $0x30] sm:$0xf]
        %v7940 = vld [vmem:[%s7926 + $0x34] sm:$0xf]
        %v7941 = vld [vmem:[%s7926 + $0x38] sm:$0xf]
        %v7942 = vld [vmem:[%s7926 + $0x3c] sm:$0xf]
        %v7959 = vunpack.c.l.b16 %v7927
        %v7960 = vunpack.c.l.b16 %v7928
        %v7961 = vunpack.c.l.b16 %v7929
        %v7962 = vunpack.c.l.b16 %v7930
        %v7963 = vunpack.c.l.b16 %v7931
        %v7964 = vunpack.c.l.b16 %v7932
        %v7965 = vunpack.c.l.b16 %v7933
        %v7966 = vunpack.c.l.b16 %v7934
        %v7967 = vunpack.c.l.b16 %v7935
        %v7968 = vunpack.c.l.b16 %v7936
        %v7969 = vunpack.c.l.b16 %v7937
        %v7970 = vunpack.c.l.b16 %v7938
        %v7971 = vunpack.c.l.b16 %v7939
        %v7972 = vunpack.c.l.b16 %v7940
        %v7973 = vunpack.c.l.b16 %v7941
        %v7974 = vunpack.c.l.b16 %v7942
        %v7975 = vpack.c.b16 %v7960, %v7959
        %v7976 = vpack.c.b16 %v7962, %v7961
        %v7977 = vpack.c.b16 %v7964, %v7963
        %v7978 = vpack.c.b16 %v7966, %v7965
        %v7979 = vpack.c.b16 %v7968, %v7967
        %v7980 = vpack.c.b16 %v7970, %v7969
        %v7981 = vpack.c.b16 %v7972, %v7971
        %v7982 = vpack.c.b16 %v7974, %v7973
        %7991 = vmatpush.bf16.msra.mxu0 %v7982
        %7992 = vmatpush.bf16.msra.mxu0 %v7981
        %7993 = vmatpush.bf16.msra.mxu0 %v7980
        %7994 = vmatpush.bf16.msra.mxu0 %v7979
        %7995 = vmatpush.bf16.msra.mxu0 %v7978
        %7996 = vmatpush.bf16.msra.mxu0 %v7977
        %7997 = vmatpush.bf16.msra.mxu0 %v7976
        %7998 = vmatpush.bf16.msra.mxu0 %v7975
        %7999 = vmatmul.bf16.gmra.mxu0 %v7910
        %v8000 = vpop.f32.mrf.mxu0
        %v8001 = vadd.f32 0.0, %v8000
        %v8002 = vpop.f32.mrf.mxu0
        %v8003 = vadd.f32 0.0, %v8002
        %8004 = vmatmul.bf16.gmra.mxu0 %v7911
        %v8005 = vpop.f32.mrf.mxu0
        %v8006 = vadd.f32 0.0, %v8005
        %v8007 = vpop.f32.mrf.mxu0
        %v8008 = vadd.f32 0.0, %v8007
        %8009 = vmatmul.bf16.gmra.mxu0 %v7912
        %v8010 = vpop.f32.mrf.mxu0
        %v8011 = vadd.f32 0.0, %v8010
        %v8012 = vpop.f32.mrf.mxu0
        %v8013 = vadd.f32 0.0, %v8012
        %8014 = vmatmul.bf16.gmra.mxu0 %v7913
        %v8015 = vpop.f32.mrf.mxu0
        %v8016 = vadd.f32 0.0, %v8015
        %v8017 = vpop.f32.mrf.mxu0
        %v8018 = vadd.f32 0.0, %v8017
        %8019 = vmatmul.bf16.gmra.mxu0 %v7914
        %v8020 = vpop.f32.mrf.mxu0
        %v8021 = vadd.f32 0.0, %v8020
        %v8022 = vpop.f32.mrf.mxu0
        %v8023 = vadd.f32 0.0, %v8022
        %8024 = vmatmul.bf16.gmra.mxu0 %v7915
        %v8025 = vpop.f32.mrf.mxu0
        %v8026 = vadd.f32 0.0, %v8025
        %v8027 = vpop.f32.mrf.mxu0
        %v8028 = vadd.f32 0.0, %v8027
        %8029 = vmatmul.bf16.gmra.mxu0 %v7916
        %v8030 = vpop.f32.mrf.mxu0
        %v8031 = vadd.f32 0.0, %v8030
        %v8032 = vpop.f32.mrf.mxu0
        %v8033 = vadd.f32 0.0, %v8032
        %8034 = vmatmul.bf16.gmra.mxu0 %v7917
        %v8035 = vpop.f32.mrf.mxu0
        %v8036 = vadd.f32 0.0, %v8035
        %v8037 = vpop.f32.mrf.mxu0
        %v8038 = vadd.f32 0.0, %v8037
        %8039 = vmatmul.bf16.gmra.mxu0 %v7918
        %v8040 = vpop.f32.mrf.mxu0
        %v8041 = vadd.f32 0.0, %v8040
        %v8042 = vpop.f32.mrf.mxu0
        %v8043 = vadd.f32 0.0, %v8042
        %8044 = vmatmul.bf16.gmra.mxu0 %v7919
        %v8045 = vpop.f32.mrf.mxu0
        %v8046 = vadd.f32 0.0, %v8045
        %v8047 = vpop.f32.mrf.mxu0
        %v8048 = vadd.f32 0.0, %v8047
        %8049 = vmatmul.bf16.gmra.mxu0 %v7920
        %v8050 = vpop.f32.mrf.mxu0
        %v8051 = vadd.f32 0.0, %v8050
        %v8052 = vpop.f32.mrf.mxu0
        %v8053 = vadd.f32 0.0, %v8052
        %8054 = vmatmul.bf16.gmra.mxu0 %v7921
        %v8055 = vpop.f32.mrf.mxu0
        %v8056 = vadd.f32 0.0, %v8055
        %v8057 = vpop.f32.mrf.mxu0
        %v8058 = vadd.f32 0.0, %v8057
        %8059 = vmatmul.bf16.gmra.mxu0 %v7922
        %v8060 = vpop.f32.mrf.mxu0
        %v8061 = vadd.f32 0.0, %v8060
        %v8062 = vpop.f32.mrf.mxu0
        %v8063 = vadd.f32 0.0, %v8062
        %8064 = vmatmul.bf16.gmra.mxu0 %v7923
        %v8065 = vpop.f32.mrf.mxu0
        %v8066 = vadd.f32 0.0, %v8065
        %v8067 = vpop.f32.mrf.mxu0
        %v8068 = vadd.f32 0.0, %v8067
        %8069 = vmatmul.bf16.gmra.mxu0 %v7924
        %v8070 = vpop.f32.mrf.mxu0
        %v8071 = vadd.f32 0.0, %v8070
        %v8072 = vpop.f32.mrf.mxu0
        %v8073 = vadd.f32 0.0, %v8072
        %8074 = vmatmul.bf16.gmra.mxu0 %v7925
        %v8075 = vpop.f32.mrf.mxu0
        %v8076 = vadd.f32 0.0, %v8075
        %v8077 = vpop.f32.mrf.mxu0
        %v8078 = vadd.f32 0.0, %v8077
        %8079 = vdwg.mxu0
        %v8080 = vadd.f32 %v7846, %v8001
        %v8081 = vadd.f32 %v7847, %v8003
        %v8082 = vadd.f32 %v7848, %v8006
        %v8083 = vadd.f32 %v7849, %v8008
        %v8084 = vadd.f32 %v7850, %v8011
        %v8085 = vadd.f32 %v7851, %v8013
        %v8086 = vadd.f32 %v7852, %v8016
        %v8087 = vadd.f32 %v7853, %v8018
        %v8088 = vadd.f32 %v7854, %v8021
        %v8089 = vadd.f32 %v7855, %v8023
        %v8090 = vadd.f32 %v7856, %v8026
        %v8091 = vadd.f32 %v7857, %v8028
        %v8092 = vadd.f32 %v7858, %v8031
        %v8093 = vadd.f32 %v7859, %v8033
        %v8094 = vadd.f32 %v7860, %v8036
        %v8095 = vadd.f32 %v7861, %v8038
        %v8096 = vadd.f32 %v7862, %v8041
        %v8097 = vadd.f32 %v7863, %v8043
        %v8098 = vadd.f32 %v7864, %v8046
        %v8099 = vadd.f32 %v7865, %v8048
        %v8100 = vadd.f32 %v7866, %v8051
        %v8101 = vadd.f32 %v7867, %v8053
        %v8102 = vadd.f32 %v7868, %v8056
        %v8103 = vadd.f32 %v7869, %v8058
        %v8104 = vadd.f32 %v7870, %v8061
        %v8105 = vadd.f32 %v7871, %v8063
        %v8106 = vadd.f32 %v7872, %v8066
        %v8107 = vadd.f32 %v7873, %v8068
        %v8108 = vadd.f32 %v7874, %v8071
        %v8109 = vadd.f32 %v7875, %v8073
        %v8110 = vadd.f32 %v7876, %v8076
        %v8111 = vadd.f32 %v7877, %v8078
        %v8112 = vld [vmem:[%s7023 + $0x8] sm:$0xff]
        %v8113 = vld [vmem:[%s7023 + $0x10] sm:$0xff]
        %v8114 = vld [vmem:[%s7023 + $0x28] sm:$0xff]
        %v8115 = vld [vmem:[%s7023 + $0x30] sm:$0xff]
        %v8116 = vld [vmem:[%s7023 + $0x48] sm:$0xff]
        %v8117 = vld [vmem:[%s7023 + $0x50] sm:$0xff]
        %v8118 = vld [vmem:[%s7023 + $0x68] sm:$0xff]
        %v8119 = vld [vmem:[%s7023 + $0x70] sm:$0xff]
        %v8120 = vld [vmem:[%s7023 + $0x88] sm:$0xff]
        %v8121 = vld [vmem:[%s7023 + $0x90] sm:$0xff]
        %v8122 = vld [vmem:[%s7023 + $0xa8] sm:$0xff]
        %v8123 = vld [vmem:[%s7023 + $0xb0] sm:$0xff]
        %v8124 = vld [vmem:[%s7023 + $0xc8] sm:$0xff]
        %v8125 = vld [vmem:[%s7023 + $0xd0] sm:$0xff]
        %v8126 = vld [vmem:[%s7023 + $0xe8] sm:$0xff]
        %v8127 = vld [vmem:[%s7023 + $0xf0] sm:$0xff]
        %v8128 = vld [vmem:[%s7023 + $0x108] sm:$0xff]
        %v8129 = vld [vmem:[%s7023 + $0x110] sm:$0xff]
        %v8130 = vld [vmem:[%s7023 + $0x128] sm:$0xff]
        %v8131 = vld [vmem:[%s7023 + $0x130] sm:$0xff]
        %v8132 = vld [vmem:[%s7023 + $0x148] sm:$0xff]
        %v8133 = vld [vmem:[%s7023 + $0x150] sm:$0xff]
        %v8134 = vld [vmem:[%s7023 + $0x168] sm:$0xff]
        %v8135 = vld [vmem:[%s7023 + $0x170] sm:$0xff]
        %v8136 = vld [vmem:[%s7023 + $0x188] sm:$0xff]
        %v8137 = vld [vmem:[%s7023 + $0x190] sm:$0xff]
        %v8138 = vld [vmem:[%s7023 + $0x1a8] sm:$0xff]
        %v8139 = vld [vmem:[%s7023 + $0x1b0] sm:$0xff]
        %v8140 = vld [vmem:[%s7023 + $0x1c8] sm:$0xff]
        %v8141 = vld [vmem:[%s7023 + $0x1d0] sm:$0xff]
        %v8142 = vld [vmem:[%s7023 + $0x1e8] sm:$0xff]
        %v8143 = vld [vmem:[%s7023 + $0x1f0] sm:$0xff]
        %v8144 = vpack.c.bf16 %v8113, %v8112
        %v8145 = vpack.c.bf16 %v8115, %v8114
        %v8146 = vpack.c.bf16 %v8117, %v8116
        %v8147 = vpack.c.bf16 %v8119, %v8118
        %v8148 = vpack.c.bf16 %v8121, %v8120
        %v8149 = vpack.c.bf16 %v8123, %v8122
        %v8150 = vpack.c.bf16 %v8125, %v8124
        %v8151 = vpack.c.bf16 %v8127, %v8126
        %v8152 = vpack.c.bf16 %v8129, %v8128
        %v8153 = vpack.c.bf16 %v8131, %v8130
        %v8154 = vpack.c.bf16 %v8133, %v8132
        %v8155 = vpack.c.bf16 %v8135, %v8134
        %v8156 = vpack.c.bf16 %v8137, %v8136
        %v8157 = vpack.c.bf16 %v8139, %v8138
        %v8158 = vpack.c.bf16 %v8141, %v8140
        %v8159 = vpack.c.bf16 %v8143, %v8142
        %s8160 = scalar_lea.vmem [#allocation7], 256
        %v8161 = vld [vmem:[%s8160] sm:$0xf]
        %v8162 = vld [vmem:[%s8160 + $0x4] sm:$0xf]
        %v8163 = vld [vmem:[%s8160 + $0x8] sm:$0xf]
        %v8164 = vld [vmem:[%s8160 + $0xc] sm:$0xf]
        %v8165 = vld [vmem:[%s8160 + $0x10] sm:$0xf]
        %v8166 = vld [vmem:[%s8160 + $0x14] sm:$0xf]
        %v8167 = vld [vmem:[%s8160 + $0x18] sm:$0xf]
        %v8168 = vld [vmem:[%s8160 + $0x1c] sm:$0xf]
        %v8169 = vld [vmem:[%s8160 + $0x20] sm:$0xf]
        %v8170 = vld [vmem:[%s8160 + $0x24] sm:$0xf]
        %v8171 = vld [vmem:[%s8160 + $0x28] sm:$0xf]
        %v8172 = vld [vmem:[%s8160 + $0x2c] sm:$0xf]
        %v8173 = vld [vmem:[%s8160 + $0x30] sm:$0xf]
        %v8174 = vld [vmem:[%s8160 + $0x34] sm:$0xf]
        %v8175 = vld [vmem:[%s8160 + $0x38] sm:$0xf]
        %v8176 = vld [vmem:[%s8160 + $0x3c] sm:$0xf]
        %v8193 = vunpack.c.l.b16 %v8161
        %v8194 = vunpack.c.l.b16 %v8162
        %v8195 = vunpack.c.l.b16 %v8163
        %v8196 = vunpack.c.l.b16 %v8164
        %v8197 = vunpack.c.l.b16 %v8165
        %v8198 = vunpack.c.l.b16 %v8166
        %v8199 = vunpack.c.l.b16 %v8167
        %v8200 = vunpack.c.l.b16 %v8168
        %v8201 = vunpack.c.l.b16 %v8169
        %v8202 = vunpack.c.l.b16 %v8170
        %v8203 = vunpack.c.l.b16 %v8171
        %v8204 = vunpack.c.l.b16 %v8172
        %v8205 = vunpack.c.l.b16 %v8173
        %v8206 = vunpack.c.l.b16 %v8174
        %v8207 = vunpack.c.l.b16 %v8175
        %v8208 = vunpack.c.l.b16 %v8176
        %v8209 = vpack.c.b16 %v8194, %v8193
        %v8210 = vpack.c.b16 %v8196, %v8195
        %v8211 = vpack.c.b16 %v8198, %v8197
        %v8212 = vpack.c.b16 %v8200, %v8199
        %v8213 = vpack.c.b16 %v8202, %v8201
        %v8214 = vpack.c.b16 %v8204, %v8203
        %v8215 = vpack.c.b16 %v8206, %v8205
        %v8216 = vpack.c.b16 %v8208, %v8207
        %8225 = vmatpush.bf16.msra.mxu0 %v8216
        %8226 = vmatpush.bf16.msra.mxu0 %v8215
        %8227 = vmatpush.bf16.msra.mxu0 %v8214
        %8228 = vmatpush.bf16.msra.mxu0 %v8213
        %8229 = vmatpush.bf16.msra.mxu0 %v8212
        %8230 = vmatpush.bf16.msra.mxu0 %v8211
        %8231 = vmatpush.bf16.msra.mxu0 %v8210
        %8232 = vmatpush.bf16.msra.mxu0 %v8209
        %8233 = vmatmul.bf16.gmra.mxu0 %v8144
        %v8234 = vpop.f32.mrf.mxu0
        %v8235 = vadd.f32 0.0, %v8234
        %v8236 = vpop.f32.mrf.mxu0
        %v8237 = vadd.f32 0.0, %v8236
        %8238 = vmatmul.bf16.gmra.mxu0 %v8145
        %v8239 = vpop.f32.mrf.mxu0
        %v8240 = vadd.f32 0.0, %v8239
        %v8241 = vpop.f32.mrf.mxu0
        %v8242 = vadd.f32 0.0, %v8241
        %8243 = vmatmul.bf16.gmra.mxu0 %v8146
        %v8244 = vpop.f32.mrf.mxu0
        %v8245 = vadd.f32 0.0, %v8244
        %v8246 = vpop.f32.mrf.mxu0
        %v8247 = vadd.f32 0.0, %v8246
        %8248 = vmatmul.bf16.gmra.mxu0 %v8147
        %v8249 = vpop.f32.mrf.mxu0
        %v8250 = vadd.f32 0.0, %v8249
        %v8251 = vpop.f32.mrf.mxu0
        %v8252 = vadd.f32 0.0, %v8251
        %8253 = vmatmul.bf16.gmra.mxu0 %v8148
        %v8254 = vpop.f32.mrf.mxu0
        %v8255 = vadd.f32 0.0, %v8254
        %v8256 = vpop.f32.mrf.mxu0
        %v8257 = vadd.f32 0.0, %v8256
        %8258 = vmatmul.bf16.gmra.mxu0 %v8149
        %v8259 = vpop.f32.mrf.mxu0
        %v8260 = vadd.f32 0.0, %v8259
        %v8261 = vpop.f32.mrf.mxu0
        %v8262 = vadd.f32 0.0, %v8261
        %8263 = vmatmul.bf16.gmra.mxu0 %v8150
        %v8264 = vpop.f32.mrf.mxu0
        %v8265 = vadd.f32 0.0, %v8264
        %v8266 = vpop.f32.mrf.mxu0
        %v8267 = vadd.f32 0.0, %v8266
        %8268 = vmatmul.bf16.gmra.mxu0 %v8151
        %v8269 = vpop.f32.mrf.mxu0
        %v8270 = vadd.f32 0.0, %v8269
        %v8271 = vpop.f32.mrf.mxu0
        %v8272 = vadd.f32 0.0, %v8271
        %8273 = vmatmul.bf16.gmra.mxu0 %v8152
        %v8274 = vpop.f32.mrf.mxu0
        %v8275 = vadd.f32 0.0, %v8274
        %v8276 = vpop.f32.mrf.mxu0
        %v8277 = vadd.f32 0.0, %v8276
        %8278 = vmatmul.bf16.gmra.mxu0 %v8153
        %v8279 = vpop.f32.mrf.mxu0
        %v8280 = vadd.f32 0.0, %v8279
        %v8281 = vpop.f32.mrf.mxu0
        %v8282 = vadd.f32 0.0, %v8281
        %8283 = vmatmul.bf16.gmra.mxu0 %v8154
        %v8284 = vpop.f32.mrf.mxu0
        %v8285 = vadd.f32 0.0, %v8284
        %v8286 = vpop.f32.mrf.mxu0
        %v8287 = vadd.f32 0.0, %v8286
        %8288 = vmatmul.bf16.gmra.mxu0 %v8155
        %v8289 = vpop.f32.mrf.mxu0
        %v8290 = vadd.f32 0.0, %v8289
        %v8291 = vpop.f32.mrf.mxu0
        %v8292 = vadd.f32 0.0, %v8291
        %8293 = vmatmul.bf16.gmra.mxu0 %v8156
        %v8294 = vpop.f32.mrf.mxu0
        %v8295 = vadd.f32 0.0, %v8294
        %v8296 = vpop.f32.mrf.mxu0
        %v8297 = vadd.f32 0.0, %v8296
        %8298 = vmatmul.bf16.gmra.mxu0 %v8157
        %v8299 = vpop.f32.mrf.mxu0
        %v8300 = vadd.f32 0.0, %v8299
        %v8301 = vpop.f32.mrf.mxu0
        %v8302 = vadd.f32 0.0, %v8301
        %8303 = vmatmul.bf16.gmra.mxu0 %v8158
        %v8304 = vpop.f32.mrf.mxu0
        %v8305 = vadd.f32 0.0, %v8304
        %v8306 = vpop.f32.mrf.mxu0
        %v8307 = vadd.f32 0.0, %v8306
        %8308 = vmatmul.bf16.gmra.mxu0 %v8159
        %v8309 = vpop.f32.mrf.mxu0
        %v8310 = vadd.f32 0.0, %v8309
        %v8311 = vpop.f32.mrf.mxu0
        %v8312 = vadd.f32 0.0, %v8311
        %8313 = vdwg.mxu0
        %v8314 = vadd.f32 %v8080, %v8235
        %v8315 = vadd.f32 %v8081, %v8237
        %v8316 = vadd.f32 %v8082, %v8240
        %v8317 = vadd.f32 %v8083, %v8242
        %v8318 = vadd.f32 %v8084, %v8245
        %v8319 = vadd.f32 %v8085, %v8247
        %v8320 = vadd.f32 %v8086, %v8250
        %v8321 = vadd.f32 %v8087, %v8252
        %v8322 = vadd.f32 %v8088, %v8255
        %v8323 = vadd.f32 %v8089, %v8257
        %v8324 = vadd.f32 %v8090, %v8260
        %v8325 = vadd.f32 %v8091, %v8262
        %v8326 = vadd.f32 %v8092, %v8265
        %v8327 = vadd.f32 %v8093, %v8267
        %v8328 = vadd.f32 %v8094, %v8270
        %v8329 = vadd.f32 %v8095, %v8272
        %v8330 = vadd.f32 %v8096, %v8275
        %v8331 = vadd.f32 %v8097, %v8277
        %v8332 = vadd.f32 %v8098, %v8280
        %v8333 = vadd.f32 %v8099, %v8282
        %v8334 = vadd.f32 %v8100, %v8285
        %v8335 = vadd.f32 %v8101, %v8287
        %v8336 = vadd.f32 %v8102, %v8290
        %v8337 = vadd.f32 %v8103, %v8292
        %v8338 = vadd.f32 %v8104, %v8295
        %v8339 = vadd.f32 %v8105, %v8297
        %v8340 = vadd.f32 %v8106, %v8300
        %v8341 = vadd.f32 %v8107, %v8302
        %v8342 = vadd.f32 %v8108, %v8305
        %v8343 = vadd.f32 %v8109, %v8307
        %v8344 = vadd.f32 %v8110, %v8310
        %v8345 = vadd.f32 %v8111, %v8312
        %v8346 = vld [vmem:[%s7023 + $0x9] sm:$0xff]
        %v8347 = vld [vmem:[%s7023 + $0x11] sm:$0xff]
        %v8348 = vld [vmem:[%s7023 + $0x29] sm:$0xff]
        %v8349 = vld [vmem:[%s7023 + $0x31] sm:$0xff]
        %v8350 = vld [vmem:[%s7023 + $0x49] sm:$0xff]
        %v8351 = vld [vmem:[%s7023 + $0x51] sm:$0xff]
        %v8352 = vld [vmem:[%s7023 + $0x69] sm:$0xff]
        %v8353 = vld [vmem:[%s7023 + $0x71] sm:$0xff]
        %v8354 = vld [vmem:[%s7023 + $0x89] sm:$0xff]
        %v8355 = vld [vmem:[%s7023 + $0x91] sm:$0xff]
        %v8356 = vld [vmem:[%s7023 + $0xa9] sm:$0xff]
        %v8357 = vld [vmem:[%s7023 + $0xb1] sm:$0xff]
        %v8358 = vld [vmem:[%s7023 + $0xc9] sm:$0xff]
        %v8359 = vld [vmem:[%s7023 + $0xd1] sm:$0xff]
        %v8360 = vld [vmem:[%s7023 + $0xe9] sm:$0xff]
        %v8361 = vld [vmem:[%s7023 + $0xf1] sm:$0xff]
        %v8362 = vld [vmem:[%s7023 + $0x109] sm:$0xff]
        %v8363 = vld [vmem:[%s7023 + $0x111] sm:$0xff]
        %v8364 = vld [vmem:[%s7023 + $0x129] sm:$0xff]
        %v8365 = vld [vmem:[%s7023 + $0x131] sm:$0xff]
        %v8366 = vld [vmem:[%s7023 + $0x149] sm:$0xff]
        %v8367 = vld [vmem:[%s7023 + $0x151] sm:$0xff]
        %v8368 = vld [vmem:[%s7023 + $0x169] sm:$0xff]
        %v8369 = vld [vmem:[%s7023 + $0x171] sm:$0xff]
        %v8370 = vld [vmem:[%s7023 + $0x189] sm:$0xff]
        %v8371 = vld [vmem:[%s7023 + $0x191] sm:$0xff]
        %v8372 = vld [vmem:[%s7023 + $0x1a9] sm:$0xff]
        %v8373 = vld [vmem:[%s7023 + $0x1b1] sm:$0xff]
        %v8374 = vld [vmem:[%s7023 + $0x1c9] sm:$0xff]
        %v8375 = vld [vmem:[%s7023 + $0x1d1] sm:$0xff]
        %v8376 = vld [vmem:[%s7023 + $0x1e9] sm:$0xff]
        %v8377 = vld [vmem:[%s7023 + $0x1f1] sm:$0xff]
        %v8378 = vpack.c.bf16 %v8347, %v8346
        %v8379 = vpack.c.bf16 %v8349, %v8348
        %v8380 = vpack.c.bf16 %v8351, %v8350
        %v8381 = vpack.c.bf16 %v8353, %v8352
        %v8382 = vpack.c.bf16 %v8355, %v8354
        %v8383 = vpack.c.bf16 %v8357, %v8356
        %v8384 = vpack.c.bf16 %v8359, %v8358
        %v8385 = vpack.c.bf16 %v8361, %v8360
        %v8386 = vpack.c.bf16 %v8363, %v8362
        %v8387 = vpack.c.bf16 %v8365, %v8364
        %v8388 = vpack.c.bf16 %v8367, %v8366
        %v8389 = vpack.c.bf16 %v8369, %v8368
        %v8390 = vpack.c.bf16 %v8371, %v8370
        %v8391 = vpack.c.bf16 %v8373, %v8372
        %v8392 = vpack.c.bf16 %v8375, %v8374
        %v8393 = vpack.c.bf16 %v8377, %v8376
        %s8394 = scalar_lea.vmem [#allocation7], 320
        %v8395 = vld [vmem:[%s8394] sm:$0xf]
        %v8396 = vld [vmem:[%s8394 + $0x4] sm:$0xf]
        %v8397 = vld [vmem:[%s8394 + $0x8] sm:$0xf]
        %v8398 = vld [vmem:[%s8394 + $0xc] sm:$0xf]
        %v8399 = vld [vmem:[%s8394 + $0x10] sm:$0xf]
        %v8400 = vld [vmem:[%s8394 + $0x14] sm:$0xf]
        %v8401 = vld [vmem:[%s8394 + $0x18] sm:$0xf]
        %v8402 = vld [vmem:[%s8394 + $0x1c] sm:$0xf]
        %v8403 = vld [vmem:[%s8394 + $0x20] sm:$0xf]
        %v8404 = vld [vmem:[%s8394 + $0x24] sm:$0xf]
        %v8405 = vld [vmem:[%s8394 + $0x28] sm:$0xf]
        %v8406 = vld [vmem:[%s8394 + $0x2c] sm:$0xf]
        %v8407 = vld [vmem:[%s8394 + $0x30] sm:$0xf]
        %v8408 = vld [vmem:[%s8394 + $0x34] sm:$0xf]
        %v8409 = vld [vmem:[%s8394 + $0x38] sm:$0xf]
        %v8410 = vld [vmem:[%s8394 + $0x3c] sm:$0xf]
        %v8427 = vunpack.c.l.b16 %v8395
        %v8428 = vunpack.c.l.b16 %v8396
        %v8429 = vunpack.c.l.b16 %v8397
        %v8430 = vunpack.c.l.b16 %v8398
        %v8431 = vunpack.c.l.b16 %v8399
        %v8432 = vunpack.c.l.b16 %v8400
        %v8433 = vunpack.c.l.b16 %v8401
        %v8434 = vunpack.c.l.b16 %v8402
        %v8435 = vunpack.c.l.b16 %v8403
        %v8436 = vunpack.c.l.b16 %v8404
        %v8437 = vunpack.c.l.b16 %v8405
        %v8438 = vunpack.c.l.b16 %v8406
        %v8439 = vunpack.c.l.b16 %v8407
        %v8440 = vunpack.c.l.b16 %v8408
        %v8441 = vunpack.c.l.b16 %v8409
        %v8442 = vunpack.c.l.b16 %v8410
        %v8443 = vpack.c.b16 %v8428, %v8427
        %v8444 = vpack.c.b16 %v8430, %v8429
        %v8445 = vpack.c.b16 %v8432, %v8431
        %v8446 = vpack.c.b16 %v8434, %v8433
        %v8447 = vpack.c.b16 %v8436, %v8435
        %v8448 = vpack.c.b16 %v8438, %v8437
        %v8449 = vpack.c.b16 %v8440, %v8439
        %v8450 = vpack.c.b16 %v8442, %v8441
        %8459 = vmatpush.bf16.msra.mxu0 %v8450
        %8460 = vmatpush.bf16.msra.mxu0 %v8449
        %8461 = vmatpush.bf16.msra.mxu0 %v8448
        %8462 = vmatpush.bf16.msra.mxu0 %v8447
        %8463 = vmatpush.bf16.msra.mxu0 %v8446
        %8464 = vmatpush.bf16.msra.mxu0 %v8445
        %8465 = vmatpush.bf16.msra.mxu0 %v8444
        %8466 = vmatpush.bf16.msra.mxu0 %v8443
        %8467 = vmatmul.bf16.gmra.mxu0 %v8378
        %v8468 = vpop.f32.mrf.mxu0
        %v8469 = vadd.f32 0.0, %v8468
        %v8470 = vpop.f32.mrf.mxu0
        %v8471 = vadd.f32 0.0, %v8470
        %8472 = vmatmul.bf16.gmra.mxu0 %v8379
        %v8473 = vpop.f32.mrf.mxu0
        %v8474 = vadd.f32 0.0, %v8473
        %v8475 = vpop.f32.mrf.mxu0
        %v8476 = vadd.f32 0.0, %v8475
        %8477 = vmatmul.bf16.gmra.mxu0 %v8380
        %v8478 = vpop.f32.mrf.mxu0
        %v8479 = vadd.f32 0.0, %v8478
        %v8480 = vpop.f32.mrf.mxu0
        %v8481 = vadd.f32 0.0, %v8480
        %8482 = vmatmul.bf16.gmra.mxu0 %v8381
        %v8483 = vpop.f32.mrf.mxu0
        %v8484 = vadd.f32 0.0, %v8483
        %v8485 = vpop.f32.mrf.mxu0
        %v8486 = vadd.f32 0.0, %v8485
        %8487 = vmatmul.bf16.gmra.mxu0 %v8382
        %v8488 = vpop.f32.mrf.mxu0
        %v8489 = vadd.f32 0.0, %v8488
        %v8490 = vpop.f32.mrf.mxu0
        %v8491 = vadd.f32 0.0, %v8490
        %8492 = vmatmul.bf16.gmra.mxu0 %v8383
        %v8493 = vpop.f32.mrf.mxu0
        %v8494 = vadd.f32 0.0, %v8493
        %v8495 = vpop.f32.mrf.mxu0
        %v8496 = vadd.f32 0.0, %v8495
        %8497 = vmatmul.bf16.gmra.mxu0 %v8384
        %v8498 = vpop.f32.mrf.mxu0
        %v8499 = vadd.f32 0.0, %v8498
        %v8500 = vpop.f32.mrf.mxu0
        %v8501 = vadd.f32 0.0, %v8500
        %8502 = vmatmul.bf16.gmra.mxu0 %v8385
        %v8503 = vpop.f32.mrf.mxu0
        %v8504 = vadd.f32 0.0, %v8503
        %v8505 = vpop.f32.mrf.mxu0
        %v8506 = vadd.f32 0.0, %v8505
        %8507 = vmatmul.bf16.gmra.mxu0 %v8386
        %v8508 = vpop.f32.mrf.mxu0
        %v8509 = vadd.f32 0.0, %v8508
        %v8510 = vpop.f32.mrf.mxu0
        %v8511 = vadd.f32 0.0, %v8510
        %8512 = vmatmul.bf16.gmra.mxu0 %v8387
        %v8513 = vpop.f32.mrf.mxu0
        %v8514 = vadd.f32 0.0, %v8513
        %v8515 = vpop.f32.mrf.mxu0
        %v8516 = vadd.f32 0.0, %v8515
        %8517 = vmatmul.bf16.gmra.mxu0 %v8388
        %v8518 = vpop.f32.mrf.mxu0
        %v8519 = vadd.f32 0.0, %v8518
        %v8520 = vpop.f32.mrf.mxu0
        %v8521 = vadd.f32 0.0, %v8520
        %8522 = vmatmul.bf16.gmra.mxu0 %v8389
        %v8523 = vpop.f32.mrf.mxu0
        %v8524 = vadd.f32 0.0, %v8523
        %v8525 = vpop.f32.mrf.mxu0
        %v8526 = vadd.f32 0.0, %v8525
        %8527 = vmatmul.bf16.gmra.mxu0 %v8390
        %v8528 = vpop.f32.mrf.mxu0
        %v8529 = vadd.f32 0.0, %v8528
        %v8530 = vpop.f32.mrf.mxu0
        %v8531 = vadd.f32 0.0, %v8530
        %8532 = vmatmul.bf16.gmra.mxu0 %v8391
        %v8533 = vpop.f32.mrf.mxu0
        %v8534 = vadd.f32 0.0, %v8533
        %v8535 = vpop.f32.mrf.mxu0
        %v8536 = vadd.f32 0.0, %v8535
        %8537 = vmatmul.bf16.gmra.mxu0 %v8392
        %v8538 = vpop.f32.mrf.mxu0
        %v8539 = vadd.f32 0.0, %v8538
        %v8540 = vpop.f32.mrf.mxu0
        %v8541 = vadd.f32 0.0, %v8540
        %8542 = vmatmul.bf16.gmra.mxu0 %v8393
        %v8543 = vpop.f32.mrf.mxu0
        %v8544 = vadd.f32 0.0, %v8543
        %v8545 = vpop.f32.mrf.mxu0
        %v8546 = vadd.f32 0.0, %v8545
        %8547 = vdwg.mxu0
        %v8548 = vadd.f32 %v8314, %v8469
        %v8549 = vadd.f32 %v8315, %v8471
        %v8550 = vadd.f32 %v8316, %v8474
        %v8551 = vadd.f32 %v8317, %v8476
        %v8552 = vadd.f32 %v8318, %v8479
        %v8553 = vadd.f32 %v8319, %v8481
        %v8554 = vadd.f32 %v8320, %v8484
        %v8555 = vadd.f32 %v8321, %v8486
        %v8556 = vadd.f32 %v8322, %v8489
        %v8557 = vadd.f32 %v8323, %v8491
        %v8558 = vadd.f32 %v8324, %v8494
        %v8559 = vadd.f32 %v8325, %v8496
        %v8560 = vadd.f32 %v8326, %v8499
        %v8561 = vadd.f32 %v8327, %v8501
        %v8562 = vadd.f32 %v8328, %v8504
        %v8563 = vadd.f32 %v8329, %v8506
        %v8564 = vadd.f32 %v8330, %v8509
        %v8565 = vadd.f32 %v8331, %v8511
        %v8566 = vadd.f32 %v8332, %v8514
        %v8567 = vadd.f32 %v8333, %v8516
        %v8568 = vadd.f32 %v8334, %v8519
        %v8569 = vadd.f32 %v8335, %v8521
        %v8570 = vadd.f32 %v8336, %v8524
        %v8571 = vadd.f32 %v8337, %v8526
        %v8572 = vadd.f32 %v8338, %v8529
        %v8573 = vadd.f32 %v8339, %v8531
        %v8574 = vadd.f32 %v8340, %v8534
        %v8575 = vadd.f32 %v8341, %v8536
        %v8576 = vadd.f32 %v8342, %v8539
        %v8577 = vadd.f32 %v8343, %v8541
        %v8578 = vadd.f32 %v8344, %v8544
        %v8579 = vadd.f32 %v8345, %v8546
        %s8580 = scalar_lea.vmem [#allocation3], 64
        %v8581 = vld [vmem:[%s8580 + $0x7] sm:$0xff]
        %v8582 = vld [vmem:[%s8580 + $0xf] sm:$0xff]
        %v8583 = vld [vmem:[%s8580 + $0x27] sm:$0xff]
        %v8584 = vld [vmem:[%s8580 + $0x2f] sm:$0xff]
        %v8585 = vld [vmem:[%s8580 + $0x47] sm:$0xff]
        %v8586 = vld [vmem:[%s8580 + $0x4f] sm:$0xff]
        %v8587 = vld [vmem:[%s8580 + $0x67] sm:$0xff]
        %v8588 = vld [vmem:[%s8580 + $0x6f] sm:$0xff]
        %v8589 = vld [vmem:[%s8580 + $0x87] sm:$0xff]
        %v8590 = vld [vmem:[%s8580 + $0x8f] sm:$0xff]
        %v8591 = vld [vmem:[%s8580 + $0xa7] sm:$0xff]
        %v8592 = vld [vmem:[%s8580 + $0xaf] sm:$0xff]
        %v8593 = vld [vmem:[%s8580 + $0xc7] sm:$0xff]
        %v8594 = vld [vmem:[%s8580 + $0xcf] sm:$0xff]
        %v8595 = vld [vmem:[%s8580 + $0xe7] sm:$0xff]
        %v8596 = vld [vmem:[%s8580 + $0xef] sm:$0xff]
        %v8597 = vld [vmem:[%s8580 + $0x107] sm:$0xff]
        %v8598 = vld [vmem:[%s8580 + $0x10f] sm:$0xff]
        %v8599 = vld [vmem:[%s8580 + $0x127] sm:$0xff]
        %v8600 = vld [vmem:[%s8580 + $0x12f] sm:$0xff]
        %v8601 = vld [vmem:[%s8580 + $0x147] sm:$0xff]
        %v8602 = vld [vmem:[%s8580 + $0x14f] sm:$0xff]
        %v8603 = vld [vmem:[%s8580 + $0x167] sm:$0xff]
        %v8604 = vld [vmem:[%s8580 + $0x16f] sm:$0xff]
        %v8605 = vld [vmem:[%s8580 + $0x187] sm:$0xff]
        %v8606 = vld [vmem:[%s8580 + $0x18f] sm:$0xff]
        %v8607 = vld [vmem:[%s8580 + $0x1a7] sm:$0xff]
        %v8608 = vld [vmem:[%s8580 + $0x1af] sm:$0xff]
        %v8609 = vld [vmem:[%s8580 + $0x1c7] sm:$0xff]
        %v8610 = vld [vmem:[%s8580 + $0x1cf] sm:$0xff]
        %v8611 = vld [vmem:[%s8580 + $0x1e7] sm:$0xff]
        %v8612 = vld [vmem:[%s8580 + $0x1ef] sm:$0xff]
        %v8613 = vpack.c.bf16 %v8582, %v8581
        %v8614 = vpack.c.bf16 %v8584, %v8583
        %v8615 = vpack.c.bf16 %v8586, %v8585
        %v8616 = vpack.c.bf16 %v8588, %v8587
        %v8617 = vpack.c.bf16 %v8590, %v8589
        %v8618 = vpack.c.bf16 %v8592, %v8591
        %v8619 = vpack.c.bf16 %v8594, %v8593
        %v8620 = vpack.c.bf16 %v8596, %v8595
        %v8621 = vpack.c.bf16 %v8598, %v8597
        %v8622 = vpack.c.bf16 %v8600, %v8599
        %v8623 = vpack.c.bf16 %v8602, %v8601
        %v8624 = vpack.c.bf16 %v8604, %v8603
        %v8625 = vpack.c.bf16 %v8606, %v8605
        %v8626 = vpack.c.bf16 %v8608, %v8607
        %v8627 = vpack.c.bf16 %v8610, %v8609
        %v8628 = vpack.c.bf16 %v8612, %v8611
        %s8629 = scalar_lea.vmem [#allocation7], 384
        %v8630 = vld [vmem:[%s8629] sm:$0xf]
        %v8631 = vld [vmem:[%s8629 + $0x4] sm:$0xf]
        %v8632 = vld [vmem:[%s8629 + $0x8] sm:$0xf]
        %v8633 = vld [vmem:[%s8629 + $0xc] sm:$0xf]
        %v8634 = vld [vmem:[%s8629 + $0x10] sm:$0xf]
        %v8635 = vld [vmem:[%s8629 + $0x14] sm:$0xf]
        %v8636 = vld [vmem:[%s8629 + $0x18] sm:$0xf]
        %v8637 = vld [vmem:[%s8629 + $0x1c] sm:$0xf]
        %v8638 = vld [vmem:[%s8629 + $0x20] sm:$0xf]
        %v8639 = vld [vmem:[%s8629 + $0x24] sm:$0xf]
        %v8640 = vld [vmem:[%s8629 + $0x28] sm:$0xf]
        %v8641 = vld [vmem:[%s8629 + $0x2c] sm:$0xf]
        %v8642 = vld [vmem:[%s8629 + $0x30] sm:$0xf]
        %v8643 = vld [vmem:[%s8629 + $0x34] sm:$0xf]
        %v8644 = vld [vmem:[%s8629 + $0x38] sm:$0xf]
        %v8645 = vld [vmem:[%s8629 + $0x3c] sm:$0xf]
        %v8662 = vunpack.c.l.b16 %v8630
        %v8663 = vunpack.c.l.b16 %v8631
        %v8664 = vunpack.c.l.b16 %v8632
        %v8665 = vunpack.c.l.b16 %v8633
        %v8666 = vunpack.c.l.b16 %v8634
        %v8667 = vunpack.c.l.b16 %v8635
        %v8668 = vunpack.c.l.b16 %v8636
        %v8669 = vunpack.c.l.b16 %v8637
        %v8670 = vunpack.c.l.b16 %v8638
        %v8671 = vunpack.c.l.b16 %v8639
        %v8672 = vunpack.c.l.b16 %v8640
        %v8673 = vunpack.c.l.b16 %v8641
        %v8674 = vunpack.c.l.b16 %v8642
        %v8675 = vunpack.c.l.b16 %v8643
        %v8676 = vunpack.c.l.b16 %v8644
        %v8677 = vunpack.c.l.b16 %v8645
        %v8678 = vpack.c.b16 %v8663, %v8662
        %v8679 = vpack.c.b16 %v8665, %v8664
        %v8680 = vpack.c.b16 %v8667, %v8666
        %v8681 = vpack.c.b16 %v8669, %v8668
        %v8682 = vpack.c.b16 %v8671, %v8670
        %v8683 = vpack.c.b16 %v8673, %v8672
        %v8684 = vpack.c.b16 %v8675, %v8674
        %v8685 = vpack.c.b16 %v8677, %v8676
        %8694 = vmatpush.bf16.msra.mxu0 %v8685
        %8695 = vmatpush.bf16.msra.mxu0 %v8684
        %8696 = vmatpush.bf16.msra.mxu0 %v8683
        %8697 = vmatpush.bf16.msra.mxu0 %v8682
        %8698 = vmatpush.bf16.msra.mxu0 %v8681
        %8699 = vmatpush.bf16.msra.mxu0 %v8680
        %8700 = vmatpush.bf16.msra.mxu0 %v8679
        %8701 = vmatpush.bf16.msra.mxu0 %v8678
        %8702 = vmatmul.bf16.gmra.mxu0 %v8613
        %v8703 = vpop.f32.mrf.mxu0
        %v8704 = vadd.f32 0.0, %v8703
        %v8705 = vpop.f32.mrf.mxu0
        %v8706 = vadd.f32 0.0, %v8705
        %8707 = vmatmul.bf16.gmra.mxu0 %v8614
        %v8708 = vpop.f32.mrf.mxu0
        %v8709 = vadd.f32 0.0, %v8708
        %v8710 = vpop.f32.mrf.mxu0
        %v8711 = vadd.f32 0.0, %v8710
        %8712 = vmatmul.bf16.gmra.mxu0 %v8615
        %v8713 = vpop.f32.mrf.mxu0
        %v8714 = vadd.f32 0.0, %v8713
        %v8715 = vpop.f32.mrf.mxu0
        %v8716 = vadd.f32 0.0, %v8715
        %8717 = vmatmul.bf16.gmra.mxu0 %v8616
        %v8718 = vpop.f32.mrf.mxu0
        %v8719 = vadd.f32 0.0, %v8718
        %v8720 = vpop.f32.mrf.mxu0
        %v8721 = vadd.f32 0.0, %v8720
        %8722 = vmatmul.bf16.gmra.mxu0 %v8617
        %v8723 = vpop.f32.mrf.mxu0
        %v8724 = vadd.f32 0.0, %v8723
        %v8725 = vpop.f32.mrf.mxu0
        %v8726 = vadd.f32 0.0, %v8725
        %8727 = vmatmul.bf16.gmra.mxu0 %v8618
        %v8728 = vpop.f32.mrf.mxu0
        %v8729 = vadd.f32 0.0, %v8728
        %v8730 = vpop.f32.mrf.mxu0
        %v8731 = vadd.f32 0.0, %v8730
        %8732 = vmatmul.bf16.gmra.mxu0 %v8619
        %v8733 = vpop.f32.mrf.mxu0
        %v8734 = vadd.f32 0.0, %v8733
        %v8735 = vpop.f32.mrf.mxu0
        %v8736 = vadd.f32 0.0, %v8735
        %8737 = vmatmul.bf16.gmra.mxu0 %v8620
        %v8738 = vpop.f32.mrf.mxu0
        %v8739 = vadd.f32 0.0, %v8738
        %v8740 = vpop.f32.mrf.mxu0
        %v8741 = vadd.f32 0.0, %v8740
        %8742 = vmatmul.bf16.gmra.mxu0 %v8621
        %v8743 = vpop.f32.mrf.mxu0
        %v8744 = vadd.f32 0.0, %v8743
        %v8745 = vpop.f32.mrf.mxu0
        %v8746 = vadd.f32 0.0, %v8745
        %8747 = vmatmul.bf16.gmra.mxu0 %v8622
        %v8748 = vpop.f32.mrf.mxu0
        %v8749 = vadd.f32 0.0, %v8748
        %v8750 = vpop.f32.mrf.mxu0
        %v8751 = vadd.f32 0.0, %v8750
        %8752 = vmatmul.bf16.gmra.mxu0 %v8623
        %v8753 = vpop.f32.mrf.mxu0
        %v8754 = vadd.f32 0.0, %v8753
        %v8755 = vpop.f32.mrf.mxu0
        %v8756 = vadd.f32 0.0, %v8755
        %8757 = vmatmul.bf16.gmra.mxu0 %v8624
        %v8758 = vpop.f32.mrf.mxu0
        %v8759 = vadd.f32 0.0, %v8758
        %v8760 = vpop.f32.mrf.mxu0
        %v8761 = vadd.f32 0.0, %v8760
        %8762 = vmatmul.bf16.gmra.mxu0 %v8625
        %v8763 = vpop.f32.mrf.mxu0
        %v8764 = vadd.f32 0.0, %v8763
        %v8765 = vpop.f32.mrf.mxu0
        %v8766 = vadd.f32 0.0, %v8765
        %8767 = vmatmul.bf16.gmra.mxu0 %v8626
        %v8768 = vpop.f32.mrf.mxu0
        %v8769 = vadd.f32 0.0, %v8768
        %v8770 = vpop.f32.mrf.mxu0
        %v8771 = vadd.f32 0.0, %v8770
        %8772 = vmatmul.bf16.gmra.mxu0 %v8627
        %v8773 = vpop.f32.mrf.mxu0
        %v8774 = vadd.f32 0.0, %v8773
        %v8775 = vpop.f32.mrf.mxu0
        %v8776 = vadd.f32 0.0, %v8775
        %8777 = vmatmul.bf16.gmra.mxu0 %v8628
        %v8778 = vpop.f32.mrf.mxu0
        %v8779 = vadd.f32 0.0, %v8778
        %v8780 = vpop.f32.mrf.mxu0
        %v8781 = vadd.f32 0.0, %v8780
        %8782 = vdwg.mxu0
        %v8783 = vadd.f32 %v8548, %v8704
        %v8784 = vadd.f32 %v8549, %v8706
        %v8785 = vadd.f32 %v8550, %v8709
        %v8786 = vadd.f32 %v8551, %v8711
        %v8787 = vadd.f32 %v8552, %v8714
        %v8788 = vadd.f32 %v8553, %v8716
        %v8789 = vadd.f32 %v8554, %v8719
        %v8790 = vadd.f32 %v8555, %v8721
        %v8791 = vadd.f32 %v8556, %v8724
        %v8792 = vadd.f32 %v8557, %v8726
        %v8793 = vadd.f32 %v8558, %v8729
        %v8794 = vadd.f32 %v8559, %v8731
        %v8795 = vadd.f32 %v8560, %v8734
        %v8796 = vadd.f32 %v8561, %v8736
        %v8797 = vadd.f32 %v8562, %v8739
        %v8798 = vadd.f32 %v8563, %v8741
        %v8799 = vadd.f32 %v8564, %v8744
        %v8800 = vadd.f32 %v8565, %v8746
        %v8801 = vadd.f32 %v8566, %v8749
        %v8802 = vadd.f32 %v8567, %v8751
        %v8803 = vadd.f32 %v8568, %v8754
        %v8804 = vadd.f32 %v8569, %v8756
        %v8805 = vadd.f32 %v8570, %v8759
        %v8806 = vadd.f32 %v8571, %v8761
        %v8807 = vadd.f32 %v8572, %v8764
        %v8808 = vadd.f32 %v8573, %v8766
        %v8809 = vadd.f32 %v8574, %v8769
        %v8810 = vadd.f32 %v8575, %v8771
        %v8811 = vadd.f32 %v8576, %v8774
        %v8812 = vadd.f32 %v8577, %v8776
        %v8813 = vadd.f32 %v8578, %v8779
        %v8814 = vadd.f32 %v8579, %v8781
        %v8815 = vld [vmem:[%s8580 + $0x8] sm:$0xff]
        %v8816 = vld [vmem:[%s8580 + $0x10] sm:$0xff]
        %v8817 = vld [vmem:[%s8580 + $0x28] sm:$0xff]
        %v8818 = vld [vmem:[%s8580 + $0x30] sm:$0xff]
        %v8819 = vld [vmem:[%s8580 + $0x48] sm:$0xff]
        %v8820 = vld [vmem:[%s8580 + $0x50] sm:$0xff]
        %v8821 = vld [vmem:[%s8580 + $0x68] sm:$0xff]
        %v8822 = vld [vmem:[%s8580 + $0x70] sm:$0xff]
        %v8823 = vld [vmem:[%s8580 + $0x88] sm:$0xff]
        %v8824 = vld [vmem:[%s8580 + $0x90] sm:$0xff]
        %v8825 = vld [vmem:[%s8580 + $0xa8] sm:$0xff]
        %v8826 = vld [vmem:[%s8580 + $0xb0] sm:$0xff]
        %v8827 = vld [vmem:[%s8580 + $0xc8] sm:$0xff]
        %v8828 = vld [vmem:[%s8580 + $0xd0] sm:$0xff]
        %v8829 = vld [vmem:[%s8580 + $0xe8] sm:$0xff]
        %v8830 = vld [vmem:[%s8580 + $0xf0] sm:$0xff]
        %v8831 = vld [vmem:[%s8580 + $0x108] sm:$0xff]
        %v8832 = vld [vmem:[%s8580 + $0x110] sm:$0xff]
        %v8833 = vld [vmem:[%s8580 + $0x128] sm:$0xff]
        %v8834 = vld [vmem:[%s8580 + $0x130] sm:$0xff]
        %v8835 = vld [vmem:[%s8580 + $0x148] sm:$0xff]
        %v8836 = vld [vmem:[%s8580 + $0x150] sm:$0xff]
        %v8837 = vld [vmem:[%s8580 + $0x168] sm:$0xff]
        %v8838 = vld [vmem:[%s8580 + $0x170] sm:$0xff]
        %v8839 = vld [vmem:[%s8580 + $0x188] sm:$0xff]
        %v8840 = vld [vmem:[%s8580 + $0x190] sm:$0xff]
        %v8841 = vld [vmem:[%s8580 + $0x1a8] sm:$0xff]
        %v8842 = vld [vmem:[%s8580 + $0x1b0] sm:$0xff]
        %v8843 = vld [vmem:[%s8580 + $0x1c8] sm:$0xff]
        %v8844 = vld [vmem:[%s8580 + $0x1d0] sm:$0xff]
        %v8845 = vld [vmem:[%s8580 + $0x1e8] sm:$0xff]
        %v8846 = vld [vmem:[%s8580 + $0x1f0] sm:$0xff]
        %v8847 = vpack.c.bf16 %v8816, %v8815
        %v8848 = vpack.c.bf16 %v8818, %v8817
        %v8849 = vpack.c.bf16 %v8820, %v8819
        %v8850 = vpack.c.bf16 %v8822, %v8821
        %v8851 = vpack.c.bf16 %v8824, %v8823
        %v8852 = vpack.c.bf16 %v8826, %v8825
        %v8853 = vpack.c.bf16 %v8828, %v8827
        %v8854 = vpack.c.bf16 %v8830, %v8829
        %v8855 = vpack.c.bf16 %v8832, %v8831
        %v8856 = vpack.c.bf16 %v8834, %v8833
        %v8857 = vpack.c.bf16 %v8836, %v8835
        %v8858 = vpack.c.bf16 %v8838, %v8837
        %v8859 = vpack.c.bf16 %v8840, %v8839
        %v8860 = vpack.c.bf16 %v8842, %v8841
        %v8861 = vpack.c.bf16 %v8844, %v8843
        %v8862 = vpack.c.bf16 %v8846, %v8845
        %s8863 = scalar_lea.vmem [#allocation7], 448
        %v8864 = vld [vmem:[%s8863] sm:$0xf]
        %v8865 = vld [vmem:[%s8863 + $0x4] sm:$0xf]
        %v8866 = vld [vmem:[%s8863 + $0x8] sm:$0xf]
        %v8867 = vld [vmem:[%s8863 + $0xc] sm:$0xf]
        %v8868 = vld [vmem:[%s8863 + $0x10] sm:$0xf]
        %v8869 = vld [vmem:[%s8863 + $0x14] sm:$0xf]
        %v8870 = vld [vmem:[%s8863 + $0x18] sm:$0xf]
        %v8871 = vld [vmem:[%s8863 + $0x1c] sm:$0xf]
        %v8872 = vld [vmem:[%s8863 + $0x20] sm:$0xf]
        %v8873 = vld [vmem:[%s8863 + $0x24] sm:$0xf]
        %v8874 = vld [vmem:[%s8863 + $0x28] sm:$0xf]
        %v8875 = vld [vmem:[%s8863 + $0x2c] sm:$0xf]
        %v8876 = vld [vmem:[%s8863 + $0x30] sm:$0xf]
        %v8877 = vld [vmem:[%s8863 + $0x34] sm:$0xf]
        %v8878 = vld [vmem:[%s8863 + $0x38] sm:$0xf]
        %v8879 = vld [vmem:[%s8863 + $0x3c] sm:$0xf]
        %v8896 = vunpack.c.l.b16 %v8864
        %v8897 = vunpack.c.l.b16 %v8865
        %v8898 = vunpack.c.l.b16 %v8866
        %v8899 = vunpack.c.l.b16 %v8867
        %v8900 = vunpack.c.l.b16 %v8868
        %v8901 = vunpack.c.l.b16 %v8869
        %v8902 = vunpack.c.l.b16 %v8870
        %v8903 = vunpack.c.l.b16 %v8871
        %v8904 = vunpack.c.l.b16 %v8872
        %v8905 = vunpack.c.l.b16 %v8873
        %v8906 = vunpack.c.l.b16 %v8874
        %v8907 = vunpack.c.l.b16 %v8875
        %v8908 = vunpack.c.l.b16 %v8876
        %v8909 = vunpack.c.l.b16 %v8877
        %v8910 = vunpack.c.l.b16 %v8878
        %v8911 = vunpack.c.l.b16 %v8879
        %v8912 = vpack.c.b16 %v8897, %v8896
        %v8913 = vpack.c.b16 %v8899, %v8898
        %v8914 = vpack.c.b16 %v8901, %v8900
        %v8915 = vpack.c.b16 %v8903, %v8902
        %v8916 = vpack.c.b16 %v8905, %v8904
        %v8917 = vpack.c.b16 %v8907, %v8906
        %v8918 = vpack.c.b16 %v8909, %v8908
        %v8919 = vpack.c.b16 %v8911, %v8910
        %8928 = vmatpush.bf16.msra.mxu0 %v8919
        %8929 = vmatpush.bf16.msra.mxu0 %v8918
        %8930 = vmatpush.bf16.msra.mxu0 %v8917
        %8931 = vmatpush.bf16.msra.mxu0 %v8916
        %8932 = vmatpush.bf16.msra.mxu0 %v8915
        %8933 = vmatpush.bf16.msra.mxu0 %v8914
        %8934 = vmatpush.bf16.msra.mxu0 %v8913
        %8935 = vmatpush.bf16.msra.mxu0 %v8912
        %8936 = vmatmul.bf16.gmra.mxu0 %v8847
        %v8937 = vpop.f32.mrf.mxu0
        %v8938 = vadd.f32 0.0, %v8937
        %v8939 = vpop.f32.mrf.mxu0
        %v8940 = vadd.f32 0.0, %v8939
        %8941 = vmatmul.bf16.gmra.mxu0 %v8848
        %v8942 = vpop.f32.mrf.mxu0
        %v8943 = vadd.f32 0.0, %v8942
        %v8944 = vpop.f32.mrf.mxu0
        %v8945 = vadd.f32 0.0, %v8944
        %8946 = vmatmul.bf16.gmra.mxu0 %v8849
        %v8947 = vpop.f32.mrf.mxu0
        %v8948 = vadd.f32 0.0, %v8947
        %v8949 = vpop.f32.mrf.mxu0
        %v8950 = vadd.f32 0.0, %v8949
        %8951 = vmatmul.bf16.gmra.mxu0 %v8850
        %v8952 = vpop.f32.mrf.mxu0
        %v8953 = vadd.f32 0.0, %v8952
        %v8954 = vpop.f32.mrf.mxu0
        %v8955 = vadd.f32 0.0, %v8954
        %8956 = vmatmul.bf16.gmra.mxu0 %v8851
        %v8957 = vpop.f32.mrf.mxu0
        %v8958 = vadd.f32 0.0, %v8957
        %v8959 = vpop.f32.mrf.mxu0
        %v8960 = vadd.f32 0.0, %v8959
        %8961 = vmatmul.bf16.gmra.mxu0 %v8852
        %v8962 = vpop.f32.mrf.mxu0
        %v8963 = vadd.f32 0.0, %v8962
        %v8964 = vpop.f32.mrf.mxu0
        %v8965 = vadd.f32 0.0, %v8964
        %8966 = vmatmul.bf16.gmra.mxu0 %v8853
        %v8967 = vpop.f32.mrf.mxu0
        %v8968 = vadd.f32 0.0, %v8967
        %v8969 = vpop.f32.mrf.mxu0
        %v8970 = vadd.f32 0.0, %v8969
        %8971 = vmatmul.bf16.gmra.mxu0 %v8854
        %v8972 = vpop.f32.mrf.mxu0
        %v8973 = vadd.f32 0.0, %v8972
        %v8974 = vpop.f32.mrf.mxu0
        %v8975 = vadd.f32 0.0, %v8974
        %8976 = vmatmul.bf16.gmra.mxu0 %v8855
        %v8977 = vpop.f32.mrf.mxu0
        %v8978 = vadd.f32 0.0, %v8977
        %v8979 = vpop.f32.mrf.mxu0
        %v8980 = vadd.f32 0.0, %v8979
        %8981 = vmatmul.bf16.gmra.mxu0 %v8856
        %v8982 = vpop.f32.mrf.mxu0
        %v8983 = vadd.f32 0.0, %v8982
        %v8984 = vpop.f32.mrf.mxu0
        %v8985 = vadd.f32 0.0, %v8984
        %8986 = vmatmul.bf16.gmra.mxu0 %v8857
        %v8987 = vpop.f32.mrf.mxu0
        %v8988 = vadd.f32 0.0, %v8987
        %v8989 = vpop.f32.mrf.mxu0
        %v8990 = vadd.f32 0.0, %v8989
        %8991 = vmatmul.bf16.gmra.mxu0 %v8858
        %v8992 = vpop.f32.mrf.mxu0
        %v8993 = vadd.f32 0.0, %v8992
        %v8994 = vpop.f32.mrf.mxu0
        %v8995 = vadd.f32 0.0, %v8994
        %8996 = vmatmul.bf16.gmra.mxu0 %v8859
        %v8997 = vpop.f32.mrf.mxu0
        %v8998 = vadd.f32 0.0, %v8997
        %v8999 = vpop.f32.mrf.mxu0
        %v9000 = vadd.f32 0.0, %v8999
        %9001 = vmatmul.bf16.gmra.mxu0 %v8860
        %v9002 = vpop.f32.mrf.mxu0
        %v9003 = vadd.f32 0.0, %v9002
        %v9004 = vpop.f32.mrf.mxu0
        %v9005 = vadd.f32 0.0, %v9004
        %9006 = vmatmul.bf16.gmra.mxu0 %v8861
        %v9007 = vpop.f32.mrf.mxu0
        %v9008 = vadd.f32 0.0, %v9007
        %v9009 = vpop.f32.mrf.mxu0
        %v9010 = vadd.f32 0.0, %v9009
        %9011 = vmatmul.bf16.gmra.mxu0 %v8862
        %v9012 = vpop.f32.mrf.mxu0
        %v9013 = vadd.f32 0.0, %v9012
        %v9014 = vpop.f32.mrf.mxu0
        %v9015 = vadd.f32 0.0, %v9014
        %9016 = vdwg.mxu0
        %v9017 = vadd.f32 %v8783, %v8938
        %v9018 = vadd.f32 %v8784, %v8940
        %v9019 = vadd.f32 %v8785, %v8943
        %v9020 = vadd.f32 %v8786, %v8945
        %v9021 = vadd.f32 %v8787, %v8948
        %v9022 = vadd.f32 %v8788, %v8950
        %v9023 = vadd.f32 %v8789, %v8953
        %v9024 = vadd.f32 %v8790, %v8955
        %v9025 = vadd.f32 %v8791, %v8958
        %v9026 = vadd.f32 %v8792, %v8960
        %v9027 = vadd.f32 %v8793, %v8963
        %v9028 = vadd.f32 %v8794, %v8965
        %v9029 = vadd.f32 %v8795, %v8968
        %v9030 = vadd.f32 %v8796, %v8970
        %v9031 = vadd.f32 %v8797, %v8973
        %v9032 = vadd.f32 %v8798, %v8975
        %v9033 = vadd.f32 %v8799, %v8978
        %v9034 = vadd.f32 %v8800, %v8980
        %v9035 = vadd.f32 %v8801, %v8983
        %v9036 = vadd.f32 %v8802, %v8985
        %v9037 = vadd.f32 %v8803, %v8988
        %v9038 = vadd.f32 %v8804, %v8990
        %v9039 = vadd.f32 %v8805, %v8993
        %v9040 = vadd.f32 %v8806, %v8995
        %v9041 = vadd.f32 %v8807, %v8998
        %v9042 = vadd.f32 %v8808, %v9000
        %v9043 = vadd.f32 %v8809, %v9003
        %v9044 = vadd.f32 %v8810, %v9005
        %v9045 = vadd.f32 %v8811, %v9008
        %v9046 = vadd.f32 %v8812, %v9010
        %v9047 = vadd.f32 %v8813, %v9013
        %v9048 = vadd.f32 %v8814, %v9015
        %v9049 = vld [vmem:[%s8580 + $0x9] sm:$0xff]
        %v9050 = vld [vmem:[%s8580 + $0x11] sm:$0xff]
        %v9051 = vld [vmem:[%s8580 + $0x29] sm:$0xff]
        %v9052 = vld [vmem:[%s8580 + $0x31] sm:$0xff]
        %v9053 = vld [vmem:[%s8580 + $0x49] sm:$0xff]
        %v9054 = vld [vmem:[%s8580 + $0x51] sm:$0xff]
        %v9055 = vld [vmem:[%s8580 + $0x69] sm:$0xff]
        %v9056 = vld [vmem:[%s8580 + $0x71] sm:$0xff]
        %v9057 = vld [vmem:[%s8580 + $0x89] sm:$0xff]
        %v9058 = vld [vmem:[%s8580 + $0x91] sm:$0xff]
        %v9059 = vld [vmem:[%s8580 + $0xa9] sm:$0xff]
        %v9060 = vld [vmem:[%s8580 + $0xb1] sm:$0xff]
        %v9061 = vld [vmem:[%s8580 + $0xc9] sm:$0xff]
        %v9062 = vld [vmem:[%s8580 + $0xd1] sm:$0xff]
        %v9063 = vld [vmem:[%s8580 + $0xe9] sm:$0xff]
        %v9064 = vld [vmem:[%s8580 + $0xf1] sm:$0xff]
        %v9065 = vld [vmem:[%s8580 + $0x109] sm:$0xff]
        %v9066 = vld [vmem:[%s8580 + $0x111] sm:$0xff]
        %v9067 = vld [vmem:[%s8580 + $0x129] sm:$0xff]
        %v9068 = vld [vmem:[%s8580 + $0x131] sm:$0xff]
        %v9069 = vld [vmem:[%s8580 + $0x149] sm:$0xff]
        %v9070 = vld [vmem:[%s8580 + $0x151] sm:$0xff]
        %v9071 = vld [vmem:[%s8580 + $0x169] sm:$0xff]
        %v9072 = vld [vmem:[%s8580 + $0x171] sm:$0xff]
        %v9073 = vld [vmem:[%s8580 + $0x189] sm:$0xff]
        %v9074 = vld [vmem:[%s8580 + $0x191] sm:$0xff]
        %v9075 = vld [vmem:[%s8580 + $0x1a9] sm:$0xff]
        %v9076 = vld [vmem:[%s8580 + $0x1b1] sm:$0xff]
        %v9077 = vld [vmem:[%s8580 + $0x1c9] sm:$0xff]
        %v9078 = vld [vmem:[%s8580 + $0x1d1] sm:$0xff]
        %v9079 = vld [vmem:[%s8580 + $0x1e9] sm:$0xff]
        %v9080 = vld [vmem:[%s8580 + $0x1f1] sm:$0xff]
        %v9081 = vpack.c.bf16 %v9050, %v9049
        %v9082 = vpack.c.bf16 %v9052, %v9051
        %v9083 = vpack.c.bf16 %v9054, %v9053
        %v9084 = vpack.c.bf16 %v9056, %v9055
        %v9085 = vpack.c.bf16 %v9058, %v9057
        %v9086 = vpack.c.bf16 %v9060, %v9059
        %v9087 = vpack.c.bf16 %v9062, %v9061
        %v9088 = vpack.c.bf16 %v9064, %v9063
        %v9089 = vpack.c.bf16 %v9066, %v9065
        %v9090 = vpack.c.bf16 %v9068, %v9067
        %v9091 = vpack.c.bf16 %v9070, %v9069
        %v9092 = vpack.c.bf16 %v9072, %v9071
        %v9093 = vpack.c.bf16 %v9074, %v9073
        %v9094 = vpack.c.bf16 %v9076, %v9075
        %v9095 = vpack.c.bf16 %v9078, %v9077
        %v9096 = vpack.c.bf16 %v9080, %v9079
        %s9097 = scalar_lea.vmem [#allocation7], 512
        %v9098 = vld [vmem:[%s9097] sm:$0xf]
        %v9099 = vld [vmem:[%s9097 + $0x4] sm:$0xf]
        %v9100 = vld [vmem:[%s9097 + $0x8] sm:$0xf]
        %v9101 = vld [vmem:[%s9097 + $0xc] sm:$0xf]
        %v9102 = vld [vmem:[%s9097 + $0x10] sm:$0xf]
        %v9103 = vld [vmem:[%s9097 + $0x14] sm:$0xf]
        %v9104 = vld [vmem:[%s9097 + $0x18] sm:$0xf]
        %v9105 = vld [vmem:[%s9097 + $0x1c] sm:$0xf]
        %v9106 = vld [vmem:[%s9097 + $0x20] sm:$0xf]
        %v9107 = vld [vmem:[%s9097 + $0x24] sm:$0xf]
        %v9108 = vld [vmem:[%s9097 + $0x28] sm:$0xf]
        %v9109 = vld [vmem:[%s9097 + $0x2c] sm:$0xf]
        %v9110 = vld [vmem:[%s9097 + $0x30] sm:$0xf]
        %v9111 = vld [vmem:[%s9097 + $0x34] sm:$0xf]
        %v9112 = vld [vmem:[%s9097 + $0x38] sm:$0xf]
        %v9113 = vld [vmem:[%s9097 + $0x3c] sm:$0xf]
        %v9130 = vunpack.c.l.b16 %v9098
        %v9131 = vunpack.c.l.b16 %v9099
        %v9132 = vunpack.c.l.b16 %v9100
        %v9133 = vunpack.c.l.b16 %v9101
        %v9134 = vunpack.c.l.b16 %v9102
        %v9135 = vunpack.c.l.b16 %v9103
        %v9136 = vunpack.c.l.b16 %v9104
        %v9137 = vunpack.c.l.b16 %v9105
        %v9138 = vunpack.c.l.b16 %v9106
        %v9139 = vunpack.c.l.b16 %v9107
        %v9140 = vunpack.c.l.b16 %v9108
        %v9141 = vunpack.c.l.b16 %v9109
        %v9142 = vunpack.c.l.b16 %v9110
        %v9143 = vunpack.c.l.b16 %v9111
        %v9144 = vunpack.c.l.b16 %v9112
        %v9145 = vunpack.c.l.b16 %v9113
        %v9146 = vpack.c.b16 %v9131, %v9130
        %v9147 = vpack.c.b16 %v9133, %v9132
        %v9148 = vpack.c.b16 %v9135, %v9134
        %v9149 = vpack.c.b16 %v9137, %v9136
        %v9150 = vpack.c.b16 %v9139, %v9138
        %v9151 = vpack.c.b16 %v9141, %v9140
        %v9152 = vpack.c.b16 %v9143, %v9142
        %v9153 = vpack.c.b16 %v9145, %v9144
        %9162 = vmatpush.bf16.msra.mxu0 %v9153
        %9163 = vmatpush.bf16.msra.mxu0 %v9152
        %9164 = vmatpush.bf16.msra.mxu0 %v9151
        %9165 = vmatpush.bf16.msra.mxu0 %v9150
        %9166 = vmatpush.bf16.msra.mxu0 %v9149
        %9167 = vmatpush.bf16.msra.mxu0 %v9148
        %9168 = vmatpush.bf16.msra.mxu0 %v9147
        %9169 = vmatpush.bf16.msra.mxu0 %v9146
        %9170 = vmatmul.bf16.gmra.mxu0 %v9081
        %v9171 = vpop.f32.mrf.mxu0
        %v9172 = vadd.f32 0.0, %v9171
        %v9173 = vpop.f32.mrf.mxu0
        %v9174 = vadd.f32 0.0, %v9173
        %9175 = vmatmul.bf16.gmra.mxu0 %v9082
        %v9176 = vpop.f32.mrf.mxu0
        %v9177 = vadd.f32 0.0, %v9176
        %v9178 = vpop.f32.mrf.mxu0
        %v9179 = vadd.f32 0.0, %v9178
        %9180 = vmatmul.bf16.gmra.mxu0 %v9083
        %v9181 = vpop.f32.mrf.mxu0
        %v9182 = vadd.f32 0.0, %v9181
        %v9183 = vpop.f32.mrf.mxu0
        %v9184 = vadd.f32 0.0, %v9183
        %9185 = vmatmul.bf16.gmra.mxu0 %v9084
        %v9186 = vpop.f32.mrf.mxu0
        %v9187 = vadd.f32 0.0, %v9186
        %v9188 = vpop.f32.mrf.mxu0
        %v9189 = vadd.f32 0.0, %v9188
        %9190 = vmatmul.bf16.gmra.mxu0 %v9085
        %v9191 = vpop.f32.mrf.mxu0
        %v9192 = vadd.f32 0.0, %v9191
        %v9193 = vpop.f32.mrf.mxu0
        %v9194 = vadd.f32 0.0, %v9193
        %9195 = vmatmul.bf16.gmra.mxu0 %v9086
        %v9196 = vpop.f32.mrf.mxu0
        %v9197 = vadd.f32 0.0, %v9196
        %v9198 = vpop.f32.mrf.mxu0
        %v9199 = vadd.f32 0.0, %v9198
        %9200 = vmatmul.bf16.gmra.mxu0 %v9087
        %v9201 = vpop.f32.mrf.mxu0
        %v9202 = vadd.f32 0.0, %v9201
        %v9203 = vpop.f32.mrf.mxu0
        %v9204 = vadd.f32 0.0, %v9203
        %9205 = vmatmul.bf16.gmra.mxu0 %v9088
        %v9206 = vpop.f32.mrf.mxu0
        %v9207 = vadd.f32 0.0, %v9206
        %v9208 = vpop.f32.mrf.mxu0
        %v9209 = vadd.f32 0.0, %v9208
        %9210 = vmatmul.bf16.gmra.mxu0 %v9089
        %v9211 = vpop.f32.mrf.mxu0
        %v9212 = vadd.f32 0.0, %v9211
        %v9213 = vpop.f32.mrf.mxu0
        %v9214 = vadd.f32 0.0, %v9213
        %9215 = vmatmul.bf16.gmra.mxu0 %v9090
        %v9216 = vpop.f32.mrf.mxu0
        %v9217 = vadd.f32 0.0, %v9216
        %v9218 = vpop.f32.mrf.mxu0
        %v9219 = vadd.f32 0.0, %v9218
        %9220 = vmatmul.bf16.gmra.mxu0 %v9091
        %v9221 = vpop.f32.mrf.mxu0
        %v9222 = vadd.f32 0.0, %v9221
        %v9223 = vpop.f32.mrf.mxu0
        %v9224 = vadd.f32 0.0, %v9223
        %9225 = vmatmul.bf16.gmra.mxu0 %v9092
        %v9226 = vpop.f32.mrf.mxu0
        %v9227 = vadd.f32 0.0, %v9226
        %v9228 = vpop.f32.mrf.mxu0
        %v9229 = vadd.f32 0.0, %v9228
        %9230 = vmatmul.bf16.gmra.mxu0 %v9093
        %v9231 = vpop.f32.mrf.mxu0
        %v9232 = vadd.f32 0.0, %v9231
        %v9233 = vpop.f32.mrf.mxu0
        %v9234 = vadd.f32 0.0, %v9233
        %9235 = vmatmul.bf16.gmra.mxu0 %v9094
        %v9236 = vpop.f32.mrf.mxu0
        %v9237 = vadd.f32 0.0, %v9236
        %v9238 = vpop.f32.mrf.mxu0
        %v9239 = vadd.f32 0.0, %v9238
        %9240 = vmatmul.bf16.gmra.mxu0 %v9095
        %v9241 = vpop.f32.mrf.mxu0
        %v9242 = vadd.f32 0.0, %v9241
        %v9243 = vpop.f32.mrf.mxu0
        %v9244 = vadd.f32 0.0, %v9243
        %9245 = vmatmul.bf16.gmra.mxu0 %v9096
        %v9246 = vpop.f32.mrf.mxu0
        %v9247 = vadd.f32 0.0, %v9246
        %v9248 = vpop.f32.mrf.mxu0
        %v9249 = vadd.f32 0.0, %v9248
        %9250 = vdwg.mxu0
        %v9251 = vadd.f32 %v9017, %v9172
        %v9252 = vadd.f32 %v9018, %v9174
        %v9253 = vadd.f32 %v9019, %v9177
        %v9254 = vadd.f32 %v9020, %v9179
        %v9255 = vadd.f32 %v9021, %v9182
        %v9256 = vadd.f32 %v9022, %v9184
        %v9257 = vadd.f32 %v9023, %v9187
        %v9258 = vadd.f32 %v9024, %v9189
        %v9259 = vadd.f32 %v9025, %v9192
        %v9260 = vadd.f32 %v9026, %v9194
        %v9261 = vadd.f32 %v9027, %v9197
        %v9262 = vadd.f32 %v9028, %v9199
        %v9263 = vadd.f32 %v9029, %v9202
        %v9264 = vadd.f32 %v9030, %v9204
        %v9265 = vadd.f32 %v9031, %v9207
        %v9266 = vadd.f32 %v9032, %v9209
        %v9267 = vadd.f32 %v9033, %v9212
        %v9268 = vadd.f32 %v9034, %v9214
        %v9269 = vadd.f32 %v9035, %v9217
        %v9270 = vadd.f32 %v9036, %v9219
        %v9271 = vadd.f32 %v9037, %v9222
        %v9272 = vadd.f32 %v9038, %v9224
        %v9273 = vadd.f32 %v9039, %v9227
        %v9274 = vadd.f32 %v9040, %v9229
        %v9275 = vadd.f32 %v9041, %v9232
        %v9276 = vadd.f32 %v9042, %v9234
        %v9277 = vadd.f32 %v9043, %v9237
        %v9278 = vadd.f32 %v9044, %v9239
        %v9279 = vadd.f32 %v9045, %v9242
        %v9280 = vadd.f32 %v9046, %v9244
        %v9281 = vadd.f32 %v9047, %v9247
        %v9282 = vadd.f32 %v9048, %v9249
        %v9283 = vld [vmem:[%s9] sm:$0x1]
        %v9285 = vperm.slane %v9283, 0
        %v9287 = vmul.f32 %v9251, %v9285
        %v9288 = vmul.f32 %v9252, %v9285
        %v9289 = vmul.f32 %v9253, %v9285
        %v9290 = vmul.f32 %v9254, %v9285
        %v9291 = vmul.f32 %v9255, %v9285
        %v9292 = vmul.f32 %v9256, %v9285
        %v9293 = vmul.f32 %v9257, %v9285
        %v9294 = vmul.f32 %v9258, %v9285
        %v9295 = vmul.f32 %v9259, %v9285
        %v9296 = vmul.f32 %v9260, %v9285
        %v9297 = vmul.f32 %v9261, %v9285
        %v9298 = vmul.f32 %v9262, %v9285
        %v9299 = vmul.f32 %v9263, %v9285
        %v9300 = vmul.f32 %v9264, %v9285
        %v9301 = vmul.f32 %v9265, %v9285
        %v9302 = vmul.f32 %v9266, %v9285
        %v9303 = vmul.f32 %v9267, %v9285
        %v9304 = vmul.f32 %v9268, %v9285
        %v9305 = vmul.f32 %v9269, %v9285
        %v9306 = vmul.f32 %v9270, %v9285
        %v9307 = vmul.f32 %v9271, %v9285
        %v9308 = vmul.f32 %v9272, %v9285
        %v9309 = vmul.f32 %v9273, %v9285
        %v9310 = vmul.f32 %v9274, %v9285
        %v9311 = vmul.f32 %v9275, %v9285
        %v9312 = vmul.f32 %v9276, %v9285
        %v9313 = vmul.f32 %v9277, %v9285
        %v9314 = vmul.f32 %v9278, %v9285
        %v9315 = vmul.f32 %v9279, %v9285
        %v9316 = vmul.f32 %v9280, %v9285
        %v9317 = vmul.f32 %v9281, %v9285
        %v9318 = vmul.f32 %v9282, %v9285
        %v9319 = vld [vmem:[%s10] sm:$0x1]
        %v9321 = vperm.slane %v9319, 0
        %v9323 = vadd.f32 %v9287, %v9321
        %v9324 = vadd.f32 %v9288, %v9321
        %v9325 = vadd.f32 %v9289, %v9321
        %v9326 = vadd.f32 %v9290, %v9321
        %v9327 = vadd.f32 %v9291, %v9321
        %v9328 = vadd.f32 %v9292, %v9321
        %v9329 = vadd.f32 %v9293, %v9321
        %v9330 = vadd.f32 %v9294, %v9321
        %v9331 = vadd.f32 %v9295, %v9321
        %v9332 = vadd.f32 %v9296, %v9321
        %v9333 = vadd.f32 %v9297, %v9321
        %v9334 = vadd.f32 %v9298, %v9321
        %v9335 = vadd.f32 %v9299, %v9321
        %v9336 = vadd.f32 %v9300, %v9321
        %v9337 = vadd.f32 %v9301, %v9321
        %v9338 = vadd.f32 %v9302, %v9321
        %v9339 = vadd.f32 %v9303, %v9321
        %v9340 = vadd.f32 %v9304, %v9321
        %v9341 = vadd.f32 %v9305, %v9321
        %v9342 = vadd.f32 %v9306, %v9321
        %v9343 = vadd.f32 %v9307, %v9321
        %v9344 = vadd.f32 %v9308, %v9321
        %v9345 = vadd.f32 %v9309, %v9321
        %v9346 = vadd.f32 %v9310, %v9321
        %v9347 = vadd.f32 %v9311, %v9321
        %v9348 = vadd.f32 %v9312, %v9321
        %v9349 = vadd.f32 %v9313, %v9321
        %v9350 = vadd.f32 %v9314, %v9321
        %v9351 = vadd.f32 %v9315, %v9321
        %v9352 = vadd.f32 %v9316, %v9321
        %v9353 = vadd.f32 %v9317, %v9321
        %v9354 = vadd.f32 %v9318, %v9321
        %v9355 = vmax.f32 %v9323, 0.0
        %v9356 = vmax.f32 %v9324, 0.0
        %v9357 = vmax.f32 %v9325, 0.0
        %v9358 = vmax.f32 %v9326, 0.0
        %v9359 = vmax.f32 %v9327, 0.0
        %v9360 = vmax.f32 %v9328, 0.0
        %v9361 = vmax.f32 %v9329, 0.0
        %v9362 = vmax.f32 %v9330, 0.0
        %v9363 = vmax.f32 %v9331, 0.0
        %v9364 = vmax.f32 %v9332, 0.0
        %v9365 = vmax.f32 %v9333, 0.0
        %v9366 = vmax.f32 %v9334, 0.0
        %v9367 = vmax.f32 %v9335, 0.0
        %v9368 = vmax.f32 %v9336, 0.0
        %v9369 = vmax.f32 %v9337, 0.0
        %v9370 = vmax.f32 %v9338, 0.0
        %v9371 = vmax.f32 %v9339, 0.0
        %v9372 = vmax.f32 %v9340, 0.0
        %v9373 = vmax.f32 %v9341, 0.0
        %v9374 = vmax.f32 %v9342, 0.0
        %v9375 = vmax.f32 %v9343, 0.0
        %v9376 = vmax.f32 %v9344, 0.0
        %v9377 = vmax.f32 %v9345, 0.0
        %v9378 = vmax.f32 %v9346, 0.0
        %v9379 = vmax.f32 %v9347, 0.0
        %v9380 = vmax.f32 %v9348, 0.0
        %v9381 = vmax.f32 %v9349, 0.0
        %v9382 = vmax.f32 %v9350, 0.0
        %v9383 = vmax.f32 %v9351, 0.0
        %v9384 = vmax.f32 %v9352, 0.0
        %v9385 = vmax.f32 %v9353, 0.0
        %v9386 = vmax.f32 %v9354, 0.0
        %v9387 = vpack.c.bf16 %v9355, %v9355
        %v9388 = vpack.c.bf16 %v9356, %v9356
        %v9389 = vpack.c.bf16 %v9357, %v9357
        %v9390 = vpack.c.bf16 %v9358, %v9358
        %v9391 = vpack.c.bf16 %v9359, %v9359
        %v9392 = vpack.c.bf16 %v9360, %v9360
        %v9393 = vpack.c.bf16 %v9361, %v9361
        %v9394 = vpack.c.bf16 %v9362, %v9362
        %v9395 = vpack.c.bf16 %v9363, %v9363
        %v9396 = vpack.c.bf16 %v9364, %v9364
        %v9397 = vpack.c.bf16 %v9365, %v9365
        %v9398 = vpack.c.bf16 %v9366, %v9366
        %v9399 = vpack.c.bf16 %v9367, %v9367
        %v9400 = vpack.c.bf16 %v9368, %v9368
        %v9401 = vpack.c.bf16 %v9369, %v9369
        %v9402 = vpack.c.bf16 %v9370, %v9370
        %v9403 = vpack.c.bf16 %v9371, %v9371
        %v9404 = vpack.c.bf16 %v9372, %v9372
        %v9405 = vpack.c.bf16 %v9373, %v9373
        %v9406 = vpack.c.bf16 %v9374, %v9374
        %v9407 = vpack.c.bf16 %v9375, %v9375
        %v9408 = vpack.c.bf16 %v9376, %v9376
        %v9409 = vpack.c.bf16 %v9377, %v9377
        %v9410 = vpack.c.bf16 %v9378, %v9378
        %v9411 = vpack.c.bf16 %v9379, %v9379
        %v9412 = vpack.c.bf16 %v9380, %v9380
        %v9413 = vpack.c.bf16 %v9381, %v9381
        %v9414 = vpack.c.bf16 %v9382, %v9382
        %v9415 = vpack.c.bf16 %v9383, %v9383
        %v9416 = vpack.c.bf16 %v9384, %v9384
        %v9417 = vpack.c.bf16 %v9385, %v9385
        %v9418 = vpack.c.bf16 %v9386, %v9386
        %9419 = vst [vmem:[%s413] sm:$0xf] %v9387
        %9420 = vst [vmem:[%s413 + $0x4] sm:$0xf] %v9388
        %9421 = vst [vmem:[%s413 + $0x8] sm:$0xf] %v9389
        %9422 = vst [vmem:[%s413 + $0xc] sm:$0xf] %v9390
        %9423 = vst [vmem:[%s413 + $0x10] sm:$0xf] %v9391
        %9424 = vst [vmem:[%s413 + $0x14] sm:$0xf] %v9392
        %9425 = vst [vmem:[%s413 + $0x18] sm:$0xf] %v9393
        %9426 = vst [vmem:[%s413 + $0x1c] sm:$0xf] %v9394
        %9427 = vst [vmem:[%s413 + $0x20] sm:$0xf] %v9395
        %9428 = vst [vmem:[%s413 + $0x24] sm:$0xf] %v9396
        %9429 = vst [vmem:[%s413 + $0x28] sm:$0xf] %v9397
        %9430 = vst [vmem:[%s413 + $0x2c] sm:$0xf] %v9398
        %9431 = vst [vmem:[%s413 + $0x30] sm:$0xf] %v9399
        %9432 = vst [vmem:[%s413 + $0x34] sm:$0xf] %v9400
        %9433 = vst [vmem:[%s413 + $0x38] sm:$0xf] %v9401
        %9434 = vst [vmem:[%s413 + $0x3c] sm:$0xf] %v9402
        %9435 = vst [vmem:[%s413 + $0x40] sm:$0xf] %v9403
        %9436 = vst [vmem:[%s413 + $0x44] sm:$0xf] %v9404
        %9437 = vst [vmem:[%s413 + $0x48] sm:$0xf] %v9405
        %9438 = vst [vmem:[%s413 + $0x4c] sm:$0xf] %v9406
        %9439 = vst [vmem:[%s413 + $0x50] sm:$0xf] %v9407
        %9440 = vst [vmem:[%s413 + $0x54] sm:$0xf] %v9408
        %9441 = vst [vmem:[%s413 + $0x58] sm:$0xf] %v9409
        %9442 = vst [vmem:[%s413 + $0x5c] sm:$0xf] %v9410
        %9443 = vst [vmem:[%s413 + $0x60] sm:$0xf] %v9411
        %9444 = vst [vmem:[%s413 + $0x64] sm:$0xf] %v9412
        %9445 = vst [vmem:[%s413 + $0x68] sm:$0xf] %v9413
        %9446 = vst [vmem:[%s413 + $0x6c] sm:$0xf] %v9414
        %9447 = vst [vmem:[%s413 + $0x70] sm:$0xf] %v9415
        %9448 = vst [vmem:[%s413 + $0x74] sm:$0xf] %v9416
        %9449 = vst [vmem:[%s413 + $0x78] sm:$0xf] %v9417
        %9450 = vst [vmem:[%s413 + $0x7c] sm:$0xf] %v9418
        %s9451 = sand.u32 %s271, 1
        %s9452 = scalar_lea.sflag [#allocation6], %s9451
        %s9453 = sand.u32 %s271, 1
        %s9454 = smul.addr %s9453, 128
        %s9455 = scalar_lea.vmem [#allocation9], %s9454
        // Predicated region
        $region73: #{tpu_custom_call.1} parent=63 // pred_check
          %p9456 = pneg %p281
        $region74: #{tpu_custom_call.1} parent=63 // pred_check_branch
          %9458 = sbr.rel (%p9456) target = $region76
        $region75: #{tpu_custom_call.1} parent=63 // pred_region
          %9460 = vsyncadd %s9452, 0
          %s9461 = smul.addr %s27, 32
          %s9462 = smul.addr %s9461, 4
          %s9463 = scalar_lea.hbm %s11, %s9462
          %s9464 = sshll.u32 %s9455, 4
          %s9465 = int_to_ptr.vmem [resolvable:$true] %s9464
          %s9466 = sshll.u32 %s9463, 4
          %s9467 = int_to_ptr.hbm [resolvable:$true] %s9466
          %9472 = dma.vmem_to_hbm [thread:$0]  %s9465, 2048, %s9467, %s9452, 64, 64, 4
        $region76: #{tpu_custom_call.1} parent=63 // pred_fallthru
          _
      $region64: #{tpu_custom_call.1} parent=5 // pred_fallthru
        _
      %p9473 = scmp.le.s32.totalorder 2, %s22
      // Predicated region
      $region77: #{tpu_custom_call.1} parent=5 // pred_check
        %p9474 = pneg %p9473
      $region78: #{tpu_custom_call.1} parent=5 // pred_check_branch
        %9476 = sbr.rel (%p9474) target = $region80
      $region79: #{tpu_custom_call.1} parent=5 // pred_region
        %s9477 = ssub.s32 %s22, 2
        // Predicated region
        $region81: #{tpu_custom_call.1} parent=79 // pred_check
          %p9478 = pneg %p287
        $region82: #{tpu_custom_call.1} parent=79 // pred_check_branch
          %9480 = sbr.rel (%p9478) target = $region84
        $region83: #{tpu_custom_call.1} parent=79 // pred_region
          %s9481 = sand.u32 %s272, 1
          %s9482 = scalar_lea.sflag [#allocation6], %s9481
          %s9483 = sand.u32 %s272, 1
          %s9484 = smul.addr %s9483, 128
          %s9485 = scalar_lea.vmem [#allocation9], %s9484
          %9487 = dma.done %s9482, 2048
        $region84: #{tpu_custom_call.1} parent=79 // pred_fallthru
          _
      $region80: #{tpu_custom_call.1} parent=5 // pred_fallthru
        _
    $region6: #{tpu_custom_call.1} parent=1 // loop_footer
      %s26 = sadd.s32 1, %s22
    $region7: #{tpu_custom_call.1} parent=1 // loop_footer_branch
      %21 = sbr.rel target = $region3
    $region8: #{tpu_custom_call.1} parent=1 // loop_exit
      _
    %9488 = vsyncpa [#allocation5], 1
    %s9489 = scalar_lea.sflag [#allocation5], 1
    %9490 = vsyncpa %s9489, 1
    %9491 = vsyncpa [#allocation8], 1
    %9492 = vsyncpa [#allocation6], 1
    %s9493 = scalar_lea.sflag [#allocation6], 1
    %9494 = vsyncpa %s9493, 1

</llo_original>
